<compile_context>
chip_gen: v5e
topology: v5e:2x2
jax: 0.10.0
libtpu: 0.0.40
codegen_flags: <defaults>
</compile_context>

<pallas_src>
import functools
import math

import jax
import jax.numpy as jnp
from jax.experimental import pallas as pl
from jax.experimental.pallas import tpu as pltpu

EPS = 1e-5
VMEM_LIMIT = 32 * 1024 * 1024


def _round_up(x, m):
    return -(-x // m) * m


# ----------------------------------------------------------------------------
# Pallas kernels
# ----------------------------------------------------------------------------
def _mm_kernel(*refs, n_add, act):
    """(TM, K) @ (K, Cout) + bias [+ adds] [+ relu/relu6] in one pass."""
    a_ref, b_ref, bias_ref = refs[0], refs[1], refs[2]
    add_refs = refs[3:3 + n_add]
    o_ref = refs[3 + n_add]
    y = jnp.dot(a_ref[...].astype(jnp.bfloat16), b_ref[...],
                preferred_element_type=jnp.float32)
    y = y + bias_ref[...]
    for r in add_refs:
        y = y + r[...]
    if act == "relu6":
        y = jnp.clip(y, 0.0, 6.0)
    elif act == "relu":
        y = jnp.maximum(y, 0.0)
    o_ref[...] = y


def matmul_fused(a, b, bias, adds=(), act=None):
    """a: (M, K) f32, b: (K, Cout) bf16 (BN-folded), bias: (Cout,) f32.

    adds: optional sequence of (M, Cout) f32 arrays added in the epilogue
    (MobileV2 residual, hourglass skip connections)."""
    M, K = a.shape
    Cout = b.shape[1]
    TM = min(512, _round_up(max(M, 8), 8))
    grid = (pl.cdiv(M, TM),)
    in_specs = [
        pl.BlockSpec((TM, K), lambda i: (i, 0)),        # row tile of activations
        pl.BlockSpec((K, Cout), lambda i: (0, 0)),      # resident weight matrix
        pl.BlockSpec((1, Cout), lambda i: (0, 0)),      # resident bias
    ] + [pl.BlockSpec((TM, Cout), lambda i: (i, 0)) for _ in adds]
    out = pl.pallas_call(
        functools.partial(_mm_kernel, n_add=len(adds), act=act),
        out_shape=jax.ShapeDtypeStruct((M, Cout), jnp.float32),
        grid_spec=pltpu.PrefetchScalarGridSpec(
            num_scalar_prefetch=0,
            grid=grid,
            in_specs=in_specs,
            out_specs=pl.BlockSpec((TM, Cout), lambda i: (i, 0))),
        compiler_params=pltpu.CompilerParams(
            dimension_semantics=("parallel",),
            vmem_limit_bytes=VMEM_LIMIT),
    )(a, b, bias.reshape(1, Cout), *adds)
    return out


def _dw_s1_kernel(x_ref, w_ref, b_ref, o_ref, *, ho, wo):
    """Depthwise 3x3, stride 1, pad 1; taps are in-kernel shifted slices. Fused BN+ReLU6."""
    acc = x_ref[0, 0:ho, 0:wo, :] * w_ref[0]
    for k in range(1, 9):
        dy, dx = k // 3, k % 3
        acc = acc + x_ref[0, dy:dy + ho, dx:dx + wo, :] * w_ref[k]
    o_ref[0] = jnp.clip(acc + b_ref[0], 0.0, 6.0)


def _dw_s2_kernel(x_ref, w_ref, b_ref, o_ref, *, ho, wo):
    """Depthwise 3x3, stride 2, pad 1 on parity-split planes (unit-stride slices only)."""
    acc = None
    for k in range(9):
        dy, dx = k // 3, k % 3
        pi = (dy % 2) * 2 + (dx % 2)
        oy, ox = dy // 2, dx // 2
        tap = x_ref[pi, oy:oy + ho, ox:ox + wo, :] * w_ref[k]
        acc = tap if acc is None else acc + tap
    o_ref[0] = jnp.clip(acc + b_ref[0], 0.0, 6.0)


def depthwise_bn_relu6(x, w9c, bias, stride):
    """x: (N, H, W, C) NHWC. w9c: (9, C) BN-folded per-tap weights. bias: (C,)."""
    assert stride in (1, 2)
    N, H, W, C = x.shape
    TC = min(C, 128)
    nC = pl.cdiv(C, TC)
    if stride == 1:
        Ho, Wo = H, W
        xin = jnp.pad(x, ((0, 0), (1, 1), (1, 1), (0, 0)))
        kern = functools.partial(_dw_s1_kernel, ho=Ho, wo=Wo)
        x_spec = pl.BlockSpec((1, H + 2, W + 2, TC), lambda n, c: (n, 0, 0, c))
    else:
        Ho = (H - 1) // 2 + 1
        Wo = (W - 1) // 2 + 1
        pad_b = 2 * Ho + 2 - (H + 1)
        pad_r = 2 * Wo + 2 - (W + 1)
        xp = jnp.pad(x, ((0, 0), (1, pad_b), (1, pad_r), (0, 0)))
        planes = jnp.stack([xp[:, r::2, c::2, :] for r in (0, 1) for c in (0, 1)],
                           axis=1)                      # (N, 4, Ho+1, Wo+1, C)
        xin = planes.reshape(N * 4, Ho + 1, Wo + 1, C)
        kern = functools.partial(_dw_s2_kernel, ho=Ho, wo=Wo)
        x_spec = pl.BlockSpec((4, Ho + 1, Wo + 1, TC), lambda n, c: (n, 0, 0, c))
    out = pl.pallas_call(
        kern,
        out_shape=jax.ShapeDtypeStruct((N, Ho, Wo, C), jnp.float32),
        grid_spec=pltpu.PrefetchScalarGridSpec(
            num_scalar_prefetch=0,
            grid=(N, nC),
            in_specs=[x_spec,
                      pl.BlockSpec((9, TC), lambda n, c: (0, c)),
                      pl.BlockSpec((1, TC), lambda n, c: (0, c))],
            out_specs=pl.BlockSpec((1, Ho, Wo, TC), lambda n, c: (n, 0, 0, c))),
        compiler_params=pltpu.CompilerParams(
            dimension_semantics=("parallel", "parallel"),
            vmem_limit_bytes=VMEM_LIMIT),
    )(xin, w9c, bias.reshape(1, C))
    return out


# ----------------------------------------------------------------------------
# Module building blocks
# ----------------------------------------------------------------------------
def apply_mv2(p, x, extra_add=None, final_act=None):
    """MobileV2_Residual (expanse_ratio=2) in NHWC. Residual / extra skip-add / final
    activation are fused into the last pointwise-matmul epilogue."""
    N, H, W, Cin = x.shape
    hid = p["B1"].shape[1]
    oup = p["B2"].shape[1]
    h = matmul_fused(x.reshape(N * H * W, Cin), p["B1"], p["b1"], act="relu6")
    h = h.reshape(N, H, W, hid)
    h = depthwise_bn_relu6(h, p["Wdw"], p["bdw"], p["stride"])
    N, Ho, Wo, _ = h.shape
    adds = []
    if p["use_res"]:
        adds.append(x.reshape(N * Ho * Wo, Cin))
    if extra_add is not None:
        adds.append(extra_add.reshape(N * Ho * Wo, oup))
    y = matmul_fused(h.reshape(N * Ho * Wo, hid), p["B2"], p["b2"],
                     adds=tuple(adds), act=final_act)
    return y.reshape(N, Ho, Wo, oup)


def conv_transpose_bn(x, p):
    """ConvTranspose2d(3, stride=2, pad=1, output_pad=1, bias=False) + BN, via
    output-parity decomposition -> single matmul on 4 shifted activation copies."""
    N, H, W, Cin = x.shape
    Cout = p["W"].shape[1] // 4
    xp = jnp.pad(x, ((0, 0), (0, 1), (0, 1), (0, 0)))
    a_cat = jnp.concatenate(
        [xp[:, :H, :W, :],          # x[m, n]
         xp[:, :H, 1:W + 1, :],     # x[m, n+1]
         xp[:, 1:H + 1, :W, :],     # x[m+1, n]
         xp[:, 1:H + 1, 1:W + 1, :]],  # x[m+1, n+1]
        axis=-1).reshape(N * H * W, 4 * Cin)
    y = matmul_fused(a_cat, p["W"], p["b"])             # (M, 4*Cout): [EE|EO|OE|OO]
    y = y.reshape(N, H, W, 2, 2, Cout).transpose(0, 1, 3, 2, 4, 5)
    return y.reshape(N, 2 * H, 2 * W, Cout)


def hourglass2d_forward(params, x_nchw):
    x = jnp.transpose(x_nchw, (0, 2, 3, 1))             # NHWC
    c1 = apply_mv2(params["conv1"], x)
    c2 = apply_mv2(params["conv2"], c1)
    c3 = apply_mv2(params["conv3"], c2)
    c4 = apply_mv2(params["conv4"], c3)
    t5 = conv_transpose_bn(c4, params["conv5"])
    c5 = apply_mv2(params["redir2"], c2, extra_add=t5, final_act="relu")
    t6 = conv_transpose_bn(c5, params["conv6"])
    c6 = apply_mv2(params["redir1"], x, extra_add=t6, final_act="relu")
    return jnp.transpose(c6, (0, 3, 1, 2))              # back to NCHW


# ----------------------------------------------------------------------------
# Parameter construction (eval-mode BN folded into weights at build time)
# ----------------------------------------------------------------------------
class KeyGen:
    def __init__(self, key):
        self.key = key
        self.i = 0

    def __call__(self):
        self.i += 1
        return jax.random.fold_in(self.key, self.i)


def _uniform(key, shape, fan_in):
    b = 1.0 / math.sqrt(fan_in)
    return jax.random.uniform(key, shape, jnp.float32, -b, b)


def _bn_fold(c):
    # PyTorch init / eval mode: gamma=1, beta=0, running_mean=0, running_var=1.
    gamma = jnp.ones((c,), jnp.float32)
    beta = jnp.zeros((c,), jnp.float32)
    mean = jnp.zeros((c,), jnp.float32)
    var = jnp.ones((c,), jnp.float32)
    s = gamma / jnp.sqrt(var + EPS)
    t = beta - mean * s
    return s, t


def make_mv2(kg, inp, oup, stride, expanse_ratio=2):
    hidden = int(inp * expanse_ratio)
    w_pw1 = _uniform(kg(), (hidden, inp), inp)          # (Cout, Cin) 1x1 conv
    w_dw = _uniform(kg(), (hidden, 3, 3), 9)            # (C, kh, kw) depthwise
    w_pw2 = _uniform(kg(), (oup, hidden), hidden)
    s1, t1 = _bn_fold(hidden)
    s2, t2 = _bn_fold(hidden)
    s3, t3 = _bn_fold(oup)
    return dict(
        stride=stride,
        use_res=(stride == 1 and inp == oup),
        B1=(w_pw1 * s1[:, None]).T.astype(jnp.bfloat16),                 # (inp, hidden)
        b1=t1,
        Wdw=(w_dw * s2[:, None, None]).transpose(1, 2, 0).reshape(9, hidden),
        bdw=t2,
        B2=(w_pw2 * s3[:, None]).T.astype(jnp.bfloat16),                 # (hidden, oup)
        b2=t3,
    )


def make_convT(kg, cin, cout):
    wt = _uniform(kg(), (cin, cout, 3, 3), cin * 9)     # PyTorch layout (Cin, Cout, kh, kw)
    s, t = _bn_fold(cout)
    T = wt * s[None, :, None, None]
    Z = jnp.zeros((cin, cout), jnp.float32)
    tap = lambda kh, kw: T[:, :, kh, kw]
    # rows: shifts [x, x(+w), x(+h), x(+h,+w)]; cols: output parities [EE, EO, OE, OO]
    rows = [
        jnp.concatenate([tap(1, 1), tap(1, 2), tap(2, 1), tap(2, 2)], axis=1),
        jnp.concatenate([Z,         tap(1, 0), Z,         tap(2, 0)], axis=1),
        jnp.concatenate([Z,         Z,         tap(0, 1), tap(0, 2)], axis=1),
        jnp.concatenate([Z,         Z,         Z,         tap(0, 0)], axis=1),
    ]
    return dict(W=jnp.concatenate(rows, axis=0).astype(jnp.bfloat16),    # (4Cin, 4Cout)
                b=jnp.tile(t, 4))


def make_hourglass2d_params(key, c):
    kg = KeyGen(key)
    return dict(
        conv1=make_mv2(kg, c, 2 * c, 2),
        conv2=make_mv2(kg, 2 * c, 2 * c, 1),
        conv3=make_mv2(kg, 2 * c, 4 * c, 2),
        conv4=make_mv2(kg, 4 * c, 4 * c, 1),
        conv5=make_convT(kg, 4 * c, 2 * c),
        conv6=make_convT(kg, 2 * c, c),
        redir1=make_mv2(kg, c, c, 1),
        redir2=make_mv2(kg, 2 * c, 2 * c, 1),
    )


# ----------------------------------------------------------------------------
if __name__ == "__main__":
    in_channels = 16
    N, H, W = 2, 16, 16

    key = jax.random.PRNGKey(0)
    kx, kp = jax.random.split(key)
    x = jax.random.normal(kx, (N, in_channels, H, W), jnp.float32)
    params = make_hourglass2d_params(kp, in_channels)

    fwd = jax.jit(functools.partial(hourglass2d_forward, params))
    y = jax.block_until_ready(fwd(x))

    assert y.shape == (N, in_channels, H, W)
    assert y.dtype == jnp.float32
    assert bool(jnp.isfinite(y).all())
    print("KERNEL_OK")
</pallas_src>

<mosaic_0001>
module attributes {stable_mosaic.version = 11 : i64} {
  func.func @_mm_kernel(%arg0: i32, %arg1: memref<512x16xf32, #tpu.memory_space<vmem>>, %arg2: memref<16x32xbf16, #tpu.memory_space<vmem>>, %arg3: memref<1x32xf32, #tpu.memory_space<vmem>>, %arg4: memref<512x32xf32, #tpu.memory_space<vmem>>) attributes {dimension_semantics = [#tpu.dimension_semantics<parallel>], iteration_bounds = array<i64: 1>, scalar_prefetch = 0 : i64, scratch_operands = 0 : i64, tpu.core_type = #tpu.core_type<tc>, window_params = [{transform_indices = @transform_0, window_bounds = array<i64: 512, 16>}, {pipeline_mode = #tpu.pipeline_mode<synchronous>, transform_indices = @transform_1, window_bounds = array<i64: 16, 32>}, {pipeline_mode = #tpu.pipeline_mode<synchronous>, transform_indices = @transform_2, window_bounds = array<i64: 1, 32>}, {transform_indices = @transform_3, window_bounds = array<i64: 512, 32>}]} {
    %c0 = arith.constant 0 : index
    %c0_0 = arith.constant 0 : index
    %0 = vector.load %arg1[%c0, %c0_0] : memref<512x16xf32, #tpu.memory_space<vmem>>, vector<512x16xf32>
    %1 = arith.truncf %0 : vector<512x16xf32> to vector<512x16xbf16>
    %c0_1 = arith.constant 0 : index
    %c0_2 = arith.constant 0 : index
    %2 = vector.load %arg2[%c0_1, %c0_2] : memref<16x32xbf16, #tpu.memory_space<vmem>>, vector<16x32xbf16>
    %cst = arith.constant dense<0.000000e+00> : vector<512x32xf32>
    %3 = tpu.matmul %1, %2, %cst {dimension_numbers = #tpu.dot_dimension_numbers<[1], [0], [0], [1], [0, 0, 1, 1], [], []>} : vector<512x16xbf16>, vector<16x32xbf16>, vector<512x32xf32> -> vector<512x32xf32>
    %c0_3 = arith.constant 0 : index
    %c0_4 = arith.constant 0 : index
    %4 = vector.load %arg3[%c0_3, %c0_4] : memref<1x32xf32, #tpu.memory_space<vmem>>, vector<1x32xf32>
    %5 = vector.broadcast %4 : vector<1x32xf32> to vector<512x32xf32>
    %6 = arith.addf %3, %5 : vector<512x32xf32>
    %cst_5 = arith.constant 0.000000e+00 : f32
    %cst_6 = arith.constant 6.000000e+00 : f32
    %7 = vector.broadcast %cst_5 : f32 to vector<512x32xf32>
    %8 = arith.maximumf %7, %6 : vector<512x32xf32>
    %9 = vector.broadcast %cst_6 : f32 to vector<512x32xf32>
    %10 = arith.minimumf %9, %8 : vector<512x32xf32>
    %c0_7 = arith.constant 0 : index
    %c0_8 = arith.constant 0 : index
    %11 = vector.load %arg4[%c0_7, %c0_8] : memref<512x32xf32, #tpu.memory_space<vmem>>, vector<512x32xf32>
    tpu.vector_store %arg4[%c0_7, %c0_8], %10 {strides = array<i32>} : memref<512x32xf32, #tpu.memory_space<vmem>>, vector<512x32xf32>,
    return
  }
  func.func @transform_0(%arg0: i32) -> (i32, i32) {
    %c0_i32 = arith.constant 0 : i32
    %c0_i32_0 = arith.constant 0 : i32
    return %arg0, %c0_i32 : i32, i32
  }
  func.func @transform_1(%arg0: i32) -> (i32, i32) {
    %c0_i32 = arith.constant 0 : i32
    %c0_i32_0 = arith.constant 0 : i32
    %c0_i32_1 = arith.constant 0 : i32
    return %c0_i32, %c0_i32_0 : i32, i32
  }
  func.func @transform_2(%arg0: i32) -> (i32, i32) {
    %c0_i32 = arith.constant 0 : i32
    %c0_i32_0 = arith.constant 0 : i32
    %c0_i32_1 = arith.constant 0 : i32
    return %c0_i32, %c0_i32_0 : i32, i32
  }
  func.func @transform_3(%arg0: i32) -> (i32, i32) {
    %c0_i32 = arith.constant 0 : i32
    %c0_i32_0 = arith.constant 0 : i32
    return %arg0, %c0_i32 : i32, i32
  }
}

module attributes {stable_mosaic.version = 11 : i64} {
  func.func @_mm_kernel(%arg0: i32, %arg1: memref<128x32xf32, #tpu.memory_space<vmem>>, %arg2: memref<32x32xbf16, #tpu.memory_space<vmem>>, %arg3: memref<1x32xf32, #tpu.memory_space<vmem>>, %arg4: memref<128x32xf32, #tpu.memory_space<vmem>>) attributes {dimension_semantics = [#tpu.dimension_semantics<parallel>], iteration_bounds = array<i64: 1>, scalar_prefetch = 0 : i64, scratch_operands = 0 : i64, tpu.core_type = #tpu.core_type<tc>, window_params = [{transform_indices = @transform_0, window_bounds = array<i64: 128, 32>}, {pipeline_mode = #tpu.pipeline_mode<synchronous>, transform_indices = @transform_1, window_bounds = array<i64: 32, 32>}, {pipeline_mode = #tpu.pipeline_mode<synchronous>, transform_indices = @transform_2, window_bounds = array<i64: 1, 32>}, {transform_indices = @transform_3, window_bounds = array<i64: 128, 32>}]} {
    %c0 = arith.constant 0 : index
    %c0_0 = arith.constant 0 : index
    %0 = vector.load %arg1[%c0, %c0_0] : memref<128x32xf32, #tpu.memory_space<vmem>>, vector<128x32xf32>
    %1 = arith.truncf %0 : vector<128x32xf32> to vector<128x32xbf16>
    %c0_1 = arith.constant 0 : index
    %c0_2 = arith.constant 0 : index
    %2 = vector.load %arg2[%c0_1, %c0_2] : memref<32x32xbf16, #tpu.memory_space<vmem>>, vector<32x32xbf16>
    %cst = arith.constant dense<0.000000e+00> : vector<128x32xf32>
    %3 = tpu.matmul %1, %2, %cst {dimension_numbers = #tpu.dot_dimension_numbers<[1], [0], [0], [1], [0, 0, 1, 1], [], []>} : vector<128x32xbf16>, vector<32x32xbf16>, vector<128x32xf32> -> vector<128x32xf32>
    %c0_3 = arith.constant 0 : index
    %c0_4 = arith.constant 0 : index
    %4 = vector.load %arg3[%c0_3, %c0_4] : memref<1x32xf32, #tpu.memory_space<vmem>>, vector<1x32xf32>
    %5 = vector.broadcast %4 : vector<1x32xf32> to vector<128x32xf32>
    %6 = arith.addf %3, %5 : vector<128x32xf32>
    %c0_5 = arith.constant 0 : index
    %c0_6 = arith.constant 0 : index
    %7 = vector.load %arg4[%c0_5, %c0_6] : memref<128x32xf32, #tpu.memory_space<vmem>>, vector<128x32xf32>
    tpu.vector_store %arg4[%c0_5, %c0_6], %6 {strides = array<i32>} : memref<128x32xf32, #tpu.memory_space<vmem>>, vector<128x32xf32>,
    return
  }
  func.func @transform_0(%arg0: i32) -> (i32, i32) {
    %c0_i32 = arith.constant 0 : i32
    %c0_i32_0 = arith.constant 0 : i32
    return %arg0, %c0_i32 : i32, i32
  }
  func.func @transform_1(%arg0: i32) -> (i32, i32) {
    %c0_i32 = arith.constant 0 : i32
    %c0_i32_0 = arith.constant 0 : i32
    %c0_i32_1 = arith.constant 0 : i32
    return %c0_i32, %c0_i32_0 : i32, i32
  }
  func.func @transform_2(%arg0: i32) -> (i32, i32) {
    %c0_i32 = arith.constant 0 : i32
    %c0_i32_0 = arith.constant 0 : i32
    %c0_i32_1 = arith.constant 0 : i32
    return %c0_i32, %c0_i32_0 : i32, i32
  }
  func.func @transform_3(%arg0: i32) -> (i32, i32) {
    %c0_i32 = arith.constant 0 : i32
    %c0_i32_0 = arith.constant 0 : i32
    return %arg0, %c0_i32 : i32, i32
  }
}

module attributes {stable_mosaic.version = 11 : i64} {
  func.func @_dw_s2_kernel(%arg0: i32, %arg1: i32, %arg2: memref<4x9x9x32xf32, #tpu.memory_space<vmem>>, %arg3: memref<9x32xf32, #tpu.memory_space<vmem>>, %arg4: memref<1x32xf32, #tpu.memory_space<vmem>>, %arg5: memref<1x8x8x32xf32, #tpu.memory_space<vmem>>) attributes {dimension_semantics = [#tpu.dimension_semantics<parallel>, #tpu.dimension_semantics<parallel>], iteration_bounds = array<i64: 2, 1>, scalar_prefetch = 0 : i64, scratch_operands = 0 : i64, tpu.core_type = #tpu.core_type<tc>, window_params = [{transform_indices = @transform_0, window_bounds = array<i64: 4, 9, 9, 32>}, {transform_indices = @transform_1, window_bounds = array<i64: 9, 32>}, {transform_indices = @transform_2, window_bounds = array<i64: 1, 32>}, {transform_indices = @transform_3, window_bounds = array<i64: 1, 8, 8, 32>}]} {
    %c0 = arith.constant 0 : index
    %c0_0 = arith.constant 0 : index
    %c0_1 = arith.constant 0 : index
    %c0_2 = arith.constant 0 : index
    %0 = vector.load %arg2[%c0, %c0_0, %c0_1, %c0_2] : memref<4x9x9x32xf32, #tpu.memory_space<vmem>>, vector<1x8x8x32xf32>
    %1 = vector.shape_cast %0 : vector<1x8x8x32xf32> to vector<8x8x32xf32>
    %c0_3 = arith.constant 0 : index
    %c0_4 = arith.constant 0 : index
    %2 = vector.load %arg3[%c0_3, %c0_4] : memref<9x32xf32, #tpu.memory_space<vmem>>, vector<1x32xf32>
    %3 = vector.shape_cast %2 : vector<1x32xf32> to vector<32xf32>
    %4 = vector.shape_cast %3 : vector<32xf32> to vector<1x1x32xf32>
    %5 = vector.broadcast %4 : vector<1x1x32xf32> to vector<8x8x32xf32>
    %6 = arith.mulf %1, %5 : vector<8x8x32xf32>
    %c1 = arith.constant 1 : index
    %c0_5 = arith.constant 0 : index
    %c0_6 = arith.constant 0 : index
    %c0_7 = arith.constant 0 : index
    %7 = vector.load %arg2[%c1, %c0_5, %c0_6, %c0_7] : memref<4x9x9x32xf32, #tpu.memory_space<vmem>>, vector<1x8x8x32xf32>
    %8 = vector.shape_cast %7 : vector<1x8x8x32xf32> to vector<8x8x32xf32>
    %c1_8 = arith.constant 1 : index
    %c0_9 = arith.constant 0 : index
    %9 = vector.load %arg3[%c1_8, %c0_9] : memref<9x32xf32, #tpu.memory_space<vmem>>, vector<1x32xf32>
    %10 = vector.shape_cast %9 : vector<1x32xf32> to vector<32xf32>
    %11 = vector.shape_cast %10 : vector<32xf32> to vector<1x1x32xf32>
    %12 = vector.broadcast %11 : vector<1x1x32xf32> to vector<8x8x32xf32>
    %13 = arith.mulf %8, %12 : vector<8x8x32xf32>
    %14 = arith.addf %6, %13 : vector<8x8x32xf32>
    %c0_10 = arith.constant 0 : index
    %c0_11 = arith.constant 0 : index
    %c1_12 = arith.constant 1 : index
    %c0_13 = arith.constant 0 : index
    %15 = vector.load %arg2[%c0_10, %c0_11, %c1_12, %c0_13] : memref<4x9x9x32xf32, #tpu.memory_space<vmem>>, vector<1x8x8x32xf32>
    %16 = vector.shape_cast %15 : vector<1x8x8x32xf32> to vector<8x8x32xf32>
    %c2 = arith.constant 2 : index
    %c0_14 = arith.constant 0 : index
    %17 = vector.load %arg3[%c2, %c0_14] : memref<9x32xf32, #tpu.memory_space<vmem>>, vector<1x32xf32>
    %18 = vector.shape_cast %17 : vector<1x32xf32> to vector<32xf32>
    %19 = vector.shape_cast %18 : vector<32xf32> to vector<1x1x32xf32>
    %20 = vector.broadcast %19 : vector<1x1x32xf32> to vector<8x8x32xf32>
    %21 = arith.mulf %16, %20 : vector<8x8x32xf32>
    %22 = arith.addf %14, %21 : vector<8x8x32xf32>
    %c2_15 = arith.constant 2 : index
    %c0_16 = arith.constant 0 : index
    %c0_17 = arith.constant 0 : index
    %c0_18 = arith.constant 0 : index
    %23 = vector.load %arg2[%c2_15, %c0_16, %c0_17, %c0_18] : memref<4x9x9x32xf32, #tpu.memory_space<vmem>>, vector<1x8x8x32xf32>
    %24 = vector.shape_cast %23 : vector<1x8x8x32xf32> to vector<8x8x32xf32>
    %c3 = arith.constant 3 : index
    %c0_19 = arith.constant 0 : index
    %25 = vector.load %arg3[%c3, %c0_19] : memref<9x32xf32, #tpu.memory_space<vmem>>, vector<1x32xf32>
    %26 = vector.shape_cast %25 : vector<1x32xf32> to vector<32xf32>
    %27 = vector.shape_cast %26 : vector<32xf32> to vector<1x1x32xf32>
    %28 = vector.broadcast %27 : vector<1x1x32xf32> to vector<8x8x32xf32>
    %29 = arith.mulf %24, %28 : vector<8x8x32xf32>
    %30 = arith.addf %22, %29 : vector<8x8x32xf32>
    %c3_20 = arith.constant 3 : index
    %c0_21 = arith.constant 0 : index
    %c0_22 = arith.constant 0 : index
    %c0_23 = arith.constant 0 : index
    %31 = vector.load %arg2[%c3_20, %c0_21, %c0_22, %c0_23] : memref<4x9x9x32xf32, #tpu.memory_space<vmem>>, vector<1x8x8x32xf32>
    %32 = vector.shape_cast %31 : vector<1x8x8x32xf32> to vector<8x8x32xf32>
    %c4 = arith.constant 4 : index
    %c0_24 = arith.constant 0 : index
    %33 = vector.load %arg3[%c4, %c0_24] : memref<9x32xf32, #tpu.memory_space<vmem>>, vector<1x32xf32>
    %34 = vector.shape_cast %33 : vector<1x32xf32> to vector<32xf32>
    %35 = vector.shape_cast %34 : vector<32xf32> to vector<1x1x32xf32>
    %36 = vector.broadcast %35 : vector<1x1x32xf32> to vector<8x8x32xf32>
    %37 = arith.mulf %32, %36 : vector<8x8x32xf32>
    %38 = arith.addf %30, %37 : vector<8x8x32xf32>
    %c2_25 = arith.constant 2 : index
    %c0_26 = arith.constant 0 : index
    %c1_27 = arith.constant 1 : index
    %c0_28 = arith.constant 0 : index
    %39 = vector.load %arg2[%c2_25, %c0_26, %c1_27, %c0_28] : memref<4x9x9x32xf32, #tpu.memory_space<vmem>>, vector<1x8x8x32xf32>
    %40 = vector.shape_cast %39 : vector<1x8x8x32xf32> to vector<8x8x32xf32>
    %c5 = arith.constant 5 : index
    %c0_29 = arith.constant 0 : index
    %41 = vector.load %arg3[%c5, %c0_29] : memref<9x32xf32, #tpu.memory_space<vmem>>, vector<1x32xf32>
    %42 = vector.shape_cast %41 : vector<1x32xf32> to vector<32xf32>
    %43 = vector.shape_cast %42 : vector<32xf32> to vector<1x1x32xf32>
    %44 = vector.broadcast %43 : vector<1x1x32xf32> to vector<8x8x32xf32>
    %45 = arith.mulf %40, %44 : vector<8x8x32xf32>
    %46 = arith.addf %38, %45 : vector<8x8x32xf32>
    %c0_30 = arith.constant 0 : index
    %c1_31 = arith.constant 1 : index
    %c0_32 = arith.constant 0 : index
    %c0_33 = arith.constant 0 : index
    %47 = vector.load %arg2[%c0_30, %c1_31, %c0_32, %c0_33] : memref<4x9x9x32xf32, #tpu.memory_space<vmem>>, vector<1x8x8x32xf32>
    %48 = vector.shape_cast %47 : vector<1x8x8x32xf32> to vector<8x8x32xf32>
    %c6 = arith.constant 6 : index
    %c0_34 = arith.constant 0 : index
    %49 = vector.load %arg3[%c6, %c0_34] : memref<9x32xf32, #tpu.memory_space<vmem>>, vector<1x32xf32>
    %50 = vector.shape_cast %49 : vector<1x32xf32> to vector<32xf32>
    %51 = vector.shape_cast %50 : vector<32xf32> to vector<1x1x32xf32>
    %52 = vector.broadcast %51 : vector<1x1x32xf32> to vector<8x8x32xf32>
    %53 = arith.mulf %48, %52 : vector<8x8x32xf32>
    %54 = arith.addf %46, %53 : vector<8x8x32xf32>
    %c1_35 = arith.constant 1 : index
    %c1_36 = arith.constant 1 : index
    %c0_37 = arith.constant 0 : index
    %c0_38 = arith.constant 0 : index
    %55 = vector.load %arg2[%c1_35, %c1_36, %c0_37, %c0_38] : memref<4x9x9x32xf32, #tpu.memory_space<vmem>>, vector<1x8x8x32xf32>
    %56 = vector.shape_cast %55 : vector<1x8x8x32xf32> to vector<8x8x32xf32>
    %c7 = arith.constant 7 : index
    %c0_39 = arith.constant 0 : index
    %57 = vector.load %arg3[%c7, %c0_39] : memref<9x32xf32, #tpu.memory_space<vmem>>, vector<1x32xf32>
    %58 = vector.shape_cast %57 : vector<1x32xf32> to vector<32xf32>
    %59 = vector.shape_cast %58 : vector<32xf32> to vector<1x1x32xf32>
    %60 = vector.broadcast %59 : vector<1x1x32xf32> to vector<8x8x32xf32>
    %61 = arith.mulf %56, %60 : vector<8x8x32xf32>
    %62 = arith.addf %54, %61 : vector<8x8x32xf32>
    %c0_40 = arith.constant 0 : index
    %c1_41 = arith.constant 1 : index
    %c1_42 = arith.constant 1 : index
    %c0_43 = arith.constant 0 : index
    %63 = vector.load %arg2[%c0_40, %c1_41, %c1_42, %c0_43] : memref<4x9x9x32xf32, #tpu.memory_space<vmem>>, vector<1x8x8x32xf32>
    %64 = vector.shape_cast %63 : vector<1x8x8x32xf32> to vector<8x8x32xf32>
    %c8 = arith.constant 8 : index
    %c0_44 = arith.constant 0 : index
    %65 = vector.load %arg3[%c8, %c0_44] : memref<9x32xf32, #tpu.memory_space<vmem>>, vector<1x32xf32>
    %66 = vector.shape_cast %65 : vector<1x32xf32> to vector<32xf32>
    %67 = vector.shape_cast %66 : vector<32xf32> to vector<1x1x32xf32>
    %68 = vector.broadcast %67 : vector<1x1x32xf32> to vector<8x8x32xf32>
    %69 = arith.mulf %64, %68 : vector<8x8x32xf32>
    %70 = arith.addf %62, %69 : vector<8x8x32xf32>
    %c0_45 = arith.constant 0 : index
    %c0_46 = arith.constant 0 : index
    %71 = vector.load %arg4[%c0_45, %c0_46] : memref<1x32xf32, #tpu.memory_space<vmem>>, vector<1x32xf32>
    %72 = vector.shape_cast %71 : vector<1x32xf32> to vector<32xf32>
    %73 = vector.shape_cast %72 : vector<32xf32> to vector<1x1x32xf32>
    %74 = vector.broadcast %73 : vector<1x1x32xf32> to vector<8x8x32xf32>
    %75 = arith.addf %70, %74 : vector<8x8x32xf32>
    %cst = arith.constant 0.000000e+00 : f32
    %cst_47 = arith.constant 6.000000e+00 : f32
    %76 = vector.broadcast %cst : f32 to vector<8x8x32xf32>
    %77 = arith.maximumf %76, %75 : vector<8x8x32xf32>
    %78 = vector.broadcast %cst_47 : f32 to vector<8x8x32xf32>
    %79 = arith.minimumf %78, %77 : vector<8x8x32xf32>
    %c0_48 = arith.constant 0 : index
    %c0_49 = arith.constant 0 : index
    %c0_50 = arith.constant 0 : index
    %c0_51 = arith.constant 0 : index
    %80 = vector.load %arg5[%c0_48, %c0_49, %c0_50, %c0_51] : memref<1x8x8x32xf32, #tpu.memory_space<vmem>>, vector<1x8x8x32xf32>
    %81 = vector.shape_cast %80 : vector<1x8x8x32xf32> to vector<8x8x32xf32>
    %82 = vector.shape_cast %79 : vector<8x8x32xf32> to vector<1x8x8x32xf32>
    tpu.vector_store %arg5[%c0_48, %c0_49, %c0_50, %c0_51], %82 {strides = array<i32>} : memref<1x8x8x32xf32, #tpu.memory_space<vmem>>, vector<1x8x8x32xf32>,
    return
  }
  func.func @transform_0(%arg0: i32, %arg1: i32) -> (i32, i32, i32, i32) {
    %c0_i32 = arith.constant 0 : i32
    %c0_i32_0 = arith.constant 0 : i32
    %c0_i32_1 = arith.constant 0 : i32
    return %arg0, %c0_i32, %c0_i32_0, %arg1 : i32, i32, i32, i32
  }
  func.func @transform_1(%arg0: i32, %arg1: i32) -> (i32, i32) {
    %c0_i32 = arith.constant 0 : i32
    %c0_i32_0 = arith.constant 0 : i32
    return %c0_i32, %arg1 : i32, i32
  }
  func.func @transform_2(%arg0: i32, %arg1: i32) -> (i32, i32) {
    %c0_i32 = arith.constant 0 : i32
    %c0_i32_0 = arith.constant 0 : i32
    return %c0_i32, %arg1 : i32, i32
  }
  func.func @transform_3(%arg0: i32, %arg1: i32) -> (i32, i32, i32, i32) {
    %c0_i32 = arith.constant 0 : i32
    %c0_i32_0 = arith.constant 0 : i32
    %c0_i32_1 = arith.constant 0 : i32
    return %arg0, %c0_i32, %c0_i32_0, %arg1 : i32, i32, i32, i32
  }
}

module attributes {stable_mosaic.version = 11 : i64} {
  func.func @_mm_kernel(%arg0: i32, %arg1: memref<128x32xf32, #tpu.memory_space<vmem>>, %arg2: memref<32x64xbf16, #tpu.memory_space<vmem>>, %arg3: memref<1x64xf32, #tpu.memory_space<vmem>>, %arg4: memref<128x64xf32, #tpu.memory_space<vmem>>) attributes {dimension_semantics = [#tpu.dimension_semantics<parallel>], iteration_bounds = array<i64: 1>, scalar_prefetch = 0 : i64, scratch_operands = 0 : i64, tpu.core_type = #tpu.core_type<tc>, window_params = [{transform_indices = @transform_0, window_bounds = array<i64: 128, 32>}, {pipeline_mode = #tpu.pipeline_mode<synchronous>, transform_indices = @transform_1, window_bounds = array<i64: 32, 64>}, {pipeline_mode = #tpu.pipeline_mode<synchronous>, transform_indices = @transform_2, window_bounds = array<i64: 1, 64>}, {transform_indices = @transform_3, window_bounds = array<i64: 128, 64>}]} {
    %c0 = arith.constant 0 : index
    %c0_0 = arith.constant 0 : index
    %0 = vector.load %arg1[%c0, %c0_0] : memref<128x32xf32, #tpu.memory_space<vmem>>, vector<128x32xf32>
    %1 = arith.truncf %0 : vector<128x32xf32> to vector<128x32xbf16>
    %c0_1 = arith.constant 0 : index
    %c0_2 = arith.constant 0 : index
    %2 = vector.load %arg2[%c0_1, %c0_2] : memref<32x64xbf16, #tpu.memory_space<vmem>>, vector<32x64xbf16>
    %cst = arith.constant dense<0.000000e+00> : vector<128x64xf32>
    %3 = tpu.matmul %1, %2, %cst {dimension_numbers = #tpu.dot_dimension_numbers<[1], [0], [0], [1], [0, 0, 1, 1], [], []>} : vector<128x32xbf16>, vector<32x64xbf16>, vector<128x64xf32> -> vector<128x64xf32>
    %c0_3 = arith.constant 0 : index
    %c0_4 = arith.constant 0 : index
    %4 = vector.load %arg3[%c0_3, %c0_4] : memref<1x64xf32, #tpu.memory_space<vmem>>, vector<1x64xf32>
    %5 = vector.broadcast %4 : vector<1x64xf32> to vector<128x64xf32>
    %6 = arith.addf %3, %5 : vector<128x64xf32>
    %cst_5 = arith.constant 0.000000e+00 : f32
    %cst_6 = arith.constant 6.000000e+00 : f32
    %7 = vector.broadcast %cst_5 : f32 to vector<128x64xf32>
    %8 = arith.maximumf %7, %6 : vector<128x64xf32>
    %9 = vector.broadcast %cst_6 : f32 to vector<128x64xf32>
    %10 = arith.minimumf %9, %8 : vector<128x64xf32>
    %c0_7 = arith.constant 0 : index
    %c0_8 = arith.constant 0 : index
    %11 = vector.load %arg4[%c0_7, %c0_8] : memref<128x64xf32, #tpu.memory_space<vmem>>, vector<128x64xf32>
    tpu.vector_store %arg4[%c0_7, %c0_8], %10 {strides = array<i32>} : memref<128x64xf32, #tpu.memory_space<vmem>>, vector<128x64xf32>,
    return
  }
  func.func @transform_0(%arg0: i32) -> (i32, i32) {
    %c0_i32 = arith.constant 0 : i32
    %c0_i32_0 = arith.constant 0 : i32
    return %arg0, %c0_i32 : i32, i32
  }
  func.func @transform_1(%arg0: i32) -> (i32, i32) {
    %c0_i32 = arith.constant 0 : i32
    %c0_i32_0 = arith.constant 0 : i32
    %c0_i32_1 = arith.constant 0 : i32
    return %c0_i32, %c0_i32_0 : i32, i32
  }
  func.func @transform_2(%arg0: i32) -> (i32, i32) {
    %c0_i32 = arith.constant 0 : i32
    %c0_i32_0 = arith.constant 0 : i32
    %c0_i32_1 = arith.constant 0 : i32
    return %c0_i32, %c0_i32_0 : i32, i32
  }
  func.func @transform_3(%arg0: i32) -> (i32, i32) {
    %c0_i32 = arith.constant 0 : i32
    %c0_i32_0 = arith.constant 0 : i32
    return %arg0, %c0_i32 : i32, i32
  }
}

module attributes {stable_mosaic.version = 11 : i64} {
  func.func @_dw_s1_kernel(%arg0: i32, %arg1: i32, %arg2: memref<1x10x10x64xf32, #tpu.memory_space<vmem>>, %arg3: memref<9x64xf32, #tpu.memory_space<vmem>>, %arg4: memref<1x64xf32, #tpu.memory_space<vmem>>, %arg5: memref<1x8x8x64xf32, #tpu.memory_space<vmem>>) attributes {dimension_semantics = [#tpu.dimension_semantics<parallel>, #tpu.dimension_semantics<parallel>], iteration_bounds = array<i64: 2, 1>, scalar_prefetch = 0 : i64, scratch_operands = 0 : i64, tpu.core_type = #tpu.core_type<tc>, window_params = [{transform_indices = @transform_0, window_bounds = array<i64: 1, 10, 10, 64>}, {transform_indices = @transform_1, window_bounds = array<i64: 9, 64>}, {transform_indices = @transform_2, window_bounds = array<i64: 1, 64>}, {transform_indices = @transform_3, window_bounds = array<i64: 1, 8, 8, 64>}]} {
    %c0 = arith.constant 0 : index
    %c0_0 = arith.constant 0 : index
    %c0_1 = arith.constant 0 : index
    %c0_2 = arith.constant 0 : index
    %0 = vector.load %arg2[%c0, %c0_0, %c0_1, %c0_2] : memref<1x10x10x64xf32, #tpu.memory_space<vmem>>, vector<1x8x8x64xf32>
    %1 = vector.shape_cast %0 : vector<1x8x8x64xf32> to vector<8x8x64xf32>
    %c0_3 = arith.constant 0 : index
    %c0_4 = arith.constant 0 : index
    %2 = vector.load %arg3[%c0_3, %c0_4] : memref<9x64xf32, #tpu.memory_space<vmem>>, vector<1x64xf32>
    %3 = vector.shape_cast %2 : vector<1x64xf32> to vector<64xf32>
    %4 = vector.shape_cast %3 : vector<64xf32> to vector<1x1x64xf32>
    %5 = vector.broadcast %4 : vector<1x1x64xf32> to vector<8x8x64xf32>
    %6 = arith.mulf %1, %5 : vector<8x8x64xf32>
    %c0_5 = arith.constant 0 : index
    %c0_6 = arith.constant 0 : index
    %c1 = arith.constant 1 : index
    %c0_7 = arith.constant 0 : index
    %7 = vector.load %arg2[%c0_5, %c0_6, %c1, %c0_7] : memref<1x10x10x64xf32, #tpu.memory_space<vmem>>, vector<1x8x8x64xf32>
    %8 = vector.shape_cast %7 : vector<1x8x8x64xf32> to vector<8x8x64xf32>
    %c1_8 = arith.constant 1 : index
    %c0_9 = arith.constant 0 : index
    %9 = vector.load %arg3[%c1_8, %c0_9] : memref<9x64xf32, #tpu.memory_space<vmem>>, vector<1x64xf32>
    %10 = vector.shape_cast %9 : vector<1x64xf32> to vector<64xf32>
    %11 = vector.shape_cast %10 : vector<64xf32> to vector<1x1x64xf32>
    %12 = vector.broadcast %11 : vector<1x1x64xf32> to vector<8x8x64xf32>
    %13 = arith.mulf %8, %12 : vector<8x8x64xf32>
    %14 = arith.addf %6, %13 : vector<8x8x64xf32>
    %c0_10 = arith.constant 0 : index
    %c0_11 = arith.constant 0 : index
    %c2 = arith.constant 2 : index
    %c0_12 = arith.constant 0 : index
    %15 = vector.load %arg2[%c0_10, %c0_11, %c2, %c0_12] : memref<1x10x10x64xf32, #tpu.memory_space<vmem>>, vector<1x8x8x64xf32>
    %16 = vector.shape_cast %15 : vector<1x8x8x64xf32> to vector<8x8x64xf32>
    %c2_13 = arith.constant 2 : index
    %c0_14 = arith.constant 0 : index
    %17 = vector.load %arg3[%c2_13, %c0_14] : memref<9x64xf32, #tpu.memory_space<vmem>>, vector<1x64xf32>
    %18 = vector.shape_cast %17 : vector<1x64xf32> to vector<64xf32>
    %19 = vector.shape_cast %18 : vector<64xf32> to vector<1x1x64xf32>
    %20 = vector.broadcast %19 : vector<1x1x64xf32> to vector<8x8x64xf32>
    %21 = arith.mulf %16, %20 : vector<8x8x64xf32>
    %22 = arith.addf %14, %21 : vector<8x8x64xf32>
    %c0_15 = arith.constant 0 : index
    %c1_16 = arith.constant 1 : index
    %c0_17 = arith.constant 0 : index
    %c0_18 = arith.constant 0 : index
    %23 = vector.load %arg2[%c0_15, %c1_16, %c0_17, %c0_18] : memref<1x10x10x64xf32, #tpu.memory_space<vmem>>, vector<1x8x8x64xf32>
    %24 = vector.shape_cast %23 : vector<1x8x8x64xf32> to vector<8x8x64xf32>
    %c3 = arith.constant 3 : index
    %c0_19 = arith.constant 0 : index
    %25 = vector.load %arg3[%c3, %c0_19] : memref<9x64xf32, #tpu.memory_space<vmem>>, vector<1x64xf32>
    %26 = vector.shape_cast %25 : vector<1x64xf32> to vector<64xf32>
    %27 = vector.shape_cast %26 : vector<64xf32> to vector<1x1x64xf32>
    %28 = vector.broadcast %27 : vector<1x1x64xf32> to vector<8x8x64xf32>
    %29 = arith.mulf %24, %28 : vector<8x8x64xf32>
    %30 = arith.addf %22, %29 : vector<8x8x64xf32>
    %c0_20 = arith.constant 0 : index
    %c1_21 = arith.constant 1 : index
    %c1_22 = arith.constant 1 : index
    %c0_23 = arith.constant 0 : index
    %31 = vector.load %arg2[%c0_20, %c1_21, %c1_22, %c0_23] : memref<1x10x10x64xf32, #tpu.memory_space<vmem>>, vector<1x8x8x64xf32>
    %32 = vector.shape_cast %31 : vector<1x8x8x64xf32> to vector<8x8x64xf32>
    %c4 = arith.constant 4 : index
    %c0_24 = arith.constant 0 : index
    %33 = vector.load %arg3[%c4, %c0_24] : memref<9x64xf32, #tpu.memory_space<vmem>>, vector<1x64xf32>
    %34 = vector.shape_cast %33 : vector<1x64xf32> to vector<64xf32>
    %35 = vector.shape_cast %34 : vector<64xf32> to vector<1x1x64xf32>
    %36 = vector.broadcast %35 : vector<1x1x64xf32> to vector<8x8x64xf32>
    %37 = arith.mulf %32, %36 : vector<8x8x64xf32>
    %38 = arith.addf %30, %37 : vector<8x8x64xf32>
    %c0_25 = arith.constant 0 : index
    %c1_26 = arith.constant 1 : index
    %c2_27 = arith.constant 2 : index
    %c0_28 = arith.constant 0 : index
    %39 = vector.load %arg2[%c0_25, %c1_26, %c2_27, %c0_28] : memref<1x10x10x64xf32, #tpu.memory_space<vmem>>, vector<1x8x8x64xf32>
    %40 = vector.shape_cast %39 : vector<1x8x8x64xf32> to vector<8x8x64xf32>
    %c5 = arith.constant 5 : index
    %c0_29 = arith.constant 0 : index
    %41 = vector.load %arg3[%c5, %c0_29] : memref<9x64xf32, #tpu.memory_space<vmem>>, vector<1x64xf32>
    %42 = vector.shape_cast %41 : vector<1x64xf32> to vector<64xf32>
    %43 = vector.shape_cast %42 : vector<64xf32> to vector<1x1x64xf32>
    %44 = vector.broadcast %43 : vector<1x1x64xf32> to vector<8x8x64xf32>
    %45 = arith.mulf %40, %44 : vector<8x8x64xf32>
    %46 = arith.addf %38, %45 : vector<8x8x64xf32>
    %c0_30 = arith.constant 0 : index
    %c2_31 = arith.constant 2 : index
    %c0_32 = arith.constant 0 : index
    %c0_33 = arith.constant 0 : index
    %47 = vector.load %arg2[%c0_30, %c2_31, %c0_32, %c0_33] : memref<1x10x10x64xf32, #tpu.memory_space<vmem>>, vector<1x8x8x64xf32>
    %48 = vector.shape_cast %47 : vector<1x8x8x64xf32> to vector<8x8x64xf32>
    %c6 = arith.constant 6 : index
    %c0_34 = arith.constant 0 : index
    %49 = vector.load %arg3[%c6, %c0_34] : memref<9x64xf32, #tpu.memory_space<vmem>>, vector<1x64xf32>
    %50 = vector.shape_cast %49 : vector<1x64xf32> to vector<64xf32>
    %51 = vector.shape_cast %50 : vector<64xf32> to vector<1x1x64xf32>
    %52 = vector.broadcast %51 : vector<1x1x64xf32> to vector<8x8x64xf32>
    %53 = arith.mulf %48, %52 : vector<8x8x64xf32>
    %54 = arith.addf %46, %53 : vector<8x8x64xf32>
    %c0_35 = arith.constant 0 : index
    %c2_36 = arith.constant 2 : index
    %c1_37 = arith.constant 1 : index
    %c0_38 = arith.constant 0 : index
    %55 = vector.load %arg2[%c0_35, %c2_36, %c1_37, %c0_38] : memref<1x10x10x64xf32, #tpu.memory_space<vmem>>, vector<1x8x8x64xf32>
    %56 = vector.shape_cast %55 : vector<1x8x8x64xf32> to vector<8x8x64xf32>
    %c7 = arith.constant 7 : index
    %c0_39 = arith.constant 0 : index
    %57 = vector.load %arg3[%c7, %c0_39] : memref<9x64xf32, #tpu.memory_space<vmem>>, vector<1x64xf32>
    %58 = vector.shape_cast %57 : vector<1x64xf32> to vector<64xf32>
    %59 = vector.shape_cast %58 : vector<64xf32> to vector<1x1x64xf32>
    %60 = vector.broadcast %59 : vector<1x1x64xf32> to vector<8x8x64xf32>
    %61 = arith.mulf %56, %60 : vector<8x8x64xf32>
    %62 = arith.addf %54, %61 : vector<8x8x64xf32>
    %c0_40 = arith.constant 0 : index
    %c2_41 = arith.constant 2 : index
    %c2_42 = arith.constant 2 : index
    %c0_43 = arith.constant 0 : index
    %63 = vector.load %arg2[%c0_40, %c2_41, %c2_42, %c0_43] : memref<1x10x10x64xf32, #tpu.memory_space<vmem>>, vector<1x8x8x64xf32>
    %64 = vector.shape_cast %63 : vector<1x8x8x64xf32> to vector<8x8x64xf32>
    %c8 = arith.constant 8 : index
    %c0_44 = arith.constant 0 : index
    %65 = vector.load %arg3[%c8, %c0_44] : memref<9x64xf32, #tpu.memory_space<vmem>>, vector<1x64xf32>
    %66 = vector.shape_cast %65 : vector<1x64xf32> to vector<64xf32>
    %67 = vector.shape_cast %66 : vector<64xf32> to vector<1x1x64xf32>
    %68 = vector.broadcast %67 : vector<1x1x64xf32> to vector<8x8x64xf32>
    %69 = arith.mulf %64, %68 : vector<8x8x64xf32>
    %70 = arith.addf %62, %69 : vector<8x8x64xf32>
    %c0_45 = arith.constant 0 : index
    %c0_46 = arith.constant 0 : index
    %71 = vector.load %arg4[%c0_45, %c0_46] : memref<1x64xf32, #tpu.memory_space<vmem>>, vector<1x64xf32>
    %72 = vector.shape_cast %71 : vector<1x64xf32> to vector<64xf32>
    %73 = vector.shape_cast %72 : vector<64xf32> to vector<1x1x64xf32>
    %74 = vector.broadcast %73 : vector<1x1x64xf32> to vector<8x8x64xf32>
    %75 = arith.addf %70, %74 : vector<8x8x64xf32>
    %cst = arith.constant 0.000000e+00 : f32
    %cst_47 = arith.constant 6.000000e+00 : f32
    %76 = vector.broadcast %cst : f32 to vector<8x8x64xf32>
    %77 = arith.maximumf %76, %75 : vector<8x8x64xf32>
    %78 = vector.broadcast %cst_47 : f32 to vector<8x8x64xf32>
    %79 = arith.minimumf %78, %77 : vector<8x8x64xf32>
    %c0_48 = arith.constant 0 : index
    %c0_49 = arith.constant 0 : index
    %c0_50 = arith.constant 0 : index
    %c0_51 = arith.constant 0 : index
    %80 = vector.load %arg5[%c0_48, %c0_49, %c0_50, %c0_51] : memref<1x8x8x64xf32, #tpu.memory_space<vmem>>, vector<1x8x8x64xf32>
    %81 = vector.shape_cast %80 : vector<1x8x8x64xf32> to vector<8x8x64xf32>
    %82 = vector.shape_cast %79 : vector<8x8x64xf32> to vector<1x8x8x64xf32>
    tpu.vector_store %arg5[%c0_48, %c0_49, %c0_50, %c0_51], %82 {strides = array<i32>} : memref<1x8x8x64xf32, #tpu.memory_space<vmem>>, vector<1x8x8x64xf32>,
    return
  }
  func.func @transform_0(%arg0: i32, %arg1: i32) -> (i32, i32, i32, i32) {
    %c0_i32 = arith.constant 0 : i32
    %c0_i32_0 = arith.constant 0 : i32
    %c0_i32_1 = arith.constant 0 : i32
    return %arg0, %c0_i32, %c0_i32_0, %arg1 : i32, i32, i32, i32
  }
  func.func @transform_1(%arg0: i32, %arg1: i32) -> (i32, i32) {
    %c0_i32 = arith.constant 0 : i32
    %c0_i32_0 = arith.constant 0 : i32
    return %c0_i32, %arg1 : i32, i32
  }
  func.func @transform_2(%arg0: i32, %arg1: i32) -> (i32, i32) {
    %c0_i32 = arith.constant 0 : i32
    %c0_i32_0 = arith.constant 0 : i32
    return %c0_i32, %arg1 : i32, i32
  }
  func.func @transform_3(%arg0: i32, %arg1: i32) -> (i32, i32, i32, i32) {
    %c0_i32 = arith.constant 0 : i32
    %c0_i32_0 = arith.constant 0 : i32
    %c0_i32_1 = arith.constant 0 : i32
    return %arg0, %c0_i32, %c0_i32_0, %arg1 : i32, i32, i32, i32
  }
}

module attributes {stable_mosaic.version = 11 : i64} {
  func.func @_mm_kernel(%arg0: i32, %arg1: memref<128x64xf32, #tpu.memory_space<vmem>>, %arg2: memref<64x32xbf16, #tpu.memory_space<vmem>>, %arg3: memref<1x32xf32, #tpu.memory_space<vmem>>, %arg4: memref<128x32xf32, #tpu.memory_space<vmem>>, %arg5: memref<128x32xf32, #tpu.memory_space<vmem>>) attributes {dimension_semantics = [#tpu.dimension_semantics<parallel>], iteration_bounds = array<i64: 1>, scalar_prefetch = 0 : i64, scratch_operands = 0 : i64, tpu.core_type = #tpu.core_type<tc>, window_params = [{transform_indices = @transform_0, window_bounds = array<i64: 128, 64>}, {pipeline_mode = #tpu.pipeline_mode<synchronous>, transform_indices = @transform_1, window_bounds = array<i64: 64, 32>}, {pipeline_mode = #tpu.pipeline_mode<synchronous>, transform_indices = @transform_2, window_bounds = array<i64: 1, 32>}, {transform_indices = @transform_3, window_bounds = array<i64: 128, 32>}, {transform_indices = @transform_4, window_bounds = array<i64: 128, 32>}]} {
    %c0 = arith.constant 0 : index
    %c0_0 = arith.constant 0 : index
    %0 = vector.load %arg1[%c0, %c0_0] : memref<128x64xf32, #tpu.memory_space<vmem>>, vector<128x64xf32>
    %1 = arith.truncf %0 : vector<128x64xf32> to vector<128x64xbf16>
    %c0_1 = arith.constant 0 : index
    %c0_2 = arith.constant 0 : index
    %2 = vector.load %arg2[%c0_1, %c0_2] : memref<64x32xbf16, #tpu.memory_space<vmem>>, vector<64x32xbf16>
    %cst = arith.constant dense<0.000000e+00> : vector<128x32xf32>
    %3 = tpu.matmul %1, %2, %cst {dimension_numbers = #tpu.dot_dimension_numbers<[1], [0], [0], [1], [0, 0, 1, 1], [], []>} : vector<128x64xbf16>, vector<64x32xbf16>, vector<128x32xf32> -> vector<128x32xf32>
    %c0_3 = arith.constant 0 : index
    %c0_4 = arith.constant 0 : index
    %4 = vector.load %arg3[%c0_3, %c0_4] : memref<1x32xf32, #tpu.memory_space<vmem>>, vector<1x32xf32>
    %5 = vector.broadcast %4 : vector<1x32xf32> to vector<128x32xf32>
    %6 = arith.addf %3, %5 : vector<128x32xf32>
    %c0_5 = arith.constant 0 : index
    %c0_6 = arith.constant 0 : index
    %7 = vector.load %arg4[%c0_5, %c0_6] : memref<128x32xf32, #tpu.memory_space<vmem>>, vector<128x32xf32>
    %8 = arith.addf %6, %7 : vector<128x32xf32>
    %c0_7 = arith.constant 0 : index
    %c0_8 = arith.constant 0 : index
    %9 = vector.load %arg5[%c0_7, %c0_8] : memref<128x32xf32, #tpu.memory_space<vmem>>, vector<128x32xf32>
    tpu.vector_store %arg5[%c0_7, %c0_8], %8 {strides = array<i32>} : memref<128x32xf32, #tpu.memory_space<vmem>>, vector<128x32xf32>,
    return
  }
  func.func @transform_0(%arg0: i32) -> (i32, i32) {
    %c0_i32 = arith.constant 0 : i32
    %c0_i32_0 = arith.constant 0 : i32
    return %arg0, %c0_i32 : i32, i32
  }
  func.func @transform_1(%arg0: i32) -> (i32, i32) {
    %c0_i32 = arith.constant 0 : i32
    %c0_i32_0 = arith.constant 0 : i32
    %c0_i32_1 = arith.constant 0 : i32
    return %c0_i32, %c0_i32_0 : i32, i32
  }
  func.func @transform_2(%arg0: i32) -> (i32, i32) {
    %c0_i32 = arith.constant 0 : i32
    %c0_i32_0 = arith.constant 0 : i32
    %c0_i32_1 = arith.constant 0 : i32
    return %c0_i32, %c0_i32_0 : i32, i32
  }
  func.func @transform_3(%arg0: i32) -> (i32, i32) {
    %c0_i32 = arith.constant 0 : i32
    %c0_i32_0 = arith.constant 0 : i32
    return %arg0, %c0_i32 : i32, i32
  }
  func.func @transform_4(%arg0: i32) -> (i32, i32) {
    %c0_i32 = arith.constant 0 : i32
    %c0_i32_0 = arith.constant 0 : i32
    return %arg0, %c0_i32 : i32, i32
  }
}

module attributes {stable_mosaic.version = 11 : i64} {
  func.func @_dw_s2_kernel(%arg0: i32, %arg1: i32, %arg2: memref<4x5x5x64xf32, #tpu.memory_space<vmem>>, %arg3: memref<9x64xf32, #tpu.memory_space<vmem>>, %arg4: memref<1x64xf32, #tpu.memory_space<vmem>>, %arg5: memref<1x4x4x64xf32, #tpu.memory_space<vmem>>) attributes {dimension_semantics = [#tpu.dimension_semantics<parallel>, #tpu.dimension_semantics<parallel>], iteration_bounds = array<i64: 2, 1>, scalar_prefetch = 0 : i64, scratch_operands = 0 : i64, tpu.core_type = #tpu.core_type<tc>, window_params = [{transform_indices = @transform_0, window_bounds = array<i64: 4, 5, 5, 64>}, {transform_indices = @transform_1, window_bounds = array<i64: 9, 64>}, {transform_indices = @transform_2, window_bounds = array<i64: 1, 64>}, {transform_indices = @transform_3, window_bounds = array<i64: 1, 4, 4, 64>}]} {
    %c0 = arith.constant 0 : index
    %c0_0 = arith.constant 0 : index
    %c0_1 = arith.constant 0 : index
    %c0_2 = arith.constant 0 : index
    %0 = vector.load %arg2[%c0, %c0_0, %c0_1, %c0_2] : memref<4x5x5x64xf32, #tpu.memory_space<vmem>>, vector<1x4x4x64xf32>
    %1 = vector.shape_cast %0 : vector<1x4x4x64xf32> to vector<4x4x64xf32>
    %c0_3 = arith.constant 0 : index
    %c0_4 = arith.constant 0 : index
    %2 = vector.load %arg3[%c0_3, %c0_4] : memref<9x64xf32, #tpu.memory_space<vmem>>, vector<1x64xf32>
    %3 = vector.shape_cast %2 : vector<1x64xf32> to vector<64xf32>
    %4 = vector.shape_cast %3 : vector<64xf32> to vector<1x1x64xf32>
    %5 = vector.broadcast %4 : vector<1x1x64xf32> to vector<4x4x64xf32>
    %6 = arith.mulf %1, %5 : vector<4x4x64xf32>
    %c1 = arith.constant 1 : index
    %c0_5 = arith.constant 0 : index
    %c0_6 = arith.constant 0 : index
    %c0_7 = arith.constant 0 : index
    %7 = vector.load %arg2[%c1, %c0_5, %c0_6, %c0_7] : memref<4x5x5x64xf32, #tpu.memory_space<vmem>>, vector<1x4x4x64xf32>
    %8 = vector.shape_cast %7 : vector<1x4x4x64xf32> to vector<4x4x64xf32>
    %c1_8 = arith.constant 1 : index
    %c0_9 = arith.constant 0 : index
    %9 = vector.load %arg3[%c1_8, %c0_9] : memref<9x64xf32, #tpu.memory_space<vmem>>, vector<1x64xf32>
    %10 = vector.shape_cast %9 : vector<1x64xf32> to vector<64xf32>
    %11 = vector.shape_cast %10 : vector<64xf32> to vector<1x1x64xf32>
    %12 = vector.broadcast %11 : vector<1x1x64xf32> to vector<4x4x64xf32>
    %13 = arith.mulf %8, %12 : vector<4x4x64xf32>
    %14 = arith.addf %6, %13 : vector<4x4x64xf32>
    %c0_10 = arith.constant 0 : index
    %c0_11 = arith.constant 0 : index
    %c1_12 = arith.constant 1 : index
    %c0_13 = arith.constant 0 : index
    %15 = vector.load %arg2[%c0_10, %c0_11, %c1_12, %c0_13] : memref<4x5x5x64xf32, #tpu.memory_space<vmem>>, vector<1x4x4x64xf32>
    %16 = vector.shape_cast %15 : vector<1x4x4x64xf32> to vector<4x4x64xf32>
    %c2 = arith.constant 2 : index
    %c0_14 = arith.constant 0 : index
    %17 = vector.load %arg3[%c2, %c0_14] : memref<9x64xf32, #tpu.memory_space<vmem>>, vector<1x64xf32>
    %18 = vector.shape_cast %17 : vector<1x64xf32> to vector<64xf32>
    %19 = vector.shape_cast %18 : vector<64xf32> to vector<1x1x64xf32>
    %20 = vector.broadcast %19 : vector<1x1x64xf32> to vector<4x4x64xf32>
    %21 = arith.mulf %16, %20 : vector<4x4x64xf32>
    %22 = arith.addf %14, %21 : vector<4x4x64xf32>
    %c2_15 = arith.constant 2 : index
    %c0_16 = arith.constant 0 : index
    %c0_17 = arith.constant 0 : index
    %c0_18 = arith.constant 0 : index
    %23 = vector.load %arg2[%c2_15, %c0_16, %c0_17, %c0_18] : memref<4x5x5x64xf32, #tpu.memory_space<vmem>>, vector<1x4x4x64xf32>
    %24 = vector.shape_cast %23 : vector<1x4x4x64xf32> to vector<4x4x64xf32>
    %c3 = arith.constant 3 : index
    %c0_19 = arith.constant 0 : index
    %25 = vector.load %arg3[%c3, %c0_19] : memref<9x64xf32, #tpu.memory_space<vmem>>, vector<1x64xf32>
    %26 = vector.shape_cast %25 : vector<1x64xf32> to vector<64xf32>
    %27 = vector.shape_cast %26 : vector<64xf32> to vector<1x1x64xf32>
    %28 = vector.broadcast %27 : vector<1x1x64xf32> to vector<4x4x64xf32>
    %29 = arith.mulf %24, %28 : vector<4x4x64xf32>
    %30 = arith.addf %22, %29 : vector<4x4x64xf32>
    %c3_20 = arith.constant 3 : index
    %c0_21 = arith.constant 0 : index
    %c0_22 = arith.constant 0 : index
    %c0_23 = arith.constant 0 : index
    %31 = vector.load %arg2[%c3_20, %c0_21, %c0_22, %c0_23] : memref<4x5x5x64xf32, #tpu.memory_space<vmem>>, vector<1x4x4x64xf32>
    %32 = vector.shape_cast %31 : vector<1x4x4x64xf32> to vector<4x4x64xf32>
    %c4 = arith.constant 4 : index
    %c0_24 = arith.constant 0 : index
    %33 = vector.load %arg3[%c4, %c0_24] : memref<9x64xf32, #tpu.memory_space<vmem>>, vector<1x64xf32>
    %34 = vector.shape_cast %33 : vector<1x64xf32> to vector<64xf32>
    %35 = vector.shape_cast %34 : vector<64xf32> to vector<1x1x64xf32>
    %36 = vector.broadcast %35 : vector<1x1x64xf32> to vector<4x4x64xf32>
    %37 = arith.mulf %32, %36 : vector<4x4x64xf32>
    %38 = arith.addf %30, %37 : vector<4x4x64xf32>
    %c2_25 = arith.constant 2 : index
    %c0_26 = arith.constant 0 : index
    %c1_27 = arith.constant 1 : index
    %c0_28 = arith.constant 0 : index
    %39 = vector.load %arg2[%c2_25, %c0_26, %c1_27, %c0_28] : memref<4x5x5x64xf32, #tpu.memory_space<vmem>>, vector<1x4x4x64xf32>
    %40 = vector.shape_cast %39 : vector<1x4x4x64xf32> to vector<4x4x64xf32>
    %c5 = arith.constant 5 : index
    %c0_29 = arith.constant 0 : index
    %41 = vector.load %arg3[%c5, %c0_29] : memref<9x64xf32, #tpu.memory_space<vmem>>, vector<1x64xf32>
    %42 = vector.shape_cast %41 : vector<1x64xf32> to vector<64xf32>
    %43 = vector.shape_cast %42 : vector<64xf32> to vector<1x1x64xf32>
    %44 = vector.broadcast %43 : vector<1x1x64xf32> to vector<4x4x64xf32>
    %45 = arith.mulf %40, %44 : vector<4x4x64xf32>
    %46 = arith.addf %38, %45 : vector<4x4x64xf32>
    %c0_30 = arith.constant 0 : index
    %c1_31 = arith.constant 1 : index
    %c0_32 = arith.constant 0 : index
    %c0_33 = arith.constant 0 : index
    %47 = vector.load %arg2[%c0_30, %c1_31, %c0_32, %c0_33] : memref<4x5x5x64xf32, #tpu.memory_space<vmem>>, vector<1x4x4x64xf32>
    %48 = vector.shape_cast %47 : vector<1x4x4x64xf32> to vector<4x4x64xf32>
    %c6 = arith.constant 6 : index
    %c0_34 = arith.constant 0 : index
    %49 = vector.load %arg3[%c6, %c0_34] : memref<9x64xf32, #tpu.memory_space<vmem>>, vector<1x64xf32>
    %50 = vector.shape_cast %49 : vector<1x64xf32> to vector<64xf32>
    %51 = vector.shape_cast %50 : vector<64xf32> to vector<1x1x64xf32>
    %52 = vector.broadcast %51 : vector<1x1x64xf32> to vector<4x4x64xf32>
    %53 = arith.mulf %48, %52 : vector<4x4x64xf32>
    %54 = arith.addf %46, %53 : vector<4x4x64xf32>
    %c1_35 = arith.constant 1 : index
    %c1_36 = arith.constant 1 : index
    %c0_37 = arith.constant 0 : index
    %c0_38 = arith.constant 0 : index
    %55 = vector.load %arg2[%c1_35, %c1_36, %c0_37, %c0_38] : memref<4x5x5x64xf32, #tpu.memory_space<vmem>>, vector<1x4x4x64xf32>
    %56 = vector.shape_cast %55 : vector<1x4x4x64xf32> to vector<4x4x64xf32>
    %c7 = arith.constant 7 : index
    %c0_39 = arith.constant 0 : index
    %57 = vector.load %arg3[%c7, %c0_39] : memref<9x64xf32, #tpu.memory_space<vmem>>, vector<1x64xf32>
    %58 = vector.shape_cast %57 : vector<1x64xf32> to vector<64xf32>
    %59 = vector.shape_cast %58 : vector<64xf32> to vector<1x1x64xf32>
    %60 = vector.broadcast %59 : vector<1x1x64xf32> to vector<4x4x64xf32>
    %61 = arith.mulf %56, %60 : vector<4x4x64xf32>
    %62 = arith.addf %54, %61 : vector<4x4x64xf32>
    %c0_40 = arith.constant 0 : index
    %c1_41 = arith.constant 1 : index
    %c1_42 = arith.constant 1 : index
    %c0_43 = arith.constant 0 : index
    %63 = vector.load %arg2[%c0_40, %c1_41, %c1_42, %c0_43] : memref<4x5x5x64xf32, #tpu.memory_space<vmem>>, vector<1x4x4x64xf32>
    %64 = vector.shape_cast %63 : vector<1x4x4x64xf32> to vector<4x4x64xf32>
    %c8 = arith.constant 8 : index
    %c0_44 = arith.constant 0 : index
    %65 = vector.load %arg3[%c8, %c0_44] : memref<9x64xf32, #tpu.memory_space<vmem>>, vector<1x64xf32>
    %66 = vector.shape_cast %65 : vector<1x64xf32> to vector<64xf32>
    %67 = vector.shape_cast %66 : vector<64xf32> to vector<1x1x64xf32>
    %68 = vector.broadcast %67 : vector<1x1x64xf32> to vector<4x4x64xf32>
    %69 = arith.mulf %64, %68 : vector<4x4x64xf32>
    %70 = arith.addf %62, %69 : vector<4x4x64xf32>
    %c0_45 = arith.constant 0 : index
    %c0_46 = arith.constant 0 : index
    %71 = vector.load %arg4[%c0_45, %c0_46] : memref<1x64xf32, #tpu.memory_space<vmem>>, vector<1x64xf32>
    %72 = vector.shape_cast %71 : vector<1x64xf32> to vector<64xf32>
    %73 = vector.shape_cast %72 : vector<64xf32> to vector<1x1x64xf32>
    %74 = vector.broadcast %73 : vector<1x1x64xf32> to vector<4x4x64xf32>
    %75 = arith.addf %70, %74 : vector<4x4x64xf32>
    %cst = arith.constant 0.000000e+00 : f32
    %cst_47 = arith.constant 6.000000e+00 : f32
    %76 = vector.broadcast %cst : f32 to vector<4x4x64xf32>
    %77 = arith.maximumf %76, %75 : vector<4x4x64xf32>
    %78 = vector.broadcast %cst_47 : f32 to vector<4x4x64xf32>
    %79 = arith.minimumf %78, %77 : vector<4x4x64xf32>
    %c0_48 = arith.constant 0 : index
    %c0_49 = arith.constant 0 : index
    %c0_50 = arith.constant 0 : index
    %c0_51 = arith.constant 0 : index
    %80 = vector.load %arg5[%c0_48, %c0_49, %c0_50, %c0_51] : memref<1x4x4x64xf32, #tpu.memory_space<vmem>>, vector<1x4x4x64xf32>
    %81 = vector.shape_cast %80 : vector<1x4x4x64xf32> to vector<4x4x64xf32>
    %82 = vector.shape_cast %79 : vector<4x4x64xf32> to vector<1x4x4x64xf32>
    tpu.vector_store %arg5[%c0_48, %c0_49, %c0_50, %c0_51], %82 {strides = array<i32>} : memref<1x4x4x64xf32, #tpu.memory_space<vmem>>, vector<1x4x4x64xf32>,
    return
  }
  func.func @transform_0(%arg0: i32, %arg1: i32) -> (i32, i32, i32, i32) {
    %c0_i32 = arith.constant 0 : i32
    %c0_i32_0 = arith.constant 0 : i32
    %c0_i32_1 = arith.constant 0 : i32
    return %arg0, %c0_i32, %c0_i32_0, %arg1 : i32, i32, i32, i32
  }
  func.func @transform_1(%arg0: i32, %arg1: i32) -> (i32, i32) {
    %c0_i32 = arith.constant 0 : i32
    %c0_i32_0 = arith.constant 0 : i32
    return %c0_i32, %arg1 : i32, i32
  }
  func.func @transform_2(%arg0: i32, %arg1: i32) -> (i32, i32) {
    %c0_i32 = arith.constant 0 : i32
    %c0_i32_0 = arith.constant 0 : i32
    return %c0_i32, %arg1 : i32, i32
  }
  func.func @transform_3(%arg0: i32, %arg1: i32) -> (i32, i32, i32, i32) {
    %c0_i32 = arith.constant 0 : i32
    %c0_i32_0 = arith.constant 0 : i32
    %c0_i32_1 = arith.constant 0 : i32
    return %arg0, %c0_i32, %c0_i32_0, %arg1 : i32, i32, i32, i32
  }
}

module attributes {stable_mosaic.version = 11 : i64} {
  func.func @_mm_kernel(%arg0: i32, %arg1: memref<32x64xf32, #tpu.memory_space<vmem>>, %arg2: memref<64x64xbf16, #tpu.memory_space<vmem>>, %arg3: memref<1x64xf32, #tpu.memory_space<vmem>>, %arg4: memref<32x64xf32, #tpu.memory_space<vmem>>) attributes {dimension_semantics = [#tpu.dimension_semantics<parallel>], iteration_bounds = array<i64: 1>, scalar_prefetch = 0 : i64, scratch_operands = 0 : i64, tpu.core_type = #tpu.core_type<tc>, window_params = [{transform_indices = @transform_0, window_bounds = array<i64: 32, 64>}, {pipeline_mode = #tpu.pipeline_mode<synchronous>, transform_indices = @transform_1, window_bounds = array<i64: 64, 64>}, {pipeline_mode = #tpu.pipeline_mode<synchronous>, transform_indices = @transform_2, window_bounds = array<i64: 1, 64>}, {transform_indices = @transform_3, window_bounds = array<i64: 32, 64>}]} {
    %c0 = arith.constant 0 : index
    %c0_0 = arith.constant 0 : index
    %0 = vector.load %arg1[%c0, %c0_0] : memref<32x64xf32, #tpu.memory_space<vmem>>, vector<32x64xf32>
    %1 = arith.truncf %0 : vector<32x64xf32> to vector<32x64xbf16>
    %c0_1 = arith.constant 0 : index
    %c0_2 = arith.constant 0 : index
    %2 = vector.load %arg2[%c0_1, %c0_2] : memref<64x64xbf16, #tpu.memory_space<vmem>>, vector<64x64xbf16>
    %cst = arith.constant dense<0.000000e+00> : vector<32x64xf32>
    %3 = tpu.matmul %1, %2, %cst {dimension_numbers = #tpu.dot_dimension_numbers<[1], [0], [0], [1], [0, 0, 1, 1], [], []>} : vector<32x64xbf16>, vector<64x64xbf16>, vector<32x64xf32> -> vector<32x64xf32>
    %c0_3 = arith.constant 0 : index
    %c0_4 = arith.constant 0 : index
    %4 = vector.load %arg3[%c0_3, %c0_4] : memref<1x64xf32, #tpu.memory_space<vmem>>, vector<1x64xf32>
    %5 = vector.broadcast %4 : vector<1x64xf32> to vector<32x64xf32>
    %6 = arith.addf %3, %5 : vector<32x64xf32>
    %c0_5 = arith.constant 0 : index
    %c0_6 = arith.constant 0 : index
    %7 = vector.load %arg4[%c0_5, %c0_6] : memref<32x64xf32, #tpu.memory_space<vmem>>, vector<32x64xf32>
    tpu.vector_store %arg4[%c0_5, %c0_6], %6 {strides = array<i32>} : memref<32x64xf32, #tpu.memory_space<vmem>>, vector<32x64xf32>,
    return
  }
  func.func @transform_0(%arg0: i32) -> (i32, i32) {
    %c0_i32 = arith.constant 0 : i32
    %c0_i32_0 = arith.constant 0 : i32
    return %arg0, %c0_i32 : i32, i32
  }
  func.func @transform_1(%arg0: i32) -> (i32, i32) {
    %c0_i32 = arith.constant 0 : i32
    %c0_i32_0 = arith.constant 0 : i32
    %c0_i32_1 = arith.constant 0 : i32
    return %c0_i32, %c0_i32_0 : i32, i32
  }
  func.func @transform_2(%arg0: i32) -> (i32, i32) {
    %c0_i32 = arith.constant 0 : i32
    %c0_i32_0 = arith.constant 0 : i32
    %c0_i32_1 = arith.constant 0 : i32
    return %c0_i32, %c0_i32_0 : i32, i32
  }
  func.func @transform_3(%arg0: i32) -> (i32, i32) {
    %c0_i32 = arith.constant 0 : i32
    %c0_i32_0 = arith.constant 0 : i32
    return %arg0, %c0_i32 : i32, i32
  }
}

module attributes {stable_mosaic.version = 11 : i64} {
  func.func @_mm_kernel(%arg0: i32, %arg1: memref<32x64xf32, #tpu.memory_space<vmem>>, %arg2: memref<64x128xbf16, #tpu.memory_space<vmem>>, %arg3: memref<1x128xf32, #tpu.memory_space<vmem>>, %arg4: memref<32x128xf32, #tpu.memory_space<vmem>>) attributes {dimension_semantics = [#tpu.dimension_semantics<parallel>], iteration_bounds = array<i64: 1>, scalar_prefetch = 0 : i64, scratch_operands = 0 : i64, tpu.core_type = #tpu.core_type<tc>, window_params = [{transform_indices = @transform_0, window_bounds = array<i64: 32, 64>}, {pipeline_mode = #tpu.pipeline_mode<synchronous>, transform_indices = @transform_1, window_bounds = array<i64: 64, 128>}, {pipeline_mode = #tpu.pipeline_mode<synchronous>, transform_indices = @transform_2, window_bounds = array<i64: 1, 128>}, {transform_indices = @transform_3, window_bounds = array<i64: 32, 128>}]} {
    %c0 = arith.constant 0 : index
    %c0_0 = arith.constant 0 : index
    %0 = vector.load %arg1[%c0, %c0_0] : memref<32x64xf32, #tpu.memory_space<vmem>>, vector<32x64xf32>
    %1 = arith.truncf %0 : vector<32x64xf32> to vector<32x64xbf16>
    %c0_1 = arith.constant 0 : index
    %c0_2 = arith.constant 0 : index
    %2 = vector.load %arg2[%c0_1, %c0_2] : memref<64x128xbf16, #tpu.memory_space<vmem>>, vector<64x128xbf16>
    %cst = arith.constant dense<0.000000e+00> : vector<32x128xf32>
    %3 = tpu.matmul %1, %2, %cst {dimension_numbers = #tpu.dot_dimension_numbers<[1], [0], [0], [1], [0, 0, 1, 1], [], []>} : vector<32x64xbf16>, vector<64x128xbf16>, vector<32x128xf32> -> vector<32x128xf32>
    %c0_3 = arith.constant 0 : index
    %c0_4 = arith.constant 0 : index
    %4 = vector.load %arg3[%c0_3, %c0_4] : memref<1x128xf32, #tpu.memory_space<vmem>>, vector<1x128xf32>
    %5 = vector.broadcast %4 : vector<1x128xf32> to vector<32x128xf32>
    %6 = arith.addf %3, %5 : vector<32x128xf32>
    %cst_5 = arith.constant 0.000000e+00 : f32
    %cst_6 = arith.constant 6.000000e+00 : f32
    %7 = vector.broadcast %cst_5 : f32 to vector<32x128xf32>
    %8 = arith.maximumf %7, %6 : vector<32x128xf32>
    %9 = vector.broadcast %cst_6 : f32 to vector<32x128xf32>
    %10 = arith.minimumf %9, %8 : vector<32x128xf32>
    %c0_7 = arith.constant 0 : index
    %c0_8 = arith.constant 0 : index
    %11 = vector.load %arg4[%c0_7, %c0_8] : memref<32x128xf32, #tpu.memory_space<vmem>>, vector<32x128xf32>
    tpu.vector_store %arg4[%c0_7, %c0_8], %10 {strides = array<i32>} : memref<32x128xf32, #tpu.memory_space<vmem>>, vector<32x128xf32>,
    return
  }
  func.func @transform_0(%arg0: i32) -> (i32, i32) {
    %c0_i32 = arith.constant 0 : i32
    %c0_i32_0 = arith.constant 0 : i32
    return %arg0, %c0_i32 : i32, i32
  }
  func.func @transform_1(%arg0: i32) -> (i32, i32) {
    %c0_i32 = arith.constant 0 : i32
    %c0_i32_0 = arith.constant 0 : i32
    %c0_i32_1 = arith.constant 0 : i32
    return %c0_i32, %c0_i32_0 : i32, i32
  }
  func.func @transform_2(%arg0: i32) -> (i32, i32) {
    %c0_i32 = arith.constant 0 : i32
    %c0_i32_0 = arith.constant 0 : i32
    %c0_i32_1 = arith.constant 0 : i32
    return %c0_i32, %c0_i32_0 : i32, i32
  }
  func.func @transform_3(%arg0: i32) -> (i32, i32) {
    %c0_i32 = arith.constant 0 : i32
    %c0_i32_0 = arith.constant 0 : i32
    return %arg0, %c0_i32 : i32, i32
  }
}

module attributes {stable_mosaic.version = 11 : i64} {
  func.func @_dw_s1_kernel(%arg0: i32, %arg1: i32, %arg2: memref<1x6x6x128xf32, #tpu.memory_space<vmem>>, %arg3: memref<9x128xf32, #tpu.memory_space<vmem>>, %arg4: memref<1x128xf32, #tpu.memory_space<vmem>>, %arg5: memref<1x4x4x128xf32, #tpu.memory_space<vmem>>) attributes {dimension_semantics = [#tpu.dimension_semantics<parallel>, #tpu.dimension_semantics<parallel>], iteration_bounds = array<i64: 2, 1>, scalar_prefetch = 0 : i64, scratch_operands = 0 : i64, tpu.core_type = #tpu.core_type<tc>, window_params = [{transform_indices = @transform_0, window_bounds = array<i64: 1, 6, 6, 128>}, {transform_indices = @transform_1, window_bounds = array<i64: 9, 128>}, {transform_indices = @transform_2, window_bounds = array<i64: 1, 128>}, {transform_indices = @transform_3, window_bounds = array<i64: 1, 4, 4, 128>}]} {
    %c0 = arith.constant 0 : index
    %c0_0 = arith.constant 0 : index
    %c0_1 = arith.constant 0 : index
    %c0_2 = arith.constant 0 : index
    %0 = vector.load %arg2[%c0, %c0_0, %c0_1, %c0_2] : memref<1x6x6x128xf32, #tpu.memory_space<vmem>>, vector<1x4x4x128xf32>
    %1 = vector.shape_cast %0 : vector<1x4x4x128xf32> to vector<4x4x128xf32>
    %c0_3 = arith.constant 0 : index
    %c0_4 = arith.constant 0 : index
    %2 = vector.load %arg3[%c0_3, %c0_4] : memref<9x128xf32, #tpu.memory_space<vmem>>, vector<1x128xf32>
    %3 = vector.shape_cast %2 : vector<1x128xf32> to vector<128xf32>
    %4 = vector.shape_cast %3 : vector<128xf32> to vector<1x1x128xf32>
    %5 = vector.broadcast %4 : vector<1x1x128xf32> to vector<4x4x128xf32>
    %6 = arith.mulf %1, %5 : vector<4x4x128xf32>
    %c0_5 = arith.constant 0 : index
    %c0_6 = arith.constant 0 : index
    %c1 = arith.constant 1 : index
    %c0_7 = arith.constant 0 : index
    %7 = vector.load %arg2[%c0_5, %c0_6, %c1, %c0_7] : memref<1x6x6x128xf32, #tpu.memory_space<vmem>>, vector<1x4x4x128xf32>
    %8 = vector.shape_cast %7 : vector<1x4x4x128xf32> to vector<4x4x128xf32>
    %c1_8 = arith.constant 1 : index
    %c0_9 = arith.constant 0 : index
    %9 = vector.load %arg3[%c1_8, %c0_9] : memref<9x128xf32, #tpu.memory_space<vmem>>, vector<1x128xf32>
    %10 = vector.shape_cast %9 : vector<1x128xf32> to vector<128xf32>
    %11 = vector.shape_cast %10 : vector<128xf32> to vector<1x1x128xf32>
    %12 = vector.broadcast %11 : vector<1x1x128xf32> to vector<4x4x128xf32>
    %13 = arith.mulf %8, %12 : vector<4x4x128xf32>
    %14 = arith.addf %6, %13 : vector<4x4x128xf32>
    %c0_10 = arith.constant 0 : index
    %c0_11 = arith.constant 0 : index
    %c2 = arith.constant 2 : index
    %c0_12 = arith.constant 0 : index
    %15 = vector.load %arg2[%c0_10, %c0_11, %c2, %c0_12] : memref<1x6x6x128xf32, #tpu.memory_space<vmem>>, vector<1x4x4x128xf32>
    %16 = vector.shape_cast %15 : vector<1x4x4x128xf32> to vector<4x4x128xf32>
    %c2_13 = arith.constant 2 : index
    %c0_14 = arith.constant 0 : index
    %17 = vector.load %arg3[%c2_13, %c0_14] : memref<9x128xf32, #tpu.memory_space<vmem>>, vector<1x128xf32>
    %18 = vector.shape_cast %17 : vector<1x128xf32> to vector<128xf32>
    %19 = vector.shape_cast %18 : vector<128xf32> to vector<1x1x128xf32>
    %20 = vector.broadcast %19 : vector<1x1x128xf32> to vector<4x4x128xf32>
    %21 = arith.mulf %16, %20 : vector<4x4x128xf32>
    %22 = arith.addf %14, %21 : vector<4x4x128xf32>
    %c0_15 = arith.constant 0 : index
    %c1_16 = arith.constant 1 : index
    %c0_17 = arith.constant 0 : index
    %c0_18 = arith.constant 0 : index
    %23 = vector.load %arg2[%c0_15, %c1_16, %c0_17, %c0_18] : memref<1x6x6x128xf32, #tpu.memory_space<vmem>>, vector<1x4x4x128xf32>
    %24 = vector.shape_cast %23 : vector<1x4x4x128xf32> to vector<4x4x128xf32>
    %c3 = arith.constant 3 : index
    %c0_19 = arith.constant 0 : index
    %25 = vector.load %arg3[%c3, %c0_19] : memref<9x128xf32, #tpu.memory_space<vmem>>, vector<1x128xf32>
    %26 = vector.shape_cast %25 : vector<1x128xf32> to vector<128xf32>
    %27 = vector.shape_cast %26 : vector<128xf32> to vector<1x1x128xf32>
    %28 = vector.broadcast %27 : vector<1x1x128xf32> to vector<4x4x128xf32>
    %29 = arith.mulf %24, %28 : vector<4x4x128xf32>
    %30 = arith.addf %22, %29 : vector<4x4x128xf32>
    %c0_20 = arith.constant 0 : index
    %c1_21 = arith.constant 1 : index
    %c1_22 = arith.constant 1 : index
    %c0_23 = arith.constant 0 : index
    %31 = vector.load %arg2[%c0_20, %c1_21, %c1_22, %c0_23] : memref<1x6x6x128xf32, #tpu.memory_space<vmem>>, vector<1x4x4x128xf32>
    %32 = vector.shape_cast %31 : vector<1x4x4x128xf32> to vector<4x4x128xf32>
    %c4 = arith.constant 4 : index
    %c0_24 = arith.constant 0 : index
    %33 = vector.load %arg3[%c4, %c0_24] : memref<9x128xf32, #tpu.memory_space<vmem>>, vector<1x128xf32>
    %34 = vector.shape_cast %33 : vector<1x128xf32> to vector<128xf32>
    %35 = vector.shape_cast %34 : vector<128xf32> to vector<1x1x128xf32>
    %36 = vector.broadcast %35 : vector<1x1x128xf32> to vector<4x4x128xf32>
    %37 = arith.mulf %32, %36 : vector<4x4x128xf32>
    %38 = arith.addf %30, %37 : vector<4x4x128xf32>
    %c0_25 = arith.constant 0 : index
    %c1_26 = arith.constant 1 : index
    %c2_27 = arith.constant 2 : index
    %c0_28 = arith.constant 0 : index
    %39 = vector.load %arg2[%c0_25, %c1_26, %c2_27, %c0_28] : memref<1x6x6x128xf32, #tpu.memory_space<vmem>>, vector<1x4x4x128xf32>
    %40 = vector.shape_cast %39 : vector<1x4x4x128xf32> to vector<4x4x128xf32>
    %c5 = arith.constant 5 : index
    %c0_29 = arith.constant 0 : index
    %41 = vector.load %arg3[%c5, %c0_29] : memref<9x128xf32, #tpu.memory_space<vmem>>, vector<1x128xf32>
    %42 = vector.shape_cast %41 : vector<1x128xf32> to vector<128xf32>
    %43 = vector.shape_cast %42 : vector<128xf32> to vector<1x1x128xf32>
    %44 = vector.broadcast %43 : vector<1x1x128xf32> to vector<4x4x128xf32>
    %45 = arith.mulf %40, %44 : vector<4x4x128xf32>
    %46 = arith.addf %38, %45 : vector<4x4x128xf32>
    %c0_30 = arith.constant 0 : index
    %c2_31 = arith.constant 2 : index
    %c0_32 = arith.constant 0 : index
    %c0_33 = arith.constant 0 : index
    %47 = vector.load %arg2[%c0_30, %c2_31, %c0_32, %c0_33] : memref<1x6x6x128xf32, #tpu.memory_space<vmem>>, vector<1x4x4x128xf32>
    %48 = vector.shape_cast %47 : vector<1x4x4x128xf32> to vector<4x4x128xf32>
    %c6 = arith.constant 6 : index
    %c0_34 = arith.constant 0 : index
    %49 = vector.load %arg3[%c6, %c0_34] : memref<9x128xf32, #tpu.memory_space<vmem>>, vector<1x128xf32>
    %50 = vector.shape_cast %49 : vector<1x128xf32> to vector<128xf32>
    %51 = vector.shape_cast %50 : vector<128xf32> to vector<1x1x128xf32>
    %52 = vector.broadcast %51 : vector<1x1x128xf32> to vector<4x4x128xf32>
    %53 = arith.mulf %48, %52 : vector<4x4x128xf32>
    %54 = arith.addf %46, %53 : vector<4x4x128xf32>
    %c0_35 = arith.constant 0 : index
    %c2_36 = arith.constant 2 : index
    %c1_37 = arith.constant 1 : index
    %c0_38 = arith.constant 0 : index
    %55 = vector.load %arg2[%c0_35, %c2_36, %c1_37, %c0_38] : memref<1x6x6x128xf32, #tpu.memory_space<vmem>>, vector<1x4x4x128xf32>
    %56 = vector.shape_cast %55 : vector<1x4x4x128xf32> to vector<4x4x128xf32>
    %c7 = arith.constant 7 : index
    %c0_39 = arith.constant 0 : index
    %57 = vector.load %arg3[%c7, %c0_39] : memref<9x128xf32, #tpu.memory_space<vmem>>, vector<1x128xf32>
    %58 = vector.shape_cast %57 : vector<1x128xf32> to vector<128xf32>
    %59 = vector.shape_cast %58 : vector<128xf32> to vector<1x1x128xf32>
    %60 = vector.broadcast %59 : vector<1x1x128xf32> to vector<4x4x128xf32>
    %61 = arith.mulf %56, %60 : vector<4x4x128xf32>
    %62 = arith.addf %54, %61 : vector<4x4x128xf32>
    %c0_40 = arith.constant 0 : index
    %c2_41 = arith.constant 2 : index
    %c2_42 = arith.constant 2 : index
    %c0_43 = arith.constant 0 : index
    %63 = vector.load %arg2[%c0_40, %c2_41, %c2_42, %c0_43] : memref<1x6x6x128xf32, #tpu.memory_space<vmem>>, vector<1x4x4x128xf32>
    %64 = vector.shape_cast %63 : vector<1x4x4x128xf32> to vector<4x4x128xf32>
    %c8 = arith.constant 8 : index
    %c0_44 = arith.constant 0 : index
    %65 = vector.load %arg3[%c8, %c0_44] : memref<9x128xf32, #tpu.memory_space<vmem>>, vector<1x128xf32>
    %66 = vector.shape_cast %65 : vector<1x128xf32> to vector<128xf32>
    %67 = vector.shape_cast %66 : vector<128xf32> to vector<1x1x128xf32>
    %68 = vector.broadcast %67 : vector<1x1x128xf32> to vector<4x4x128xf32>
    %69 = arith.mulf %64, %68 : vector<4x4x128xf32>
    %70 = arith.addf %62, %69 : vector<4x4x128xf32>
    %c0_45 = arith.constant 0 : index
    %c0_46 = arith.constant 0 : index
    %71 = vector.load %arg4[%c0_45, %c0_46] : memref<1x128xf32, #tpu.memory_space<vmem>>, vector<1x128xf32>
    %72 = vector.shape_cast %71 : vector<1x128xf32> to vector<128xf32>
    %73 = vector.shape_cast %72 : vector<128xf32> to vector<1x1x128xf32>
    %74 = vector.broadcast %73 : vector<1x1x128xf32> to vector<4x4x128xf32>
    %75 = arith.addf %70, %74 : vector<4x4x128xf32>
    %cst = arith.constant 0.000000e+00 : f32
    %cst_47 = arith.constant 6.000000e+00 : f32
    %76 = vector.broadcast %cst : f32 to vector<4x4x128xf32>
    %77 = arith.maximumf %76, %75 : vector<4x4x128xf32>
    %78 = vector.broadcast %cst_47 : f32 to vector<4x4x128xf32>
    %79 = arith.minimumf %78, %77 : vector<4x4x128xf32>
    %c0_48 = arith.constant 0 : index
    %c0_49 = arith.constant 0 : index
    %c0_50 = arith.constant 0 : index
    %c0_51 = arith.constant 0 : index
    %80 = vector.load %arg5[%c0_48, %c0_49, %c0_50, %c0_51] : memref<1x4x4x128xf32, #tpu.memory_space<vmem>>, vector<1x4x4x128xf32>
    %81 = vector.shape_cast %80 : vector<1x4x4x128xf32> to vector<4x4x128xf32>
    %82 = vector.shape_cast %79 : vector<4x4x128xf32> to vector<1x4x4x128xf32>
    tpu.vector_store %arg5[%c0_48, %c0_49, %c0_50, %c0_51], %82 {strides = array<i32>} : memref<1x4x4x128xf32, #tpu.memory_space<vmem>>, vector<1x4x4x128xf32>,
    return
  }
  func.func @transform_0(%arg0: i32, %arg1: i32) -> (i32, i32, i32, i32) {
    %c0_i32 = arith.constant 0 : i32
    %c0_i32_0 = arith.constant 0 : i32
    %c0_i32_1 = arith.constant 0 : i32
    return %arg0, %c0_i32, %c0_i32_0, %arg1 : i32, i32, i32, i32
  }
  func.func @transform_1(%arg0: i32, %arg1: i32) -> (i32, i32) {
    %c0_i32 = arith.constant 0 : i32
    %c0_i32_0 = arith.constant 0 : i32
    return %c0_i32, %arg1 : i32, i32
  }
  func.func @transform_2(%arg0: i32, %arg1: i32) -> (i32, i32) {
    %c0_i32 = arith.constant 0 : i32
    %c0_i32_0 = arith.constant 0 : i32
    return %c0_i32, %arg1 : i32, i32
  }
  func.func @transform_3(%arg0: i32, %arg1: i32) -> (i32, i32, i32, i32) {
    %c0_i32 = arith.constant 0 : i32
    %c0_i32_0 = arith.constant 0 : i32
    %c0_i32_1 = arith.constant 0 : i32
    return %arg0, %c0_i32, %c0_i32_0, %arg1 : i32, i32, i32, i32
  }
}

module attributes {stable_mosaic.version = 11 : i64} {
  func.func @_mm_kernel(%arg0: i32, %arg1: memref<32x128xf32, #tpu.memory_space<vmem>>, %arg2: memref<128x64xbf16, #tpu.memory_space<vmem>>, %arg3: memref<1x64xf32, #tpu.memory_space<vmem>>, %arg4: memref<32x64xf32, #tpu.memory_space<vmem>>, %arg5: memref<32x64xf32, #tpu.memory_space<vmem>>) attributes {dimension_semantics = [#tpu.dimension_semantics<parallel>], iteration_bounds = array<i64: 1>, scalar_prefetch = 0 : i64, scratch_operands = 0 : i64, tpu.core_type = #tpu.core_type<tc>, window_params = [{transform_indices = @transform_0, window_bounds = array<i64: 32, 128>}, {pipeline_mode = #tpu.pipeline_mode<synchronous>, transform_indices = @transform_1, window_bounds = array<i64: 128, 64>}, {pipeline_mode = #tpu.pipeline_mode<synchronous>, transform_indices = @transform_2, window_bounds = array<i64: 1, 64>}, {transform_indices = @transform_3, window_bounds = array<i64: 32, 64>}, {transform_indices = @transform_4, window_bounds = array<i64: 32, 64>}]} {
    %c0 = arith.constant 0 : index
    %c0_0 = arith.constant 0 : index
    %0 = vector.load %arg1[%c0, %c0_0] : memref<32x128xf32, #tpu.memory_space<vmem>>, vector<32x128xf32>
    %1 = arith.truncf %0 : vector<32x128xf32> to vector<32x128xbf16>
    %c0_1 = arith.constant 0 : index
    %c0_2 = arith.constant 0 : index
    %2 = vector.load %arg2[%c0_1, %c0_2] : memref<128x64xbf16, #tpu.memory_space<vmem>>, vector<128x64xbf16>
    %cst = arith.constant dense<0.000000e+00> : vector<32x64xf32>
    %3 = tpu.matmul %1, %2, %cst {dimension_numbers = #tpu.dot_dimension_numbers<[1], [0], [0], [1], [0, 0, 1, 1], [], []>} : vector<32x128xbf16>, vector<128x64xbf16>, vector<32x64xf32> -> vector<32x64xf32>
    %c0_3 = arith.constant 0 : index
    %c0_4 = arith.constant 0 : index
    %4 = vector.load %arg3[%c0_3, %c0_4] : memref<1x64xf32, #tpu.memory_space<vmem>>, vector<1x64xf32>
    %5 = vector.broadcast %4 : vector<1x64xf32> to vector<32x64xf32>
    %6 = arith.addf %3, %5 : vector<32x64xf32>
    %c0_5 = arith.constant 0 : index
    %c0_6 = arith.constant 0 : index
    %7 = vector.load %arg4[%c0_5, %c0_6] : memref<32x64xf32, #tpu.memory_space<vmem>>, vector<32x64xf32>
    %8 = arith.addf %6, %7 : vector<32x64xf32>
    %c0_7 = arith.constant 0 : index
    %c0_8 = arith.constant 0 : index
    %9 = vector.load %arg5[%c0_7, %c0_8] : memref<32x64xf32, #tpu.memory_space<vmem>>, vector<32x64xf32>
    tpu.vector_store %arg5[%c0_7, %c0_8], %8 {strides = array<i32>} : memref<32x64xf32, #tpu.memory_space<vmem>>, vector<32x64xf32>,
    return
  }
  func.func @transform_0(%arg0: i32) -> (i32, i32) {
    %c0_i32 = arith.constant 0 : i32
    %c0_i32_0 = arith.constant 0 : i32
    return %arg0, %c0_i32 : i32, i32
  }
  func.func @transform_1(%arg0: i32) -> (i32, i32) {
    %c0_i32 = arith.constant 0 : i32
    %c0_i32_0 = arith.constant 0 : i32
    %c0_i32_1 = arith.constant 0 : i32
    return %c0_i32, %c0_i32_0 : i32, i32
  }
  func.func @transform_2(%arg0: i32) -> (i32, i32) {
    %c0_i32 = arith.constant 0 : i32
    %c0_i32_0 = arith.constant 0 : i32
    %c0_i32_1 = arith.constant 0 : i32
    return %c0_i32, %c0_i32_0 : i32, i32
  }
  func.func @transform_3(%arg0: i32) -> (i32, i32) {
    %c0_i32 = arith.constant 0 : i32
    %c0_i32_0 = arith.constant 0 : i32
    return %arg0, %c0_i32 : i32, i32
  }
  func.func @transform_4(%arg0: i32) -> (i32, i32) {
    %c0_i32 = arith.constant 0 : i32
    %c0_i32_0 = arith.constant 0 : i32
    return %arg0, %c0_i32 : i32, i32
  }
}

module attributes {stable_mosaic.version = 11 : i64} {
  func.func @_mm_kernel(%arg0: i32, %arg1: memref<32x256xf32, #tpu.memory_space<vmem>>, %arg2: memref<256x128xbf16, #tpu.memory_space<vmem>>, %arg3: memref<1x128xf32, #tpu.memory_space<vmem>>, %arg4: memref<32x128xf32, #tpu.memory_space<vmem>>) attributes {dimension_semantics = [#tpu.dimension_semantics<parallel>], iteration_bounds = array<i64: 1>, scalar_prefetch = 0 : i64, scratch_operands = 0 : i64, tpu.core_type = #tpu.core_type<tc>, window_params = [{transform_indices = @transform_0, window_bounds = array<i64: 32, 256>}, {pipeline_mode = #tpu.pipeline_mode<synchronous>, transform_indices = @transform_1, window_bounds = array<i64: 256, 128>}, {pipeline_mode = #tpu.pipeline_mode<synchronous>, transform_indices = @transform_2, window_bounds = array<i64: 1, 128>}, {transform_indices = @transform_3, window_bounds = array<i64: 32, 128>}]} {
    %c0 = arith.constant 0 : index
    %c0_0 = arith.constant 0 : index
    %0 = vector.load %arg1[%c0, %c0_0] : memref<32x256xf32, #tpu.memory_space<vmem>>, vector<32x256xf32>
    %1 = arith.truncf %0 : vector<32x256xf32> to vector<32x256xbf16>
    %c0_1 = arith.constant 0 : index
    %c0_2 = arith.constant 0 : index
    %2 = vector.load %arg2[%c0_1, %c0_2] : memref<256x128xbf16, #tpu.memory_space<vmem>>, vector<256x128xbf16>
    %cst = arith.constant dense<0.000000e+00> : vector<32x128xf32>
    %3 = tpu.matmul %1, %2, %cst {dimension_numbers = #tpu.dot_dimension_numbers<[1], [0], [0], [1], [0, 0, 1, 1], [], []>} : vector<32x256xbf16>, vector<256x128xbf16>, vector<32x128xf32> -> vector<32x128xf32>
    %c0_3 = arith.constant 0 : index
    %c0_4 = arith.constant 0 : index
    %4 = vector.load %arg3[%c0_3, %c0_4] : memref<1x128xf32, #tpu.memory_space<vmem>>, vector<1x128xf32>
    %5 = vector.broadcast %4 : vector<1x128xf32> to vector<32x128xf32>
    %6 = arith.addf %3, %5 : vector<32x128xf32>
    %c0_5 = arith.constant 0 : index
    %c0_6 = arith.constant 0 : index
    %7 = vector.load %arg4[%c0_5, %c0_6] : memref<32x128xf32, #tpu.memory_space<vmem>>, vector<32x128xf32>
    tpu.vector_store %arg4[%c0_5, %c0_6], %6 {strides = array<i32>} : memref<32x128xf32, #tpu.memory_space<vmem>>, vector<32x128xf32>,
    return
  }
  func.func @transform_0(%arg0: i32) -> (i32, i32) {
    %c0_i32 = arith.constant 0 : i32
    %c0_i32_0 = arith.constant 0 : i32
    return %arg0, %c0_i32 : i32, i32
  }
  func.func @transform_1(%arg0: i32) -> (i32, i32) {
    %c0_i32 = arith.constant 0 : i32
    %c0_i32_0 = arith.constant 0 : i32
    %c0_i32_1 = arith.constant 0 : i32
    return %c0_i32, %c0_i32_0 : i32, i32
  }
  func.func @transform_2(%arg0: i32) -> (i32, i32) {
    %c0_i32 = arith.constant 0 : i32
    %c0_i32_0 = arith.constant 0 : i32
    %c0_i32_1 = arith.constant 0 : i32
    return %c0_i32, %c0_i32_0 : i32, i32
  }
  func.func @transform_3(%arg0: i32) -> (i32, i32) {
    %c0_i32 = arith.constant 0 : i32
    %c0_i32_0 = arith.constant 0 : i32
    return %arg0, %c0_i32 : i32, i32
  }
}

module attributes {stable_mosaic.version = 11 : i64} {
  func.func @_mm_kernel(%arg0: i32, %arg1: memref<128x64xf32, #tpu.memory_space<vmem>>, %arg2: memref<64x32xbf16, #tpu.memory_space<vmem>>, %arg3: memref<1x32xf32, #tpu.memory_space<vmem>>, %arg4: memref<128x32xf32, #tpu.memory_space<vmem>>, %arg5: memref<128x32xf32, #tpu.memory_space<vmem>>, %arg6: memref<128x32xf32, #tpu.memory_space<vmem>>) attributes {dimension_semantics = [#tpu.dimension_semantics<parallel>], iteration_bounds = array<i64: 1>, scalar_prefetch = 0 : i64, scratch_operands = 0 : i64, tpu.core_type = #tpu.core_type<tc>, window_params = [{transform_indices = @transform_0, window_bounds = array<i64: 128, 64>}, {pipeline_mode = #tpu.pipeline_mode<synchronous>, transform_indices = @transform_1, window_bounds = array<i64: 64, 32>}, {pipeline_mode = #tpu.pipeline_mode<synchronous>, transform_indices = @transform_2, window_bounds = array<i64: 1, 32>}, {transform_indices = @transform_3, window_bounds = array<i64: 128, 32>}, {transform_indices = @transform_4, window_bounds = array<i64: 128, 32>}, {transform_indices = @transform_5, window_bounds = array<i64: 128, 32>}]} {
    %c0 = arith.constant 0 : index
    %c0_0 = arith.constant 0 : index
    %0 = vector.load %arg1[%c0, %c0_0] : memref<128x64xf32, #tpu.memory_space<vmem>>, vector<128x64xf32>
    %1 = arith.truncf %0 : vector<128x64xf32> to vector<128x64xbf16>
    %c0_1 = arith.constant 0 : index
    %c0_2 = arith.constant 0 : index
    %2 = vector.load %arg2[%c0_1, %c0_2] : memref<64x32xbf16, #tpu.memory_space<vmem>>, vector<64x32xbf16>
    %cst = arith.constant dense<0.000000e+00> : vector<128x32xf32>
    %3 = tpu.matmul %1, %2, %cst {dimension_numbers = #tpu.dot_dimension_numbers<[1], [0], [0], [1], [0, 0, 1, 1], [], []>} : vector<128x64xbf16>, vector<64x32xbf16>, vector<128x32xf32> -> vector<128x32xf32>
    %c0_3 = arith.constant 0 : index
    %c0_4 = arith.constant 0 : index
    %4 = vector.load %arg3[%c0_3, %c0_4] : memref<1x32xf32, #tpu.memory_space<vmem>>, vector<1x32xf32>
    %5 = vector.broadcast %4 : vector<1x32xf32> to vector<128x32xf32>
    %6 = arith.addf %3, %5 : vector<128x32xf32>
    %c0_5 = arith.constant 0 : index
    %c0_6 = arith.constant 0 : index
    %7 = vector.load %arg4[%c0_5, %c0_6] : memref<128x32xf32, #tpu.memory_space<vmem>>, vector<128x32xf32>
    %8 = arith.addf %6, %7 : vector<128x32xf32>
    %c0_7 = arith.constant 0 : index
    %c0_8 = arith.constant 0 : index
    %9 = vector.load %arg5[%c0_7, %c0_8] : memref<128x32xf32, #tpu.memory_space<vmem>>, vector<128x32xf32>
    %10 = arith.addf %8, %9 : vector<128x32xf32>
    %cst_9 = arith.constant 0.000000e+00 : f32
    %11 = vector.broadcast %cst_9 : f32 to vector<128x32xf32>
    %12 = arith.maximumf %10, %11 : vector<128x32xf32>
    %c0_10 = arith.constant 0 : index
    %c0_11 = arith.constant 0 : index
    %13 = vector.load %arg6[%c0_10, %c0_11] : memref<128x32xf32, #tpu.memory_space<vmem>>, vector<128x32xf32>
    tpu.vector_store %arg6[%c0_10, %c0_11], %12 {strides = array<i32>} : memref<128x32xf32, #tpu.memory_space<vmem>>, vector<128x32xf32>,
    return
  }
  func.func @transform_0(%arg0: i32) -> (i32, i32) {
    %c0_i32 = arith.constant 0 : i32
    %c0_i32_0 = arith.constant 0 : i32
    return %arg0, %c0_i32 : i32, i32
  }
  func.func @transform_1(%arg0: i32) -> (i32, i32) {
    %c0_i32 = arith.constant 0 : i32
    %c0_i32_0 = arith.constant 0 : i32
    %c0_i32_1 = arith.constant 0 : i32
    return %c0_i32, %c0_i32_0 : i32, i32
  }
  func.func @transform_2(%arg0: i32) -> (i32, i32) {
    %c0_i32 = arith.constant 0 : i32
    %c0_i32_0 = arith.constant 0 : i32
    %c0_i32_1 = arith.constant 0 : i32
    return %c0_i32, %c0_i32_0 : i32, i32
  }
  func.func @transform_3(%arg0: i32) -> (i32, i32) {
    %c0_i32 = arith.constant 0 : i32
    %c0_i32_0 = arith.constant 0 : i32
    return %arg0, %c0_i32 : i32, i32
  }
  func.func @transform_4(%arg0: i32) -> (i32, i32) {
    %c0_i32 = arith.constant 0 : i32
    %c0_i32_0 = arith.constant 0 : i32
    return %arg0, %c0_i32 : i32, i32
  }
  func.func @transform_5(%arg0: i32) -> (i32, i32) {
    %c0_i32 = arith.constant 0 : i32
    %c0_i32_0 = arith.constant 0 : i32
    return %arg0, %c0_i32 : i32, i32
  }
}

module attributes {stable_mosaic.version = 11 : i64} {
  func.func @_mm_kernel(%arg0: i32, %arg1: memref<128x128xf32, #tpu.memory_space<vmem>>, %arg2: memref<128x64xbf16, #tpu.memory_space<vmem>>, %arg3: memref<1x64xf32, #tpu.memory_space<vmem>>, %arg4: memref<128x64xf32, #tpu.memory_space<vmem>>) attributes {dimension_semantics = [#tpu.dimension_semantics<parallel>], iteration_bounds = array<i64: 1>, scalar_prefetch = 0 : i64, scratch_operands = 0 : i64, tpu.core_type = #tpu.core_type<tc>, window_params = [{transform_indices = @transform_0, window_bounds = array<i64: 128, 128>}, {pipeline_mode = #tpu.pipeline_mode<synchronous>, transform_indices = @transform_1, window_bounds = array<i64: 128, 64>}, {pipeline_mode = #tpu.pipeline_mode<synchronous>, transform_indices = @transform_2, window_bounds = array<i64: 1, 64>}, {transform_indices = @transform_3, window_bounds = array<i64: 128, 64>}]} {
    %c0 = arith.constant 0 : index
    %c0_0 = arith.constant 0 : index
    %0 = vector.load %arg1[%c0, %c0_0] : memref<128x128xf32, #tpu.memory_space<vmem>>, vector<128x128xf32>
    %1 = arith.truncf %0 : vector<128x128xf32> to vector<128x128xbf16>
    %c0_1 = arith.constant 0 : index
    %c0_2 = arith.constant 0 : index
    %2 = vector.load %arg2[%c0_1, %c0_2] : memref<128x64xbf16, #tpu.memory_space<vmem>>, vector<128x64xbf16>
    %cst = arith.constant dense<0.000000e+00> : vector<128x64xf32>
    %3 = tpu.matmul %1, %2, %cst {dimension_numbers = #tpu.dot_dimension_numbers<[1], [0], [0], [1], [0, 0, 1, 1], [], []>} : vector<128x128xbf16>, vector<128x64xbf16>, vector<128x64xf32> -> vector<128x64xf32>
    %c0_3 = arith.constant 0 : index
    %c0_4 = arith.constant 0 : index
    %4 = vector.load %arg3[%c0_3, %c0_4] : memref<1x64xf32, #tpu.memory_space<vmem>>, vector<1x64xf32>
    %5 = vector.broadcast %4 : vector<1x64xf32> to vector<128x64xf32>
    %6 = arith.addf %3, %5 : vector<128x64xf32>
    %c0_5 = arith.constant 0 : index
    %c0_6 = arith.constant 0 : index
    %7 = vector.load %arg4[%c0_5, %c0_6] : memref<128x64xf32, #tpu.memory_space<vmem>>, vector<128x64xf32>
    tpu.vector_store %arg4[%c0_5, %c0_6], %6 {strides = array<i32>} : memref<128x64xf32, #tpu.memory_space<vmem>>, vector<128x64xf32>,
    return
  }
  func.func @transform_0(%arg0: i32) -> (i32, i32) {
    %c0_i32 = arith.constant 0 : i32
    %c0_i32_0 = arith.constant 0 : i32
    return %arg0, %c0_i32 : i32, i32
  }
  func.func @transform_1(%arg0: i32) -> (i32, i32) {
    %c0_i32 = arith.constant 0 : i32
    %c0_i32_0 = arith.constant 0 : i32
    %c0_i32_1 = arith.constant 0 : i32
    return %c0_i32, %c0_i32_0 : i32, i32
  }
  func.func @transform_2(%arg0: i32) -> (i32, i32) {
    %c0_i32 = arith.constant 0 : i32
    %c0_i32_0 = arith.constant 0 : i32
    %c0_i32_1 = arith.constant 0 : i32
    return %c0_i32, %c0_i32_0 : i32, i32
  }
  func.func @transform_3(%arg0: i32) -> (i32, i32) {
    %c0_i32 = arith.constant 0 : i32
    %c0_i32_0 = arith.constant 0 : i32
    return %arg0, %c0_i32 : i32, i32
  }
}

module attributes {stable_mosaic.version = 11 : i64} {
  func.func @_dw_s1_kernel(%arg0: i32, %arg1: i32, %arg2: memref<1x18x18x32xf32, #tpu.memory_space<vmem>>, %arg3: memref<9x32xf32, #tpu.memory_space<vmem>>, %arg4: memref<1x32xf32, #tpu.memory_space<vmem>>, %arg5: memref<1x16x16x32xf32, #tpu.memory_space<vmem>>) attributes {dimension_semantics = [#tpu.dimension_semantics<parallel>, #tpu.dimension_semantics<parallel>], iteration_bounds = array<i64: 2, 1>, scalar_prefetch = 0 : i64, scratch_operands = 0 : i64, tpu.core_type = #tpu.core_type<tc>, window_params = [{transform_indices = @transform_0, window_bounds = array<i64: 1, 18, 18, 32>}, {transform_indices = @transform_1, window_bounds = array<i64: 9, 32>}, {transform_indices = @transform_2, window_bounds = array<i64: 1, 32>}, {transform_indices = @transform_3, window_bounds = array<i64: 1, 16, 16, 32>}]} {
    %c0 = arith.constant 0 : index
    %c0_0 = arith.constant 0 : index
    %c0_1 = arith.constant 0 : index
    %c0_2 = arith.constant 0 : index
    %0 = vector.load %arg2[%c0, %c0_0, %c0_1, %c0_2] : memref<1x18x18x32xf32, #tpu.memory_space<vmem>>, vector<1x16x16x32xf32>
    %1 = vector.shape_cast %0 : vector<1x16x16x32xf32> to vector<16x16x32xf32>
    %c0_3 = arith.constant 0 : index
    %c0_4 = arith.constant 0 : index
    %2 = vector.load %arg3[%c0_3, %c0_4] : memref<9x32xf32, #tpu.memory_space<vmem>>, vector<1x32xf32>
    %3 = vector.shape_cast %2 : vector<1x32xf32> to vector<32xf32>
    %4 = vector.shape_cast %3 : vector<32xf32> to vector<1x1x32xf32>
    %5 = vector.broadcast %4 : vector<1x1x32xf32> to vector<16x16x32xf32>
    %6 = arith.mulf %1, %5 : vector<16x16x32xf32>
    %c0_5 = arith.constant 0 : index
    %c0_6 = arith.constant 0 : index
    %c1 = arith.constant 1 : index
    %c0_7 = arith.constant 0 : index
    %7 = vector.load %arg2[%c0_5, %c0_6, %c1, %c0_7] : memref<1x18x18x32xf32, #tpu.memory_space<vmem>>, vector<1x16x16x32xf32>
    %8 = vector.shape_cast %7 : vector<1x16x16x32xf32> to vector<16x16x32xf32>
    %c1_8 = arith.constant 1 : index
    %c0_9 = arith.constant 0 : index
    %9 = vector.load %arg3[%c1_8, %c0_9] : memref<9x32xf32, #tpu.memory_space<vmem>>, vector<1x32xf32>
    %10 = vector.shape_cast %9 : vector<1x32xf32> to vector<32xf32>
    %11 = vector.shape_cast %10 : vector<32xf32> to vector<1x1x32xf32>
    %12 = vector.broadcast %11 : vector<1x1x32xf32> to vector<16x16x32xf32>
    %13 = arith.mulf %8, %12 : vector<16x16x32xf32>
    %14 = arith.addf %6, %13 : vector<16x16x32xf32>
    %c0_10 = arith.constant 0 : index
    %c0_11 = arith.constant 0 : index
    %c2 = arith.constant 2 : index
    %c0_12 = arith.constant 0 : index
    %15 = vector.load %arg2[%c0_10, %c0_11, %c2, %c0_12] : memref<1x18x18x32xf32, #tpu.memory_space<vmem>>, vector<1x16x16x32xf32>
    %16 = vector.shape_cast %15 : vector<1x16x16x32xf32> to vector<16x16x32xf32>
    %c2_13 = arith.constant 2 : index
    %c0_14 = arith.constant 0 : index
    %17 = vector.load %arg3[%c2_13, %c0_14] : memref<9x32xf32, #tpu.memory_space<vmem>>, vector<1x32xf32>
    %18 = vector.shape_cast %17 : vector<1x32xf32> to vector<32xf32>
    %19 = vector.shape_cast %18 : vector<32xf32> to vector<1x1x32xf32>
    %20 = vector.broadcast %19 : vector<1x1x32xf32> to vector<16x16x32xf32>
    %21 = arith.mulf %16, %20 : vector<16x16x32xf32>
    %22 = arith.addf %14, %21 : vector<16x16x32xf32>
    %c0_15 = arith.constant 0 : index
    %c1_16 = arith.constant 1 : index
    %c0_17 = arith.constant 0 : index
    %c0_18 = arith.constant 0 : index
    %23 = vector.load %arg2[%c0_15, %c1_16, %c0_17, %c0_18] : memref<1x18x18x32xf32, #tpu.memory_space<vmem>>, vector<1x16x16x32xf32>
    %24 = vector.shape_cast %23 : vector<1x16x16x32xf32> to vector<16x16x32xf32>
    %c3 = arith.constant 3 : index
    %c0_19 = arith.constant 0 : index
    %25 = vector.load %arg3[%c3, %c0_19] : memref<9x32xf32, #tpu.memory_space<vmem>>, vector<1x32xf32>
    %26 = vector.shape_cast %25 : vector<1x32xf32> to vector<32xf32>
    %27 = vector.shape_cast %26 : vector<32xf32> to vector<1x1x32xf32>
    %28 = vector.broadcast %27 : vector<1x1x32xf32> to vector<16x16x32xf32>
    %29 = arith.mulf %24, %28 : vector<16x16x32xf32>
    %30 = arith.addf %22, %29 : vector<16x16x32xf32>
    %c0_20 = arith.constant 0 : index
    %c1_21 = arith.constant 1 : index
    %c1_22 = arith.constant 1 : index
    %c0_23 = arith.constant 0 : index
    %31 = vector.load %arg2[%c0_20, %c1_21, %c1_22, %c0_23] : memref<1x18x18x32xf32, #tpu.memory_space<vmem>>, vector<1x16x16x32xf32>
    %32 = vector.shape_cast %31 : vector<1x16x16x32xf32> to vector<16x16x32xf32>
    %c4 = arith.constant 4 : index
    %c0_24 = arith.constant 0 : index
    %33 = vector.load %arg3[%c4, %c0_24] : memref<9x32xf32, #tpu.memory_space<vmem>>, vector<1x32xf32>
    %34 = vector.shape_cast %33 : vector<1x32xf32> to vector<32xf32>
    %35 = vector.shape_cast %34 : vector<32xf32> to vector<1x1x32xf32>
    %36 = vector.broadcast %35 : vector<1x1x32xf32> to vector<16x16x32xf32>
    %37 = arith.mulf %32, %36 : vector<16x16x32xf32>
    %38 = arith.addf %30, %37 : vector<16x16x32xf32>
    %c0_25 = arith.constant 0 : index
    %c1_26 = arith.constant 1 : index
    %c2_27 = arith.constant 2 : index
    %c0_28 = arith.constant 0 : index
    %39 = vector.load %arg2[%c0_25, %c1_26, %c2_27, %c0_28] : memref<1x18x18x32xf32, #tpu.memory_space<vmem>>, vector<1x16x16x32xf32>
    %40 = vector.shape_cast %39 : vector<1x16x16x32xf32> to vector<16x16x32xf32>
    %c5 = arith.constant 5 : index
    %c0_29 = arith.constant 0 : index
    %41 = vector.load %arg3[%c5, %c0_29] : memref<9x32xf32, #tpu.memory_space<vmem>>, vector<1x32xf32>
    %42 = vector.shape_cast %41 : vector<1x32xf32> to vector<32xf32>
    %43 = vector.shape_cast %42 : vector<32xf32> to vector<1x1x32xf32>
    %44 = vector.broadcast %43 : vector<1x1x32xf32> to vector<16x16x32xf32>
    %45 = arith.mulf %40, %44 : vector<16x16x32xf32>
    %46 = arith.addf %38, %45 : vector<16x16x32xf32>
    %c0_30 = arith.constant 0 : index
    %c2_31 = arith.constant 2 : index
    %c0_32 = arith.constant 0 : index
    %c0_33 = arith.constant 0 : index
    %47 = vector.load %arg2[%c0_30, %c2_31, %c0_32, %c0_33] : memref<1x18x18x32xf32, #tpu.memory_space<vmem>>, vector<1x16x16x32xf32>
    %48 = vector.shape_cast %47 : vector<1x16x16x32xf32> to vector<16x16x32xf32>
    %c6 = arith.constant 6 : index
    %c0_34 = arith.constant 0 : index
    %49 = vector.load %arg3[%c6, %c0_34] : memref<9x32xf32, #tpu.memory_space<vmem>>, vector<1x32xf32>
    %50 = vector.shape_cast %49 : vector<1x32xf32> to vector<32xf32>
    %51 = vector.shape_cast %50 : vector<32xf32> to vector<1x1x32xf32>
    %52 = vector.broadcast %51 : vector<1x1x32xf32> to vector<16x16x32xf32>
    %53 = arith.mulf %48, %52 : vector<16x16x32xf32>
    %54 = arith.addf %46, %53 : vector<16x16x32xf32>
    %c0_35 = arith.constant 0 : index
    %c2_36 = arith.constant 2 : index
    %c1_37 = arith.constant 1 : index
    %c0_38 = arith.constant 0 : index
    %55 = vector.load %arg2[%c0_35, %c2_36, %c1_37, %c0_38] : memref<1x18x18x32xf32, #tpu.memory_space<vmem>>, vector<1x16x16x32xf32>
    %56 = vector.shape_cast %55 : vector<1x16x16x32xf32> to vector<16x16x32xf32>
    %c7 = arith.constant 7 : index
    %c0_39 = arith.constant 0 : index
    %57 = vector.load %arg3[%c7, %c0_39] : memref<9x32xf32, #tpu.memory_space<vmem>>, vector<1x32xf32>
    %58 = vector.shape_cast %57 : vector<1x32xf32> to vector<32xf32>
    %59 = vector.shape_cast %58 : vector<32xf32> to vector<1x1x32xf32>
    %60 = vector.broadcast %59 : vector<1x1x32xf32> to vector<16x16x32xf32>
    %61 = arith.mulf %56, %60 : vector<16x16x32xf32>
    %62 = arith.addf %54, %61 : vector<16x16x32xf32>
    %c0_40 = arith.constant 0 : index
    %c2_41 = arith.constant 2 : index
    %c2_42 = arith.constant 2 : index
    %c0_43 = arith.constant 0 : index
    %63 = vector.load %arg2[%c0_40, %c2_41, %c2_42, %c0_43] : memref<1x18x18x32xf32, #tpu.memory_space<vmem>>, vector<1x16x16x32xf32>
    %64 = vector.shape_cast %63 : vector<1x16x16x32xf32> to vector<16x16x32xf32>
    %c8 = arith.constant 8 : index
    %c0_44 = arith.constant 0 : index
    %65 = vector.load %arg3[%c8, %c0_44] : memref<9x32xf32, #tpu.memory_space<vmem>>, vector<1x32xf32>
    %66 = vector.shape_cast %65 : vector<1x32xf32> to vector<32xf32>
    %67 = vector.shape_cast %66 : vector<32xf32> to vector<1x1x32xf32>
    %68 = vector.broadcast %67 : vector<1x1x32xf32> to vector<16x16x32xf32>
    %69 = arith.mulf %64, %68 : vector<16x16x32xf32>
    %70 = arith.addf %62, %69 : vector<16x16x32xf32>
    %c0_45 = arith.constant 0 : index
    %c0_46 = arith.constant 0 : index
    %71 = vector.load %arg4[%c0_45, %c0_46] : memref<1x32xf32, #tpu.memory_space<vmem>>, vector<1x32xf32>
    %72 = vector.shape_cast %71 : vector<1x32xf32> to vector<32xf32>
    %73 = vector.shape_cast %72 : vector<32xf32> to vector<1x1x32xf32>
    %74 = vector.broadcast %73 : vector<1x1x32xf32> to vector<16x16x32xf32>
    %75 = arith.addf %70, %74 : vector<16x16x32xf32>
    %cst = arith.constant 0.000000e+00 : f32
    %cst_47 = arith.constant 6.000000e+00 : f32
    %76 = vector.broadcast %cst : f32 to vector<16x16x32xf32>
    %77 = arith.maximumf %76, %75 : vector<16x16x32xf32>
    %78 = vector.broadcast %cst_47 : f32 to vector<16x16x32xf32>
    %79 = arith.minimumf %78, %77 : vector<16x16x32xf32>
    %c0_48 = arith.constant 0 : index
    %c0_49 = arith.constant 0 : index
    %c0_50 = arith.constant 0 : index
    %c0_51 = arith.constant 0 : index
    %80 = vector.load %arg5[%c0_48, %c0_49, %c0_50, %c0_51] : memref<1x16x16x32xf32, #tpu.memory_space<vmem>>, vector<1x16x16x32xf32>
    %81 = vector.shape_cast %80 : vector<1x16x16x32xf32> to vector<16x16x32xf32>
    %82 = vector.shape_cast %79 : vector<16x16x32xf32> to vector<1x16x16x32xf32>
    tpu.vector_store %arg5[%c0_48, %c0_49, %c0_50, %c0_51], %82 {strides = array<i32>} : memref<1x16x16x32xf32, #tpu.memory_space<vmem>>, vector<1x16x16x32xf32>,
    return
  }
  func.func @transform_0(%arg0: i32, %arg1: i32) -> (i32, i32, i32, i32) {
    %c0_i32 = arith.constant 0 : i32
    %c0_i32_0 = arith.constant 0 : i32
    %c0_i32_1 = arith.constant 0 : i32
    return %arg0, %c0_i32, %c0_i32_0, %arg1 : i32, i32, i32, i32
  }
  func.func @transform_1(%arg0: i32, %arg1: i32) -> (i32, i32) {
    %c0_i32 = arith.constant 0 : i32
    %c0_i32_0 = arith.constant 0 : i32
    return %c0_i32, %arg1 : i32, i32
  }
  func.func @transform_2(%arg0: i32, %arg1: i32) -> (i32, i32) {
    %c0_i32 = arith.constant 0 : i32
    %c0_i32_0 = arith.constant 0 : i32
    return %c0_i32, %arg1 : i32, i32
  }
  func.func @transform_3(%arg0: i32, %arg1: i32) -> (i32, i32, i32, i32) {
    %c0_i32 = arith.constant 0 : i32
    %c0_i32_0 = arith.constant 0 : i32
    %c0_i32_1 = arith.constant 0 : i32
    return %arg0, %c0_i32, %c0_i32_0, %arg1 : i32, i32, i32, i32
  }
}

module attributes {stable_mosaic.version = 11 : i64} {
  func.func @_mm_kernel(%arg0: i32, %arg1: memref<512x32xf32, #tpu.memory_space<vmem>>, %arg2: memref<32x16xbf16, #tpu.memory_space<vmem>>, %arg3: memref<1x16xf32, #tpu.memory_space<vmem>>, %arg4: memref<512x16xf32, #tpu.memory_space<vmem>>, %arg5: memref<512x16xf32, #tpu.memory_space<vmem>>, %arg6: memref<512x16xf32, #tpu.memory_space<vmem>>) attributes {dimension_semantics = [#tpu.dimension_semantics<parallel>], iteration_bounds = array<i64: 1>, scalar_prefetch = 0 : i64, scratch_operands = 0 : i64, tpu.core_type = #tpu.core_type<tc>, window_params = [{transform_indices = @transform_0, window_bounds = array<i64: 512, 32>}, {pipeline_mode = #tpu.pipeline_mode<synchronous>, transform_indices = @transform_1, window_bounds = array<i64: 32, 16>}, {pipeline_mode = #tpu.pipeline_mode<synchronous>, transform_indices = @transform_2, window_bounds = array<i64: 1, 16>}, {transform_indices = @transform_3, window_bounds = array<i64: 512, 16>}, {transform_indices = @transform_4, window_bounds = array<i64: 512, 16>}, {transform_indices = @transform_5, window_bounds = array<i64: 512, 16>}]} {
    %c0 = arith.constant 0 : index
    %c0_0 = arith.constant 0 : index
    %0 = vector.load %arg1[%c0, %c0_0] : memref<512x32xf32, #tpu.memory_space<vmem>>, vector<512x32xf32>
    %1 = arith.truncf %0 : vector<512x32xf32> to vector<512x32xbf16>
    %c0_1 = arith.constant 0 : index
    %c0_2 = arith.constant 0 : index
    %2 = vector.load %arg2[%c0_1, %c0_2] : memref<32x16xbf16, #tpu.memory_space<vmem>>, vector<32x16xbf16>
    %cst = arith.constant dense<0.000000e+00> : vector<512x16xf32>
    %3 = tpu.matmul %1, %2, %cst {dimension_numbers = #tpu.dot_dimension_numbers<[1], [0], [0], [1], [0, 0, 1, 1], [], []>} : vector<512x32xbf16>, vector<32x16xbf16>, vector<512x16xf32> -> vector<512x16xf32>
    %c0_3 = arith.constant 0 : index
    %c0_4 = arith.constant 0 : index
    %4 = vector.load %arg3[%c0_3, %c0_4] : memref<1x16xf32, #tpu.memory_space<vmem>>, vector<1x16xf32>
    %5 = vector.broadcast %4 : vector<1x16xf32> to vector<512x16xf32>
    %6 = arith.addf %3, %5 : vector<512x16xf32>
    %c0_5 = arith.constant 0 : index
    %c0_6 = arith.constant 0 : index
    %7 = vector.load %arg4[%c0_5, %c0_6] : memref<512x16xf32, #tpu.memory_space<vmem>>, vector<512x16xf32>
    %8 = arith.addf %6, %7 : vector<512x16xf32>
    %c0_7 = arith.constant 0 : index
    %c0_8 = arith.constant 0 : index
    %9 = vector.load %arg5[%c0_7, %c0_8] : memref<512x16xf32, #tpu.memory_space<vmem>>, vector<512x16xf32>
    %10 = arith.addf %8, %9 : vector<512x16xf32>
    %cst_9 = arith.constant 0.000000e+00 : f32
    %11 = vector.broadcast %cst_9 : f32 to vector<512x16xf32>
    %12 = arith.maximumf %10, %11 : vector<512x16xf32>
    %c0_10 = arith.constant 0 : index
    %c0_11 = arith.constant 0 : index
    %13 = vector.load %arg6[%c0_10, %c0_11] : memref<512x16xf32, #tpu.memory_space<vmem>>, vector<512x16xf32>
    tpu.vector_store %arg6[%c0_10, %c0_11], %12 {strides = array<i32>} : memref<512x16xf32, #tpu.memory_space<vmem>>, vector<512x16xf32>,
    return
  }
  func.func @transform_0(%arg0: i32) -> (i32, i32) {
    %c0_i32 = arith.constant 0 : i32
    %c0_i32_0 = arith.constant 0 : i32
    return %arg0, %c0_i32 : i32, i32
  }
  func.func @transform_1(%arg0: i32) -> (i32, i32) {
    %c0_i32 = arith.constant 0 : i32
    %c0_i32_0 = arith.constant 0 : i32
    %c0_i32_1 = arith.constant 0 : i32
    return %c0_i32, %c0_i32_0 : i32, i32
  }
  func.func @transform_2(%arg0: i32) -> (i32, i32) {
    %c0_i32 = arith.constant 0 : i32
    %c0_i32_0 = arith.constant 0 : i32
    %c0_i32_1 = arith.constant 0 : i32
    return %c0_i32, %c0_i32_0 : i32, i32
  }
  func.func @transform_3(%arg0: i32) -> (i32, i32) {
    %c0_i32 = arith.constant 0 : i32
    %c0_i32_0 = arith.constant 0 : i32
    return %arg0, %c0_i32 : i32, i32
  }
  func.func @transform_4(%arg0: i32) -> (i32, i32) {
    %c0_i32 = arith.constant 0 : i32
    %c0_i32_0 = arith.constant 0 : i32
    return %arg0, %c0_i32 : i32, i32
  }
  func.func @transform_5(%arg0: i32) -> (i32, i32) {
    %c0_i32 = arith.constant 0 : i32
    %c0_i32_0 = arith.constant 0 : i32
    return %arg0, %c0_i32 : i32, i32
  }
}

</mosaic_0001>

<llo_original>
// kernel: hourglass2d_forward.20
$region0: #{hourglass2d_forward.20}
  #allocation0 [shape = 'u32[]', space=smem, size = 0x4, offset = 0x4, fixed_abs, tag = 'smem constant byte address 0x4 - core index']
  #allocation1 [shape = 'u32[72,128]{1,0:T(1,128)}', space=vmem, size = 0x9000, scoped, tag = 'internal scratch']
  %s0 = inlined_call_operand.vmem [shape: f32[512,16], index: 0, kind: input, shape index: {}]
  %s1 = inlined_call_operand.vmem [shape: bf16[16,32], index: 1, kind: input, shape index: {}]
  %s2 = inlined_call_operand.vmem [shape: f32[1,32], index: 2, kind: input, shape index: {}]
  %s3 = inlined_call_operand.vmem [shape: f32[512,32], index: 3, kind: output, shape index: {}]
  %s4 = sld [smem:[#allocation0]]
  $region22: #{hourglass2d_forward.20} parent=0
    _
  %s6 = ssub.s32 1, %s4
  %s7 = scalar_select 0, %s6, %s4
  // Predicated region
  $region2: #{hourglass2d_forward.20} parent=0 // pred_check
    _
  $region3: #{hourglass2d_forward.20} parent=0 // pred_check_branch
    %9 = sbr.rel (0) target = $region5
  $region4: #{hourglass2d_forward.20} parent=0 // pred_region
    _
  $region5: #{hourglass2d_forward.20} parent=0 // pred_fallthru
    _
  // Predicated region
  $region6: #{hourglass2d_forward.20} parent=0 // pred_check
    _
  $region7: #{hourglass2d_forward.20} parent=0 // pred_check_branch
    %11 = sbr.rel (0) target = $region9
  $region8: #{hourglass2d_forward.20} parent=0 // pred_region
    _
  $region9: #{hourglass2d_forward.20} parent=0 // pred_fallthru
    _
  // Predicated region
  $region10: #{hourglass2d_forward.20} parent=0 // pred_check
    _
  $region11: #{hourglass2d_forward.20} parent=0 // pred_check_branch
    %13 = sbr.rel (0) target = $region13
  $region12: #{hourglass2d_forward.20} parent=0 // pred_region
    _
  $region13: #{hourglass2d_forward.20} parent=0 // pred_fallthru
    _
  %v15 = vld [vmem:[%s0] sm:$0xff]
  %v16 = vld [vmem:[%s0 + $0x8] sm:$0xff]
  %v17 = vld [vmem:[%s0 + $0x10] sm:$0xff]
  %v18 = vld [vmem:[%s0 + $0x18] sm:$0xff]
  %v19 = vld [vmem:[%s0 + $0x20] sm:$0xff]
  %v20 = vld [vmem:[%s0 + $0x28] sm:$0xff]
  %v21 = vld [vmem:[%s0 + $0x30] sm:$0xff]
  %v22 = vld [vmem:[%s0 + $0x38] sm:$0xff]
  %v23 = vld [vmem:[%s0 + $0x40] sm:$0xff]
  %v24 = vld [vmem:[%s0 + $0x48] sm:$0xff]
  %v25 = vld [vmem:[%s0 + $0x50] sm:$0xff]
  %v26 = vld [vmem:[%s0 + $0x58] sm:$0xff]
  %v27 = vld [vmem:[%s0 + $0x60] sm:$0xff]
  %v28 = vld [vmem:[%s0 + $0x68] sm:$0xff]
  %v29 = vld [vmem:[%s0 + $0x70] sm:$0xff]
  %v30 = vld [vmem:[%s0 + $0x78] sm:$0xff]
  %v31 = vld [vmem:[%s0 + $0x80] sm:$0xff]
  %v32 = vld [vmem:[%s0 + $0x88] sm:$0xff]
  %v33 = vld [vmem:[%s0 + $0x90] sm:$0xff]
  %v34 = vld [vmem:[%s0 + $0x98] sm:$0xff]
  %v35 = vld [vmem:[%s0 + $0xa0] sm:$0xff]
  %v36 = vld [vmem:[%s0 + $0xa8] sm:$0xff]
  %v37 = vld [vmem:[%s0 + $0xb0] sm:$0xff]
  %v38 = vld [vmem:[%s0 + $0xb8] sm:$0xff]
  %v39 = vld [vmem:[%s0 + $0xc0] sm:$0xff]
  %v40 = vld [vmem:[%s0 + $0xc8] sm:$0xff]
  %v41 = vld [vmem:[%s0 + $0xd0] sm:$0xff]
  %v42 = vld [vmem:[%s0 + $0xd8] sm:$0xff]
  %v43 = vld [vmem:[%s0 + $0xe0] sm:$0xff]
  %v44 = vld [vmem:[%s0 + $0xe8] sm:$0xff]
  %v45 = vld [vmem:[%s0 + $0xf0] sm:$0xff]
  %v46 = vld [vmem:[%s0 + $0xf8] sm:$0xff]
  %v47 = vld [vmem:[%s0 + $0x100] sm:$0xff]
  %v48 = vld [vmem:[%s0 + $0x108] sm:$0xff]
  %v49 = vld [vmem:[%s0 + $0x110] sm:$0xff]
  %v50 = vld [vmem:[%s0 + $0x118] sm:$0xff]
  %v51 = vld [vmem:[%s0 + $0x120] sm:$0xff]
  %v52 = vld [vmem:[%s0 + $0x128] sm:$0xff]
  %v53 = vld [vmem:[%s0 + $0x130] sm:$0xff]
  %v54 = vld [vmem:[%s0 + $0x138] sm:$0xff]
  %v55 = vld [vmem:[%s0 + $0x140] sm:$0xff]
  %v56 = vld [vmem:[%s0 + $0x148] sm:$0xff]
  %v57 = vld [vmem:[%s0 + $0x150] sm:$0xff]
  %v58 = vld [vmem:[%s0 + $0x158] sm:$0xff]
  %v59 = vld [vmem:[%s0 + $0x160] sm:$0xff]
  %v60 = vld [vmem:[%s0 + $0x168] sm:$0xff]
  %v61 = vld [vmem:[%s0 + $0x170] sm:$0xff]
  %v62 = vld [vmem:[%s0 + $0x178] sm:$0xff]
  %v63 = vld [vmem:[%s0 + $0x180] sm:$0xff]
  %v64 = vld [vmem:[%s0 + $0x188] sm:$0xff]
  %v65 = vld [vmem:[%s0 + $0x190] sm:$0xff]
  %v66 = vld [vmem:[%s0 + $0x198] sm:$0xff]
  %v67 = vld [vmem:[%s0 + $0x1a0] sm:$0xff]
  %v68 = vld [vmem:[%s0 + $0x1a8] sm:$0xff]
  %v69 = vld [vmem:[%s0 + $0x1b0] sm:$0xff]
  %v70 = vld [vmem:[%s0 + $0x1b8] sm:$0xff]
  %v71 = vld [vmem:[%s0 + $0x1c0] sm:$0xff]
  %v72 = vld [vmem:[%s0 + $0x1c8] sm:$0xff]
  %v73 = vld [vmem:[%s0 + $0x1d0] sm:$0xff]
  %v74 = vld [vmem:[%s0 + $0x1d8] sm:$0xff]
  %v75 = vld [vmem:[%s0 + $0x1e0] sm:$0xff]
  %v76 = vld [vmem:[%s0 + $0x1e8] sm:$0xff]
  %v77 = vld [vmem:[%s0 + $0x1f0] sm:$0xff]
  %v78 = vld [vmem:[%s0 + $0x1f8] sm:$0xff]
  %v79 = vpack.c.bf16 %v16, %v15
  %v80 = vpack.c.bf16 %v18, %v17
  %v81 = vpack.c.bf16 %v20, %v19
  %v82 = vpack.c.bf16 %v22, %v21
  %v83 = vpack.c.bf16 %v24, %v23
  %v84 = vpack.c.bf16 %v26, %v25
  %v85 = vpack.c.bf16 %v28, %v27
  %v86 = vpack.c.bf16 %v30, %v29
  %v87 = vpack.c.bf16 %v32, %v31
  %v88 = vpack.c.bf16 %v34, %v33
  %v89 = vpack.c.bf16 %v36, %v35
  %v90 = vpack.c.bf16 %v38, %v37
  %v91 = vpack.c.bf16 %v40, %v39
  %v92 = vpack.c.bf16 %v42, %v41
  %v93 = vpack.c.bf16 %v44, %v43
  %v94 = vpack.c.bf16 %v46, %v45
  %v95 = vpack.c.bf16 %v48, %v47
  %v96 = vpack.c.bf16 %v50, %v49
  %v97 = vpack.c.bf16 %v52, %v51
  %v98 = vpack.c.bf16 %v54, %v53
  %v99 = vpack.c.bf16 %v56, %v55
  %v100 = vpack.c.bf16 %v58, %v57
  %v101 = vpack.c.bf16 %v60, %v59
  %v102 = vpack.c.bf16 %v62, %v61
  %v103 = vpack.c.bf16 %v64, %v63
  %v104 = vpack.c.bf16 %v66, %v65
  %v105 = vpack.c.bf16 %v68, %v67
  %v106 = vpack.c.bf16 %v70, %v69
  %v107 = vpack.c.bf16 %v72, %v71
  %v108 = vpack.c.bf16 %v74, %v73
  %v109 = vpack.c.bf16 %v76, %v75
  %v110 = vpack.c.bf16 %v78, %v77
  %v111 = vld [vmem:[%s1] sm:$0xf]
  %v112 = vld [vmem:[%s1 + $0x4] sm:$0xf]
  %v113 = vld [vmem:[%s2] sm:$0x1]
  %v115 = vperm.slane %v113, 0
  %v119 = vunpack.c.l.b16 %v111
  %v120 = vunpack.c.l.b16 %v112
  %v121 = vpack.c.b16 %v120, %v119
  %vm123 = vcmask 130048
  %v125 = vsel %vm123, %v79, 0
  %v128 = vsel %vm123, %v80, 0
  %v131 = vsel %vm123, %v81, 0
  %v134 = vsel %vm123, %v82, 0
  %v137 = vsel %vm123, %v83, 0
  %v140 = vsel %vm123, %v84, 0
  %v143 = vsel %vm123, %v85, 0
  %v146 = vsel %vm123, %v86, 0
  %v149 = vsel %vm123, %v87, 0
  %v152 = vsel %vm123, %v88, 0
  %v155 = vsel %vm123, %v89, 0
  %v158 = vsel %vm123, %v90, 0
  %v161 = vsel %vm123, %v91, 0
  %v164 = vsel %vm123, %v92, 0
  %v167 = vsel %vm123, %v93, 0
  %v170 = vsel %vm123, %v94, 0
  %v173 = vsel %vm123, %v95, 0
  %v176 = vsel %vm123, %v96, 0
  %v179 = vsel %vm123, %v97, 0
  %v182 = vsel %vm123, %v98, 0
  %v185 = vsel %vm123, %v99, 0
  %v188 = vsel %vm123, %v100, 0
  %v191 = vsel %vm123, %v101, 0
  %v194 = vsel %vm123, %v102, 0
  %v197 = vsel %vm123, %v103, 0
  %v200 = vsel %vm123, %v104, 0
  %v203 = vsel %vm123, %v105, 0
  %v206 = vsel %vm123, %v106, 0
  %v209 = vsel %vm123, %v107, 0
  %v212 = vsel %vm123, %v108, 0
  %v215 = vsel %vm123, %v109, 0
  %v218 = vsel %vm123, %v110, 0
  %220 = vmatpush.bf16.msra.mxu0 0
  %221 = vmatpush.bf16.msra.mxu0 0
  %222 = vmatpush.bf16.msra.mxu0 0
  %223 = vmatpush.bf16.msra.mxu0 0
  %224 = vmatpush.bf16.msra.mxu0 0
  %225 = vmatpush.bf16.msra.mxu0 0
  %226 = vmatpush.bf16.msra.mxu0 0
  %227 = vmatpush.bf16.msra.mxu0 %v121
  %228 = vmatmul.bf16.gmra.mxu0 %v125
  %v229 = vpop.f32.mrf.mxu0
  %v230 = vadd.f32 %v115, %v229
  %v231 = vpop.f32.mrf.mxu0
  %v232 = vadd.f32 %v115, %v231
  %233 = vmatmul.bf16.gmra.mxu0 %v128
  %v234 = vpop.f32.mrf.mxu0
  %v235 = vadd.f32 %v115, %v234
  %v236 = vpop.f32.mrf.mxu0
  %v237 = vadd.f32 %v115, %v236
  %238 = vmatmul.bf16.gmra.mxu0 %v131
  %v239 = vpop.f32.mrf.mxu0
  %v240 = vadd.f32 %v115, %v239
  %v241 = vpop.f32.mrf.mxu0
  %v242 = vadd.f32 %v115, %v241
  %243 = vmatmul.bf16.gmra.mxu0 %v134
  %v244 = vpop.f32.mrf.mxu0
  %v245 = vadd.f32 %v115, %v244
  %v246 = vpop.f32.mrf.mxu0
  %v247 = vadd.f32 %v115, %v246
  %248 = vmatmul.bf16.gmra.mxu0 %v137
  %v249 = vpop.f32.mrf.mxu0
  %v250 = vadd.f32 %v115, %v249
  %v251 = vpop.f32.mrf.mxu0
  %v252 = vadd.f32 %v115, %v251
  %253 = vmatmul.bf16.gmra.mxu0 %v140
  %v254 = vpop.f32.mrf.mxu0
  %v255 = vadd.f32 %v115, %v254
  %v256 = vpop.f32.mrf.mxu0
  %v257 = vadd.f32 %v115, %v256
  %258 = vmatmul.bf16.gmra.mxu0 %v143
  %v259 = vpop.f32.mrf.mxu0
  %v260 = vadd.f32 %v115, %v259
  %v261 = vpop.f32.mrf.mxu0
  %v262 = vadd.f32 %v115, %v261
  %263 = vmatmul.bf16.gmra.mxu0 %v146
  %v264 = vpop.f32.mrf.mxu0
  %v265 = vadd.f32 %v115, %v264
  %v266 = vpop.f32.mrf.mxu0
  %v267 = vadd.f32 %v115, %v266
  %268 = vmatmul.bf16.gmra.mxu0 %v149
  %v269 = vpop.f32.mrf.mxu0
  %v270 = vadd.f32 %v115, %v269
  %v271 = vpop.f32.mrf.mxu0
  %v272 = vadd.f32 %v115, %v271
  %273 = vmatmul.bf16.gmra.mxu0 %v152
  %v274 = vpop.f32.mrf.mxu0
  %v275 = vadd.f32 %v115, %v274
  %v276 = vpop.f32.mrf.mxu0
  %v277 = vadd.f32 %v115, %v276
  %278 = vmatmul.bf16.gmra.mxu0 %v155
  %v279 = vpop.f32.mrf.mxu0
  %v280 = vadd.f32 %v115, %v279
  %v281 = vpop.f32.mrf.mxu0
  %v282 = vadd.f32 %v115, %v281
  %283 = vmatmul.bf16.gmra.mxu0 %v158
  %v284 = vpop.f32.mrf.mxu0
  %v285 = vadd.f32 %v115, %v284
  %v286 = vpop.f32.mrf.mxu0
  %v287 = vadd.f32 %v115, %v286
  %288 = vmatmul.bf16.gmra.mxu0 %v161
  %v289 = vpop.f32.mrf.mxu0
  %v290 = vadd.f32 %v115, %v289
  %v291 = vpop.f32.mrf.mxu0
  %v292 = vadd.f32 %v115, %v291
  %293 = vmatmul.bf16.gmra.mxu0 %v164
  %v294 = vpop.f32.mrf.mxu0
  %v295 = vadd.f32 %v115, %v294
  %v296 = vpop.f32.mrf.mxu0
  %v297 = vadd.f32 %v115, %v296
  %298 = vmatmul.bf16.gmra.mxu0 %v167
  %v299 = vpop.f32.mrf.mxu0
  %v300 = vadd.f32 %v115, %v299
  %v301 = vpop.f32.mrf.mxu0
  %v302 = vadd.f32 %v115, %v301
  %303 = vmatmul.bf16.gmra.mxu0 %v170
  %v304 = vpop.f32.mrf.mxu0
  %v305 = vadd.f32 %v115, %v304
  %v306 = vpop.f32.mrf.mxu0
  %v307 = vadd.f32 %v115, %v306
  %308 = vmatmul.bf16.gmra.mxu0 %v173
  %v309 = vpop.f32.mrf.mxu0
  %v310 = vadd.f32 %v115, %v309
  %v311 = vpop.f32.mrf.mxu0
  %v312 = vadd.f32 %v115, %v311
  %313 = vmatmul.bf16.gmra.mxu0 %v176
  %v314 = vpop.f32.mrf.mxu0
  %v315 = vadd.f32 %v115, %v314
  %v316 = vpop.f32.mrf.mxu0
  %v317 = vadd.f32 %v115, %v316
  %318 = vmatmul.bf16.gmra.mxu0 %v179
  %v319 = vpop.f32.mrf.mxu0
  %v320 = vadd.f32 %v115, %v319
  %v321 = vpop.f32.mrf.mxu0
  %v322 = vadd.f32 %v115, %v321
  %323 = vmatmul.bf16.gmra.mxu0 %v182
  %v324 = vpop.f32.mrf.mxu0
  %v325 = vadd.f32 %v115, %v324
  %v326 = vpop.f32.mrf.mxu0
  %v327 = vadd.f32 %v115, %v326
  %328 = vmatmul.bf16.gmra.mxu0 %v185
  %v329 = vpop.f32.mrf.mxu0
  %v330 = vadd.f32 %v115, %v329
  %v331 = vpop.f32.mrf.mxu0
  %v332 = vadd.f32 %v115, %v331
  %333 = vmatmul.bf16.gmra.mxu0 %v188
  %v334 = vpop.f32.mrf.mxu0
  %v335 = vadd.f32 %v115, %v334
  %v336 = vpop.f32.mrf.mxu0
  %v337 = vadd.f32 %v115, %v336
  %338 = vmatmul.bf16.gmra.mxu0 %v191
  %v339 = vpop.f32.mrf.mxu0
  %v340 = vadd.f32 %v115, %v339
  %v341 = vpop.f32.mrf.mxu0
  %v342 = vadd.f32 %v115, %v341
  %343 = vmatmul.bf16.gmra.mxu0 %v194
  %v344 = vpop.f32.mrf.mxu0
  %v345 = vadd.f32 %v115, %v344
  %v346 = vpop.f32.mrf.mxu0
  %v347 = vadd.f32 %v115, %v346
  %348 = vmatmul.bf16.gmra.mxu0 %v197
  %v349 = vpop.f32.mrf.mxu0
  %v350 = vadd.f32 %v115, %v349
  %v351 = vpop.f32.mrf.mxu0
  %v352 = vadd.f32 %v115, %v351
  %353 = vmatmul.bf16.gmra.mxu0 %v200
  %v354 = vpop.f32.mrf.mxu0
  %v355 = vadd.f32 %v115, %v354
  %v356 = vpop.f32.mrf.mxu0
  %v357 = vadd.f32 %v115, %v356
  %358 = vmatmul.bf16.gmra.mxu0 %v203
  %v359 = vpop.f32.mrf.mxu0
  %v360 = vadd.f32 %v115, %v359
  %v361 = vpop.f32.mrf.mxu0
  %v362 = vadd.f32 %v115, %v361
  %363 = vmatmul.bf16.gmra.mxu0 %v206
  %v364 = vpop.f32.mrf.mxu0
  %v365 = vadd.f32 %v115, %v364
  %v366 = vpop.f32.mrf.mxu0
  %v367 = vadd.f32 %v115, %v366
  %368 = vmatmul.bf16.gmra.mxu0 %v209
  %v369 = vpop.f32.mrf.mxu0
  %v370 = vadd.f32 %v115, %v369
  %v371 = vpop.f32.mrf.mxu0
  %v372 = vadd.f32 %v115, %v371
  %373 = vmatmul.bf16.gmra.mxu0 %v212
  %v374 = vpop.f32.mrf.mxu0
  %v375 = vadd.f32 %v115, %v374
  %v376 = vpop.f32.mrf.mxu0
  %v377 = vadd.f32 %v115, %v376
  %378 = vmatmul.bf16.gmra.mxu0 %v215
  %v379 = vpop.f32.mrf.mxu0
  %v380 = vadd.f32 %v115, %v379
  %v381 = vpop.f32.mrf.mxu0
  %v382 = vadd.f32 %v115, %v381
  %383 = vmatmul.bf16.gmra.mxu0 %v218
  %v384 = vpop.f32.mrf.mxu0
  %v385 = vadd.f32 %v115, %v384
  %v386 = vpop.f32.mrf.mxu0
  %v387 = vadd.f32 %v115, %v386
  %388 = vdwg.mxu0
  %v389 = vmax.f32 %v230, 0.0
  %v390 = vmax.f32 %v232, 0.0
  %v391 = vmax.f32 %v235, 0.0
  %v392 = vmax.f32 %v237, 0.0
  %v393 = vmax.f32 %v240, 0.0
  %v394 = vmax.f32 %v242, 0.0
  %v395 = vmax.f32 %v245, 0.0
  %v396 = vmax.f32 %v247, 0.0
  %v397 = vmax.f32 %v250, 0.0
  %v398 = vmax.f32 %v252, 0.0
  %v399 = vmax.f32 %v255, 0.0
  %v400 = vmax.f32 %v257, 0.0
  %v401 = vmax.f32 %v260, 0.0
  %v402 = vmax.f32 %v262, 0.0
  %v403 = vmax.f32 %v265, 0.0
  %v404 = vmax.f32 %v267, 0.0
  %v405 = vmax.f32 %v270, 0.0
  %v406 = vmax.f32 %v272, 0.0
  %v407 = vmax.f32 %v275, 0.0
  %v408 = vmax.f32 %v277, 0.0
  %v409 = vmax.f32 %v280, 0.0
  %v410 = vmax.f32 %v282, 0.0
  %v411 = vmax.f32 %v285, 0.0
  %v412 = vmax.f32 %v287, 0.0
  %v413 = vmax.f32 %v290, 0.0
  %v414 = vmax.f32 %v292, 0.0
  %v415 = vmax.f32 %v295, 0.0
  %v416 = vmax.f32 %v297, 0.0
  %v417 = vmax.f32 %v300, 0.0
  %v418 = vmax.f32 %v302, 0.0
  %v419 = vmax.f32 %v305, 0.0
  %v420 = vmax.f32 %v307, 0.0
  %v421 = vmax.f32 %v310, 0.0
  %v422 = vmax.f32 %v312, 0.0
  %v423 = vmax.f32 %v315, 0.0
  %v424 = vmax.f32 %v317, 0.0
  %v425 = vmax.f32 %v320, 0.0
  %v426 = vmax.f32 %v322, 0.0
  %v427 = vmax.f32 %v325, 0.0
  %v428 = vmax.f32 %v327, 0.0
  %v429 = vmax.f32 %v330, 0.0
  %v430 = vmax.f32 %v332, 0.0
  %v431 = vmax.f32 %v335, 0.0
  %v432 = vmax.f32 %v337, 0.0
  %v433 = vmax.f32 %v340, 0.0
  %v434 = vmax.f32 %v342, 0.0
  %v435 = vmax.f32 %v345, 0.0
  %v436 = vmax.f32 %v347, 0.0
  %v437 = vmax.f32 %v350, 0.0
  %v438 = vmax.f32 %v352, 0.0
  %v439 = vmax.f32 %v355, 0.0
  %v440 = vmax.f32 %v357, 0.0
  %v441 = vmax.f32 %v360, 0.0
  %v442 = vmax.f32 %v362, 0.0
  %v443 = vmax.f32 %v365, 0.0
  %v444 = vmax.f32 %v367, 0.0
  %v445 = vmax.f32 %v370, 0.0
  %v446 = vmax.f32 %v372, 0.0
  %v447 = vmax.f32 %v375, 0.0
  %v448 = vmax.f32 %v377, 0.0
  %v449 = vmax.f32 %v380, 0.0
  %v450 = vmax.f32 %v382, 0.0
  %v451 = vmax.f32 %v385, 0.0
  %v452 = vmax.f32 %v387, 0.0
  %v453 = vmin.f32 %v389, 6.0
  %v454 = vmin.f32 %v390, 6.0
  %v455 = vmin.f32 %v391, 6.0
  %v456 = vmin.f32 %v392, 6.0
  %v457 = vmin.f32 %v393, 6.0
  %v458 = vmin.f32 %v394, 6.0
  %v459 = vmin.f32 %v395, 6.0
  %v460 = vmin.f32 %v396, 6.0
  %v461 = vmin.f32 %v397, 6.0
  %v462 = vmin.f32 %v398, 6.0
  %v463 = vmin.f32 %v399, 6.0
  %v464 = vmin.f32 %v400, 6.0
  %v465 = vmin.f32 %v401, 6.0
  %v466 = vmin.f32 %v402, 6.0
  %v467 = vmin.f32 %v403, 6.0
  %v468 = vmin.f32 %v404, 6.0
  %v469 = vmin.f32 %v405, 6.0
  %v470 = vmin.f32 %v406, 6.0
  %v471 = vmin.f32 %v407, 6.0
  %v472 = vmin.f32 %v408, 6.0
  %v473 = vmin.f32 %v409, 6.0
  %v474 = vmin.f32 %v410, 6.0
  %v475 = vmin.f32 %v411, 6.0
  %v476 = vmin.f32 %v412, 6.0
  %v477 = vmin.f32 %v413, 6.0
  %v478 = vmin.f32 %v414, 6.0
  %v479 = vmin.f32 %v415, 6.0
  %v480 = vmin.f32 %v416, 6.0
  %v481 = vmin.f32 %v417, 6.0
  %v482 = vmin.f32 %v418, 6.0
  %v483 = vmin.f32 %v419, 6.0
  %v484 = vmin.f32 %v420, 6.0
  %v485 = vmin.f32 %v421, 6.0
  %v486 = vmin.f32 %v422, 6.0
  %v487 = vmin.f32 %v423, 6.0
  %v488 = vmin.f32 %v424, 6.0
  %v489 = vmin.f32 %v425, 6.0
  %v490 = vmin.f32 %v426, 6.0
  %v491 = vmin.f32 %v427, 6.0
  %v492 = vmin.f32 %v428, 6.0
  %v493 = vmin.f32 %v429, 6.0
  %v494 = vmin.f32 %v430, 6.0
  %v495 = vmin.f32 %v431, 6.0
  %v496 = vmin.f32 %v432, 6.0
  %v497 = vmin.f32 %v433, 6.0
  %v498 = vmin.f32 %v434, 6.0
  %v499 = vmin.f32 %v435, 6.0
  %v500 = vmin.f32 %v436, 6.0
  %v501 = vmin.f32 %v437, 6.0
  %v502 = vmin.f32 %v438, 6.0
  %v503 = vmin.f32 %v439, 6.0
  %v504 = vmin.f32 %v440, 6.0
  %v505 = vmin.f32 %v441, 6.0
  %v506 = vmin.f32 %v442, 6.0
  %v507 = vmin.f32 %v443, 6.0
  %v508 = vmin.f32 %v444, 6.0
  %v509 = vmin.f32 %v445, 6.0
  %v510 = vmin.f32 %v446, 6.0
  %v511 = vmin.f32 %v447, 6.0
  %v512 = vmin.f32 %v448, 6.0
  %v513 = vmin.f32 %v449, 6.0
  %v514 = vmin.f32 %v450, 6.0
  %v515 = vmin.f32 %v451, 6.0
  %v516 = vmin.f32 %v452, 6.0
  %vm517 = vcmask 261120
  %518 = vst.msk [vmem:[%s3] sm:$0xff] %vm517, %v453
  %519 = vst.msk [vmem:[%s3 + $0x8] sm:$0xff] %vm517, %v454
  %520 = vst.msk [vmem:[%s3 + $0x10] sm:$0xff] %vm517, %v455
  %521 = vst.msk [vmem:[%s3 + $0x18] sm:$0xff] %vm517, %v456
  %522 = vst.msk [vmem:[%s3 + $0x20] sm:$0xff] %vm517, %v457
  %523 = vst.msk [vmem:[%s3 + $0x28] sm:$0xff] %vm517, %v458
  %524 = vst.msk [vmem:[%s3 + $0x30] sm:$0xff] %vm517, %v459
  %525 = vst.msk [vmem:[%s3 + $0x38] sm:$0xff] %vm517, %v460
  %526 = vst.msk [vmem:[%s3 + $0x40] sm:$0xff] %vm517, %v461
  %527 = vst.msk [vmem:[%s3 + $0x48] sm:$0xff] %vm517, %v462
  %528 = vst.msk [vmem:[%s3 + $0x50] sm:$0xff] %vm517, %v463
  %529 = vst.msk [vmem:[%s3 + $0x58] sm:$0xff] %vm517, %v464
  %530 = vst.msk [vmem:[%s3 + $0x60] sm:$0xff] %vm517, %v465
  %531 = vst.msk [vmem:[%s3 + $0x68] sm:$0xff] %vm517, %v466
  %532 = vst.msk [vmem:[%s3 + $0x70] sm:$0xff] %vm517, %v467
  %533 = vst.msk [vmem:[%s3 + $0x78] sm:$0xff] %vm517, %v468
  %534 = vst.msk [vmem:[%s3 + $0x80] sm:$0xff] %vm517, %v469
  %535 = vst.msk [vmem:[%s3 + $0x88] sm:$0xff] %vm517, %v470
  %536 = vst.msk [vmem:[%s3 + $0x90] sm:$0xff] %vm517, %v471
  %537 = vst.msk [vmem:[%s3 + $0x98] sm:$0xff] %vm517, %v472
  %538 = vst.msk [vmem:[%s3 + $0xa0] sm:$0xff] %vm517, %v473
  %539 = vst.msk [vmem:[%s3 + $0xa8] sm:$0xff] %vm517, %v474
  %540 = vst.msk [vmem:[%s3 + $0xb0] sm:$0xff] %vm517, %v475
  %541 = vst.msk [vmem:[%s3 + $0xb8] sm:$0xff] %vm517, %v476
  %542 = vst.msk [vmem:[%s3 + $0xc0] sm:$0xff] %vm517, %v477
  %543 = vst.msk [vmem:[%s3 + $0xc8] sm:$0xff] %vm517, %v478
  %544 = vst.msk [vmem:[%s3 + $0xd0] sm:$0xff] %vm517, %v479
  %545 = vst.msk [vmem:[%s3 + $0xd8] sm:$0xff] %vm517, %v480
  %546 = vst.msk [vmem:[%s3 + $0xe0] sm:$0xff] %vm517, %v481
  %547 = vst.msk [vmem:[%s3 + $0xe8] sm:$0xff] %vm517, %v482
  %548 = vst.msk [vmem:[%s3 + $0xf0] sm:$0xff] %vm517, %v483
  %549 = vst.msk [vmem:[%s3 + $0xf8] sm:$0xff] %vm517, %v484
  %550 = vst.msk [vmem:[%s3 + $0x100] sm:$0xff] %vm517, %v485
  %551 = vst.msk [vmem:[%s3 + $0x108] sm:$0xff] %vm517, %v486
  %552 = vst.msk [vmem:[%s3 + $0x110] sm:$0xff] %vm517, %v487
  %553 = vst.msk [vmem:[%s3 + $0x118] sm:$0xff] %vm517, %v488
  %554 = vst.msk [vmem:[%s3 + $0x120] sm:$0xff] %vm517, %v489
  %555 = vst.msk [vmem:[%s3 + $0x128] sm:$0xff] %vm517, %v490
  %556 = vst.msk [vmem:[%s3 + $0x130] sm:$0xff] %vm517, %v491
  %557 = vst.msk [vmem:[%s3 + $0x138] sm:$0xff] %vm517, %v492
  %558 = vst.msk [vmem:[%s3 + $0x140] sm:$0xff] %vm517, %v493
  %559 = vst.msk [vmem:[%s3 + $0x148] sm:$0xff] %vm517, %v494
  %560 = vst.msk [vmem:[%s3 + $0x150] sm:$0xff] %vm517, %v495
  %561 = vst.msk [vmem:[%s3 + $0x158] sm:$0xff] %vm517, %v496
  %562 = vst.msk [vmem:[%s3 + $0x160] sm:$0xff] %vm517, %v497
  %563 = vst.msk [vmem:[%s3 + $0x168] sm:$0xff] %vm517, %v498
  %564 = vst.msk [vmem:[%s3 + $0x170] sm:$0xff] %vm517, %v499
  %565 = vst.msk [vmem:[%s3 + $0x178] sm:$0xff] %vm517, %v500
  %566 = vst.msk [vmem:[%s3 + $0x180] sm:$0xff] %vm517, %v501
  %567 = vst.msk [vmem:[%s3 + $0x188] sm:$0xff] %vm517, %v502
  %568 = vst.msk [vmem:[%s3 + $0x190] sm:$0xff] %vm517, %v503
  %569 = vst.msk [vmem:[%s3 + $0x198] sm:$0xff] %vm517, %v504
  %570 = vst.msk [vmem:[%s3 + $0x1a0] sm:$0xff] %vm517, %v505
  %571 = vst.msk [vmem:[%s3 + $0x1a8] sm:$0xff] %vm517, %v506
  %572 = vst.msk [vmem:[%s3 + $0x1b0] sm:$0xff] %vm517, %v507
  %573 = vst.msk [vmem:[%s3 + $0x1b8] sm:$0xff] %vm517, %v508
  %574 = vst.msk [vmem:[%s3 + $0x1c0] sm:$0xff] %vm517, %v509
  %575 = vst.msk [vmem:[%s3 + $0x1c8] sm:$0xff] %vm517, %v510
  %576 = vst.msk [vmem:[%s3 + $0x1d0] sm:$0xff] %vm517, %v511
  %577 = vst.msk [vmem:[%s3 + $0x1d8] sm:$0xff] %vm517, %v512
  %578 = vst.msk [vmem:[%s3 + $0x1e0] sm:$0xff] %vm517, %v513
  %579 = vst.msk [vmem:[%s3 + $0x1e8] sm:$0xff] %vm517, %v514
  %580 = vst.msk [vmem:[%s3 + $0x1f0] sm:$0xff] %vm517, %v515
  %581 = vst.msk [vmem:[%s3 + $0x1f8] sm:$0xff] %vm517, %v516
  // Predicated region
  $region14: #{hourglass2d_forward.20} parent=0 // pred_check
    _
  $region15: #{hourglass2d_forward.20} parent=0 // pred_check_branch
    %583 = sbr.rel (0) target = $region17
  $region16: #{hourglass2d_forward.20} parent=0 // pred_region
    _
  $region17: #{hourglass2d_forward.20} parent=0 // pred_fallthru
    _
  // Predicated region
  $region18: #{hourglass2d_forward.20} parent=0 // pred_check
    _
  $region19: #{hourglass2d_forward.20} parent=0 // pred_check_branch
    %585 = sbr.rel (0) target = $region21
  $region20: #{hourglass2d_forward.20} parent=0 // pred_region
    _
  $region21: #{hourglass2d_forward.20} parent=0 // pred_fallthru
    _

// kernel: hourglass2d_forward.22
$region0: #{hourglass2d_forward.22}
  #allocation0 [shape = 'u32[]', space=smem, size = 0x4, offset = 0x4, fixed_abs, tag = 'smem constant byte address 0x4 - core index']
  #allocation1 [shape = 'u32[72,128]{1,0:T(1,128)}', space=vmem, size = 0x9000, scoped, tag = 'internal scratch']
  %s0 = inlined_call_operand.vmem [shape: f32[128,32], index: 0, kind: input, shape index: {}]
  %s1 = inlined_call_operand.vmem [shape: bf16[32,32], index: 1, kind: input, shape index: {}]
  %s2 = inlined_call_operand.vmem [shape: f32[1,32], index: 2, kind: input, shape index: {}]
  %s3 = inlined_call_operand.vmem [shape: f32[128,32], index: 3, kind: output, shape index: {}]
  %s4 = sld [smem:[#allocation0]]
  $region22: #{hourglass2d_forward.22} parent=0
    _
  %s6 = ssub.s32 1, %s4
  %s7 = scalar_select 0, %s6, %s4
  // Predicated region
  $region2: #{hourglass2d_forward.22} parent=0 // pred_check
    _
  $region3: #{hourglass2d_forward.22} parent=0 // pred_check_branch
    %9 = sbr.rel (0) target = $region5
  $region4: #{hourglass2d_forward.22} parent=0 // pred_region
    _
  $region5: #{hourglass2d_forward.22} parent=0 // pred_fallthru
    _
  // Predicated region
  $region6: #{hourglass2d_forward.22} parent=0 // pred_check
    _
  $region7: #{hourglass2d_forward.22} parent=0 // pred_check_branch
    %11 = sbr.rel (0) target = $region9
  $region8: #{hourglass2d_forward.22} parent=0 // pred_region
    _
  $region9: #{hourglass2d_forward.22} parent=0 // pred_fallthru
    _
  // Predicated region
  $region10: #{hourglass2d_forward.22} parent=0 // pred_check
    _
  $region11: #{hourglass2d_forward.22} parent=0 // pred_check_branch
    %13 = sbr.rel (0) target = $region13
  $region12: #{hourglass2d_forward.22} parent=0 // pred_region
    _
  $region13: #{hourglass2d_forward.22} parent=0 // pred_fallthru
    _
  %v15 = vld [vmem:[%s0] sm:$0xff]
  %v16 = vld [vmem:[%s0 + $0x8] sm:$0xff]
  %v17 = vld [vmem:[%s0 + $0x10] sm:$0xff]
  %v18 = vld [vmem:[%s0 + $0x18] sm:$0xff]
  %v19 = vld [vmem:[%s0 + $0x20] sm:$0xff]
  %v20 = vld [vmem:[%s0 + $0x28] sm:$0xff]
  %v21 = vld [vmem:[%s0 + $0x30] sm:$0xff]
  %v22 = vld [vmem:[%s0 + $0x38] sm:$0xff]
  %v23 = vld [vmem:[%s0 + $0x40] sm:$0xff]
  %v24 = vld [vmem:[%s0 + $0x48] sm:$0xff]
  %v25 = vld [vmem:[%s0 + $0x50] sm:$0xff]
  %v26 = vld [vmem:[%s0 + $0x58] sm:$0xff]
  %v27 = vld [vmem:[%s0 + $0x60] sm:$0xff]
  %v28 = vld [vmem:[%s0 + $0x68] sm:$0xff]
  %v29 = vld [vmem:[%s0 + $0x70] sm:$0xff]
  %v30 = vld [vmem:[%s0 + $0x78] sm:$0xff]
  %v31 = vpack.c.bf16 %v16, %v15
  %v32 = vpack.c.bf16 %v18, %v17
  %v33 = vpack.c.bf16 %v20, %v19
  %v34 = vpack.c.bf16 %v22, %v21
  %v35 = vpack.c.bf16 %v24, %v23
  %v36 = vpack.c.bf16 %v26, %v25
  %v37 = vpack.c.bf16 %v28, %v27
  %v38 = vpack.c.bf16 %v30, %v29
  %v39 = vld [vmem:[%s1] sm:$0xf]
  %v40 = vld [vmem:[%s1 + $0x4] sm:$0xf]
  %v41 = vld [vmem:[%s1 + $0x8] sm:$0xf]
  %v42 = vld [vmem:[%s1 + $0xc] sm:$0xf]
  %v43 = vld [vmem:[%s2] sm:$0x1]
  %v45 = vperm.slane %v43, 0
  %v51 = vunpack.c.l.b16 %v39
  %v52 = vunpack.c.l.b16 %v40
  %v53 = vunpack.c.l.b16 %v41
  %v54 = vunpack.c.l.b16 %v42
  %v55 = vpack.c.b16 %v52, %v51
  %v56 = vpack.c.b16 %v54, %v53
  %vm59 = vcmask 261120
  %v61 = vsel %vm59, %v31, 0
  %v64 = vsel %vm59, %v32, 0
  %v67 = vsel %vm59, %v33, 0
  %v70 = vsel %vm59, %v34, 0
  %v73 = vsel %vm59, %v35, 0
  %v76 = vsel %vm59, %v36, 0
  %v79 = vsel %vm59, %v37, 0
  %v82 = vsel %vm59, %v38, 0
  %84 = vmatpush.bf16.msra.mxu0 0
  %85 = vmatpush.bf16.msra.mxu0 0
  %86 = vmatpush.bf16.msra.mxu0 0
  %87 = vmatpush.bf16.msra.mxu0 0
  %88 = vmatpush.bf16.msra.mxu0 0
  %89 = vmatpush.bf16.msra.mxu0 0
  %90 = vmatpush.bf16.msra.mxu0 %v56
  %91 = vmatpush.bf16.msra.mxu0 %v55
  %92 = vmatmul.bf16.gmra.mxu0 %v61
  %v93 = vpop.f32.mrf.mxu0
  %v94 = vadd.f32 %v45, %v93
  %v95 = vpop.f32.mrf.mxu0
  %v96 = vadd.f32 %v45, %v95
  %97 = vmatmul.bf16.gmra.mxu0 %v64
  %v98 = vpop.f32.mrf.mxu0
  %v99 = vadd.f32 %v45, %v98
  %v100 = vpop.f32.mrf.mxu0
  %v101 = vadd.f32 %v45, %v100
  %102 = vmatmul.bf16.gmra.mxu0 %v67
  %v103 = vpop.f32.mrf.mxu0
  %v104 = vadd.f32 %v45, %v103
  %v105 = vpop.f32.mrf.mxu0
  %v106 = vadd.f32 %v45, %v105
  %107 = vmatmul.bf16.gmra.mxu0 %v70
  %v108 = vpop.f32.mrf.mxu0
  %v109 = vadd.f32 %v45, %v108
  %v110 = vpop.f32.mrf.mxu0
  %v111 = vadd.f32 %v45, %v110
  %112 = vmatmul.bf16.gmra.mxu0 %v73
  %v113 = vpop.f32.mrf.mxu0
  %v114 = vadd.f32 %v45, %v113
  %v115 = vpop.f32.mrf.mxu0
  %v116 = vadd.f32 %v45, %v115
  %117 = vmatmul.bf16.gmra.mxu0 %v76
  %v118 = vpop.f32.mrf.mxu0
  %v119 = vadd.f32 %v45, %v118
  %v120 = vpop.f32.mrf.mxu0
  %v121 = vadd.f32 %v45, %v120
  %122 = vmatmul.bf16.gmra.mxu0 %v79
  %v123 = vpop.f32.mrf.mxu0
  %v124 = vadd.f32 %v45, %v123
  %v125 = vpop.f32.mrf.mxu0
  %v126 = vadd.f32 %v45, %v125
  %127 = vmatmul.bf16.gmra.mxu0 %v82
  %v128 = vpop.f32.mrf.mxu0
  %v129 = vadd.f32 %v45, %v128
  %v130 = vpop.f32.mrf.mxu0
  %v131 = vadd.f32 %v45, %v130
  %132 = vdwg.mxu0
  %133 = vst.msk [vmem:[%s3] sm:$0xff] %vm59, %v94
  %134 = vst.msk [vmem:[%s3 + $0x8] sm:$0xff] %vm59, %v96
  %135 = vst.msk [vmem:[%s3 + $0x10] sm:$0xff] %vm59, %v99
  %136 = vst.msk [vmem:[%s3 + $0x18] sm:$0xff] %vm59, %v101
  %137 = vst.msk [vmem:[%s3 + $0x20] sm:$0xff] %vm59, %v104
  %138 = vst.msk [vmem:[%s3 + $0x28] sm:$0xff] %vm59, %v106
  %139 = vst.msk [vmem:[%s3 + $0x30] sm:$0xff] %vm59, %v109
  %140 = vst.msk [vmem:[%s3 + $0x38] sm:$0xff] %vm59, %v111
  %141 = vst.msk [vmem:[%s3 + $0x40] sm:$0xff] %vm59, %v114
  %142 = vst.msk [vmem:[%s3 + $0x48] sm:$0xff] %vm59, %v116
  %143 = vst.msk [vmem:[%s3 + $0x50] sm:$0xff] %vm59, %v119
  %144 = vst.msk [vmem:[%s3 + $0x58] sm:$0xff] %vm59, %v121
  %145 = vst.msk [vmem:[%s3 + $0x60] sm:$0xff] %vm59, %v124
  %146 = vst.msk [vmem:[%s3 + $0x68] sm:$0xff] %vm59, %v126
  %147 = vst.msk [vmem:[%s3 + $0x70] sm:$0xff] %vm59, %v129
  %148 = vst.msk [vmem:[%s3 + $0x78] sm:$0xff] %vm59, %v131
  // Predicated region
  $region14: #{hourglass2d_forward.22} parent=0 // pred_check
    _
  $region15: #{hourglass2d_forward.22} parent=0 // pred_check_branch
    %150 = sbr.rel (0) target = $region17
  $region16: #{hourglass2d_forward.22} parent=0 // pred_region
    _
  $region17: #{hourglass2d_forward.22} parent=0 // pred_fallthru
    _
  // Predicated region
  $region18: #{hourglass2d_forward.22} parent=0 // pred_check
    _
  $region19: #{hourglass2d_forward.22} parent=0 // pred_check_branch
    %152 = sbr.rel (0) target = $region21
  $region20: #{hourglass2d_forward.22} parent=0 // pred_region
    _
  $region21: #{hourglass2d_forward.22} parent=0 // pred_fallthru
    _

// kernel: hourglass2d_forward.21
$region0: #{hourglass2d_forward.21}
  #allocation0 [shape = 'u32[]', space=smem, size = 0x4, offset = 0x4, fixed_abs, tag = 'smem constant byte address 0x4 - core index']
  #allocation1 [shape = 'u32[72,128]{1,0:T(1,128)}', space=vmem, size = 0x9000, scoped, tag = 'internal scratch']
  %s0 = inlined_call_operand.vmem [shape: f32[8,9,9,32], index: 0, kind: input, shape index: {}]
  %s1 = inlined_call_operand.vmem [shape: f32[9,32], index: 1, kind: input, shape index: {}]
  %s2 = inlined_call_operand.vmem [shape: f32[1,32], index: 2, kind: input, shape index: {}]
  %s3 = inlined_call_operand.vmem [shape: f32[2,8,8,32], index: 3, kind: output, shape index: {}]
  %s4 = sld [smem:[#allocation0]]
  $region45: #{hourglass2d_forward.21} parent=0
    _
  %s6 = ssub.s32 1, %s4
  %s7 = scalar_select 0, %s6, %s4
  loop: start=0, step=1, limit=4
  $region2: #{hourglass2d_forward.21} parent=0 // loop_pre_header
    _
  $region3: #{hourglass2d_forward.21} parent=0 // loop_header
    %s9 = sphi 0, %s13
    %p10 = scmp.ge.s32.totalorder %s9, 4
    %s16 = sphi 0, %s28
    %s17 = sphi 0, %s24
    %s18 = sphi 0, %s16
    %s19 = sphi 0, %s17
    %s20 = sphi 0, %s18
    %s21 = sphi 0, %s19
    %s33 = sphi 0, %s35
    %s36 = sphi 0, %s33
    %s37 = sphi 0, %s36
    %s53 = sphi 0, %s37
    %s59 = sphi 0, %s61
    %s62 = sphi 0, %s59
    %s63 = sphi 0, %s62
    %s79 = sphi 0, %s63
    %s85 = sphi 0, %s87
    %s88 = sphi 0, %s85
    %s89 = sphi 0, %s88
    %s105 = sphi 0, %s89
    %s113 = sphi 0, %s115
    %s116 = sphi 0, %s113
    %s117 = sphi 0, %s116
    %s133 = sphi 0, %s117
  $region4: #{hourglass2d_forward.21} parent=0 // loop_header_branch
    %12 = sbr.rel (%p10) target = $region8
  $region5: #{hourglass2d_forward.21} parent=0 // loop_body
    %s14 = ssub.s32 %s9, 1
    %s15 = ssub.s32 %s9, 2
    %s22 = sadd.s32 1, %s17
    %p23 = scmp.ge.s32.totalorder %s22, 1
    %s24 = scalar_select %p23, 0, %s22
    %s25 = sadd.s32 1, %s16
    %s26 = scalar_select %p23, %s25, %s16
    %p27 = scmp.ge.s32.totalorder %s26, 2
    %s28 = scalar_select %p27, 0, %s26
    %s29 = ssub.s32 %s16, %s28
    %s30 = ssub.s32 %s17, %s24
    %s31 = sor.u32 %s29, %s30
    %p32 = scmp.eq.s32.totalorder %s31, 0
    %s34 = sadd.s32 %s33, 1
    %s35 = scalar_select %p32, %s33, %s34
    %p38 = pneg %p32
    %p39 = scmp.eq.s32.totalorder %s9, 1
    %p40 = por %p38, %p39
    %p41 = scmp.ne.s32.totalorder %s33, %s36
    %p42 = scmp.eq.s32.totalorder %s9, 0
    %p43 = por %p41, %p42
    %p44 = scmp.ne.s32.totalorder %s33, %s36
    %p45 = scmp.eq.s32.totalorder %s14, 1
    %p46 = por %p44, %p45
    %p47 = scmp.ne.s32.totalorder %s36, %s37
    %p48 = scmp.eq.s32.totalorder %s14, 0
    %p49 = por %p47, %p48
    %p50 = scmp.ne.s32.totalorder %s36, %s37
    %p51 = scmp.eq.s32.totalorder %s15, 1
    %p52 = por %p50, %p51
    %p54 = scmp.ne.s32.totalorder %s37, %s53
    %p55 = scmp.eq.s32.totalorder %s15, 0
    %p56 = por %p54, %p55
    %s57 = ssub.s32 %s17, %s24
    %p58 = scmp.eq.s32.totalorder %s57, 0
    %s60 = sadd.s32 %s59, 1
    %s61 = scalar_select %p58, %s59, %s60
    %p64 = pneg %p58
    %p65 = scmp.eq.s32.totalorder %s9, 1
    %p66 = por %p64, %p65
    %p67 = scmp.ne.s32.totalorder %s59, %s62
    %p68 = scmp.eq.s32.totalorder %s9, 0
    %p69 = por %p67, %p68
    %p70 = scmp.ne.s32.totalorder %s59, %s62
    %p71 = scmp.eq.s32.totalorder %s14, 1
    %p72 = por %p70, %p71
    %p73 = scmp.ne.s32.totalorder %s62, %s63
    %p74 = scmp.eq.s32.totalorder %s14, 0
    %p75 = por %p73, %p74
    %p76 = scmp.ne.s32.totalorder %s62, %s63
    %p77 = scmp.eq.s32.totalorder %s15, 1
    %p78 = por %p76, %p77
    %p80 = scmp.ne.s32.totalorder %s63, %s79
    %p81 = scmp.eq.s32.totalorder %s15, 0
    %p82 = por %p80, %p81
    %s83 = ssub.s32 %s17, %s24
    %p84 = scmp.eq.s32.totalorder %s83, 0
    %s86 = sadd.s32 %s85, 1
    %s87 = scalar_select %p84, %s85, %s86
    %p90 = pneg %p84
    %p91 = scmp.eq.s32.totalorder %s9, 1
    %p92 = por %p90, %p91
    %p93 = scmp.ne.s32.totalorder %s85, %s88
    %p94 = scmp.eq.s32.totalorder %s9, 0
    %p95 = por %p93, %p94
    %p96 = scmp.ne.s32.totalorder %s85, %s88
    %p97 = scmp.eq.s32.totalorder %s14, 1
    %p98 = por %p96, %p97
    %p99 = scmp.ne.s32.totalorder %s88, %s89
    %p100 = scmp.eq.s32.totalorder %s14, 0
    %p101 = por %p99, %p100
    %p102 = scmp.ne.s32.totalorder %s88, %s89
    %p103 = scmp.eq.s32.totalorder %s15, 1
    %p104 = por %p102, %p103
    %p106 = scmp.ne.s32.totalorder %s89, %s105
    %p107 = scmp.eq.s32.totalorder %s15, 0
    %p108 = por %p106, %p107
    %s109 = ssub.s32 %s16, %s28
    %s110 = ssub.s32 %s17, %s24
    %s111 = sor.u32 %s109, %s110
    %p112 = scmp.eq.s32.totalorder %s111, 0
    %s114 = sadd.s32 %s113, 1
    %s115 = scalar_select %p112, %s113, %s114
    %p118 = pneg %p112
    %p119 = scmp.eq.s32.totalorder %s9, 1
    %p120 = por %p118, %p119
    %p121 = scmp.ne.s32.totalorder %s113, %s116
    %p122 = scmp.eq.s32.totalorder %s9, 0
    %p123 = por %p121, %p122
    %p124 = scmp.ne.s32.totalorder %s113, %s116
    %p125 = scmp.eq.s32.totalorder %s14, 1
    %p126 = por %p124, %p125
    %p127 = scmp.ne.s32.totalorder %s116, %s117
    %p128 = scmp.eq.s32.totalorder %s14, 0
    %p129 = por %p127, %p128
    %p130 = scmp.ne.s32.totalorder %s116, %s117
    %p131 = scmp.eq.s32.totalorder %s15, 1
    %p132 = por %p130, %p131
    %p134 = scmp.ne.s32.totalorder %s117, %s133
    %p135 = scmp.eq.s32.totalorder %s15, 0
    %p136 = por %p134, %p135
    %p137 = scmp.le.s32.totalorder 1, %s9
    %p138 = scmp.lt.s32.totalorder %s9, 3
    %p139 = pnand %p137, %p138
    %p140 = pneg %p139
    // Predicated region
    $region9: #{hourglass2d_forward.21} parent=5 // pred_check
      _
    $region10: #{hourglass2d_forward.21} parent=5 // pred_check_branch
      %142 = sbr.rel (%p139) target = $region12
    $region11: #{hourglass2d_forward.21} parent=5 // pred_region
      %s143 = ssub.s32 %s9, 1
      // Predicated region
      $region13: #{hourglass2d_forward.21} parent=11 // pred_check
        %p144 = pneg %p75
      $region14: #{hourglass2d_forward.21} parent=11 // pred_check_branch
        %146 = sbr.rel (%p144) target = $region16
      $region15: #{hourglass2d_forward.21} parent=11 // pred_region
        %p147 = scmp.lt.s32.totalorder %s19, 0
        %s148 = scalar_select %p147, %s19, 0
        %s149 = smul.addr %s148, 8
        %s150 = scalar_lea.vmem %s1, %s149
      $region16: #{hourglass2d_forward.21} parent=11 // pred_fallthru
        _
      // Predicated region
      $region17: #{hourglass2d_forward.21} parent=11 // pred_check
        %p151 = pneg %p101
      $region18: #{hourglass2d_forward.21} parent=11 // pred_check_branch
        %153 = sbr.rel (%p151) target = $region20
      $region19: #{hourglass2d_forward.21} parent=11 // pred_region
        %p154 = scmp.lt.s32.totalorder %s19, 0
        %s155 = scalar_select %p154, %s19, 0
        %s156 = scalar_lea.vmem %s2, %s155
      $region20: #{hourglass2d_forward.21} parent=11 // pred_fallthru
        _
    $region12: #{hourglass2d_forward.21} parent=5 // pred_fallthru
      _
    %p157 = scmp.lt.s32.totalorder %s9, 2
    // Predicated region
    $region21: #{hourglass2d_forward.21} parent=5 // pred_check
      %p158 = pneg %p157
    $region22: #{hourglass2d_forward.21} parent=5 // pred_check_branch
      %160 = sbr.rel (%p158) target = $region24
    $region23: #{hourglass2d_forward.21} parent=5 // pred_region
      // Predicated region
      $region25: #{hourglass2d_forward.21} parent=23 // pred_check
        %p161 = pneg %p43
      $region26: #{hourglass2d_forward.21} parent=23 // pred_check_branch
        %163 = sbr.rel (%p161) target = $region28
      $region27: #{hourglass2d_forward.21} parent=23 // pred_region
        %s164 = smul.u32 4, %s16
        %p165 = scmp.lt.s32.totalorder %s164, 7
        %s166 = scalar_select %p165, %s164, 7
        %p167 = scmp.lt.s32.totalorder %s17, 0
        %s168 = scalar_select %p167, %s17, 0
        %s169 = smul.addr %s166, 18
        %s170 = sadd.s32 %s168, %s169
        %s171 = smul.addr %s170, 8
        %s172 = scalar_lea.vmem %s0, %s171
        %s173 = smul.u32 4, %s16
      $region28: #{hourglass2d_forward.21} parent=23 // pred_fallthru
        _
    $region24: #{hourglass2d_forward.21} parent=5 // pred_fallthru
      _
    %p174 = scmp.le.s32.totalorder 1, %s9
    %p175 = scmp.lt.s32.totalorder %s9, 3
    %p176 = pnand %p174, %p175
    %p177 = pneg %p176
    // Predicated region
    $region29: #{hourglass2d_forward.21} parent=5 // pred_check
      _
    $region30: #{hourglass2d_forward.21} parent=5 // pred_check_branch
      %179 = sbr.rel (%p176) target = $region32
    $region31: #{hourglass2d_forward.21} parent=5 // pred_region
      %s180 = ssub.s32 %s9, 1
      %s181 = smul.u32 4, %s18
      %p182 = scmp.lt.s32.totalorder %s181, 7
      %s183 = scalar_select %p182, %s181, 7
      %p184 = scmp.lt.s32.totalorder %s19, 0
      %s185 = scalar_select %p184, %s19, 0
      %s186 = smul.addr %s183, 18
      %s187 = sadd.s32 %s185, %s186
      %s188 = smul.addr %s187, 8
      %s189 = scalar_lea.vmem %s0, %s188
      %p190 = pneg %p49
      %p191 = pneg %p46
      %p192 = scmp.lt.s32.totalorder %s19, 0
      %s193 = scalar_select %p192, %s19, 0
      %s194 = smul.addr %s193, 8
      %s195 = scalar_lea.vmem %s1, %s194
      %p196 = pneg %p75
      %p197 = pneg %p72
      %p198 = scmp.lt.s32.totalorder %s19, 0
      %s199 = scalar_select %p198, %s19, 0
      %s200 = scalar_lea.vmem %s2, %s199
      %p201 = pneg %p101
      %p202 = pneg %p98
      %p203 = pneg %p129
      %p204 = pneg %p126
      %p205 = scmp.lt.s32.totalorder %s18, 1
      %s206 = scalar_select %p205, %s18, 1
      %p207 = scmp.lt.s32.totalorder %s19, 0
      %s208 = scalar_select %p207, %s19, 0
      %s209 = smul.addr %s206, 8
      %s210 = sadd.s32 %s208, %s209
      %s211 = smul.addr %s210, 8
      %s212 = scalar_lea.vmem %s3, %s211
      %s213 = smul.u32 4, %s18
      %p214 = scmp.lt.s32.totalorder %s213, 7
      %s215 = scalar_select %p214, %s213, 7
      %p216 = scmp.lt.s32.totalorder %s19, 0
      %s217 = scalar_select %p216, %s19, 0
      %s218 = smul.addr %s215, 18
      %s219 = sadd.s32 %s217, %s218
      %s220 = smul.addr %s219, 8
      %s221 = scalar_lea.vmem %s0, %s220
      %s222 = smul.u32 4, %s18
      %p223 = scmp.lt.s32.totalorder %s19, 0
      %s224 = scalar_select %p223, %s19, 0
      %s225 = smul.addr %s224, 8
      %s226 = scalar_lea.vmem %s1, %s225
      %p227 = scmp.lt.s32.totalorder %s19, 0
      %s228 = scalar_select %p227, %s19, 0
      %s229 = scalar_lea.vmem %s2, %s228
      %p230 = scmp.lt.s32.totalorder %s18, 1
      %s231 = scalar_select %p230, %s18, 1
      %p232 = scmp.lt.s32.totalorder %s19, 0
      %s233 = scalar_select %p232, %s19, 0
      %s234 = smul.addr %s231, 8
      %s235 = sadd.s32 %s233, %s234
      %s236 = smul.addr %s235, 8
      %s237 = scalar_lea.vmem %s3, %s236
      %v238 = vld [vmem:[%s221] sm:$0xff]
      %v239 = vld [vmem:[%s221 + $0x10] sm:$0xff]
      %v240 = vld [vmem:[%s221 + $0x20] sm:$0xff]
      %v241 = vld [vmem:[%s221 + $0x30] sm:$0xff]
      %v242 = vld [vmem:[%s221 + $0x40] sm:$0xff]
      %v243 = vld [vmem:[%s221 + $0x50] sm:$0xff]
      %v244 = vld [vmem:[%s221 + $0x60] sm:$0xff]
      %v245 = vld [vmem:[%s221 + $0x70] sm:$0xff]
      %v246 = vld [vmem:[%s226] sm:$0x1]
      %v247 = vperm.slane %v246, 0
      %v248 = vmul.f32 %v238, %v247
      %v249 = vmul.f32 %v239, %v247
      %v250 = vmul.f32 %v240, %v247
      %v251 = vmul.f32 %v241, %v247
      %v252 = vmul.f32 %v242, %v247
      %v253 = vmul.f32 %v243, %v247
      %v254 = vmul.f32 %v244, %v247
      %v255 = vmul.f32 %v245, %v247
      %s256 = scalar_lea.vmem %s221, 144
      %v257 = vld [vmem:[%s256] sm:$0xff]
      %v258 = vld [vmem:[%s256 + $0x10] sm:$0xff]
      %v259 = vld [vmem:[%s256 + $0x20] sm:$0xff]
      %v260 = vld [vmem:[%s256 + $0x30] sm:$0xff]
      %v261 = vld [vmem:[%s256 + $0x40] sm:$0xff]
      %v262 = vld [vmem:[%s256 + $0x50] sm:$0xff]
      %v263 = vld [vmem:[%s256 + $0x60] sm:$0xff]
      %v264 = vld [vmem:[%s256 + $0x70] sm:$0xff]
      %v265 = vld [vmem:[%s226 + $0x1] sm:$0x1]
      %v266 = vperm.slane %v265, 0
      %v267 = vmul.f32 %v257, %v266
      %v268 = vmul.f32 %v258, %v266
      %v269 = vmul.f32 %v259, %v266
      %v270 = vmul.f32 %v260, %v266
      %v271 = vmul.f32 %v261, %v266
      %v272 = vmul.f32 %v262, %v266
      %v273 = vmul.f32 %v263, %v266
      %v274 = vmul.f32 %v264, %v266
      %v275 = vadd.f32 %v248, %v267
      %v276 = vadd.f32 %v249, %v268
      %v277 = vadd.f32 %v250, %v269
      %v278 = vadd.f32 %v251, %v270
      %v279 = vadd.f32 %v252, %v271
      %v280 = vadd.f32 %v253, %v272
      %v281 = vadd.f32 %v254, %v273
      %v282 = vadd.f32 %v255, %v274
      %v283 = vld [vmem:[%s221 + $0x1] sm:$0xff]
      %v284 = vld [vmem:[%s221 + $0x11] sm:$0xff]
      %v285 = vld [vmem:[%s221 + $0x21] sm:$0xff]
      %v286 = vld [vmem:[%s221 + $0x31] sm:$0xff]
      %v287 = vld [vmem:[%s221 + $0x41] sm:$0xff]
      %v288 = vld [vmem:[%s221 + $0x51] sm:$0xff]
      %v289 = vld [vmem:[%s221 + $0x61] sm:$0xff]
      %v290 = vld [vmem:[%s221 + $0x71] sm:$0xff]
      %v291 = vld [vmem:[%s226 + $0x2] sm:$0x1]
      %v292 = vperm.slane %v291, 0
      %v293 = vmul.f32 %v283, %v292
      %v294 = vmul.f32 %v284, %v292
      %v295 = vmul.f32 %v285, %v292
      %v296 = vmul.f32 %v286, %v292
      %v297 = vmul.f32 %v287, %v292
      %v298 = vmul.f32 %v288, %v292
      %v299 = vmul.f32 %v289, %v292
      %v300 = vmul.f32 %v290, %v292
      %v301 = vadd.f32 %v275, %v293
      %v302 = vadd.f32 %v276, %v294
      %v303 = vadd.f32 %v277, %v295
      %v304 = vadd.f32 %v278, %v296
      %v305 = vadd.f32 %v279, %v297
      %v306 = vadd.f32 %v280, %v298
      %v307 = vadd.f32 %v281, %v299
      %v308 = vadd.f32 %v282, %v300
      %s309 = scalar_lea.vmem %s221, 288
      %v310 = vld [vmem:[%s309] sm:$0xff]
      %v311 = vld [vmem:[%s309 + $0x10] sm:$0xff]
      %v312 = vld [vmem:[%s309 + $0x20] sm:$0xff]
      %v313 = vld [vmem:[%s309 + $0x30] sm:$0xff]
      %v314 = vld [vmem:[%s309 + $0x40] sm:$0xff]
      %v315 = vld [vmem:[%s309 + $0x50] sm:$0xff]
      %v316 = vld [vmem:[%s309 + $0x60] sm:$0xff]
      %v317 = vld [vmem:[%s309 + $0x70] sm:$0xff]
      %v318 = vld [vmem:[%s226 + $0x3] sm:$0x1]
      %v319 = vperm.slane %v318, 0
      %v320 = vmul.f32 %v310, %v319
      %v321 = vmul.f32 %v311, %v319
      %v322 = vmul.f32 %v312, %v319
      %v323 = vmul.f32 %v313, %v319
      %v324 = vmul.f32 %v314, %v319
      %v325 = vmul.f32 %v315, %v319
      %v326 = vmul.f32 %v316, %v319
      %v327 = vmul.f32 %v317, %v319
      %v328 = vadd.f32 %v301, %v320
      %v329 = vadd.f32 %v302, %v321
      %v330 = vadd.f32 %v303, %v322
      %v331 = vadd.f32 %v304, %v323
      %v332 = vadd.f32 %v305, %v324
      %v333 = vadd.f32 %v306, %v325
      %v334 = vadd.f32 %v307, %v326
      %v335 = vadd.f32 %v308, %v327
      %s336 = scalar_lea.vmem %s221, 432
      %v337 = vld [vmem:[%s336] sm:$0xff]
      %v338 = vld [vmem:[%s336 + $0x10] sm:$0xff]
      %v339 = vld [vmem:[%s336 + $0x20] sm:$0xff]
      %v340 = vld [vmem:[%s336 + $0x30] sm:$0xff]
      %v341 = vld [vmem:[%s336 + $0x40] sm:$0xff]
      %v342 = vld [vmem:[%s336 + $0x50] sm:$0xff]
      %v343 = vld [vmem:[%s336 + $0x60] sm:$0xff]
      %v344 = vld [vmem:[%s336 + $0x70] sm:$0xff]
      %v345 = vld [vmem:[%s226 + $0x4] sm:$0x1]
      %v346 = vperm.slane %v345, 0
      %v347 = vmul.f32 %v337, %v346
      %v348 = vmul.f32 %v338, %v346
      %v349 = vmul.f32 %v339, %v346
      %v350 = vmul.f32 %v340, %v346
      %v351 = vmul.f32 %v341, %v346
      %v352 = vmul.f32 %v342, %v346
      %v353 = vmul.f32 %v343, %v346
      %v354 = vmul.f32 %v344, %v346
      %v355 = vadd.f32 %v328, %v347
      %v356 = vadd.f32 %v329, %v348
      %v357 = vadd.f32 %v330, %v349
      %v358 = vadd.f32 %v331, %v350
      %v359 = vadd.f32 %v332, %v351
      %v360 = vadd.f32 %v333, %v352
      %v361 = vadd.f32 %v334, %v353
      %v362 = vadd.f32 %v335, %v354
      %v363 = vld [vmem:[%s309 + $0x1] sm:$0xff]
      %v364 = vld [vmem:[%s309 + $0x11] sm:$0xff]
      %v365 = vld [vmem:[%s309 + $0x21] sm:$0xff]
      %v366 = vld [vmem:[%s309 + $0x31] sm:$0xff]
      %v367 = vld [vmem:[%s309 + $0x41] sm:$0xff]
      %v368 = vld [vmem:[%s309 + $0x51] sm:$0xff]
      %v369 = vld [vmem:[%s309 + $0x61] sm:$0xff]
      %v370 = vld [vmem:[%s309 + $0x71] sm:$0xff]
      %v371 = vld [vmem:[%s226 + $0x5] sm:$0x1]
      %v372 = vperm.slane %v371, 0
      %v373 = vmul.f32 %v363, %v372
      %v374 = vmul.f32 %v364, %v372
      %v375 = vmul.f32 %v365, %v372
      %v376 = vmul.f32 %v366, %v372
      %v377 = vmul.f32 %v367, %v372
      %v378 = vmul.f32 %v368, %v372
      %v379 = vmul.f32 %v369, %v372
      %v380 = vmul.f32 %v370, %v372
      %v381 = vadd.f32 %v355, %v373
      %v382 = vadd.f32 %v356, %v374
      %v383 = vadd.f32 %v357, %v375
      %v384 = vadd.f32 %v358, %v376
      %v385 = vadd.f32 %v359, %v377
      %v386 = vadd.f32 %v360, %v378
      %v387 = vadd.f32 %v361, %v379
      %v388 = vadd.f32 %v362, %v380
      %s389 = scalar_lea.vmem %s221, 16
      %v390 = vld [vmem:[%s389] sm:$0xff]
      %v391 = vld [vmem:[%s389 + $0x10] sm:$0xff]
      %v392 = vld [vmem:[%s389 + $0x20] sm:$0xff]
      %v393 = vld [vmem:[%s389 + $0x30] sm:$0xff]
      %v394 = vld [vmem:[%s389 + $0x40] sm:$0xff]
      %v395 = vld [vmem:[%s389 + $0x50] sm:$0xff]
      %v396 = vld [vmem:[%s389 + $0x60] sm:$0xff]
      %v397 = vld [vmem:[%s389 + $0x70] sm:$0xff]
      %v398 = vld [vmem:[%s226 + $0x6] sm:$0x1]
      %v399 = vperm.slane %v398, 0
      %v400 = vmul.f32 %v390, %v399
      %v401 = vmul.f32 %v391, %v399
      %v402 = vmul.f32 %v392, %v399
      %v403 = vmul.f32 %v393, %v399
      %v404 = vmul.f32 %v394, %v399
      %v405 = vmul.f32 %v395, %v399
      %v406 = vmul.f32 %v396, %v399
      %v407 = vmul.f32 %v397, %v399
      %v408 = vadd.f32 %v381, %v400
      %v409 = vadd.f32 %v382, %v401
      %v410 = vadd.f32 %v383, %v402
      %v411 = vadd.f32 %v384, %v403
      %v412 = vadd.f32 %v385, %v404
      %v413 = vadd.f32 %v386, %v405
      %v414 = vadd.f32 %v387, %v406
      %v415 = vadd.f32 %v388, %v407
      %s416 = scalar_lea.vmem %s221, 160
      %v417 = vld [vmem:[%s416] sm:$0xff]
      %v418 = vld [vmem:[%s416 + $0x10] sm:$0xff]
      %v419 = vld [vmem:[%s416 + $0x20] sm:$0xff]
      %v420 = vld [vmem:[%s416 + $0x30] sm:$0xff]
      %v421 = vld [vmem:[%s416 + $0x40] sm:$0xff]
      %v422 = vld [vmem:[%s416 + $0x50] sm:$0xff]
      %v423 = vld [vmem:[%s416 + $0x60] sm:$0xff]
      %v424 = vld [vmem:[%s416 + $0x70] sm:$0xff]
      %v425 = vld [vmem:[%s226 + $0x7] sm:$0x1]
      %v426 = vperm.slane %v425, 0
      %v427 = vmul.f32 %v417, %v426
      %v428 = vmul.f32 %v418, %v426
      %v429 = vmul.f32 %v419, %v426
      %v430 = vmul.f32 %v420, %v426
      %v431 = vmul.f32 %v421, %v426
      %v432 = vmul.f32 %v422, %v426
      %v433 = vmul.f32 %v423, %v426
      %v434 = vmul.f32 %v424, %v426
      %v435 = vadd.f32 %v408, %v427
      %v436 = vadd.f32 %v409, %v428
      %v437 = vadd.f32 %v410, %v429
      %v438 = vadd.f32 %v411, %v430
      %v439 = vadd.f32 %v412, %v431
      %v440 = vadd.f32 %v413, %v432
      %v441 = vadd.f32 %v414, %v433
      %v442 = vadd.f32 %v415, %v434
      %v443 = vld [vmem:[%s389 + $0x1] sm:$0xff]
      %v444 = vld [vmem:[%s389 + $0x11] sm:$0xff]
      %v445 = vld [vmem:[%s389 + $0x21] sm:$0xff]
      %v446 = vld [vmem:[%s389 + $0x31] sm:$0xff]
      %v447 = vld [vmem:[%s389 + $0x41] sm:$0xff]
      %v448 = vld [vmem:[%s389 + $0x51] sm:$0xff]
      %v449 = vld [vmem:[%s389 + $0x61] sm:$0xff]
      %v450 = vld [vmem:[%s389 + $0x71] sm:$0xff]
      %v451 = vld [vmem:[%s226 + $0x8] sm:$0x1]
      %v452 = vperm.slane %v451, 0
      %v453 = vmul.f32 %v443, %v452
      %v454 = vmul.f32 %v444, %v452
      %v455 = vmul.f32 %v445, %v452
      %v456 = vmul.f32 %v446, %v452
      %v457 = vmul.f32 %v447, %v452
      %v458 = vmul.f32 %v448, %v452
      %v459 = vmul.f32 %v449, %v452
      %v460 = vmul.f32 %v450, %v452
      %v461 = vadd.f32 %v435, %v453
      %v462 = vadd.f32 %v436, %v454
      %v463 = vadd.f32 %v437, %v455
      %v464 = vadd.f32 %v438, %v456
      %v465 = vadd.f32 %v439, %v457
      %v466 = vadd.f32 %v440, %v458
      %v467 = vadd.f32 %v441, %v459
      %v468 = vadd.f32 %v442, %v460
      %v469 = vld [vmem:[%s229] sm:$0x1]
      %v471 = vperm.slane %v469, 0
      %v473 = vadd.f32 %v461, %v471
      %v474 = vadd.f32 %v462, %v471
      %v475 = vadd.f32 %v463, %v471
      %v476 = vadd.f32 %v464, %v471
      %v477 = vadd.f32 %v465, %v471
      %v478 = vadd.f32 %v466, %v471
      %v479 = vadd.f32 %v467, %v471
      %v480 = vadd.f32 %v468, %v471
      %v481 = vmax.f32 %v473, 0.0
      %v482 = vmax.f32 %v474, 0.0
      %v483 = vmax.f32 %v475, 0.0
      %v484 = vmax.f32 %v476, 0.0
      %v485 = vmax.f32 %v477, 0.0
      %v486 = vmax.f32 %v478, 0.0
      %v487 = vmax.f32 %v479, 0.0
      %v488 = vmax.f32 %v480, 0.0
      %v489 = vmin.f32 %v481, 6.0
      %v490 = vmin.f32 %v482, 6.0
      %v491 = vmin.f32 %v483, 6.0
      %v492 = vmin.f32 %v484, 6.0
      %v493 = vmin.f32 %v485, 6.0
      %v494 = vmin.f32 %v486, 6.0
      %v495 = vmin.f32 %v487, 6.0
      %v496 = vmin.f32 %v488, 6.0
      %vm497 = vcmask 261120
      %498 = vst.msk [vmem:[%s237] sm:$0xff] %vm497, %v489
      %499 = vst.msk [vmem:[%s237 + $0x8] sm:$0xff] %vm497, %v490
      %500 = vst.msk [vmem:[%s237 + $0x10] sm:$0xff] %vm497, %v491
      %501 = vst.msk [vmem:[%s237 + $0x18] sm:$0xff] %vm497, %v492
      %502 = vst.msk [vmem:[%s237 + $0x20] sm:$0xff] %vm497, %v493
      %503 = vst.msk [vmem:[%s237 + $0x28] sm:$0xff] %vm497, %v494
      %504 = vst.msk [vmem:[%s237 + $0x30] sm:$0xff] %vm497, %v495
      %505 = vst.msk [vmem:[%s237 + $0x38] sm:$0xff] %vm497, %v496
      %p506 = scmp.lt.s32.totalorder %s18, 1
      %s507 = scalar_select %p506, %s18, 1
      %p508 = scmp.lt.s32.totalorder %s19, 0
      %s509 = scalar_select %p508, %s19, 0
      %s510 = smul.addr %s507, 8
      %s511 = sadd.s32 %s509, %s510
      %s512 = smul.addr %s511, 8
      %s513 = scalar_lea.vmem %s3, %s512
      // Predicated region
      $region33: #{hourglass2d_forward.21} parent=31 // pred_check
        %p514 = pneg %p126
      $region34: #{hourglass2d_forward.21} parent=31 // pred_check_branch
        %516 = sbr.rel (%p514) target = $region36
      $region35: #{hourglass2d_forward.21} parent=31 // pred_region
        _
      $region36: #{hourglass2d_forward.21} parent=31 // pred_fallthru
        _
    $region32: #{hourglass2d_forward.21} parent=5 // pred_fallthru
      _
    %p517 = scmp.le.s32.totalorder 2, %s9
    // Predicated region
    $region37: #{hourglass2d_forward.21} parent=5 // pred_check
      %p518 = pneg %p517
    $region38: #{hourglass2d_forward.21} parent=5 // pred_check_branch
      %520 = sbr.rel (%p518) target = $region40
    $region39: #{hourglass2d_forward.21} parent=5 // pred_region
      %s521 = ssub.s32 %s9, 2
      // Predicated region
      $region41: #{hourglass2d_forward.21} parent=39 // pred_check
        %p522 = pneg %p132
      $region42: #{hourglass2d_forward.21} parent=39 // pred_check_branch
        %524 = sbr.rel (%p522) target = $region44
      $region43: #{hourglass2d_forward.21} parent=39 // pred_region
        %p525 = scmp.lt.s32.totalorder %s20, 1
        %s526 = scalar_select %p525, %s20, 1
        %p527 = scmp.lt.s32.totalorder %s21, 0
        %s528 = scalar_select %p527, %s21, 0
        %s529 = smul.addr %s526, 8
        %s530 = sadd.s32 %s528, %s529
        %s531 = smul.addr %s530, 8
        %s532 = scalar_lea.vmem %s3, %s531
      $region44: #{hourglass2d_forward.21} parent=39 // pred_fallthru
        _
    $region40: #{hourglass2d_forward.21} parent=5 // pred_fallthru
      _
  $region6: #{hourglass2d_forward.21} parent=0 // loop_footer
    %s13 = sadd.s32 1, %s9
  $region7: #{hourglass2d_forward.21} parent=0 // loop_footer_branch
    %8 = sbr.rel target = $region3
  $region8: #{hourglass2d_forward.21} parent=0 // loop_exit
    _

// kernel: hourglass2d_forward.23
$region0: #{hourglass2d_forward.23}
  #allocation0 [shape = 'u32[]', space=smem, size = 0x4, offset = 0x4, fixed_abs, tag = 'smem constant byte address 0x4 - core index']
  #allocation1 [shape = 'u32[72,128]{1,0:T(1,128)}', space=vmem, size = 0x9000, scoped, tag = 'internal scratch']
  %s0 = inlined_call_operand.vmem [shape: f32[128,32], index: 0, kind: input, shape index: {}]
  %s1 = inlined_call_operand.vmem [shape: bf16[32,64], index: 1, kind: input, shape index: {}]
  %s2 = inlined_call_operand.vmem [shape: f32[1,64], index: 2, kind: input, shape index: {}]
  %s3 = inlined_call_operand.vmem [shape: f32[128,64], index: 3, kind: output, shape index: {}]
  %s4 = sld [smem:[#allocation0]]
  $region22: #{hourglass2d_forward.23} parent=0
    _
  %s6 = ssub.s32 1, %s4
  %s7 = scalar_select 0, %s6, %s4
  // Predicated region
  $region2: #{hourglass2d_forward.23} parent=0 // pred_check
    _
  $region3: #{hourglass2d_forward.23} parent=0 // pred_check_branch
    %9 = sbr.rel (0) target = $region5
  $region4: #{hourglass2d_forward.23} parent=0 // pred_region
    _
  $region5: #{hourglass2d_forward.23} parent=0 // pred_fallthru
    _
  // Predicated region
  $region6: #{hourglass2d_forward.23} parent=0 // pred_check
    _
  $region7: #{hourglass2d_forward.23} parent=0 // pred_check_branch
    %11 = sbr.rel (0) target = $region9
  $region8: #{hourglass2d_forward.23} parent=0 // pred_region
    _
  $region9: #{hourglass2d_forward.23} parent=0 // pred_fallthru
    _
  // Predicated region
  $region10: #{hourglass2d_forward.23} parent=0 // pred_check
    _
  $region11: #{hourglass2d_forward.23} parent=0 // pred_check_branch
    %13 = sbr.rel (0) target = $region13
  $region12: #{hourglass2d_forward.23} parent=0 // pred_region
    _
  $region13: #{hourglass2d_forward.23} parent=0 // pred_fallthru
    _
  %v15 = vld [vmem:[%s0] sm:$0xff]
  %v16 = vld [vmem:[%s0 + $0x8] sm:$0xff]
  %v17 = vld [vmem:[%s0 + $0x10] sm:$0xff]
  %v18 = vld [vmem:[%s0 + $0x18] sm:$0xff]
  %v19 = vld [vmem:[%s0 + $0x20] sm:$0xff]
  %v20 = vld [vmem:[%s0 + $0x28] sm:$0xff]
  %v21 = vld [vmem:[%s0 + $0x30] sm:$0xff]
  %v22 = vld [vmem:[%s0 + $0x38] sm:$0xff]
  %v23 = vld [vmem:[%s0 + $0x40] sm:$0xff]
  %v24 = vld [vmem:[%s0 + $0x48] sm:$0xff]
  %v25 = vld [vmem:[%s0 + $0x50] sm:$0xff]
  %v26 = vld [vmem:[%s0 + $0x58] sm:$0xff]
  %v27 = vld [vmem:[%s0 + $0x60] sm:$0xff]
  %v28 = vld [vmem:[%s0 + $0x68] sm:$0xff]
  %v29 = vld [vmem:[%s0 + $0x70] sm:$0xff]
  %v30 = vld [vmem:[%s0 + $0x78] sm:$0xff]
  %v31 = vpack.c.bf16 %v16, %v15
  %v32 = vpack.c.bf16 %v18, %v17
  %v33 = vpack.c.bf16 %v20, %v19
  %v34 = vpack.c.bf16 %v22, %v21
  %v35 = vpack.c.bf16 %v24, %v23
  %v36 = vpack.c.bf16 %v26, %v25
  %v37 = vpack.c.bf16 %v28, %v27
  %v38 = vpack.c.bf16 %v30, %v29
  %v39 = vld [vmem:[%s1] sm:$0xf]
  %v40 = vld [vmem:[%s1 + $0x4] sm:$0xf]
  %v41 = vld [vmem:[%s1 + $0x8] sm:$0xf]
  %v42 = vld [vmem:[%s1 + $0xc] sm:$0xf]
  %v43 = vld [vmem:[%s2] sm:$0x1]
  %v45 = vperm.slane %v43, 0
  %v51 = vunpack.c.l.b16 %v39
  %v52 = vunpack.c.l.b16 %v40
  %v53 = vunpack.c.l.b16 %v41
  %v54 = vunpack.c.l.b16 %v42
  %v55 = vpack.c.b16 %v52, %v51
  %v56 = vpack.c.b16 %v54, %v53
  %vm59 = vcmask 261120
  %v61 = vsel %vm59, %v31, 0
  %v64 = vsel %vm59, %v32, 0
  %v67 = vsel %vm59, %v33, 0
  %v70 = vsel %vm59, %v34, 0
  %v73 = vsel %vm59, %v35, 0
  %v76 = vsel %vm59, %v36, 0
  %v79 = vsel %vm59, %v37, 0
  %v82 = vsel %vm59, %v38, 0
  %84 = vmatpush.bf16.msra.mxu0 0
  %85 = vmatpush.bf16.msra.mxu0 0
  %86 = vmatpush.bf16.msra.mxu0 0
  %87 = vmatpush.bf16.msra.mxu0 0
  %88 = vmatpush.bf16.msra.mxu0 0
  %89 = vmatpush.bf16.msra.mxu0 0
  %90 = vmatpush.bf16.msra.mxu0 %v56
  %91 = vmatpush.bf16.msra.mxu0 %v55
  %92 = vmatmul.bf16.gmra.mxu0 %v61
  %v93 = vpop.f32.mrf.mxu0
  %v94 = vadd.f32 %v45, %v93
  %v95 = vpop.f32.mrf.mxu0
  %v96 = vadd.f32 %v45, %v95
  %97 = vmatmul.bf16.gmra.mxu0 %v64
  %v98 = vpop.f32.mrf.mxu0
  %v99 = vadd.f32 %v45, %v98
  %v100 = vpop.f32.mrf.mxu0
  %v101 = vadd.f32 %v45, %v100
  %102 = vmatmul.bf16.gmra.mxu0 %v67
  %v103 = vpop.f32.mrf.mxu0
  %v104 = vadd.f32 %v45, %v103
  %v105 = vpop.f32.mrf.mxu0
  %v106 = vadd.f32 %v45, %v105
  %107 = vmatmul.bf16.gmra.mxu0 %v70
  %v108 = vpop.f32.mrf.mxu0
  %v109 = vadd.f32 %v45, %v108
  %v110 = vpop.f32.mrf.mxu0
  %v111 = vadd.f32 %v45, %v110
  %112 = vmatmul.bf16.gmra.mxu0 %v73
  %v113 = vpop.f32.mrf.mxu0
  %v114 = vadd.f32 %v45, %v113
  %v115 = vpop.f32.mrf.mxu0
  %v116 = vadd.f32 %v45, %v115
  %117 = vmatmul.bf16.gmra.mxu0 %v76
  %v118 = vpop.f32.mrf.mxu0
  %v119 = vadd.f32 %v45, %v118
  %v120 = vpop.f32.mrf.mxu0
  %v121 = vadd.f32 %v45, %v120
  %122 = vmatmul.bf16.gmra.mxu0 %v79
  %v123 = vpop.f32.mrf.mxu0
  %v124 = vadd.f32 %v45, %v123
  %v125 = vpop.f32.mrf.mxu0
  %v126 = vadd.f32 %v45, %v125
  %127 = vmatmul.bf16.gmra.mxu0 %v82
  %v128 = vpop.f32.mrf.mxu0
  %v129 = vadd.f32 %v45, %v128
  %v130 = vpop.f32.mrf.mxu0
  %v131 = vadd.f32 %v45, %v130
  %132 = vdwg.mxu0
  %v133 = vmax.f32 %v94, 0.0
  %v134 = vmax.f32 %v96, 0.0
  %v135 = vmax.f32 %v99, 0.0
  %v136 = vmax.f32 %v101, 0.0
  %v137 = vmax.f32 %v104, 0.0
  %v138 = vmax.f32 %v106, 0.0
  %v139 = vmax.f32 %v109, 0.0
  %v140 = vmax.f32 %v111, 0.0
  %v141 = vmax.f32 %v114, 0.0
  %v142 = vmax.f32 %v116, 0.0
  %v143 = vmax.f32 %v119, 0.0
  %v144 = vmax.f32 %v121, 0.0
  %v145 = vmax.f32 %v124, 0.0
  %v146 = vmax.f32 %v126, 0.0
  %v147 = vmax.f32 %v129, 0.0
  %v148 = vmax.f32 %v131, 0.0
  %v149 = vmin.f32 %v133, 6.0
  %v150 = vmin.f32 %v134, 6.0
  %v151 = vmin.f32 %v135, 6.0
  %v152 = vmin.f32 %v136, 6.0
  %v153 = vmin.f32 %v137, 6.0
  %v154 = vmin.f32 %v138, 6.0
  %v155 = vmin.f32 %v139, 6.0
  %v156 = vmin.f32 %v140, 6.0
  %v157 = vmin.f32 %v141, 6.0
  %v158 = vmin.f32 %v142, 6.0
  %v159 = vmin.f32 %v143, 6.0
  %v160 = vmin.f32 %v144, 6.0
  %v161 = vmin.f32 %v145, 6.0
  %v162 = vmin.f32 %v146, 6.0
  %v163 = vmin.f32 %v147, 6.0
  %v164 = vmin.f32 %v148, 6.0
  %vm165 = vcmask 523264
  %166 = vst.msk [vmem:[%s3] sm:$0xff] %vm165, %v149
  %167 = vst.msk [vmem:[%s3 + $0x8] sm:$0xff] %vm165, %v150
  %168 = vst.msk [vmem:[%s3 + $0x10] sm:$0xff] %vm165, %v151
  %169 = vst.msk [vmem:[%s3 + $0x18] sm:$0xff] %vm165, %v152
  %170 = vst.msk [vmem:[%s3 + $0x20] sm:$0xff] %vm165, %v153
  %171 = vst.msk [vmem:[%s3 + $0x28] sm:$0xff] %vm165, %v154
  %172 = vst.msk [vmem:[%s3 + $0x30] sm:$0xff] %vm165, %v155
  %173 = vst.msk [vmem:[%s3 + $0x38] sm:$0xff] %vm165, %v156
  %174 = vst.msk [vmem:[%s3 + $0x40] sm:$0xff] %vm165, %v157
  %175 = vst.msk [vmem:[%s3 + $0x48] sm:$0xff] %vm165, %v158
  %176 = vst.msk [vmem:[%s3 + $0x50] sm:$0xff] %vm165, %v159
  %177 = vst.msk [vmem:[%s3 + $0x58] sm:$0xff] %vm165, %v160
  %178 = vst.msk [vmem:[%s3 + $0x60] sm:$0xff] %vm165, %v161
  %179 = vst.msk [vmem:[%s3 + $0x68] sm:$0xff] %vm165, %v162
  %180 = vst.msk [vmem:[%s3 + $0x70] sm:$0xff] %vm165, %v163
  %181 = vst.msk [vmem:[%s3 + $0x78] sm:$0xff] %vm165, %v164
  // Predicated region
  $region14: #{hourglass2d_forward.23} parent=0 // pred_check
    _
  $region15: #{hourglass2d_forward.23} parent=0 // pred_check_branch
    %183 = sbr.rel (0) target = $region17
  $region16: #{hourglass2d_forward.23} parent=0 // pred_region
    _
  $region17: #{hourglass2d_forward.23} parent=0 // pred_fallthru
    _
  // Predicated region
  $region18: #{hourglass2d_forward.23} parent=0 // pred_check
    _
  $region19: #{hourglass2d_forward.23} parent=0 // pred_check_branch
    %185 = sbr.rel (0) target = $region21
  $region20: #{hourglass2d_forward.23} parent=0 // pred_region
    _
  $region21: #{hourglass2d_forward.23} parent=0 // pred_fallthru
    _

// kernel: hourglass2d_forward.24
$region0: #{hourglass2d_forward.24}
  #allocation0 [shape = 'u32[]', space=smem, size = 0x4, offset = 0x4, fixed_abs, tag = 'smem constant byte address 0x4 - core index']
  #allocation1 [shape = 'u32[72,128]{1,0:T(1,128)}', space=vmem, size = 0x9000, scoped, tag = 'internal scratch']
  %s0 = inlined_call_operand.vmem [shape: f32[2,10,10,64], index: 0, kind: input, shape index: {}]
  %s1 = inlined_call_operand.vmem [shape: f32[9,64], index: 1, kind: input, shape index: {}]
  %s2 = inlined_call_operand.vmem [shape: f32[1,64], index: 2, kind: input, shape index: {}]
  %s3 = inlined_call_operand.vmem [shape: f32[2,8,8,64], index: 3, kind: output, shape index: {}]
  %s4 = sld [smem:[#allocation0]]
  $region45: #{hourglass2d_forward.24} parent=0
    _
  %s6 = ssub.s32 1, %s4
  %s7 = scalar_select 0, %s6, %s4
  loop: start=0, step=1, limit=4
  $region2: #{hourglass2d_forward.24} parent=0 // loop_pre_header
    _
  $region3: #{hourglass2d_forward.24} parent=0 // loop_header
    %s9 = sphi 0, %s13
    %p10 = scmp.ge.s32.totalorder %s9, 4
    %s16 = sphi 0, %s28
    %s17 = sphi 0, %s24
    %s18 = sphi 0, %s16
    %s19 = sphi 0, %s17
    %s20 = sphi 0, %s18
    %s21 = sphi 0, %s19
    %s33 = sphi 0, %s35
    %s36 = sphi 0, %s33
    %s37 = sphi 0, %s36
    %s53 = sphi 0, %s37
    %s59 = sphi 0, %s61
    %s62 = sphi 0, %s59
    %s63 = sphi 0, %s62
    %s79 = sphi 0, %s63
    %s85 = sphi 0, %s87
    %s88 = sphi 0, %s85
    %s89 = sphi 0, %s88
    %s105 = sphi 0, %s89
    %s113 = sphi 0, %s115
    %s116 = sphi 0, %s113
    %s117 = sphi 0, %s116
    %s133 = sphi 0, %s117
  $region4: #{hourglass2d_forward.24} parent=0 // loop_header_branch
    %12 = sbr.rel (%p10) target = $region8
  $region5: #{hourglass2d_forward.24} parent=0 // loop_body
    %s14 = ssub.s32 %s9, 1
    %s15 = ssub.s32 %s9, 2
    %s22 = sadd.s32 1, %s17
    %p23 = scmp.ge.s32.totalorder %s22, 1
    %s24 = scalar_select %p23, 0, %s22
    %s25 = sadd.s32 1, %s16
    %s26 = scalar_select %p23, %s25, %s16
    %p27 = scmp.ge.s32.totalorder %s26, 2
    %s28 = scalar_select %p27, 0, %s26
    %s29 = ssub.s32 %s16, %s28
    %s30 = ssub.s32 %s17, %s24
    %s31 = sor.u32 %s29, %s30
    %p32 = scmp.eq.s32.totalorder %s31, 0
    %s34 = sadd.s32 %s33, 1
    %s35 = scalar_select %p32, %s33, %s34
    %p38 = pneg %p32
    %p39 = scmp.eq.s32.totalorder %s9, 1
    %p40 = por %p38, %p39
    %p41 = scmp.ne.s32.totalorder %s33, %s36
    %p42 = scmp.eq.s32.totalorder %s9, 0
    %p43 = por %p41, %p42
    %p44 = scmp.ne.s32.totalorder %s33, %s36
    %p45 = scmp.eq.s32.totalorder %s14, 1
    %p46 = por %p44, %p45
    %p47 = scmp.ne.s32.totalorder %s36, %s37
    %p48 = scmp.eq.s32.totalorder %s14, 0
    %p49 = por %p47, %p48
    %p50 = scmp.ne.s32.totalorder %s36, %s37
    %p51 = scmp.eq.s32.totalorder %s15, 1
    %p52 = por %p50, %p51
    %p54 = scmp.ne.s32.totalorder %s37, %s53
    %p55 = scmp.eq.s32.totalorder %s15, 0
    %p56 = por %p54, %p55
    %s57 = ssub.s32 %s17, %s24
    %p58 = scmp.eq.s32.totalorder %s57, 0
    %s60 = sadd.s32 %s59, 1
    %s61 = scalar_select %p58, %s59, %s60
    %p64 = pneg %p58
    %p65 = scmp.eq.s32.totalorder %s9, 1
    %p66 = por %p64, %p65
    %p67 = scmp.ne.s32.totalorder %s59, %s62
    %p68 = scmp.eq.s32.totalorder %s9, 0
    %p69 = por %p67, %p68
    %p70 = scmp.ne.s32.totalorder %s59, %s62
    %p71 = scmp.eq.s32.totalorder %s14, 1
    %p72 = por %p70, %p71
    %p73 = scmp.ne.s32.totalorder %s62, %s63
    %p74 = scmp.eq.s32.totalorder %s14, 0
    %p75 = por %p73, %p74
    %p76 = scmp.ne.s32.totalorder %s62, %s63
    %p77 = scmp.eq.s32.totalorder %s15, 1
    %p78 = por %p76, %p77
    %p80 = scmp.ne.s32.totalorder %s63, %s79
    %p81 = scmp.eq.s32.totalorder %s15, 0
    %p82 = por %p80, %p81
    %s83 = ssub.s32 %s17, %s24
    %p84 = scmp.eq.s32.totalorder %s83, 0
    %s86 = sadd.s32 %s85, 1
    %s87 = scalar_select %p84, %s85, %s86
    %p90 = pneg %p84
    %p91 = scmp.eq.s32.totalorder %s9, 1
    %p92 = por %p90, %p91
    %p93 = scmp.ne.s32.totalorder %s85, %s88
    %p94 = scmp.eq.s32.totalorder %s9, 0
    %p95 = por %p93, %p94
    %p96 = scmp.ne.s32.totalorder %s85, %s88
    %p97 = scmp.eq.s32.totalorder %s14, 1
    %p98 = por %p96, %p97
    %p99 = scmp.ne.s32.totalorder %s88, %s89
    %p100 = scmp.eq.s32.totalorder %s14, 0
    %p101 = por %p99, %p100
    %p102 = scmp.ne.s32.totalorder %s88, %s89
    %p103 = scmp.eq.s32.totalorder %s15, 1
    %p104 = por %p102, %p103
    %p106 = scmp.ne.s32.totalorder %s89, %s105
    %p107 = scmp.eq.s32.totalorder %s15, 0
    %p108 = por %p106, %p107
    %s109 = ssub.s32 %s16, %s28
    %s110 = ssub.s32 %s17, %s24
    %s111 = sor.u32 %s109, %s110
    %p112 = scmp.eq.s32.totalorder %s111, 0
    %s114 = sadd.s32 %s113, 1
    %s115 = scalar_select %p112, %s113, %s114
    %p118 = pneg %p112
    %p119 = scmp.eq.s32.totalorder %s9, 1
    %p120 = por %p118, %p119
    %p121 = scmp.ne.s32.totalorder %s113, %s116
    %p122 = scmp.eq.s32.totalorder %s9, 0
    %p123 = por %p121, %p122
    %p124 = scmp.ne.s32.totalorder %s113, %s116
    %p125 = scmp.eq.s32.totalorder %s14, 1
    %p126 = por %p124, %p125
    %p127 = scmp.ne.s32.totalorder %s116, %s117
    %p128 = scmp.eq.s32.totalorder %s14, 0
    %p129 = por %p127, %p128
    %p130 = scmp.ne.s32.totalorder %s116, %s117
    %p131 = scmp.eq.s32.totalorder %s15, 1
    %p132 = por %p130, %p131
    %p134 = scmp.ne.s32.totalorder %s117, %s133
    %p135 = scmp.eq.s32.totalorder %s15, 0
    %p136 = por %p134, %p135
    %p137 = scmp.le.s32.totalorder 1, %s9
    %p138 = scmp.lt.s32.totalorder %s9, 3
    %p139 = pnand %p137, %p138
    %p140 = pneg %p139
    // Predicated region
    $region9: #{hourglass2d_forward.24} parent=5 // pred_check
      _
    $region10: #{hourglass2d_forward.24} parent=5 // pred_check_branch
      %142 = sbr.rel (%p139) target = $region12
    $region11: #{hourglass2d_forward.24} parent=5 // pred_region
      %s143 = ssub.s32 %s9, 1
      // Predicated region
      $region13: #{hourglass2d_forward.24} parent=11 // pred_check
        %p144 = pneg %p75
      $region14: #{hourglass2d_forward.24} parent=11 // pred_check_branch
        %146 = sbr.rel (%p144) target = $region16
      $region15: #{hourglass2d_forward.24} parent=11 // pred_region
        %p147 = scmp.lt.s32.totalorder %s19, 0
        %s148 = scalar_select %p147, %s19, 0
        %s149 = smul.addr %s148, 8
        %s150 = scalar_lea.vmem %s1, %s149
      $region16: #{hourglass2d_forward.24} parent=11 // pred_fallthru
        _
      // Predicated region
      $region17: #{hourglass2d_forward.24} parent=11 // pred_check
        %p151 = pneg %p101
      $region18: #{hourglass2d_forward.24} parent=11 // pred_check_branch
        %153 = sbr.rel (%p151) target = $region20
      $region19: #{hourglass2d_forward.24} parent=11 // pred_region
        %p154 = scmp.lt.s32.totalorder %s19, 0
        %s155 = scalar_select %p154, %s19, 0
        %s156 = scalar_lea.vmem %s2, %s155
      $region20: #{hourglass2d_forward.24} parent=11 // pred_fallthru
        _
    $region12: #{hourglass2d_forward.24} parent=5 // pred_fallthru
      _
    %p157 = scmp.lt.s32.totalorder %s9, 2
    // Predicated region
    $region21: #{hourglass2d_forward.24} parent=5 // pred_check
      %p158 = pneg %p157
    $region22: #{hourglass2d_forward.24} parent=5 // pred_check_branch
      %160 = sbr.rel (%p158) target = $region24
    $region23: #{hourglass2d_forward.24} parent=5 // pred_region
      // Predicated region
      $region25: #{hourglass2d_forward.24} parent=23 // pred_check
        %p161 = pneg %p43
      $region26: #{hourglass2d_forward.24} parent=23 // pred_check_branch
        %163 = sbr.rel (%p161) target = $region28
      $region27: #{hourglass2d_forward.24} parent=23 // pred_region
        %p164 = scmp.lt.s32.totalorder %s16, 1
        %s165 = scalar_select %p164, %s16, 1
        %p166 = scmp.lt.s32.totalorder %s17, 0
        %s167 = scalar_select %p166, %s17, 0
        %s168 = smul.addr %s165, 20
        %s169 = sadd.s32 %s167, %s168
        %s170 = smul.addr %s169, 8
        %s171 = scalar_lea.vmem %s0, %s170
      $region28: #{hourglass2d_forward.24} parent=23 // pred_fallthru
        _
    $region24: #{hourglass2d_forward.24} parent=5 // pred_fallthru
      _
    %p172 = scmp.le.s32.totalorder 1, %s9
    %p173 = scmp.lt.s32.totalorder %s9, 3
    %p174 = pnand %p172, %p173
    %p175 = pneg %p174
    // Predicated region
    $region29: #{hourglass2d_forward.24} parent=5 // pred_check
      _
    $region30: #{hourglass2d_forward.24} parent=5 // pred_check_branch
      %177 = sbr.rel (%p174) target = $region32
    $region31: #{hourglass2d_forward.24} parent=5 // pred_region
      %s178 = ssub.s32 %s9, 1
      %p179 = scmp.lt.s32.totalorder %s18, 1
      %s180 = scalar_select %p179, %s18, 1
      %p181 = scmp.lt.s32.totalorder %s19, 0
      %s182 = scalar_select %p181, %s19, 0
      %s183 = smul.addr %s180, 20
      %s184 = sadd.s32 %s182, %s183
      %s185 = smul.addr %s184, 8
      %s186 = scalar_lea.vmem %s0, %s185
      %p187 = pneg %p49
      %p188 = pneg %p46
      %p189 = scmp.lt.s32.totalorder %s19, 0
      %s190 = scalar_select %p189, %s19, 0
      %s191 = smul.addr %s190, 8
      %s192 = scalar_lea.vmem %s1, %s191
      %p193 = pneg %p75
      %p194 = pneg %p72
      %p195 = scmp.lt.s32.totalorder %s19, 0
      %s196 = scalar_select %p195, %s19, 0
      %s197 = scalar_lea.vmem %s2, %s196
      %p198 = pneg %p101
      %p199 = pneg %p98
      %p200 = pneg %p129
      %p201 = pneg %p126
      %p202 = scmp.lt.s32.totalorder %s18, 1
      %s203 = scalar_select %p202, %s18, 1
      %p204 = scmp.lt.s32.totalorder %s19, 0
      %s205 = scalar_select %p204, %s19, 0
      %s206 = smul.addr %s203, 8
      %s207 = sadd.s32 %s205, %s206
      %s208 = smul.addr %s207, 8
      %s209 = scalar_lea.vmem %s3, %s208
      %p210 = scmp.lt.s32.totalorder %s18, 1
      %s211 = scalar_select %p210, %s18, 1
      %p212 = scmp.lt.s32.totalorder %s19, 0
      %s213 = scalar_select %p212, %s19, 0
      %s214 = smul.addr %s211, 20
      %s215 = sadd.s32 %s213, %s214
      %s216 = smul.addr %s215, 8
      %s217 = scalar_lea.vmem %s0, %s216
      %p218 = scmp.lt.s32.totalorder %s19, 0
      %s219 = scalar_select %p218, %s19, 0
      %s220 = smul.addr %s219, 8
      %s221 = scalar_lea.vmem %s1, %s220
      %p222 = scmp.lt.s32.totalorder %s19, 0
      %s223 = scalar_select %p222, %s19, 0
      %s224 = scalar_lea.vmem %s2, %s223
      %p225 = scmp.lt.s32.totalorder %s18, 1
      %s226 = scalar_select %p225, %s18, 1
      %p227 = scmp.lt.s32.totalorder %s19, 0
      %s228 = scalar_select %p227, %s19, 0
      %s229 = smul.addr %s226, 8
      %s230 = sadd.s32 %s228, %s229
      %s231 = smul.addr %s230, 8
      %s232 = scalar_lea.vmem %s3, %s231
      %v233 = vld [vmem:[%s217] sm:$0xff]
      %v234 = vld [vmem:[%s217 + $0x10] sm:$0xff]
      %v235 = vld [vmem:[%s217 + $0x20] sm:$0xff]
      %v236 = vld [vmem:[%s217 + $0x30] sm:$0xff]
      %v237 = vld [vmem:[%s217 + $0x40] sm:$0xff]
      %v238 = vld [vmem:[%s217 + $0x50] sm:$0xff]
      %v239 = vld [vmem:[%s217 + $0x60] sm:$0xff]
      %v240 = vld [vmem:[%s217 + $0x70] sm:$0xff]
      %v241 = vld [vmem:[%s221] sm:$0x1]
      %v242 = vperm.slane %v241, 0
      %v243 = vmul.f32 %v233, %v242
      %v244 = vmul.f32 %v234, %v242
      %v245 = vmul.f32 %v235, %v242
      %v246 = vmul.f32 %v236, %v242
      %v247 = vmul.f32 %v237, %v242
      %v248 = vmul.f32 %v238, %v242
      %v249 = vmul.f32 %v239, %v242
      %v250 = vmul.f32 %v240, %v242
      %v251 = vld [vmem:[%s217 + $0x1] sm:$0xff]
      %v252 = vld [vmem:[%s217 + $0x11] sm:$0xff]
      %v253 = vld [vmem:[%s217 + $0x21] sm:$0xff]
      %v254 = vld [vmem:[%s217 + $0x31] sm:$0xff]
      %v255 = vld [vmem:[%s217 + $0x41] sm:$0xff]
      %v256 = vld [vmem:[%s217 + $0x51] sm:$0xff]
      %v257 = vld [vmem:[%s217 + $0x61] sm:$0xff]
      %v258 = vld [vmem:[%s217 + $0x71] sm:$0xff]
      %v259 = vld [vmem:[%s221 + $0x1] sm:$0x1]
      %v260 = vperm.slane %v259, 0
      %v261 = vmul.f32 %v251, %v260
      %v262 = vmul.f32 %v252, %v260
      %v263 = vmul.f32 %v253, %v260
      %v264 = vmul.f32 %v254, %v260
      %v265 = vmul.f32 %v255, %v260
      %v266 = vmul.f32 %v256, %v260
      %v267 = vmul.f32 %v257, %v260
      %v268 = vmul.f32 %v258, %v260
      %v269 = vadd.f32 %v243, %v261
      %v270 = vadd.f32 %v244, %v262
      %v271 = vadd.f32 %v245, %v263
      %v272 = vadd.f32 %v246, %v264
      %v273 = vadd.f32 %v247, %v265
      %v274 = vadd.f32 %v248, %v266
      %v275 = vadd.f32 %v249, %v267
      %v276 = vadd.f32 %v250, %v268
      %v277 = vld [vmem:[%s217 + $0x2] sm:$0xff]
      %v278 = vld [vmem:[%s217 + $0x12] sm:$0xff]
      %v279 = vld [vmem:[%s217 + $0x22] sm:$0xff]
      %v280 = vld [vmem:[%s217 + $0x32] sm:$0xff]
      %v281 = vld [vmem:[%s217 + $0x42] sm:$0xff]
      %v282 = vld [vmem:[%s217 + $0x52] sm:$0xff]
      %v283 = vld [vmem:[%s217 + $0x62] sm:$0xff]
      %v284 = vld [vmem:[%s217 + $0x72] sm:$0xff]
      %v285 = vld [vmem:[%s221 + $0x2] sm:$0x1]
      %v286 = vperm.slane %v285, 0
      %v287 = vmul.f32 %v277, %v286
      %v288 = vmul.f32 %v278, %v286
      %v289 = vmul.f32 %v279, %v286
      %v290 = vmul.f32 %v280, %v286
      %v291 = vmul.f32 %v281, %v286
      %v292 = vmul.f32 %v282, %v286
      %v293 = vmul.f32 %v283, %v286
      %v294 = vmul.f32 %v284, %v286
      %v295 = vadd.f32 %v269, %v287
      %v296 = vadd.f32 %v270, %v288
      %v297 = vadd.f32 %v271, %v289
      %v298 = vadd.f32 %v272, %v290
      %v299 = vadd.f32 %v273, %v291
      %v300 = vadd.f32 %v274, %v292
      %v301 = vadd.f32 %v275, %v293
      %v302 = vadd.f32 %v276, %v294
      %s303 = scalar_lea.vmem %s217, 16
      %v304 = vld [vmem:[%s303] sm:$0xff]
      %v305 = vld [vmem:[%s303 + $0x10] sm:$0xff]
      %v306 = vld [vmem:[%s303 + $0x20] sm:$0xff]
      %v307 = vld [vmem:[%s303 + $0x30] sm:$0xff]
      %v308 = vld [vmem:[%s303 + $0x40] sm:$0xff]
      %v309 = vld [vmem:[%s303 + $0x50] sm:$0xff]
      %v310 = vld [vmem:[%s303 + $0x60] sm:$0xff]
      %v311 = vld [vmem:[%s303 + $0x70] sm:$0xff]
      %v312 = vld [vmem:[%s221 + $0x3] sm:$0x1]
      %v313 = vperm.slane %v312, 0
      %v314 = vmul.f32 %v304, %v313
      %v315 = vmul.f32 %v305, %v313
      %v316 = vmul.f32 %v306, %v313
      %v317 = vmul.f32 %v307, %v313
      %v318 = vmul.f32 %v308, %v313
      %v319 = vmul.f32 %v309, %v313
      %v320 = vmul.f32 %v310, %v313
      %v321 = vmul.f32 %v311, %v313
      %v322 = vadd.f32 %v295, %v314
      %v323 = vadd.f32 %v296, %v315
      %v324 = vadd.f32 %v297, %v316
      %v325 = vadd.f32 %v298, %v317
      %v326 = vadd.f32 %v299, %v318
      %v327 = vadd.f32 %v300, %v319
      %v328 = vadd.f32 %v301, %v320
      %v329 = vadd.f32 %v302, %v321
      %v330 = vld [vmem:[%s303 + $0x1] sm:$0xff]
      %v331 = vld [vmem:[%s303 + $0x11] sm:$0xff]
      %v332 = vld [vmem:[%s303 + $0x21] sm:$0xff]
      %v333 = vld [vmem:[%s303 + $0x31] sm:$0xff]
      %v334 = vld [vmem:[%s303 + $0x41] sm:$0xff]
      %v335 = vld [vmem:[%s303 + $0x51] sm:$0xff]
      %v336 = vld [vmem:[%s303 + $0x61] sm:$0xff]
      %v337 = vld [vmem:[%s303 + $0x71] sm:$0xff]
      %v338 = vld [vmem:[%s221 + $0x4] sm:$0x1]
      %v339 = vperm.slane %v338, 0
      %v340 = vmul.f32 %v330, %v339
      %v341 = vmul.f32 %v331, %v339
      %v342 = vmul.f32 %v332, %v339
      %v343 = vmul.f32 %v333, %v339
      %v344 = vmul.f32 %v334, %v339
      %v345 = vmul.f32 %v335, %v339
      %v346 = vmul.f32 %v336, %v339
      %v347 = vmul.f32 %v337, %v339
      %v348 = vadd.f32 %v322, %v340
      %v349 = vadd.f32 %v323, %v341
      %v350 = vadd.f32 %v324, %v342
      %v351 = vadd.f32 %v325, %v343
      %v352 = vadd.f32 %v326, %v344
      %v353 = vadd.f32 %v327, %v345
      %v354 = vadd.f32 %v328, %v346
      %v355 = vadd.f32 %v329, %v347
      %v356 = vld [vmem:[%s303 + $0x2] sm:$0xff]
      %v357 = vld [vmem:[%s303 + $0x12] sm:$0xff]
      %v358 = vld [vmem:[%s303 + $0x22] sm:$0xff]
      %v359 = vld [vmem:[%s303 + $0x32] sm:$0xff]
      %v360 = vld [vmem:[%s303 + $0x42] sm:$0xff]
      %v361 = vld [vmem:[%s303 + $0x52] sm:$0xff]
      %v362 = vld [vmem:[%s303 + $0x62] sm:$0xff]
      %v363 = vld [vmem:[%s303 + $0x72] sm:$0xff]
      %v364 = vld [vmem:[%s221 + $0x5] sm:$0x1]
      %v365 = vperm.slane %v364, 0
      %v366 = vmul.f32 %v356, %v365
      %v367 = vmul.f32 %v357, %v365
      %v368 = vmul.f32 %v358, %v365
      %v369 = vmul.f32 %v359, %v365
      %v370 = vmul.f32 %v360, %v365
      %v371 = vmul.f32 %v361, %v365
      %v372 = vmul.f32 %v362, %v365
      %v373 = vmul.f32 %v363, %v365
      %v374 = vadd.f32 %v348, %v366
      %v375 = vadd.f32 %v349, %v367
      %v376 = vadd.f32 %v350, %v368
      %v377 = vadd.f32 %v351, %v369
      %v378 = vadd.f32 %v352, %v370
      %v379 = vadd.f32 %v353, %v371
      %v380 = vadd.f32 %v354, %v372
      %v381 = vadd.f32 %v355, %v373
      %s382 = scalar_lea.vmem %s217, 32
      %v383 = vld [vmem:[%s382] sm:$0xff]
      %v384 = vld [vmem:[%s382 + $0x10] sm:$0xff]
      %v385 = vld [vmem:[%s382 + $0x20] sm:$0xff]
      %v386 = vld [vmem:[%s382 + $0x30] sm:$0xff]
      %v387 = vld [vmem:[%s382 + $0x40] sm:$0xff]
      %v388 = vld [vmem:[%s382 + $0x50] sm:$0xff]
      %v389 = vld [vmem:[%s382 + $0x60] sm:$0xff]
      %v390 = vld [vmem:[%s382 + $0x70] sm:$0xff]
      %v391 = vld [vmem:[%s221 + $0x6] sm:$0x1]
      %v392 = vperm.slane %v391, 0
      %v393 = vmul.f32 %v383, %v392
      %v394 = vmul.f32 %v384, %v392
      %v395 = vmul.f32 %v385, %v392
      %v396 = vmul.f32 %v386, %v392
      %v397 = vmul.f32 %v387, %v392
      %v398 = vmul.f32 %v388, %v392
      %v399 = vmul.f32 %v389, %v392
      %v400 = vmul.f32 %v390, %v392
      %v401 = vadd.f32 %v374, %v393
      %v402 = vadd.f32 %v375, %v394
      %v403 = vadd.f32 %v376, %v395
      %v404 = vadd.f32 %v377, %v396
      %v405 = vadd.f32 %v378, %v397
      %v406 = vadd.f32 %v379, %v398
      %v407 = vadd.f32 %v380, %v399
      %v408 = vadd.f32 %v381, %v400
      %v409 = vld [vmem:[%s382 + $0x1] sm:$0xff]
      %v410 = vld [vmem:[%s382 + $0x11] sm:$0xff]
      %v411 = vld [vmem:[%s382 + $0x21] sm:$0xff]
      %v412 = vld [vmem:[%s382 + $0x31] sm:$0xff]
      %v413 = vld [vmem:[%s382 + $0x41] sm:$0xff]
      %v414 = vld [vmem:[%s382 + $0x51] sm:$0xff]
      %v415 = vld [vmem:[%s382 + $0x61] sm:$0xff]
      %v416 = vld [vmem:[%s382 + $0x71] sm:$0xff]
      %v417 = vld [vmem:[%s221 + $0x7] sm:$0x1]
      %v418 = vperm.slane %v417, 0
      %v419 = vmul.f32 %v409, %v418
      %v420 = vmul.f32 %v410, %v418
      %v421 = vmul.f32 %v411, %v418
      %v422 = vmul.f32 %v412, %v418
      %v423 = vmul.f32 %v413, %v418
      %v424 = vmul.f32 %v414, %v418
      %v425 = vmul.f32 %v415, %v418
      %v426 = vmul.f32 %v416, %v418
      %v427 = vadd.f32 %v401, %v419
      %v428 = vadd.f32 %v402, %v420
      %v429 = vadd.f32 %v403, %v421
      %v430 = vadd.f32 %v404, %v422
      %v431 = vadd.f32 %v405, %v423
      %v432 = vadd.f32 %v406, %v424
      %v433 = vadd.f32 %v407, %v425
      %v434 = vadd.f32 %v408, %v426
      %v435 = vld [vmem:[%s382 + $0x2] sm:$0xff]
      %v436 = vld [vmem:[%s382 + $0x12] sm:$0xff]
      %v437 = vld [vmem:[%s382 + $0x22] sm:$0xff]
      %v438 = vld [vmem:[%s382 + $0x32] sm:$0xff]
      %v439 = vld [vmem:[%s382 + $0x42] sm:$0xff]
      %v440 = vld [vmem:[%s382 + $0x52] sm:$0xff]
      %v441 = vld [vmem:[%s382 + $0x62] sm:$0xff]
      %v442 = vld [vmem:[%s382 + $0x72] sm:$0xff]
      %v443 = vld [vmem:[%s221 + $0x8] sm:$0x1]
      %v444 = vperm.slane %v443, 0
      %v445 = vmul.f32 %v435, %v444
      %v446 = vmul.f32 %v436, %v444
      %v447 = vmul.f32 %v437, %v444
      %v448 = vmul.f32 %v438, %v444
      %v449 = vmul.f32 %v439, %v444
      %v450 = vmul.f32 %v440, %v444
      %v451 = vmul.f32 %v441, %v444
      %v452 = vmul.f32 %v442, %v444
      %v453 = vadd.f32 %v427, %v445
      %v454 = vadd.f32 %v428, %v446
      %v455 = vadd.f32 %v429, %v447
      %v456 = vadd.f32 %v430, %v448
      %v457 = vadd.f32 %v431, %v449
      %v458 = vadd.f32 %v432, %v450
      %v459 = vadd.f32 %v433, %v451
      %v460 = vadd.f32 %v434, %v452
      %v461 = vld [vmem:[%s224] sm:$0x1]
      %v463 = vperm.slane %v461, 0
      %v465 = vadd.f32 %v453, %v463
      %v466 = vadd.f32 %v454, %v463
      %v467 = vadd.f32 %v455, %v463
      %v468 = vadd.f32 %v456, %v463
      %v469 = vadd.f32 %v457, %v463
      %v470 = vadd.f32 %v458, %v463
      %v471 = vadd.f32 %v459, %v463
      %v472 = vadd.f32 %v460, %v463
      %v473 = vmax.f32 %v465, 0.0
      %v474 = vmax.f32 %v466, 0.0
      %v475 = vmax.f32 %v467, 0.0
      %v476 = vmax.f32 %v468, 0.0
      %v477 = vmax.f32 %v469, 0.0
      %v478 = vmax.f32 %v470, 0.0
      %v479 = vmax.f32 %v471, 0.0
      %v480 = vmax.f32 %v472, 0.0
      %v481 = vmin.f32 %v473, 6.0
      %v482 = vmin.f32 %v474, 6.0
      %v483 = vmin.f32 %v475, 6.0
      %v484 = vmin.f32 %v476, 6.0
      %v485 = vmin.f32 %v477, 6.0
      %v486 = vmin.f32 %v478, 6.0
      %v487 = vmin.f32 %v479, 6.0
      %v488 = vmin.f32 %v480, 6.0
      %vm489 = vcmask 523264
      %490 = vst.msk [vmem:[%s232] sm:$0xff] %vm489, %v481
      %491 = vst.msk [vmem:[%s232 + $0x8] sm:$0xff] %vm489, %v482
      %492 = vst.msk [vmem:[%s232 + $0x10] sm:$0xff] %vm489, %v483
      %493 = vst.msk [vmem:[%s232 + $0x18] sm:$0xff] %vm489, %v484
      %494 = vst.msk [vmem:[%s232 + $0x20] sm:$0xff] %vm489, %v485
      %495 = vst.msk [vmem:[%s232 + $0x28] sm:$0xff] %vm489, %v486
      %496 = vst.msk [vmem:[%s232 + $0x30] sm:$0xff] %vm489, %v487
      %497 = vst.msk [vmem:[%s232 + $0x38] sm:$0xff] %vm489, %v488
      %p498 = scmp.lt.s32.totalorder %s18, 1
      %s499 = scalar_select %p498, %s18, 1
      %p500 = scmp.lt.s32.totalorder %s19, 0
      %s501 = scalar_select %p500, %s19, 0
      %s502 = smul.addr %s499, 8
      %s503 = sadd.s32 %s501, %s502
      %s504 = smul.addr %s503, 8
      %s505 = scalar_lea.vmem %s3, %s504
      // Predicated region
      $region33: #{hourglass2d_forward.24} parent=31 // pred_check
        %p506 = pneg %p126
      $region34: #{hourglass2d_forward.24} parent=31 // pred_check_branch
        %508 = sbr.rel (%p506) target = $region36
      $region35: #{hourglass2d_forward.24} parent=31 // pred_region
        _
      $region36: #{hourglass2d_forward.24} parent=31 // pred_fallthru
        _
    $region32: #{hourglass2d_forward.24} parent=5 // pred_fallthru
      _
    %p509 = scmp.le.s32.totalorder 2, %s9
    // Predicated region
    $region37: #{hourglass2d_forward.24} parent=5 // pred_check
      %p510 = pneg %p509
    $region38: #{hourglass2d_forward.24} parent=5 // pred_check_branch
      %512 = sbr.rel (%p510) target = $region40
    $region39: #{hourglass2d_forward.24} parent=5 // pred_region
      %s513 = ssub.s32 %s9, 2
      // Predicated region
      $region41: #{hourglass2d_forward.24} parent=39 // pred_check
        %p514 = pneg %p132
      $region42: #{hourglass2d_forward.24} parent=39 // pred_check_branch
        %516 = sbr.rel (%p514) target = $region44
      $region43: #{hourglass2d_forward.24} parent=39 // pred_region
        %p517 = scmp.lt.s32.totalorder %s20, 1
        %s518 = scalar_select %p517, %s20, 1
        %p519 = scmp.lt.s32.totalorder %s21, 0
        %s520 = scalar_select %p519, %s21, 0
        %s521 = smul.addr %s518, 8
        %s522 = sadd.s32 %s520, %s521
        %s523 = smul.addr %s522, 8
        %s524 = scalar_lea.vmem %s3, %s523
      $region44: #{hourglass2d_forward.24} parent=39 // pred_fallthru
        _
    $region40: #{hourglass2d_forward.24} parent=5 // pred_fallthru
      _
  $region6: #{hourglass2d_forward.24} parent=0 // loop_footer
    %s13 = sadd.s32 1, %s9
  $region7: #{hourglass2d_forward.24} parent=0 // loop_footer_branch
    %8 = sbr.rel target = $region3
  $region8: #{hourglass2d_forward.24} parent=0 // loop_exit
    _

// kernel: hourglass2d_forward.25
$region0: #{hourglass2d_forward.25}
  #allocation0 [shape = 'u32[]', space=smem, size = 0x4, offset = 0x4, fixed_abs, tag = 'smem constant byte address 0x4 - core index']
  #allocation1 [shape = 'u32[72,128]{1,0:T(1,128)}', space=vmem, size = 0x9000, scoped, tag = 'internal scratch']
  %s0 = inlined_call_operand.vmem [shape: f32[128,64], index: 0, kind: input, shape index: {}]
  %s1 = inlined_call_operand.vmem [shape: bf16[64,32], index: 1, kind: input, shape index: {}]
  %s2 = inlined_call_operand.vmem [shape: f32[1,32], index: 2, kind: input, shape index: {}]
  %s3 = inlined_call_operand.vmem [shape: f32[128,32], index: 3, kind: input, shape index: {}]
  %s4 = inlined_call_operand.vmem [shape: f32[128,32], index: 4, kind: output, shape index: {}]
  %s5 = sld [smem:[#allocation0]]
  $region26: #{hourglass2d_forward.25} parent=0
    _
  %s7 = ssub.s32 1, %s5
  %s8 = scalar_select 0, %s7, %s5
  // Predicated region
  $region2: #{hourglass2d_forward.25} parent=0 // pred_check
    _
  $region3: #{hourglass2d_forward.25} parent=0 // pred_check_branch
    %10 = sbr.rel (0) target = $region5
  $region4: #{hourglass2d_forward.25} parent=0 // pred_region
    _
  $region5: #{hourglass2d_forward.25} parent=0 // pred_fallthru
    _
  // Predicated region
  $region6: #{hourglass2d_forward.25} parent=0 // pred_check
    _
  $region7: #{hourglass2d_forward.25} parent=0 // pred_check_branch
    %12 = sbr.rel (0) target = $region9
  $region8: #{hourglass2d_forward.25} parent=0 // pred_region
    _
  $region9: #{hourglass2d_forward.25} parent=0 // pred_fallthru
    _
  // Predicated region
  $region10: #{hourglass2d_forward.25} parent=0 // pred_check
    _
  $region11: #{hourglass2d_forward.25} parent=0 // pred_check_branch
    %14 = sbr.rel (0) target = $region13
  $region12: #{hourglass2d_forward.25} parent=0 // pred_region
    _
  $region13: #{hourglass2d_forward.25} parent=0 // pred_fallthru
    _
  // Predicated region
  $region14: #{hourglass2d_forward.25} parent=0 // pred_check
    _
  $region15: #{hourglass2d_forward.25} parent=0 // pred_check_branch
    %16 = sbr.rel (0) target = $region17
  $region16: #{hourglass2d_forward.25} parent=0 // pred_region
    _
  $region17: #{hourglass2d_forward.25} parent=0 // pred_fallthru
    _
  %v18 = vld [vmem:[%s0] sm:$0xff]
  %v19 = vld [vmem:[%s0 + $0x8] sm:$0xff]
  %v20 = vld [vmem:[%s0 + $0x10] sm:$0xff]
  %v21 = vld [vmem:[%s0 + $0x18] sm:$0xff]
  %v22 = vld [vmem:[%s0 + $0x20] sm:$0xff]
  %v23 = vld [vmem:[%s0 + $0x28] sm:$0xff]
  %v24 = vld [vmem:[%s0 + $0x30] sm:$0xff]
  %v25 = vld [vmem:[%s0 + $0x38] sm:$0xff]
  %v26 = vld [vmem:[%s0 + $0x40] sm:$0xff]
  %v27 = vld [vmem:[%s0 + $0x48] sm:$0xff]
  %v28 = vld [vmem:[%s0 + $0x50] sm:$0xff]
  %v29 = vld [vmem:[%s0 + $0x58] sm:$0xff]
  %v30 = vld [vmem:[%s0 + $0x60] sm:$0xff]
  %v31 = vld [vmem:[%s0 + $0x68] sm:$0xff]
  %v32 = vld [vmem:[%s0 + $0x70] sm:$0xff]
  %v33 = vld [vmem:[%s0 + $0x78] sm:$0xff]
  %v34 = vpack.c.bf16 %v19, %v18
  %v35 = vpack.c.bf16 %v21, %v20
  %v36 = vpack.c.bf16 %v23, %v22
  %v37 = vpack.c.bf16 %v25, %v24
  %v38 = vpack.c.bf16 %v27, %v26
  %v39 = vpack.c.bf16 %v29, %v28
  %v40 = vpack.c.bf16 %v31, %v30
  %v41 = vpack.c.bf16 %v33, %v32
  %v42 = vld [vmem:[%s1] sm:$0xf]
  %v43 = vld [vmem:[%s1 + $0x4] sm:$0xf]
  %v44 = vld [vmem:[%s1 + $0x8] sm:$0xf]
  %v45 = vld [vmem:[%s1 + $0xc] sm:$0xf]
  %v46 = vld [vmem:[%s1 + $0x10] sm:$0xf]
  %v47 = vld [vmem:[%s1 + $0x14] sm:$0xf]
  %v48 = vld [vmem:[%s1 + $0x18] sm:$0xf]
  %v49 = vld [vmem:[%s1 + $0x1c] sm:$0xf]
  %v50 = vld [vmem:[%s2] sm:$0x1]
  %v52 = vperm.slane %v50, 0
  %v62 = vunpack.c.l.b16 %v42
  %v63 = vunpack.c.l.b16 %v43
  %v64 = vunpack.c.l.b16 %v44
  %v65 = vunpack.c.l.b16 %v45
  %v66 = vunpack.c.l.b16 %v46
  %v67 = vunpack.c.l.b16 %v47
  %v68 = vunpack.c.l.b16 %v48
  %v69 = vunpack.c.l.b16 %v49
  %v70 = vpack.c.b16 %v63, %v62
  %v71 = vpack.c.b16 %v65, %v64
  %v72 = vpack.c.b16 %v67, %v66
  %v73 = vpack.c.b16 %v69, %v68
  %vm78 = vcmask 523264
  %v80 = vsel %vm78, %v34, 0
  %v83 = vsel %vm78, %v35, 0
  %v86 = vsel %vm78, %v36, 0
  %v89 = vsel %vm78, %v37, 0
  %v92 = vsel %vm78, %v38, 0
  %v95 = vsel %vm78, %v39, 0
  %v98 = vsel %vm78, %v40, 0
  %v101 = vsel %vm78, %v41, 0
  %103 = vmatpush.bf16.msra.mxu0 0
  %104 = vmatpush.bf16.msra.mxu0 0
  %105 = vmatpush.bf16.msra.mxu0 0
  %106 = vmatpush.bf16.msra.mxu0 0
  %107 = vmatpush.bf16.msra.mxu0 %v73
  %108 = vmatpush.bf16.msra.mxu0 %v72
  %109 = vmatpush.bf16.msra.mxu0 %v71
  %110 = vmatpush.bf16.msra.mxu0 %v70
  %111 = vmatmul.bf16.gmra.mxu0 %v80
  %v112 = vpop.f32.mrf.mxu0
  %v113 = vadd.f32 %v52, %v112
  %v114 = vpop.f32.mrf.mxu0
  %v115 = vadd.f32 %v52, %v114
  %116 = vmatmul.bf16.gmra.mxu0 %v83
  %v117 = vpop.f32.mrf.mxu0
  %v118 = vadd.f32 %v52, %v117
  %v119 = vpop.f32.mrf.mxu0
  %v120 = vadd.f32 %v52, %v119
  %121 = vmatmul.bf16.gmra.mxu0 %v86
  %v122 = vpop.f32.mrf.mxu0
  %v123 = vadd.f32 %v52, %v122
  %v124 = vpop.f32.mrf.mxu0
  %v125 = vadd.f32 %v52, %v124
  %126 = vmatmul.bf16.gmra.mxu0 %v89
  %v127 = vpop.f32.mrf.mxu0
  %v128 = vadd.f32 %v52, %v127
  %v129 = vpop.f32.mrf.mxu0
  %v130 = vadd.f32 %v52, %v129
  %131 = vmatmul.bf16.gmra.mxu0 %v92
  %v132 = vpop.f32.mrf.mxu0
  %v133 = vadd.f32 %v52, %v132
  %v134 = vpop.f32.mrf.mxu0
  %v135 = vadd.f32 %v52, %v134
  %136 = vmatmul.bf16.gmra.mxu0 %v95
  %v137 = vpop.f32.mrf.mxu0
  %v138 = vadd.f32 %v52, %v137
  %v139 = vpop.f32.mrf.mxu0
  %v140 = vadd.f32 %v52, %v139
  %141 = vmatmul.bf16.gmra.mxu0 %v98
  %v142 = vpop.f32.mrf.mxu0
  %v143 = vadd.f32 %v52, %v142
  %v144 = vpop.f32.mrf.mxu0
  %v145 = vadd.f32 %v52, %v144
  %146 = vmatmul.bf16.gmra.mxu0 %v101
  %v147 = vpop.f32.mrf.mxu0
  %v148 = vadd.f32 %v52, %v147
  %v149 = vpop.f32.mrf.mxu0
  %v150 = vadd.f32 %v52, %v149
  %151 = vdwg.mxu0
  %v152 = vld [vmem:[%s3] sm:$0xff]
  %v153 = vld [vmem:[%s3 + $0x8] sm:$0xff]
  %v154 = vld [vmem:[%s3 + $0x10] sm:$0xff]
  %v155 = vld [vmem:[%s3 + $0x18] sm:$0xff]
  %v156 = vld [vmem:[%s3 + $0x20] sm:$0xff]
  %v157 = vld [vmem:[%s3 + $0x28] sm:$0xff]
  %v158 = vld [vmem:[%s3 + $0x30] sm:$0xff]
  %v159 = vld [vmem:[%s3 + $0x38] sm:$0xff]
  %v160 = vld [vmem:[%s3 + $0x40] sm:$0xff]
  %v161 = vld [vmem:[%s3 + $0x48] sm:$0xff]
  %v162 = vld [vmem:[%s3 + $0x50] sm:$0xff]
  %v163 = vld [vmem:[%s3 + $0x58] sm:$0xff]
  %v164 = vld [vmem:[%s3 + $0x60] sm:$0xff]
  %v165 = vld [vmem:[%s3 + $0x68] sm:$0xff]
  %v166 = vld [vmem:[%s3 + $0x70] sm:$0xff]
  %v167 = vld [vmem:[%s3 + $0x78] sm:$0xff]
  %v168 = vadd.f32 %v113, %v152
  %v169 = vadd.f32 %v115, %v153
  %v170 = vadd.f32 %v118, %v154
  %v171 = vadd.f32 %v120, %v155
  %v172 = vadd.f32 %v123, %v156
  %v173 = vadd.f32 %v125, %v157
  %v174 = vadd.f32 %v128, %v158
  %v175 = vadd.f32 %v130, %v159
  %v176 = vadd.f32 %v133, %v160
  %v177 = vadd.f32 %v135, %v161
  %v178 = vadd.f32 %v138, %v162
  %v179 = vadd.f32 %v140, %v163
  %v180 = vadd.f32 %v143, %v164
  %v181 = vadd.f32 %v145, %v165
  %v182 = vadd.f32 %v148, %v166
  %v183 = vadd.f32 %v150, %v167
  %vm184 = vcmask 261120
  %185 = vst.msk [vmem:[%s4] sm:$0xff] %vm184, %v168
  %186 = vst.msk [vmem:[%s4 + $0x8] sm:$0xff] %vm184, %v169
  %187 = vst.msk [vmem:[%s4 + $0x10] sm:$0xff] %vm184, %v170
  %188 = vst.msk [vmem:[%s4 + $0x18] sm:$0xff] %vm184, %v171
  %189 = vst.msk [vmem:[%s4 + $0x20] sm:$0xff] %vm184, %v172
  %190 = vst.msk [vmem:[%s4 + $0x28] sm:$0xff] %vm184, %v173
  %191 = vst.msk [vmem:[%s4 + $0x30] sm:$0xff] %vm184, %v174
  %192 = vst.msk [vmem:[%s4 + $0x38] sm:$0xff] %vm184, %v175
  %193 = vst.msk [vmem:[%s4 + $0x40] sm:$0xff] %vm184, %v176
  %194 = vst.msk [vmem:[%s4 + $0x48] sm:$0xff] %vm184, %v177
  %195 = vst.msk [vmem:[%s4 + $0x50] sm:$0xff] %vm184, %v178
  %196 = vst.msk [vmem:[%s4 + $0x58] sm:$0xff] %vm184, %v179
  %197 = vst.msk [vmem:[%s4 + $0x60] sm:$0xff] %vm184, %v180
  %198 = vst.msk [vmem:[%s4 + $0x68] sm:$0xff] %vm184, %v181
  %199 = vst.msk [vmem:[%s4 + $0x70] sm:$0xff] %vm184, %v182
  %200 = vst.msk [vmem:[%s4 + $0x78] sm:$0xff] %vm184, %v183
  // Predicated region
  $region18: #{hourglass2d_forward.25} parent=0 // pred_check
    _
  $region19: #{hourglass2d_forward.25} parent=0 // pred_check_branch
    %202 = sbr.rel (0) target = $region21
  $region20: #{hourglass2d_forward.25} parent=0 // pred_region
    _
  $region21: #{hourglass2d_forward.25} parent=0 // pred_fallthru
    _
  // Predicated region
  $region22: #{hourglass2d_forward.25} parent=0 // pred_check
    _
  $region23: #{hourglass2d_forward.25} parent=0 // pred_check_branch
    %204 = sbr.rel (0) target = $region25
  $region24: #{hourglass2d_forward.25} parent=0 // pred_region
    _
  $region25: #{hourglass2d_forward.25} parent=0 // pred_fallthru
    _

// kernel: hourglass2d_forward.27
$region0: #{hourglass2d_forward.27}
  #allocation0 [shape = 'u32[]', space=smem, size = 0x4, offset = 0x4, fixed_abs, tag = 'smem constant byte address 0x4 - core index']
  #allocation1 [shape = 'u32[72,128]{1,0:T(1,128)}', space=vmem, size = 0x9000, scoped, tag = 'internal scratch']
  %s0 = inlined_call_operand.vmem [shape: f32[8,5,5,64], index: 0, kind: input, shape index: {}]
  %s1 = inlined_call_operand.vmem [shape: f32[9,64], index: 1, kind: input, shape index: {}]
  %s2 = inlined_call_operand.vmem [shape: f32[1,64], index: 2, kind: input, shape index: {}]
  %s3 = inlined_call_operand.vmem [shape: f32[2,4,4,64], index: 3, kind: output, shape index: {}]
  %s4 = sld [smem:[#allocation0]]
  $region45: #{hourglass2d_forward.27} parent=0
    _
  %s6 = ssub.s32 1, %s4
  %s7 = scalar_select 0, %s6, %s4
  loop: start=0, step=1, limit=4
  $region2: #{hourglass2d_forward.27} parent=0 // loop_pre_header
    _
  $region3: #{hourglass2d_forward.27} parent=0 // loop_header
    %s9 = sphi 0, %s13
    %p10 = scmp.ge.s32.totalorder %s9, 4
    %s16 = sphi 0, %s28
    %s17 = sphi 0, %s24
    %s18 = sphi 0, %s16
    %s19 = sphi 0, %s17
    %s20 = sphi 0, %s18
    %s21 = sphi 0, %s19
    %s33 = sphi 0, %s35
    %s36 = sphi 0, %s33
    %s37 = sphi 0, %s36
    %s53 = sphi 0, %s37
    %s59 = sphi 0, %s61
    %s62 = sphi 0, %s59
    %s63 = sphi 0, %s62
    %s79 = sphi 0, %s63
    %s85 = sphi 0, %s87
    %s88 = sphi 0, %s85
    %s89 = sphi 0, %s88
    %s105 = sphi 0, %s89
    %s113 = sphi 0, %s115
    %s116 = sphi 0, %s113
    %s117 = sphi 0, %s116
    %s133 = sphi 0, %s117
  $region4: #{hourglass2d_forward.27} parent=0 // loop_header_branch
    %12 = sbr.rel (%p10) target = $region8
  $region5: #{hourglass2d_forward.27} parent=0 // loop_body
    %s14 = ssub.s32 %s9, 1
    %s15 = ssub.s32 %s9, 2
    %s22 = sadd.s32 1, %s17
    %p23 = scmp.ge.s32.totalorder %s22, 1
    %s24 = scalar_select %p23, 0, %s22
    %s25 = sadd.s32 1, %s16
    %s26 = scalar_select %p23, %s25, %s16
    %p27 = scmp.ge.s32.totalorder %s26, 2
    %s28 = scalar_select %p27, 0, %s26
    %s29 = ssub.s32 %s16, %s28
    %s30 = ssub.s32 %s17, %s24
    %s31 = sor.u32 %s29, %s30
    %p32 = scmp.eq.s32.totalorder %s31, 0
    %s34 = sadd.s32 %s33, 1
    %s35 = scalar_select %p32, %s33, %s34
    %p38 = pneg %p32
    %p39 = scmp.eq.s32.totalorder %s9, 1
    %p40 = por %p38, %p39
    %p41 = scmp.ne.s32.totalorder %s33, %s36
    %p42 = scmp.eq.s32.totalorder %s9, 0
    %p43 = por %p41, %p42
    %p44 = scmp.ne.s32.totalorder %s33, %s36
    %p45 = scmp.eq.s32.totalorder %s14, 1
    %p46 = por %p44, %p45
    %p47 = scmp.ne.s32.totalorder %s36, %s37
    %p48 = scmp.eq.s32.totalorder %s14, 0
    %p49 = por %p47, %p48
    %p50 = scmp.ne.s32.totalorder %s36, %s37
    %p51 = scmp.eq.s32.totalorder %s15, 1
    %p52 = por %p50, %p51
    %p54 = scmp.ne.s32.totalorder %s37, %s53
    %p55 = scmp.eq.s32.totalorder %s15, 0
    %p56 = por %p54, %p55
    %s57 = ssub.s32 %s17, %s24
    %p58 = scmp.eq.s32.totalorder %s57, 0
    %s60 = sadd.s32 %s59, 1
    %s61 = scalar_select %p58, %s59, %s60
    %p64 = pneg %p58
    %p65 = scmp.eq.s32.totalorder %s9, 1
    %p66 = por %p64, %p65
    %p67 = scmp.ne.s32.totalorder %s59, %s62
    %p68 = scmp.eq.s32.totalorder %s9, 0
    %p69 = por %p67, %p68
    %p70 = scmp.ne.s32.totalorder %s59, %s62
    %p71 = scmp.eq.s32.totalorder %s14, 1
    %p72 = por %p70, %p71
    %p73 = scmp.ne.s32.totalorder %s62, %s63
    %p74 = scmp.eq.s32.totalorder %s14, 0
    %p75 = por %p73, %p74
    %p76 = scmp.ne.s32.totalorder %s62, %s63
    %p77 = scmp.eq.s32.totalorder %s15, 1
    %p78 = por %p76, %p77
    %p80 = scmp.ne.s32.totalorder %s63, %s79
    %p81 = scmp.eq.s32.totalorder %s15, 0
    %p82 = por %p80, %p81
    %s83 = ssub.s32 %s17, %s24
    %p84 = scmp.eq.s32.totalorder %s83, 0
    %s86 = sadd.s32 %s85, 1
    %s87 = scalar_select %p84, %s85, %s86
    %p90 = pneg %p84
    %p91 = scmp.eq.s32.totalorder %s9, 1
    %p92 = por %p90, %p91
    %p93 = scmp.ne.s32.totalorder %s85, %s88
    %p94 = scmp.eq.s32.totalorder %s9, 0
    %p95 = por %p93, %p94
    %p96 = scmp.ne.s32.totalorder %s85, %s88
    %p97 = scmp.eq.s32.totalorder %s14, 1
    %p98 = por %p96, %p97
    %p99 = scmp.ne.s32.totalorder %s88, %s89
    %p100 = scmp.eq.s32.totalorder %s14, 0
    %p101 = por %p99, %p100
    %p102 = scmp.ne.s32.totalorder %s88, %s89
    %p103 = scmp.eq.s32.totalorder %s15, 1
    %p104 = por %p102, %p103
    %p106 = scmp.ne.s32.totalorder %s89, %s105
    %p107 = scmp.eq.s32.totalorder %s15, 0
    %p108 = por %p106, %p107
    %s109 = ssub.s32 %s16, %s28
    %s110 = ssub.s32 %s17, %s24
    %s111 = sor.u32 %s109, %s110
    %p112 = scmp.eq.s32.totalorder %s111, 0
    %s114 = sadd.s32 %s113, 1
    %s115 = scalar_select %p112, %s113, %s114
    %p118 = pneg %p112
    %p119 = scmp.eq.s32.totalorder %s9, 1
    %p120 = por %p118, %p119
    %p121 = scmp.ne.s32.totalorder %s113, %s116
    %p122 = scmp.eq.s32.totalorder %s9, 0
    %p123 = por %p121, %p122
    %p124 = scmp.ne.s32.totalorder %s113, %s116
    %p125 = scmp.eq.s32.totalorder %s14, 1
    %p126 = por %p124, %p125
    %p127 = scmp.ne.s32.totalorder %s116, %s117
    %p128 = scmp.eq.s32.totalorder %s14, 0
    %p129 = por %p127, %p128
    %p130 = scmp.ne.s32.totalorder %s116, %s117
    %p131 = scmp.eq.s32.totalorder %s15, 1
    %p132 = por %p130, %p131
    %p134 = scmp.ne.s32.totalorder %s117, %s133
    %p135 = scmp.eq.s32.totalorder %s15, 0
    %p136 = por %p134, %p135
    %p137 = scmp.le.s32.totalorder 1, %s9
    %p138 = scmp.lt.s32.totalorder %s9, 3
    %p139 = pnand %p137, %p138
    %p140 = pneg %p139
    // Predicated region
    $region9: #{hourglass2d_forward.27} parent=5 // pred_check
      _
    $region10: #{hourglass2d_forward.27} parent=5 // pred_check_branch
      %142 = sbr.rel (%p139) target = $region12
    $region11: #{hourglass2d_forward.27} parent=5 // pred_region
      %s143 = ssub.s32 %s9, 1
      // Predicated region
      $region13: #{hourglass2d_forward.27} parent=11 // pred_check
        %p144 = pneg %p75
      $region14: #{hourglass2d_forward.27} parent=11 // pred_check_branch
        %146 = sbr.rel (%p144) target = $region16
      $region15: #{hourglass2d_forward.27} parent=11 // pred_region
        %p147 = scmp.lt.s32.totalorder %s19, 0
        %s148 = scalar_select %p147, %s19, 0
        %s149 = smul.addr %s148, 8
        %s150 = scalar_lea.vmem %s1, %s149
      $region16: #{hourglass2d_forward.27} parent=11 // pred_fallthru
        _
      // Predicated region
      $region17: #{hourglass2d_forward.27} parent=11 // pred_check
        %p151 = pneg %p101
      $region18: #{hourglass2d_forward.27} parent=11 // pred_check_branch
        %153 = sbr.rel (%p151) target = $region20
      $region19: #{hourglass2d_forward.27} parent=11 // pred_region
        %p154 = scmp.lt.s32.totalorder %s19, 0
        %s155 = scalar_select %p154, %s19, 0
        %s156 = scalar_lea.vmem %s2, %s155
      $region20: #{hourglass2d_forward.27} parent=11 // pred_fallthru
        _
    $region12: #{hourglass2d_forward.27} parent=5 // pred_fallthru
      _
    %p157 = scmp.lt.s32.totalorder %s9, 2
    // Predicated region
    $region21: #{hourglass2d_forward.27} parent=5 // pred_check
      %p158 = pneg %p157
    $region22: #{hourglass2d_forward.27} parent=5 // pred_check_branch
      %160 = sbr.rel (%p158) target = $region24
    $region23: #{hourglass2d_forward.27} parent=5 // pred_region
      // Predicated region
      $region25: #{hourglass2d_forward.27} parent=23 // pred_check
        %p161 = pneg %p43
      $region26: #{hourglass2d_forward.27} parent=23 // pred_check_branch
        %163 = sbr.rel (%p161) target = $region28
      $region27: #{hourglass2d_forward.27} parent=23 // pred_region
        %s164 = smul.u32 4, %s16
        %p165 = scmp.lt.s32.totalorder %s164, 7
        %s166 = scalar_select %p165, %s164, 7
        %p167 = scmp.lt.s32.totalorder %s17, 0
        %s168 = scalar_select %p167, %s17, 0
        %s169 = smul.addr %s166, 5
        %s170 = sadd.s32 %s168, %s169
        %s171 = smul.addr %s170, 8
        %s172 = scalar_lea.vmem %s0, %s171
        %s173 = smul.u32 4, %s16
      $region28: #{hourglass2d_forward.27} parent=23 // pred_fallthru
        _
    $region24: #{hourglass2d_forward.27} parent=5 // pred_fallthru
      _
    %p174 = scmp.le.s32.totalorder 1, %s9
    %p175 = scmp.lt.s32.totalorder %s9, 3
    %p176 = pnand %p174, %p175
    %p177 = pneg %p176
    // Predicated region
    $region29: #{hourglass2d_forward.27} parent=5 // pred_check
      _
    $region30: #{hourglass2d_forward.27} parent=5 // pred_check_branch
      %179 = sbr.rel (%p176) target = $region32
    $region31: #{hourglass2d_forward.27} parent=5 // pred_region
      %s180 = ssub.s32 %s9, 1
      %s181 = smul.u32 4, %s18
      %p182 = scmp.lt.s32.totalorder %s181, 7
      %s183 = scalar_select %p182, %s181, 7
      %p184 = scmp.lt.s32.totalorder %s19, 0
      %s185 = scalar_select %p184, %s19, 0
      %s186 = smul.addr %s183, 5
      %s187 = sadd.s32 %s185, %s186
      %s188 = smul.addr %s187, 8
      %s189 = scalar_lea.vmem %s0, %s188
      %p190 = pneg %p49
      %p191 = pneg %p46
      %p192 = scmp.lt.s32.totalorder %s19, 0
      %s193 = scalar_select %p192, %s19, 0
      %s194 = smul.addr %s193, 8
      %s195 = scalar_lea.vmem %s1, %s194
      %p196 = pneg %p75
      %p197 = pneg %p72
      %p198 = scmp.lt.s32.totalorder %s19, 0
      %s199 = scalar_select %p198, %s19, 0
      %s200 = scalar_lea.vmem %s2, %s199
      %p201 = pneg %p101
      %p202 = pneg %p98
      %p203 = pneg %p129
      %p204 = pneg %p126
      %p205 = scmp.lt.s32.totalorder %s18, 1
      %s206 = scalar_select %p205, %s18, 1
      %p207 = scmp.lt.s32.totalorder %s19, 0
      %s208 = scalar_select %p207, %s19, 0
      %s209 = smul.addr %s206, 4
      %s210 = sadd.s32 %s208, %s209
      %s211 = smul.addr %s210, 4
      %s212 = scalar_lea.vmem %s3, %s211
      %s213 = smul.u32 4, %s18
      %p214 = scmp.lt.s32.totalorder %s213, 7
      %s215 = scalar_select %p214, %s213, 7
      %p216 = scmp.lt.s32.totalorder %s19, 0
      %s217 = scalar_select %p216, %s19, 0
      %s218 = smul.addr %s215, 5
      %s219 = sadd.s32 %s217, %s218
      %s220 = smul.addr %s219, 8
      %s221 = scalar_lea.vmem %s0, %s220
      %s222 = smul.u32 4, %s18
      %p223 = scmp.lt.s32.totalorder %s19, 0
      %s224 = scalar_select %p223, %s19, 0
      %s225 = smul.addr %s224, 8
      %s226 = scalar_lea.vmem %s1, %s225
      %p227 = scmp.lt.s32.totalorder %s19, 0
      %s228 = scalar_select %p227, %s19, 0
      %s229 = scalar_lea.vmem %s2, %s228
      %p230 = scmp.lt.s32.totalorder %s18, 1
      %s231 = scalar_select %p230, %s18, 1
      %p232 = scmp.lt.s32.totalorder %s19, 0
      %s233 = scalar_select %p232, %s19, 0
      %s234 = smul.addr %s231, 4
      %s235 = sadd.s32 %s233, %s234
      %s236 = smul.addr %s235, 4
      %s237 = scalar_lea.vmem %s3, %s236
      %v238 = vld [vmem:[%s221] sm:$0xf]
      %v239 = vld [vmem:[%s221 + $0x8] sm:$0xf]
      %v240 = vld [vmem:[%s221 + $0x10] sm:$0xf]
      %v241 = vld [vmem:[%s221 + $0x18] sm:$0xf]
      %v242 = vld [vmem:[%s226] sm:$0x1]
      %v243 = vperm.slane %v242, 0
      %v244 = vmul.f32 %v238, %v243
      %v245 = vmul.f32 %v239, %v243
      %v246 = vmul.f32 %v240, %v243
      %v247 = vmul.f32 %v241, %v243
      %s248 = scalar_lea.vmem %s221, 40
      %v249 = vld [vmem:[%s248] sm:$0xf]
      %v250 = vld [vmem:[%s248 + $0x8] sm:$0xf]
      %v251 = vld [vmem:[%s248 + $0x10] sm:$0xf]
      %v252 = vld [vmem:[%s248 + $0x18] sm:$0xf]
      %v253 = vld [vmem:[%s226 + $0x1] sm:$0x1]
      %v254 = vperm.slane %v253, 0
      %v255 = vmul.f32 %v249, %v254
      %v256 = vmul.f32 %v250, %v254
      %v257 = vmul.f32 %v251, %v254
      %v258 = vmul.f32 %v252, %v254
      %v259 = vadd.f32 %v244, %v255
      %v260 = vadd.f32 %v245, %v256
      %v261 = vadd.f32 %v246, %v257
      %v262 = vadd.f32 %v247, %v258
      %v263 = vld [vmem:[%s221 + $0x1] sm:$0xf]
      %v264 = vld [vmem:[%s221 + $0x9] sm:$0xf]
      %v265 = vld [vmem:[%s221 + $0x11] sm:$0xf]
      %v266 = vld [vmem:[%s221 + $0x19] sm:$0xf]
      %v267 = vld [vmem:[%s226 + $0x2] sm:$0x1]
      %v268 = vperm.slane %v267, 0
      %v269 = vmul.f32 %v263, %v268
      %v270 = vmul.f32 %v264, %v268
      %v271 = vmul.f32 %v265, %v268
      %v272 = vmul.f32 %v266, %v268
      %v273 = vadd.f32 %v259, %v269
      %v274 = vadd.f32 %v260, %v270
      %v275 = vadd.f32 %v261, %v271
      %v276 = vadd.f32 %v262, %v272
      %s277 = scalar_lea.vmem %s221, 80
      %v278 = vld [vmem:[%s277] sm:$0xf]
      %v279 = vld [vmem:[%s277 + $0x8] sm:$0xf]
      %v280 = vld [vmem:[%s277 + $0x10] sm:$0xf]
      %v281 = vld [vmem:[%s277 + $0x18] sm:$0xf]
      %v282 = vld [vmem:[%s226 + $0x3] sm:$0x1]
      %v283 = vperm.slane %v282, 0
      %v284 = vmul.f32 %v278, %v283
      %v285 = vmul.f32 %v279, %v283
      %v286 = vmul.f32 %v280, %v283
      %v287 = vmul.f32 %v281, %v283
      %v288 = vadd.f32 %v273, %v284
      %v289 = vadd.f32 %v274, %v285
      %v290 = vadd.f32 %v275, %v286
      %v291 = vadd.f32 %v276, %v287
      %s292 = scalar_lea.vmem %s221, 120
      %v293 = vld [vmem:[%s292] sm:$0xf]
      %v294 = vld [vmem:[%s292 + $0x8] sm:$0xf]
      %v295 = vld [vmem:[%s292 + $0x10] sm:$0xf]
      %v296 = vld [vmem:[%s292 + $0x18] sm:$0xf]
      %v297 = vld [vmem:[%s226 + $0x4] sm:$0x1]
      %v298 = vperm.slane %v297, 0
      %v299 = vmul.f32 %v293, %v298
      %v300 = vmul.f32 %v294, %v298
      %v301 = vmul.f32 %v295, %v298
      %v302 = vmul.f32 %v296, %v298
      %v303 = vadd.f32 %v288, %v299
      %v304 = vadd.f32 %v289, %v300
      %v305 = vadd.f32 %v290, %v301
      %v306 = vadd.f32 %v291, %v302
      %v307 = vld [vmem:[%s277 + $0x1] sm:$0xf]
      %v308 = vld [vmem:[%s277 + $0x9] sm:$0xf]
      %v309 = vld [vmem:[%s277 + $0x11] sm:$0xf]
      %v310 = vld [vmem:[%s277 + $0x19] sm:$0xf]
      %v311 = vld [vmem:[%s226 + $0x5] sm:$0x1]
      %v312 = vperm.slane %v311, 0
      %v313 = vmul.f32 %v307, %v312
      %v314 = vmul.f32 %v308, %v312
      %v315 = vmul.f32 %v309, %v312
      %v316 = vmul.f32 %v310, %v312
      %v317 = vadd.f32 %v303, %v313
      %v318 = vadd.f32 %v304, %v314
      %v319 = vadd.f32 %v305, %v315
      %v320 = vadd.f32 %v306, %v316
      %s321 = scalar_lea.vmem %s221, 8
      %v322 = vld [vmem:[%s321] sm:$0xf]
      %v323 = vld [vmem:[%s321 + $0x8] sm:$0xf]
      %v324 = vld [vmem:[%s321 + $0x10] sm:$0xf]
      %v325 = vld [vmem:[%s321 + $0x18] sm:$0xf]
      %v326 = vld [vmem:[%s226 + $0x6] sm:$0x1]
      %v327 = vperm.slane %v326, 0
      %v328 = vmul.f32 %v322, %v327
      %v329 = vmul.f32 %v323, %v327
      %v330 = vmul.f32 %v324, %v327
      %v331 = vmul.f32 %v325, %v327
      %v332 = vadd.f32 %v317, %v328
      %v333 = vadd.f32 %v318, %v329
      %v334 = vadd.f32 %v319, %v330
      %v335 = vadd.f32 %v320, %v331
      %s336 = scalar_lea.vmem %s221, 48
      %v337 = vld [vmem:[%s336] sm:$0xf]
      %v338 = vld [vmem:[%s336 + $0x8] sm:$0xf]
      %v339 = vld [vmem:[%s336 + $0x10] sm:$0xf]
      %v340 = vld [vmem:[%s336 + $0x18] sm:$0xf]
      %v341 = vld [vmem:[%s226 + $0x7] sm:$0x1]
      %v342 = vperm.slane %v341, 0
      %v343 = vmul.f32 %v337, %v342
      %v344 = vmul.f32 %v338, %v342
      %v345 = vmul.f32 %v339, %v342
      %v346 = vmul.f32 %v340, %v342
      %v347 = vadd.f32 %v332, %v343
      %v348 = vadd.f32 %v333, %v344
      %v349 = vadd.f32 %v334, %v345
      %v350 = vadd.f32 %v335, %v346
      %v351 = vld [vmem:[%s321 + $0x1] sm:$0xf]
      %v352 = vld [vmem:[%s321 + $0x9] sm:$0xf]
      %v353 = vld [vmem:[%s321 + $0x11] sm:$0xf]
      %v354 = vld [vmem:[%s321 + $0x19] sm:$0xf]
      %v355 = vld [vmem:[%s226 + $0x8] sm:$0x1]
      %v356 = vperm.slane %v355, 0
      %v357 = vmul.f32 %v351, %v356
      %v358 = vmul.f32 %v352, %v356
      %v359 = vmul.f32 %v353, %v356
      %v360 = vmul.f32 %v354, %v356
      %v361 = vadd.f32 %v347, %v357
      %v362 = vadd.f32 %v348, %v358
      %v363 = vadd.f32 %v349, %v359
      %v364 = vadd.f32 %v350, %v360
      %v365 = vld [vmem:[%s229] sm:$0x1]
      %v367 = vperm.slane %v365, 0
      %v369 = vadd.f32 %v361, %v367
      %v370 = vadd.f32 %v362, %v367
      %v371 = vadd.f32 %v363, %v367
      %v372 = vadd.f32 %v364, %v367
      %v373 = vmax.f32 %v369, 0.0
      %v374 = vmax.f32 %v370, 0.0
      %v375 = vmax.f32 %v371, 0.0
      %v376 = vmax.f32 %v372, 0.0
      %v377 = vmin.f32 %v373, 6.0
      %v378 = vmin.f32 %v374, 6.0
      %v379 = vmin.f32 %v375, 6.0
      %v380 = vmin.f32 %v376, 6.0
      %vm381 = vcmask 519168
      %382 = vst.msk [vmem:[%s237] sm:$0xf] %vm381, %v377
      %383 = vst.msk [vmem:[%s237 + $0x4] sm:$0xf] %vm381, %v378
      %384 = vst.msk [vmem:[%s237 + $0x8] sm:$0xf] %vm381, %v379
      %385 = vst.msk [vmem:[%s237 + $0xc] sm:$0xf] %vm381, %v380
      %p386 = scmp.lt.s32.totalorder %s18, 1
      %s387 = scalar_select %p386, %s18, 1
      %p388 = scmp.lt.s32.totalorder %s19, 0
      %s389 = scalar_select %p388, %s19, 0
      %s390 = smul.addr %s387, 4
      %s391 = sadd.s32 %s389, %s390
      %s392 = smul.addr %s391, 4
      %s393 = scalar_lea.vmem %s3, %s392
      // Predicated region
      $region33: #{hourglass2d_forward.27} parent=31 // pred_check
        %p394 = pneg %p126
      $region34: #{hourglass2d_forward.27} parent=31 // pred_check_branch
        %396 = sbr.rel (%p394) target = $region36
      $region35: #{hourglass2d_forward.27} parent=31 // pred_region
        _
      $region36: #{hourglass2d_forward.27} parent=31 // pred_fallthru
        _
    $region32: #{hourglass2d_forward.27} parent=5 // pred_fallthru
      _
    %p397 = scmp.le.s32.totalorder 2, %s9
    // Predicated region
    $region37: #{hourglass2d_forward.27} parent=5 // pred_check
      %p398 = pneg %p397
    $region38: #{hourglass2d_forward.27} parent=5 // pred_check_branch
      %400 = sbr.rel (%p398) target = $region40
    $region39: #{hourglass2d_forward.27} parent=5 // pred_region
      %s401 = ssub.s32 %s9, 2
      // Predicated region
      $region41: #{hourglass2d_forward.27} parent=39 // pred_check
        %p402 = pneg %p132
      $region42: #{hourglass2d_forward.27} parent=39 // pred_check_branch
        %404 = sbr.rel (%p402) target = $region44
      $region43: #{hourglass2d_forward.27} parent=39 // pred_region
        %p405 = scmp.lt.s32.totalorder %s20, 1
        %s406 = scalar_select %p405, %s20, 1
        %p407 = scmp.lt.s32.totalorder %s21, 0
        %s408 = scalar_select %p407, %s21, 0
        %s409 = smul.addr %s406, 4
        %s410 = sadd.s32 %s408, %s409
        %s411 = smul.addr %s410, 4
        %s412 = scalar_lea.vmem %s3, %s411
      $region44: #{hourglass2d_forward.27} parent=39 // pred_fallthru
        _
    $region40: #{hourglass2d_forward.27} parent=5 // pred_fallthru
      _
  $region6: #{hourglass2d_forward.27} parent=0 // loop_footer
    %s13 = sadd.s32 1, %s9
  $region7: #{hourglass2d_forward.27} parent=0 // loop_footer_branch
    %8 = sbr.rel target = $region3
  $region8: #{hourglass2d_forward.27} parent=0 // loop_exit
    _

// kernel: hourglass2d_forward.28
$region0: #{hourglass2d_forward.28}
  #allocation0 [shape = 'u32[]', space=smem, size = 0x4, offset = 0x4, fixed_abs, tag = 'smem constant byte address 0x4 - core index']
  #allocation1 [shape = 'u32[72,128]{1,0:T(1,128)}', space=vmem, size = 0x9000, scoped, tag = 'internal scratch']
  %s0 = inlined_call_operand.vmem [shape: f32[32,64], index: 0, kind: input, shape index: {}]
  %s1 = inlined_call_operand.vmem [shape: bf16[64,64], index: 1, kind: input, shape index: {}]
  %s2 = inlined_call_operand.vmem [shape: f32[1,64], index: 2, kind: input, shape index: {}]
  %s3 = inlined_call_operand.vmem [shape: f32[32,64], index: 3, kind: output, shape index: {}]
  %s4 = sld [smem:[#allocation0]]
  $region22: #{hourglass2d_forward.28} parent=0
    _
  %s6 = ssub.s32 1, %s4
  %s7 = scalar_select 0, %s6, %s4
  // Predicated region
  $region2: #{hourglass2d_forward.28} parent=0 // pred_check
    _
  $region3: #{hourglass2d_forward.28} parent=0 // pred_check_branch
    %9 = sbr.rel (0) target = $region5
  $region4: #{hourglass2d_forward.28} parent=0 // pred_region
    _
  $region5: #{hourglass2d_forward.28} parent=0 // pred_fallthru
    _
  // Predicated region
  $region6: #{hourglass2d_forward.28} parent=0 // pred_check
    _
  $region7: #{hourglass2d_forward.28} parent=0 // pred_check_branch
    %11 = sbr.rel (0) target = $region9
  $region8: #{hourglass2d_forward.28} parent=0 // pred_region
    _
  $region9: #{hourglass2d_forward.28} parent=0 // pred_fallthru
    _
  // Predicated region
  $region10: #{hourglass2d_forward.28} parent=0 // pred_check
    _
  $region11: #{hourglass2d_forward.28} parent=0 // pred_check_branch
    %13 = sbr.rel (0) target = $region13
  $region12: #{hourglass2d_forward.28} parent=0 // pred_region
    _
  $region13: #{hourglass2d_forward.28} parent=0 // pred_fallthru
    _
  %v15 = vld [vmem:[%s0] sm:$0xff]
  %v16 = vld [vmem:[%s0 + $0x8] sm:$0xff]
  %v17 = vld [vmem:[%s0 + $0x10] sm:$0xff]
  %v18 = vld [vmem:[%s0 + $0x18] sm:$0xff]
  %v19 = vpack.c.bf16 %v16, %v15
  %v20 = vpack.c.bf16 %v18, %v17
  %v21 = vld [vmem:[%s1] sm:$0xf]
  %v22 = vld [vmem:[%s1 + $0x4] sm:$0xf]
  %v23 = vld [vmem:[%s1 + $0x8] sm:$0xf]
  %v24 = vld [vmem:[%s1 + $0xc] sm:$0xf]
  %v25 = vld [vmem:[%s1 + $0x10] sm:$0xf]
  %v26 = vld [vmem:[%s1 + $0x14] sm:$0xf]
  %v27 = vld [vmem:[%s1 + $0x18] sm:$0xf]
  %v28 = vld [vmem:[%s1 + $0x1c] sm:$0xf]
  %v29 = vld [vmem:[%s2] sm:$0x1]
  %v31 = vperm.slane %v29, 0
  %v41 = vunpack.c.l.b16 %v21
  %v42 = vunpack.c.l.b16 %v22
  %v43 = vunpack.c.l.b16 %v23
  %v44 = vunpack.c.l.b16 %v24
  %v45 = vunpack.c.l.b16 %v25
  %v46 = vunpack.c.l.b16 %v26
  %v47 = vunpack.c.l.b16 %v27
  %v48 = vunpack.c.l.b16 %v28
  %v49 = vpack.c.b16 %v42, %v41
  %v50 = vpack.c.b16 %v44, %v43
  %v51 = vpack.c.b16 %v46, %v45
  %v52 = vpack.c.b16 %v48, %v47
  %vm57 = vcmask 523264
  %v59 = vsel %vm57, %v19, 0
  %v62 = vsel %vm57, %v20, 0
  %64 = vmatpush.bf16.msra.mxu0 0
  %65 = vmatpush.bf16.msra.mxu0 0
  %66 = vmatpush.bf16.msra.mxu0 0
  %67 = vmatpush.bf16.msra.mxu0 0
  %68 = vmatpush.bf16.msra.mxu0 %v52
  %69 = vmatpush.bf16.msra.mxu0 %v51
  %70 = vmatpush.bf16.msra.mxu0 %v50
  %71 = vmatpush.bf16.msra.mxu0 %v49
  %72 = vmatmul.bf16.gmra.mxu0 %v59
  %v73 = vpop.f32.mrf.mxu0
  %v74 = vadd.f32 %v31, %v73
  %v75 = vpop.f32.mrf.mxu0
  %v76 = vadd.f32 %v31, %v75
  %77 = vmatmul.bf16.gmra.mxu0 %v62
  %v78 = vpop.f32.mrf.mxu0
  %v79 = vadd.f32 %v31, %v78
  %v80 = vpop.f32.mrf.mxu0
  %v81 = vadd.f32 %v31, %v80
  %82 = vdwg.mxu0
  %83 = vst.msk [vmem:[%s3] sm:$0xff] %vm57, %v74
  %84 = vst.msk [vmem:[%s3 + $0x8] sm:$0xff] %vm57, %v76
  %85 = vst.msk [vmem:[%s3 + $0x10] sm:$0xff] %vm57, %v79
  %86 = vst.msk [vmem:[%s3 + $0x18] sm:$0xff] %vm57, %v81
  // Predicated region
  $region14: #{hourglass2d_forward.28} parent=0 // pred_check
    _
  $region15: #{hourglass2d_forward.28} parent=0 // pred_check_branch
    %88 = sbr.rel (0) target = $region17
  $region16: #{hourglass2d_forward.28} parent=0 // pred_region
    _
  $region17: #{hourglass2d_forward.28} parent=0 // pred_fallthru
    _
  // Predicated region
  $region18: #{hourglass2d_forward.28} parent=0 // pred_check
    _
  $region19: #{hourglass2d_forward.28} parent=0 // pred_check_branch
    %90 = sbr.rel (0) target = $region21
  $region20: #{hourglass2d_forward.28} parent=0 // pred_region
    _
  $region21: #{hourglass2d_forward.28} parent=0 // pred_fallthru
    _

// kernel: hourglass2d_forward.29
$region0: #{hourglass2d_forward.29}
  #allocation0 [shape = 'u32[]', space=smem, size = 0x4, offset = 0x4, fixed_abs, tag = 'smem constant byte address 0x4 - core index']
  #allocation1 [shape = 'u32[72,128]{1,0:T(1,128)}', space=vmem, size = 0x9000, scoped, tag = 'internal scratch']
  %s0 = inlined_call_operand.vmem [shape: f32[32,64], index: 0, kind: input, shape index: {}]
  %s1 = inlined_call_operand.vmem [shape: bf16[64,128], index: 1, kind: input, shape index: {}]
  %s2 = inlined_call_operand.vmem [shape: f32[1,128], index: 2, kind: input, shape index: {}]
  %s3 = inlined_call_operand.vmem [shape: f32[32,128], index: 3, kind: output, shape index: {}]
  %s4 = sld [smem:[#allocation0]]
  $region22: #{hourglass2d_forward.29} parent=0
    _
  %s6 = ssub.s32 1, %s4
  %s7 = scalar_select 0, %s6, %s4
  // Predicated region
  $region2: #{hourglass2d_forward.29} parent=0 // pred_check
    _
  $region3: #{hourglass2d_forward.29} parent=0 // pred_check_branch
    %9 = sbr.rel (0) target = $region5
  $region4: #{hourglass2d_forward.29} parent=0 // pred_region
    _
  $region5: #{hourglass2d_forward.29} parent=0 // pred_fallthru
    _
  // Predicated region
  $region6: #{hourglass2d_forward.29} parent=0 // pred_check
    _
  $region7: #{hourglass2d_forward.29} parent=0 // pred_check_branch
    %11 = sbr.rel (0) target = $region9
  $region8: #{hourglass2d_forward.29} parent=0 // pred_region
    _
  $region9: #{hourglass2d_forward.29} parent=0 // pred_fallthru
    _
  // Predicated region
  $region10: #{hourglass2d_forward.29} parent=0 // pred_check
    _
  $region11: #{hourglass2d_forward.29} parent=0 // pred_check_branch
    %13 = sbr.rel (0) target = $region13
  $region12: #{hourglass2d_forward.29} parent=0 // pred_region
    _
  $region13: #{hourglass2d_forward.29} parent=0 // pred_fallthru
    _
  %v15 = vld [vmem:[%s0] sm:$0xff]
  %v16 = vld [vmem:[%s0 + $0x8] sm:$0xff]
  %v17 = vld [vmem:[%s0 + $0x10] sm:$0xff]
  %v18 = vld [vmem:[%s0 + $0x18] sm:$0xff]
  %v19 = vpack.c.bf16 %v16, %v15
  %v20 = vpack.c.bf16 %v18, %v17
  %v21 = vld [vmem:[%s1] sm:$0xf]
  %v22 = vld [vmem:[%s1 + $0x4] sm:$0xf]
  %v23 = vld [vmem:[%s1 + $0x8] sm:$0xf]
  %v24 = vld [vmem:[%s1 + $0xc] sm:$0xf]
  %v25 = vld [vmem:[%s1 + $0x10] sm:$0xf]
  %v26 = vld [vmem:[%s1 + $0x14] sm:$0xf]
  %v27 = vld [vmem:[%s1 + $0x18] sm:$0xf]
  %v28 = vld [vmem:[%s1 + $0x1c] sm:$0xf]
  %v29 = vld [vmem:[%s2] sm:$0x1]
  %v31 = vperm.slane %v29, 0
  %v41 = vunpack.c.l.b16 %v21
  %v42 = vunpack.c.l.b16 %v22
  %v43 = vunpack.c.l.b16 %v23
  %v44 = vunpack.c.l.b16 %v24
  %v45 = vunpack.c.l.b16 %v25
  %v46 = vunpack.c.l.b16 %v26
  %v47 = vunpack.c.l.b16 %v27
  %v48 = vunpack.c.l.b16 %v28
  %v49 = vpack.c.b16 %v42, %v41
  %v50 = vpack.c.b16 %v44, %v43
  %v51 = vpack.c.b16 %v46, %v45
  %v52 = vpack.c.b16 %v48, %v47
  %vm57 = vcmask 523264
  %v59 = vsel %vm57, %v19, 0
  %v62 = vsel %vm57, %v20, 0
  %64 = vmatpush.bf16.msra.mxu0 0
  %65 = vmatpush.bf16.msra.mxu0 0
  %66 = vmatpush.bf16.msra.mxu0 0
  %67 = vmatpush.bf16.msra.mxu0 0
  %68 = vmatpush.bf16.msra.mxu0 %v52
  %69 = vmatpush.bf16.msra.mxu0 %v51
  %70 = vmatpush.bf16.msra.mxu0 %v50
  %71 = vmatpush.bf16.msra.mxu0 %v49
  %72 = vmatmul.bf16.gmra.mxu0 %v59
  %v73 = vpop.f32.mrf.mxu0
  %v74 = vadd.f32 %v31, %v73
  %v75 = vpop.f32.mrf.mxu0
  %v76 = vadd.f32 %v31, %v75
  %77 = vmatmul.bf16.gmra.mxu0 %v62
  %v78 = vpop.f32.mrf.mxu0
  %v79 = vadd.f32 %v31, %v78
  %v80 = vpop.f32.mrf.mxu0
  %v81 = vadd.f32 %v31, %v80
  %82 = vdwg.mxu0
  %v83 = vmax.f32 %v74, 0.0
  %v84 = vmax.f32 %v76, 0.0
  %v85 = vmax.f32 %v79, 0.0
  %v86 = vmax.f32 %v81, 0.0
  %v87 = vmin.f32 %v83, 6.0
  %v88 = vmin.f32 %v84, 6.0
  %v89 = vmin.f32 %v85, 6.0
  %v90 = vmin.f32 %v86, 6.0
  %91 = vst [vmem:[%s3] sm:$0xff] %v87
  %92 = vst [vmem:[%s3 + $0x8] sm:$0xff] %v88
  %93 = vst [vmem:[%s3 + $0x10] sm:$0xff] %v89
  %94 = vst [vmem:[%s3 + $0x18] sm:$0xff] %v90
  // Predicated region
  $region14: #{hourglass2d_forward.29} parent=0 // pred_check
    _
  $region15: #{hourglass2d_forward.29} parent=0 // pred_check_branch
    %96 = sbr.rel (0) target = $region17
  $region16: #{hourglass2d_forward.29} parent=0 // pred_region
    _
  $region17: #{hourglass2d_forward.29} parent=0 // pred_fallthru
    _
  // Predicated region
  $region18: #{hourglass2d_forward.29} parent=0 // pred_check
    _
  $region19: #{hourglass2d_forward.29} parent=0 // pred_check_branch
    %98 = sbr.rel (0) target = $region21
  $region20: #{hourglass2d_forward.29} parent=0 // pred_region
    _
  $region21: #{hourglass2d_forward.29} parent=0 // pred_fallthru
    _

// kernel: hourglass2d_forward.30
$region0: #{hourglass2d_forward.30}
  #allocation0 [shape = 'u32[]', space=smem, size = 0x4, offset = 0x4, fixed_abs, tag = 'smem constant byte address 0x4 - core index']
  #allocation1 [shape = 'u32[72,128]{1,0:T(1,128)}', space=vmem, size = 0x9000, scoped, tag = 'internal scratch']
  %s0 = inlined_call_operand.vmem [shape: f32[2,6,6,128], index: 0, kind: input, shape index: {}]
  %s1 = inlined_call_operand.vmem [shape: f32[9,128], index: 1, kind: input, shape index: {}]
  %s2 = inlined_call_operand.vmem [shape: f32[1,128], index: 2, kind: input, shape index: {}]
  %s3 = inlined_call_operand.vmem [shape: f32[2,4,4,128], index: 3, kind: output, shape index: {}]
  %s4 = sld [smem:[#allocation0]]
  $region45: #{hourglass2d_forward.30} parent=0
    _
  %s6 = ssub.s32 1, %s4
  %s7 = scalar_select 0, %s6, %s4
  loop: start=0, step=1, limit=4
  $region2: #{hourglass2d_forward.30} parent=0 // loop_pre_header
    _
  $region3: #{hourglass2d_forward.30} parent=0 // loop_header
    %s9 = sphi 0, %s13
    %p10 = scmp.ge.s32.totalorder %s9, 4
    %s16 = sphi 0, %s28
    %s17 = sphi 0, %s24
    %s18 = sphi 0, %s16
    %s19 = sphi 0, %s17
    %s20 = sphi 0, %s18
    %s21 = sphi 0, %s19
    %s33 = sphi 0, %s35
    %s36 = sphi 0, %s33
    %s37 = sphi 0, %s36
    %s53 = sphi 0, %s37
    %s59 = sphi 0, %s61
    %s62 = sphi 0, %s59
    %s63 = sphi 0, %s62
    %s79 = sphi 0, %s63
    %s85 = sphi 0, %s87
    %s88 = sphi 0, %s85
    %s89 = sphi 0, %s88
    %s105 = sphi 0, %s89
    %s113 = sphi 0, %s115
    %s116 = sphi 0, %s113
    %s117 = sphi 0, %s116
    %s133 = sphi 0, %s117
  $region4: #{hourglass2d_forward.30} parent=0 // loop_header_branch
    %12 = sbr.rel (%p10) target = $region8
  $region5: #{hourglass2d_forward.30} parent=0 // loop_body
    %s14 = ssub.s32 %s9, 1
    %s15 = ssub.s32 %s9, 2
    %s22 = sadd.s32 1, %s17
    %p23 = scmp.ge.s32.totalorder %s22, 1
    %s24 = scalar_select %p23, 0, %s22
    %s25 = sadd.s32 1, %s16
    %s26 = scalar_select %p23, %s25, %s16
    %p27 = scmp.ge.s32.totalorder %s26, 2
    %s28 = scalar_select %p27, 0, %s26
    %s29 = ssub.s32 %s16, %s28
    %s30 = ssub.s32 %s17, %s24
    %s31 = sor.u32 %s29, %s30
    %p32 = scmp.eq.s32.totalorder %s31, 0
    %s34 = sadd.s32 %s33, 1
    %s35 = scalar_select %p32, %s33, %s34
    %p38 = pneg %p32
    %p39 = scmp.eq.s32.totalorder %s9, 1
    %p40 = por %p38, %p39
    %p41 = scmp.ne.s32.totalorder %s33, %s36
    %p42 = scmp.eq.s32.totalorder %s9, 0
    %p43 = por %p41, %p42
    %p44 = scmp.ne.s32.totalorder %s33, %s36
    %p45 = scmp.eq.s32.totalorder %s14, 1
    %p46 = por %p44, %p45
    %p47 = scmp.ne.s32.totalorder %s36, %s37
    %p48 = scmp.eq.s32.totalorder %s14, 0
    %p49 = por %p47, %p48
    %p50 = scmp.ne.s32.totalorder %s36, %s37
    %p51 = scmp.eq.s32.totalorder %s15, 1
    %p52 = por %p50, %p51
    %p54 = scmp.ne.s32.totalorder %s37, %s53
    %p55 = scmp.eq.s32.totalorder %s15, 0
    %p56 = por %p54, %p55
    %s57 = ssub.s32 %s17, %s24
    %p58 = scmp.eq.s32.totalorder %s57, 0
    %s60 = sadd.s32 %s59, 1
    %s61 = scalar_select %p58, %s59, %s60
    %p64 = pneg %p58
    %p65 = scmp.eq.s32.totalorder %s9, 1
    %p66 = por %p64, %p65
    %p67 = scmp.ne.s32.totalorder %s59, %s62
    %p68 = scmp.eq.s32.totalorder %s9, 0
    %p69 = por %p67, %p68
    %p70 = scmp.ne.s32.totalorder %s59, %s62
    %p71 = scmp.eq.s32.totalorder %s14, 1
    %p72 = por %p70, %p71
    %p73 = scmp.ne.s32.totalorder %s62, %s63
    %p74 = scmp.eq.s32.totalorder %s14, 0
    %p75 = por %p73, %p74
    %p76 = scmp.ne.s32.totalorder %s62, %s63
    %p77 = scmp.eq.s32.totalorder %s15, 1
    %p78 = por %p76, %p77
    %p80 = scmp.ne.s32.totalorder %s63, %s79
    %p81 = scmp.eq.s32.totalorder %s15, 0
    %p82 = por %p80, %p81
    %s83 = ssub.s32 %s17, %s24
    %p84 = scmp.eq.s32.totalorder %s83, 0
    %s86 = sadd.s32 %s85, 1
    %s87 = scalar_select %p84, %s85, %s86
    %p90 = pneg %p84
    %p91 = scmp.eq.s32.totalorder %s9, 1
    %p92 = por %p90, %p91
    %p93 = scmp.ne.s32.totalorder %s85, %s88
    %p94 = scmp.eq.s32.totalorder %s9, 0
    %p95 = por %p93, %p94
    %p96 = scmp.ne.s32.totalorder %s85, %s88
    %p97 = scmp.eq.s32.totalorder %s14, 1
    %p98 = por %p96, %p97
    %p99 = scmp.ne.s32.totalorder %s88, %s89
    %p100 = scmp.eq.s32.totalorder %s14, 0
    %p101 = por %p99, %p100
    %p102 = scmp.ne.s32.totalorder %s88, %s89
    %p103 = scmp.eq.s32.totalorder %s15, 1
    %p104 = por %p102, %p103
    %p106 = scmp.ne.s32.totalorder %s89, %s105
    %p107 = scmp.eq.s32.totalorder %s15, 0
    %p108 = por %p106, %p107
    %s109 = ssub.s32 %s16, %s28
    %s110 = ssub.s32 %s17, %s24
    %s111 = sor.u32 %s109, %s110
    %p112 = scmp.eq.s32.totalorder %s111, 0
    %s114 = sadd.s32 %s113, 1
    %s115 = scalar_select %p112, %s113, %s114
    %p118 = pneg %p112
    %p119 = scmp.eq.s32.totalorder %s9, 1
    %p120 = por %p118, %p119
    %p121 = scmp.ne.s32.totalorder %s113, %s116
    %p122 = scmp.eq.s32.totalorder %s9, 0
    %p123 = por %p121, %p122
    %p124 = scmp.ne.s32.totalorder %s113, %s116
    %p125 = scmp.eq.s32.totalorder %s14, 1
    %p126 = por %p124, %p125
    %p127 = scmp.ne.s32.totalorder %s116, %s117
    %p128 = scmp.eq.s32.totalorder %s14, 0
    %p129 = por %p127, %p128
    %p130 = scmp.ne.s32.totalorder %s116, %s117
    %p131 = scmp.eq.s32.totalorder %s15, 1
    %p132 = por %p130, %p131
    %p134 = scmp.ne.s32.totalorder %s117, %s133
    %p135 = scmp.eq.s32.totalorder %s15, 0
    %p136 = por %p134, %p135
    %p137 = scmp.le.s32.totalorder 1, %s9
    %p138 = scmp.lt.s32.totalorder %s9, 3
    %p139 = pnand %p137, %p138
    %p140 = pneg %p139
    // Predicated region
    $region9: #{hourglass2d_forward.30} parent=5 // pred_check
      _
    $region10: #{hourglass2d_forward.30} parent=5 // pred_check_branch
      %142 = sbr.rel (%p139) target = $region12
    $region11: #{hourglass2d_forward.30} parent=5 // pred_region
      %s143 = ssub.s32 %s9, 1
      // Predicated region
      $region13: #{hourglass2d_forward.30} parent=11 // pred_check
        %p144 = pneg %p75
      $region14: #{hourglass2d_forward.30} parent=11 // pred_check_branch
        %146 = sbr.rel (%p144) target = $region16
      $region15: #{hourglass2d_forward.30} parent=11 // pred_region
        %p147 = scmp.lt.s32.totalorder %s19, 0
        %s148 = scalar_select %p147, %s19, 0
        %s149 = smul.addr %s148, 8
        %s150 = scalar_lea.vmem %s1, %s149
      $region16: #{hourglass2d_forward.30} parent=11 // pred_fallthru
        _
      // Predicated region
      $region17: #{hourglass2d_forward.30} parent=11 // pred_check
        %p151 = pneg %p101
      $region18: #{hourglass2d_forward.30} parent=11 // pred_check_branch
        %153 = sbr.rel (%p151) target = $region20
      $region19: #{hourglass2d_forward.30} parent=11 // pred_region
        %p154 = scmp.lt.s32.totalorder %s19, 0
        %s155 = scalar_select %p154, %s19, 0
        %s156 = scalar_lea.vmem %s2, %s155
      $region20: #{hourglass2d_forward.30} parent=11 // pred_fallthru
        _
    $region12: #{hourglass2d_forward.30} parent=5 // pred_fallthru
      _
    %p157 = scmp.lt.s32.totalorder %s9, 2
    // Predicated region
    $region21: #{hourglass2d_forward.30} parent=5 // pred_check
      %p158 = pneg %p157
    $region22: #{hourglass2d_forward.30} parent=5 // pred_check_branch
      %160 = sbr.rel (%p158) target = $region24
    $region23: #{hourglass2d_forward.30} parent=5 // pred_region
      // Predicated region
      $region25: #{hourglass2d_forward.30} parent=23 // pred_check
        %p161 = pneg %p43
      $region26: #{hourglass2d_forward.30} parent=23 // pred_check_branch
        %163 = sbr.rel (%p161) target = $region28
      $region27: #{hourglass2d_forward.30} parent=23 // pred_region
        %p164 = scmp.lt.s32.totalorder %s16, 1
        %s165 = scalar_select %p164, %s16, 1
        %p166 = scmp.lt.s32.totalorder %s17, 0
        %s167 = scalar_select %p166, %s17, 0
        %s168 = smul.addr %s165, 6
        %s169 = sadd.s32 %s167, %s168
        %s170 = smul.addr %s169, 8
        %s171 = scalar_lea.vmem %s0, %s170
      $region28: #{hourglass2d_forward.30} parent=23 // pred_fallthru
        _
    $region24: #{hourglass2d_forward.30} parent=5 // pred_fallthru
      _
    %p172 = scmp.le.s32.totalorder 1, %s9
    %p173 = scmp.lt.s32.totalorder %s9, 3
    %p174 = pnand %p172, %p173
    %p175 = pneg %p174
    // Predicated region
    $region29: #{hourglass2d_forward.30} parent=5 // pred_check
      _
    $region30: #{hourglass2d_forward.30} parent=5 // pred_check_branch
      %177 = sbr.rel (%p174) target = $region32
    $region31: #{hourglass2d_forward.30} parent=5 // pred_region
      %s178 = ssub.s32 %s9, 1
      %p179 = scmp.lt.s32.totalorder %s18, 1
      %s180 = scalar_select %p179, %s18, 1
      %p181 = scmp.lt.s32.totalorder %s19, 0
      %s182 = scalar_select %p181, %s19, 0
      %s183 = smul.addr %s180, 6
      %s184 = sadd.s32 %s182, %s183
      %s185 = smul.addr %s184, 8
      %s186 = scalar_lea.vmem %s0, %s185
      %p187 = pneg %p49
      %p188 = pneg %p46
      %p189 = scmp.lt.s32.totalorder %s19, 0
      %s190 = scalar_select %p189, %s19, 0
      %s191 = smul.addr %s190, 8
      %s192 = scalar_lea.vmem %s1, %s191
      %p193 = pneg %p75
      %p194 = pneg %p72
      %p195 = scmp.lt.s32.totalorder %s19, 0
      %s196 = scalar_select %p195, %s19, 0
      %s197 = scalar_lea.vmem %s2, %s196
      %p198 = pneg %p101
      %p199 = pneg %p98
      %p200 = pneg %p129
      %p201 = pneg %p126
      %p202 = scmp.lt.s32.totalorder %s18, 1
      %s203 = scalar_select %p202, %s18, 1
      %p204 = scmp.lt.s32.totalorder %s19, 0
      %s205 = scalar_select %p204, %s19, 0
      %s206 = smul.addr %s203, 4
      %s207 = sadd.s32 %s205, %s206
      %s208 = smul.addr %s207, 4
      %s209 = scalar_lea.vmem %s3, %s208
      %p210 = scmp.lt.s32.totalorder %s18, 1
      %s211 = scalar_select %p210, %s18, 1
      %p212 = scmp.lt.s32.totalorder %s19, 0
      %s213 = scalar_select %p212, %s19, 0
      %s214 = smul.addr %s211, 6
      %s215 = sadd.s32 %s213, %s214
      %s216 = smul.addr %s215, 8
      %s217 = scalar_lea.vmem %s0, %s216
      %p218 = scmp.lt.s32.totalorder %s19, 0
      %s219 = scalar_select %p218, %s19, 0
      %s220 = smul.addr %s219, 8
      %s221 = scalar_lea.vmem %s1, %s220
      %p222 = scmp.lt.s32.totalorder %s19, 0
      %s223 = scalar_select %p222, %s19, 0
      %s224 = scalar_lea.vmem %s2, %s223
      %p225 = scmp.lt.s32.totalorder %s18, 1
      %s226 = scalar_select %p225, %s18, 1
      %p227 = scmp.lt.s32.totalorder %s19, 0
      %s228 = scalar_select %p227, %s19, 0
      %s229 = smul.addr %s226, 4
      %s230 = sadd.s32 %s228, %s229
      %s231 = smul.addr %s230, 4
      %s232 = scalar_lea.vmem %s3, %s231
      %v233 = vld [vmem:[%s217] sm:$0xf]
      %v234 = vld [vmem:[%s217 + $0x8] sm:$0xf]
      %v235 = vld [vmem:[%s217 + $0x10] sm:$0xf]
      %v236 = vld [vmem:[%s217 + $0x18] sm:$0xf]
      %v237 = vld [vmem:[%s221] sm:$0x1]
      %v238 = vperm.slane %v237, 0
      %v239 = vmul.f32 %v233, %v238
      %v240 = vmul.f32 %v234, %v238
      %v241 = vmul.f32 %v235, %v238
      %v242 = vmul.f32 %v236, %v238
      %v243 = vld [vmem:[%s217 + $0x1] sm:$0xf]
      %v244 = vld [vmem:[%s217 + $0x9] sm:$0xf]
      %v245 = vld [vmem:[%s217 + $0x11] sm:$0xf]
      %v246 = vld [vmem:[%s217 + $0x19] sm:$0xf]
      %v247 = vld [vmem:[%s221 + $0x1] sm:$0x1]
      %v248 = vperm.slane %v247, 0
      %v249 = vmul.f32 %v243, %v248
      %v250 = vmul.f32 %v244, %v248
      %v251 = vmul.f32 %v245, %v248
      %v252 = vmul.f32 %v246, %v248
      %v253 = vadd.f32 %v239, %v249
      %v254 = vadd.f32 %v240, %v250
      %v255 = vadd.f32 %v241, %v251
      %v256 = vadd.f32 %v242, %v252
      %v257 = vld [vmem:[%s217 + $0x2] sm:$0xf]
      %v258 = vld [vmem:[%s217 + $0xa] sm:$0xf]
      %v259 = vld [vmem:[%s217 + $0x12] sm:$0xf]
      %v260 = vld [vmem:[%s217 + $0x1a] sm:$0xf]
      %v261 = vld [vmem:[%s221 + $0x2] sm:$0x1]
      %v262 = vperm.slane %v261, 0
      %v263 = vmul.f32 %v257, %v262
      %v264 = vmul.f32 %v258, %v262
      %v265 = vmul.f32 %v259, %v262
      %v266 = vmul.f32 %v260, %v262
      %v267 = vadd.f32 %v253, %v263
      %v268 = vadd.f32 %v254, %v264
      %v269 = vadd.f32 %v255, %v265
      %v270 = vadd.f32 %v256, %v266
      %s271 = scalar_lea.vmem %s217, 8
      %v272 = vld [vmem:[%s271] sm:$0xf]
      %v273 = vld [vmem:[%s271 + $0x8] sm:$0xf]
      %v274 = vld [vmem:[%s271 + $0x10] sm:$0xf]
      %v275 = vld [vmem:[%s271 + $0x18] sm:$0xf]
      %v276 = vld [vmem:[%s221 + $0x3] sm:$0x1]
      %v277 = vperm.slane %v276, 0
      %v278 = vmul.f32 %v272, %v277
      %v279 = vmul.f32 %v273, %v277
      %v280 = vmul.f32 %v274, %v277
      %v281 = vmul.f32 %v275, %v277
      %v282 = vadd.f32 %v267, %v278
      %v283 = vadd.f32 %v268, %v279
      %v284 = vadd.f32 %v269, %v280
      %v285 = vadd.f32 %v270, %v281
      %v286 = vld [vmem:[%s271 + $0x1] sm:$0xf]
      %v287 = vld [vmem:[%s271 + $0x9] sm:$0xf]
      %v288 = vld [vmem:[%s271 + $0x11] sm:$0xf]
      %v289 = vld [vmem:[%s271 + $0x19] sm:$0xf]
      %v290 = vld [vmem:[%s221 + $0x4] sm:$0x1]
      %v291 = vperm.slane %v290, 0
      %v292 = vmul.f32 %v286, %v291
      %v293 = vmul.f32 %v287, %v291
      %v294 = vmul.f32 %v288, %v291
      %v295 = vmul.f32 %v289, %v291
      %v296 = vadd.f32 %v282, %v292
      %v297 = vadd.f32 %v283, %v293
      %v298 = vadd.f32 %v284, %v294
      %v299 = vadd.f32 %v285, %v295
      %v300 = vld [vmem:[%s271 + $0x2] sm:$0xf]
      %v301 = vld [vmem:[%s271 + $0xa] sm:$0xf]
      %v302 = vld [vmem:[%s271 + $0x12] sm:$0xf]
      %v303 = vld [vmem:[%s271 + $0x1a] sm:$0xf]
      %v304 = vld [vmem:[%s221 + $0x5] sm:$0x1]
      %v305 = vperm.slane %v304, 0
      %v306 = vmul.f32 %v300, %v305
      %v307 = vmul.f32 %v301, %v305
      %v308 = vmul.f32 %v302, %v305
      %v309 = vmul.f32 %v303, %v305
      %v310 = vadd.f32 %v296, %v306
      %v311 = vadd.f32 %v297, %v307
      %v312 = vadd.f32 %v298, %v308
      %v313 = vadd.f32 %v299, %v309
      %s314 = scalar_lea.vmem %s217, 16
      %v315 = vld [vmem:[%s314] sm:$0xf]
      %v316 = vld [vmem:[%s314 + $0x8] sm:$0xf]
      %v317 = vld [vmem:[%s314 + $0x10] sm:$0xf]
      %v318 = vld [vmem:[%s314 + $0x18] sm:$0xf]
      %v319 = vld [vmem:[%s221 + $0x6] sm:$0x1]
      %v320 = vperm.slane %v319, 0
      %v321 = vmul.f32 %v315, %v320
      %v322 = vmul.f32 %v316, %v320
      %v323 = vmul.f32 %v317, %v320
      %v324 = vmul.f32 %v318, %v320
      %v325 = vadd.f32 %v310, %v321
      %v326 = vadd.f32 %v311, %v322
      %v327 = vadd.f32 %v312, %v323
      %v328 = vadd.f32 %v313, %v324
      %v329 = vld [vmem:[%s314 + $0x1] sm:$0xf]
      %v330 = vld [vmem:[%s314 + $0x9] sm:$0xf]
      %v331 = vld [vmem:[%s314 + $0x11] sm:$0xf]
      %v332 = vld [vmem:[%s314 + $0x19] sm:$0xf]
      %v333 = vld [vmem:[%s221 + $0x7] sm:$0x1]
      %v334 = vperm.slane %v333, 0
      %v335 = vmul.f32 %v329, %v334
      %v336 = vmul.f32 %v330, %v334
      %v337 = vmul.f32 %v331, %v334
      %v338 = vmul.f32 %v332, %v334
      %v339 = vadd.f32 %v325, %v335
      %v340 = vadd.f32 %v326, %v336
      %v341 = vadd.f32 %v327, %v337
      %v342 = vadd.f32 %v328, %v338
      %v343 = vld [vmem:[%s314 + $0x2] sm:$0xf]
      %v344 = vld [vmem:[%s314 + $0xa] sm:$0xf]
      %v345 = vld [vmem:[%s314 + $0x12] sm:$0xf]
      %v346 = vld [vmem:[%s314 + $0x1a] sm:$0xf]
      %v347 = vld [vmem:[%s221 + $0x8] sm:$0x1]
      %v348 = vperm.slane %v347, 0
      %v349 = vmul.f32 %v343, %v348
      %v350 = vmul.f32 %v344, %v348
      %v351 = vmul.f32 %v345, %v348
      %v352 = vmul.f32 %v346, %v348
      %v353 = vadd.f32 %v339, %v349
      %v354 = vadd.f32 %v340, %v350
      %v355 = vadd.f32 %v341, %v351
      %v356 = vadd.f32 %v342, %v352
      %v357 = vld [vmem:[%s224] sm:$0x1]
      %v359 = vperm.slane %v357, 0
      %v361 = vadd.f32 %v353, %v359
      %v362 = vadd.f32 %v354, %v359
      %v363 = vadd.f32 %v355, %v359
      %v364 = vadd.f32 %v356, %v359
      %v365 = vmax.f32 %v361, 0.0
      %v366 = vmax.f32 %v362, 0.0
      %v367 = vmax.f32 %v363, 0.0
      %v368 = vmax.f32 %v364, 0.0
      %v369 = vmin.f32 %v365, 6.0
      %v370 = vmin.f32 %v366, 6.0
      %v371 = vmin.f32 %v367, 6.0
      %v372 = vmin.f32 %v368, 6.0
      %373 = vst [vmem:[%s232] sm:$0xf] %v369
      %374 = vst [vmem:[%s232 + $0x4] sm:$0xf] %v370
      %375 = vst [vmem:[%s232 + $0x8] sm:$0xf] %v371
      %376 = vst [vmem:[%s232 + $0xc] sm:$0xf] %v372
      %p377 = scmp.lt.s32.totalorder %s18, 1
      %s378 = scalar_select %p377, %s18, 1
      %p379 = scmp.lt.s32.totalorder %s19, 0
      %s380 = scalar_select %p379, %s19, 0
      %s381 = smul.addr %s378, 4
      %s382 = sadd.s32 %s380, %s381
      %s383 = smul.addr %s382, 4
      %s384 = scalar_lea.vmem %s3, %s383
      // Predicated region
      $region33: #{hourglass2d_forward.30} parent=31 // pred_check
        %p385 = pneg %p126
      $region34: #{hourglass2d_forward.30} parent=31 // pred_check_branch
        %387 = sbr.rel (%p385) target = $region36
      $region35: #{hourglass2d_forward.30} parent=31 // pred_region
        _
      $region36: #{hourglass2d_forward.30} parent=31 // pred_fallthru
        _
    $region32: #{hourglass2d_forward.30} parent=5 // pred_fallthru
      _
    %p388 = scmp.le.s32.totalorder 2, %s9
    // Predicated region
    $region37: #{hourglass2d_forward.30} parent=5 // pred_check
      %p389 = pneg %p388
    $region38: #{hourglass2d_forward.30} parent=5 // pred_check_branch
      %391 = sbr.rel (%p389) target = $region40
    $region39: #{hourglass2d_forward.30} parent=5 // pred_region
      %s392 = ssub.s32 %s9, 2
      // Predicated region
      $region41: #{hourglass2d_forward.30} parent=39 // pred_check
        %p393 = pneg %p132
      $region42: #{hourglass2d_forward.30} parent=39 // pred_check_branch
        %395 = sbr.rel (%p393) target = $region44
      $region43: #{hourglass2d_forward.30} parent=39 // pred_region
        %p396 = scmp.lt.s32.totalorder %s20, 1
        %s397 = scalar_select %p396, %s20, 1
        %p398 = scmp.lt.s32.totalorder %s21, 0
        %s399 = scalar_select %p398, %s21, 0
        %s400 = smul.addr %s397, 4
        %s401 = sadd.s32 %s399, %s400
        %s402 = smul.addr %s401, 4
        %s403 = scalar_lea.vmem %s3, %s402
      $region44: #{hourglass2d_forward.30} parent=39 // pred_fallthru
        _
    $region40: #{hourglass2d_forward.30} parent=5 // pred_fallthru
      _
  $region6: #{hourglass2d_forward.30} parent=0 // loop_footer
    %s13 = sadd.s32 1, %s9
  $region7: #{hourglass2d_forward.30} parent=0 // loop_footer_branch
    %8 = sbr.rel target = $region3
  $region8: #{hourglass2d_forward.30} parent=0 // loop_exit
    _

// kernel: hourglass2d_forward.31
$region0: #{hourglass2d_forward.31}
  #allocation0 [shape = 'u32[]', space=smem, size = 0x4, offset = 0x4, fixed_abs, tag = 'smem constant byte address 0x4 - core index']
  #allocation1 [shape = 'u32[72,128]{1,0:T(1,128)}', space=vmem, size = 0x9000, scoped, tag = 'internal scratch']
  %s0 = inlined_call_operand.vmem [shape: f32[32,128], index: 0, kind: input, shape index: {}]
  %s1 = inlined_call_operand.vmem [shape: bf16[128,64], index: 1, kind: input, shape index: {}]
  %s2 = inlined_call_operand.vmem [shape: f32[1,64], index: 2, kind: input, shape index: {}]
  %s3 = inlined_call_operand.vmem [shape: f32[32,64], index: 3, kind: input, shape index: {}]
  %s4 = inlined_call_operand.vmem [shape: f32[32,64], index: 4, kind: output, shape index: {}]
  %s5 = sld [smem:[#allocation0]]
  $region26: #{hourglass2d_forward.31} parent=0
    _
  %s7 = ssub.s32 1, %s5
  %s8 = scalar_select 0, %s7, %s5
  // Predicated region
  $region2: #{hourglass2d_forward.31} parent=0 // pred_check
    _
  $region3: #{hourglass2d_forward.31} parent=0 // pred_check_branch
    %10 = sbr.rel (0) target = $region5
  $region4: #{hourglass2d_forward.31} parent=0 // pred_region
    _
  $region5: #{hourglass2d_forward.31} parent=0 // pred_fallthru
    _
  // Predicated region
  $region6: #{hourglass2d_forward.31} parent=0 // pred_check
    _
  $region7: #{hourglass2d_forward.31} parent=0 // pred_check_branch
    %12 = sbr.rel (0) target = $region9
  $region8: #{hourglass2d_forward.31} parent=0 // pred_region
    _
  $region9: #{hourglass2d_forward.31} parent=0 // pred_fallthru
    _
  // Predicated region
  $region10: #{hourglass2d_forward.31} parent=0 // pred_check
    _
  $region11: #{hourglass2d_forward.31} parent=0 // pred_check_branch
    %14 = sbr.rel (0) target = $region13
  $region12: #{hourglass2d_forward.31} parent=0 // pred_region
    _
  $region13: #{hourglass2d_forward.31} parent=0 // pred_fallthru
    _
  // Predicated region
  $region14: #{hourglass2d_forward.31} parent=0 // pred_check
    _
  $region15: #{hourglass2d_forward.31} parent=0 // pred_check_branch
    %16 = sbr.rel (0) target = $region17
  $region16: #{hourglass2d_forward.31} parent=0 // pred_region
    _
  $region17: #{hourglass2d_forward.31} parent=0 // pred_fallthru
    _
  %v17 = vld [vmem:[%s0] sm:$0xff]
  %v18 = vld [vmem:[%s0 + $0x8] sm:$0xff]
  %v19 = vld [vmem:[%s0 + $0x10] sm:$0xff]
  %v20 = vld [vmem:[%s0 + $0x18] sm:$0xff]
  %v21 = vpack.c.bf16 %v18, %v17
  %v22 = vpack.c.bf16 %v20, %v19
  %v23 = vld [vmem:[%s1] sm:$0xf]
  %v24 = vld [vmem:[%s1 + $0x4] sm:$0xf]
  %v25 = vld [vmem:[%s1 + $0x8] sm:$0xf]
  %v26 = vld [vmem:[%s1 + $0xc] sm:$0xf]
  %v27 = vld [vmem:[%s1 + $0x10] sm:$0xf]
  %v28 = vld [vmem:[%s1 + $0x14] sm:$0xf]
  %v29 = vld [vmem:[%s1 + $0x18] sm:$0xf]
  %v30 = vld [vmem:[%s1 + $0x1c] sm:$0xf]
  %v31 = vld [vmem:[%s1 + $0x20] sm:$0xf]
  %v32 = vld [vmem:[%s1 + $0x24] sm:$0xf]
  %v33 = vld [vmem:[%s1 + $0x28] sm:$0xf]
  %v34 = vld [vmem:[%s1 + $0x2c] sm:$0xf]
  %v35 = vld [vmem:[%s1 + $0x30] sm:$0xf]
  %v36 = vld [vmem:[%s1 + $0x34] sm:$0xf]
  %v37 = vld [vmem:[%s1 + $0x38] sm:$0xf]
  %v38 = vld [vmem:[%s1 + $0x3c] sm:$0xf]
  %v39 = vld [vmem:[%s2] sm:$0x1]
  %v41 = vperm.slane %v39, 0
  %v59 = vunpack.c.l.b16 %v23
  %v60 = vunpack.c.l.b16 %v24
  %v61 = vunpack.c.l.b16 %v25
  %v62 = vunpack.c.l.b16 %v26
  %v63 = vunpack.c.l.b16 %v27
  %v64 = vunpack.c.l.b16 %v28
  %v65 = vunpack.c.l.b16 %v29
  %v66 = vunpack.c.l.b16 %v30
  %v67 = vunpack.c.l.b16 %v31
  %v68 = vunpack.c.l.b16 %v32
  %v69 = vunpack.c.l.b16 %v33
  %v70 = vunpack.c.l.b16 %v34
  %v71 = vunpack.c.l.b16 %v35
  %v72 = vunpack.c.l.b16 %v36
  %v73 = vunpack.c.l.b16 %v37
  %v74 = vunpack.c.l.b16 %v38
  %v75 = vpack.c.b16 %v60, %v59
  %v76 = vpack.c.b16 %v62, %v61
  %v77 = vpack.c.b16 %v64, %v63
  %v78 = vpack.c.b16 %v66, %v65
  %v79 = vpack.c.b16 %v68, %v67
  %v80 = vpack.c.b16 %v70, %v69
  %v81 = vpack.c.b16 %v72, %v71
  %v82 = vpack.c.b16 %v74, %v73
  %91 = vmatpush.bf16.msra.mxu0 %v82
  %92 = vmatpush.bf16.msra.mxu0 %v81
  %93 = vmatpush.bf16.msra.mxu0 %v80
  %94 = vmatpush.bf16.msra.mxu0 %v79
  %95 = vmatpush.bf16.msra.mxu0 %v78
  %96 = vmatpush.bf16.msra.mxu0 %v77
  %97 = vmatpush.bf16.msra.mxu0 %v76
  %98 = vmatpush.bf16.msra.mxu0 %v75
  %99 = vmatmul.bf16.gmra.mxu0 %v21
  %v100 = vpop.f32.mrf.mxu0
  %v101 = vadd.f32 %v41, %v100
  %v102 = vpop.f32.mrf.mxu0
  %v103 = vadd.f32 %v41, %v102
  %104 = vmatmul.bf16.gmra.mxu0 %v22
  %v105 = vpop.f32.mrf.mxu0
  %v106 = vadd.f32 %v41, %v105
  %v107 = vpop.f32.mrf.mxu0
  %v108 = vadd.f32 %v41, %v107
  %109 = vdwg.mxu0
  %v110 = vld [vmem:[%s3] sm:$0xff]
  %v111 = vld [vmem:[%s3 + $0x8] sm:$0xff]
  %v112 = vld [vmem:[%s3 + $0x10] sm:$0xff]
  %v113 = vld [vmem:[%s3 + $0x18] sm:$0xff]
  %v114 = vadd.f32 %v101, %v110
  %v115 = vadd.f32 %v103, %v111
  %v116 = vadd.f32 %v106, %v112
  %v117 = vadd.f32 %v108, %v113
  %vm118 = vcmask 523264
  %119 = vst.msk [vmem:[%s4] sm:$0xff] %vm118, %v114
  %120 = vst.msk [vmem:[%s4 + $0x8] sm:$0xff] %vm118, %v115
  %121 = vst.msk [vmem:[%s4 + $0x10] sm:$0xff] %vm118, %v116
  %122 = vst.msk [vmem:[%s4 + $0x18] sm:$0xff] %vm118, %v117
  // Predicated region
  $region18: #{hourglass2d_forward.31} parent=0 // pred_check
    _
  $region19: #{hourglass2d_forward.31} parent=0 // pred_check_branch
    %124 = sbr.rel (0) target = $region21
  $region20: #{hourglass2d_forward.31} parent=0 // pred_region
    _
  $region21: #{hourglass2d_forward.31} parent=0 // pred_fallthru
    _
  // Predicated region
  $region22: #{hourglass2d_forward.31} parent=0 // pred_check
    _
  $region23: #{hourglass2d_forward.31} parent=0 // pred_check_branch
    %126 = sbr.rel (0) target = $region25
  $region24: #{hourglass2d_forward.31} parent=0 // pred_region
    _
  $region25: #{hourglass2d_forward.31} parent=0 // pred_fallthru
    _

// kernel: hourglass2d_forward.32
$region0: #{hourglass2d_forward.32}
  #allocation0 [shape = 'u32[]', space=smem, size = 0x4, offset = 0x4, fixed_abs, tag = 'smem constant byte address 0x4 - core index']
  #allocation1 [shape = 'u32[72,128]{1,0:T(1,128)}', space=vmem, size = 0x9000, scoped, tag = 'internal scratch']
  %s0 = inlined_call_operand.vmem [shape: f32[32,256], index: 0, kind: input, shape index: {}]
  %s1 = inlined_call_operand.vmem [shape: bf16[256,128], index: 1, kind: input, shape index: {}]
  %s2 = inlined_call_operand.vmem [shape: f32[1,128], index: 2, kind: input, shape index: {}]
  %s3 = inlined_call_operand.vmem [shape: f32[32,128], index: 3, kind: output, shape index: {}]
  %s4 = sld [smem:[#allocation0]]
  $region22: #{hourglass2d_forward.32} parent=0
    _
  %s6 = ssub.s32 1, %s4
  %s7 = scalar_select 0, %s6, %s4
  // Predicated region
  $region2: #{hourglass2d_forward.32} parent=0 // pred_check
    _
  $region3: #{hourglass2d_forward.32} parent=0 // pred_check_branch
    %9 = sbr.rel (0) target = $region5
  $region4: #{hourglass2d_forward.32} parent=0 // pred_region
    _
  $region5: #{hourglass2d_forward.32} parent=0 // pred_fallthru
    _
  // Predicated region
  $region6: #{hourglass2d_forward.32} parent=0 // pred_check
    _
  $region7: #{hourglass2d_forward.32} parent=0 // pred_check_branch
    %11 = sbr.rel (0) target = $region9
  $region8: #{hourglass2d_forward.32} parent=0 // pred_region
    _
  $region9: #{hourglass2d_forward.32} parent=0 // pred_fallthru
    _
  // Predicated region
  $region10: #{hourglass2d_forward.32} parent=0 // pred_check
    _
  $region11: #{hourglass2d_forward.32} parent=0 // pred_check_branch
    %13 = sbr.rel (0) target = $region13
  $region12: #{hourglass2d_forward.32} parent=0 // pred_region
    _
  $region13: #{hourglass2d_forward.32} parent=0 // pred_fallthru
    _
  %v14 = vld [vmem:[%s0] sm:$0xff]
  %v15 = vld [vmem:[%s0 + $0x8] sm:$0xff]
  %v16 = vld [vmem:[%s0 + $0x10] sm:$0xff]
  %v17 = vld [vmem:[%s0 + $0x18] sm:$0xff]
  %v18 = vld [vmem:[%s0 + $0x20] sm:$0xff]
  %v19 = vld [vmem:[%s0 + $0x28] sm:$0xff]
  %v20 = vld [vmem:[%s0 + $0x30] sm:$0xff]
  %v21 = vld [vmem:[%s0 + $0x38] sm:$0xff]
  %v22 = vpack.c.bf16 %v16, %v14
  %v23 = vpack.c.bf16 %v17, %v15
  %v24 = vpack.c.bf16 %v20, %v18
  %v25 = vpack.c.bf16 %v21, %v19
  %v26 = vld [vmem:[%s1] sm:$0xf]
  %v27 = vld [vmem:[%s1 + $0x4] sm:$0xf]
  %v28 = vld [vmem:[%s1 + $0x8] sm:$0xf]
  %v29 = vld [vmem:[%s1 + $0xc] sm:$0xf]
  %v30 = vld [vmem:[%s1 + $0x10] sm:$0xf]
  %v31 = vld [vmem:[%s1 + $0x14] sm:$0xf]
  %v32 = vld [vmem:[%s1 + $0x18] sm:$0xf]
  %v33 = vld [vmem:[%s1 + $0x1c] sm:$0xf]
  %v34 = vld [vmem:[%s1 + $0x20] sm:$0xf]
  %v35 = vld [vmem:[%s1 + $0x24] sm:$0xf]
  %v36 = vld [vmem:[%s1 + $0x28] sm:$0xf]
  %v37 = vld [vmem:[%s1 + $0x2c] sm:$0xf]
  %v38 = vld [vmem:[%s1 + $0x30] sm:$0xf]
  %v39 = vld [vmem:[%s1 + $0x34] sm:$0xf]
  %v40 = vld [vmem:[%s1 + $0x38] sm:$0xf]
  %v41 = vld [vmem:[%s1 + $0x3c] sm:$0xf]
  %v42 = vld [vmem:[%s1 + $0x40] sm:$0xf]
  %v43 = vld [vmem:[%s1 + $0x44] sm:$0xf]
  %v44 = vld [vmem:[%s1 + $0x48] sm:$0xf]
  %v45 = vld [vmem:[%s1 + $0x4c] sm:$0xf]
  %v46 = vld [vmem:[%s1 + $0x50] sm:$0xf]
  %v47 = vld [vmem:[%s1 + $0x54] sm:$0xf]
  %v48 = vld [vmem:[%s1 + $0x58] sm:$0xf]
  %v49 = vld [vmem:[%s1 + $0x5c] sm:$0xf]
  %v50 = vld [vmem:[%s1 + $0x60] sm:$0xf]
  %v51 = vld [vmem:[%s1 + $0x64] sm:$0xf]
  %v52 = vld [vmem:[%s1 + $0x68] sm:$0xf]
  %v53 = vld [vmem:[%s1 + $0x6c] sm:$0xf]
  %v54 = vld [vmem:[%s1 + $0x70] sm:$0xf]
  %v55 = vld [vmem:[%s1 + $0x74] sm:$0xf]
  %v56 = vld [vmem:[%s1 + $0x78] sm:$0xf]
  %v57 = vld [vmem:[%s1 + $0x7c] sm:$0xf]
  %v58 = vld [vmem:[%s2] sm:$0x1]
  %v60 = vperm.slane %v58, 0
  %v94 = vunpack.c.l.b16 %v26
  %v95 = vunpack.c.l.b16 %v27
  %v96 = vunpack.c.l.b16 %v28
  %v97 = vunpack.c.l.b16 %v29
  %v98 = vunpack.c.l.b16 %v30
  %v99 = vunpack.c.l.b16 %v31
  %v100 = vunpack.c.l.b16 %v32
  %v101 = vunpack.c.l.b16 %v33
  %v102 = vunpack.c.l.b16 %v34
  %v103 = vunpack.c.l.b16 %v35
  %v104 = vunpack.c.l.b16 %v36
  %v105 = vunpack.c.l.b16 %v37
  %v106 = vunpack.c.l.b16 %v38
  %v107 = vunpack.c.l.b16 %v39
  %v108 = vunpack.c.l.b16 %v40
  %v109 = vunpack.c.l.b16 %v41
  %v110 = vunpack.c.l.b16 %v42
  %v111 = vunpack.c.l.b16 %v43
  %v112 = vunpack.c.l.b16 %v44
  %v113 = vunpack.c.l.b16 %v45
  %v114 = vunpack.c.l.b16 %v46
  %v115 = vunpack.c.l.b16 %v47
  %v116 = vunpack.c.l.b16 %v48
  %v117 = vunpack.c.l.b16 %v49
  %v118 = vunpack.c.l.b16 %v50
  %v119 = vunpack.c.l.b16 %v51
  %v120 = vunpack.c.l.b16 %v52
  %v121 = vunpack.c.l.b16 %v53
  %v122 = vunpack.c.l.b16 %v54
  %v123 = vunpack.c.l.b16 %v55
  %v124 = vunpack.c.l.b16 %v56
  %v125 = vunpack.c.l.b16 %v57
  %v126 = vpack.c.b16 %v95, %v94
  %v127 = vpack.c.b16 %v97, %v96
  %v128 = vpack.c.b16 %v99, %v98
  %v129 = vpack.c.b16 %v101, %v100
  %v130 = vpack.c.b16 %v103, %v102
  %v131 = vpack.c.b16 %v105, %v104
  %v132 = vpack.c.b16 %v107, %v106
  %v133 = vpack.c.b16 %v109, %v108
  %v134 = vpack.c.b16 %v111, %v110
  %v135 = vpack.c.b16 %v113, %v112
  %v136 = vpack.c.b16 %v115, %v114
  %v137 = vpack.c.b16 %v117, %v116
  %v138 = vpack.c.b16 %v119, %v118
  %v139 = vpack.c.b16 %v121, %v120
  %v140 = vpack.c.b16 %v123, %v122
  %v141 = vpack.c.b16 %v125, %v124
  %158 = vmatpush.bf16.msra.mxu0 %v133
  %159 = vmatpush.bf16.msra.mxu0 %v132
  %160 = vmatpush.bf16.msra.mxu0 %v131
  %161 = vmatpush.bf16.msra.mxu0 %v130
  %162 = vmatpush.bf16.msra.mxu0 %v129
  %163 = vmatpush.bf16.msra.mxu0 %v128
  %164 = vmatpush.bf16.msra.mxu0 %v127
  %165 = vmatpush.bf16.msra.mxu0 %v126
  %166 = vmatmul.bf16.gmra.mxu0 %v22
  %v167 = vpop.f32.mrf.mxu0
  %v168 = vadd.f32 %v60, %v167
  %v169 = vpop.f32.mrf.mxu0
  %v170 = vadd.f32 %v60, %v169
  %171 = vmatmul.bf16.gmra.mxu0 %v24
  %v172 = vpop.f32.mrf.mxu0
  %v173 = vadd.f32 %v60, %v172
  %v174 = vpop.f32.mrf.mxu0
  %v175 = vadd.f32 %v60, %v174
  %176 = vdwg.mxu0
  %177 = vmatpush.bf16.msra.mxu0 %v141
  %178 = vmatpush.bf16.msra.mxu0 %v140
  %179 = vmatpush.bf16.msra.mxu0 %v139
  %180 = vmatpush.bf16.msra.mxu0 %v138
  %181 = vmatpush.bf16.msra.mxu0 %v137
  %182 = vmatpush.bf16.msra.mxu0 %v136
  %183 = vmatpush.bf16.msra.mxu0 %v135
  %184 = vmatpush.bf16.msra.mxu0 %v134
  %185 = vmatmul.bf16.gmra.mxu0 %v23
  %v186 = vpop.f32.mrf.mxu0
  %v187 = vadd.f32 %v168, %v186
  %v188 = vpop.f32.mrf.mxu0
  %v189 = vadd.f32 %v170, %v188
  %190 = vmatmul.bf16.gmra.mxu0 %v25
  %v191 = vpop.f32.mrf.mxu0
  %v192 = vadd.f32 %v173, %v191
  %v193 = vpop.f32.mrf.mxu0
  %v194 = vadd.f32 %v175, %v193
  %195 = vdwg.mxu0
  %196 = vst [vmem:[%s3] sm:$0xff] %v187
  %197 = vst [vmem:[%s3 + $0x8] sm:$0xff] %v189
  %198 = vst [vmem:[%s3 + $0x10] sm:$0xff] %v192
  %199 = vst [vmem:[%s3 + $0x18] sm:$0xff] %v194
  // Predicated region
  $region14: #{hourglass2d_forward.32} parent=0 // pred_check
    _
  $region15: #{hourglass2d_forward.32} parent=0 // pred_check_branch
    %201 = sbr.rel (0) target = $region17
  $region16: #{hourglass2d_forward.32} parent=0 // pred_region
    _
  $region17: #{hourglass2d_forward.32} parent=0 // pred_fallthru
    _
  // Predicated region
  $region18: #{hourglass2d_forward.32} parent=0 // pred_check
    _
  $region19: #{hourglass2d_forward.32} parent=0 // pred_check_branch
    %203 = sbr.rel (0) target = $region21
  $region20: #{hourglass2d_forward.32} parent=0 // pred_region
    _
  $region21: #{hourglass2d_forward.32} parent=0 // pred_fallthru
    _

// kernel: hourglass2d_forward.35
$region0: #{hourglass2d_forward.35}
  #allocation0 [shape = 'u32[]', space=smem, size = 0x4, offset = 0x4, fixed_abs, tag = 'smem constant byte address 0x4 - core index']
  #allocation1 [shape = 'u32[72,128]{1,0:T(1,128)}', space=vmem, size = 0x9000, scoped, tag = 'internal scratch']
  %s0 = inlined_call_operand.vmem [shape: f32[128,64], index: 0, kind: input, shape index: {}]
  %s1 = inlined_call_operand.vmem [shape: bf16[64,32], index: 1, kind: input, shape index: {}]
  %s2 = inlined_call_operand.vmem [shape: f32[1,32], index: 2, kind: input, shape index: {}]
  %s3 = inlined_call_operand.vmem [shape: f32[128,32], index: 3, kind: input, shape index: {}]
  %s4 = inlined_call_operand.vmem [shape: f32[128,32], index: 4, kind: input, shape index: {}]
  %s5 = inlined_call_operand.vmem [shape: f32[128,32], index: 5, kind: output, shape index: {}]
  %s6 = sld [smem:[#allocation0]]
  $region30: #{hourglass2d_forward.35} parent=0
    _
  %s8 = ssub.s32 1, %s6
  %s9 = scalar_select 0, %s8, %s6
  // Predicated region
  $region2: #{hourglass2d_forward.35} parent=0 // pred_check
    _
  $region3: #{hourglass2d_forward.35} parent=0 // pred_check_branch
    %11 = sbr.rel (0) target = $region5
  $region4: #{hourglass2d_forward.35} parent=0 // pred_region
    _
  $region5: #{hourglass2d_forward.35} parent=0 // pred_fallthru
    _
  // Predicated region
  $region6: #{hourglass2d_forward.35} parent=0 // pred_check
    _
  $region7: #{hourglass2d_forward.35} parent=0 // pred_check_branch
    %13 = sbr.rel (0) target = $region9
  $region8: #{hourglass2d_forward.35} parent=0 // pred_region
    _
  $region9: #{hourglass2d_forward.35} parent=0 // pred_fallthru
    _
  // Predicated region
  $region10: #{hourglass2d_forward.35} parent=0 // pred_check
    _
  $region11: #{hourglass2d_forward.35} parent=0 // pred_check_branch
    %15 = sbr.rel (0) target = $region13
  $region12: #{hourglass2d_forward.35} parent=0 // pred_region
    _
  $region13: #{hourglass2d_forward.35} parent=0 // pred_fallthru
    _
  // Predicated region
  $region14: #{hourglass2d_forward.35} parent=0 // pred_check
    _
  $region15: #{hourglass2d_forward.35} parent=0 // pred_check_branch
    %17 = sbr.rel (0) target = $region17
  $region16: #{hourglass2d_forward.35} parent=0 // pred_region
    _
  $region17: #{hourglass2d_forward.35} parent=0 // pred_fallthru
    _
  // Predicated region
  $region18: #{hourglass2d_forward.35} parent=0 // pred_check
    _
  $region19: #{hourglass2d_forward.35} parent=0 // pred_check_branch
    %19 = sbr.rel (0) target = $region21
  $region20: #{hourglass2d_forward.35} parent=0 // pred_region
    _
  $region21: #{hourglass2d_forward.35} parent=0 // pred_fallthru
    _
  %v21 = vld [vmem:[%s0] sm:$0xff]
  %v22 = vld [vmem:[%s0 + $0x8] sm:$0xff]
  %v23 = vld [vmem:[%s0 + $0x10] sm:$0xff]
  %v24 = vld [vmem:[%s0 + $0x18] sm:$0xff]
  %v25 = vld [vmem:[%s0 + $0x20] sm:$0xff]
  %v26 = vld [vmem:[%s0 + $0x28] sm:$0xff]
  %v27 = vld [vmem:[%s0 + $0x30] sm:$0xff]
  %v28 = vld [vmem:[%s0 + $0x38] sm:$0xff]
  %v29 = vld [vmem:[%s0 + $0x40] sm:$0xff]
  %v30 = vld [vmem:[%s0 + $0x48] sm:$0xff]
  %v31 = vld [vmem:[%s0 + $0x50] sm:$0xff]
  %v32 = vld [vmem:[%s0 + $0x58] sm:$0xff]
  %v33 = vld [vmem:[%s0 + $0x60] sm:$0xff]
  %v34 = vld [vmem:[%s0 + $0x68] sm:$0xff]
  %v35 = vld [vmem:[%s0 + $0x70] sm:$0xff]
  %v36 = vld [vmem:[%s0 + $0x78] sm:$0xff]
  %v37 = vpack.c.bf16 %v22, %v21
  %v38 = vpack.c.bf16 %v24, %v23
  %v39 = vpack.c.bf16 %v26, %v25
  %v40 = vpack.c.bf16 %v28, %v27
  %v41 = vpack.c.bf16 %v30, %v29
  %v42 = vpack.c.bf16 %v32, %v31
  %v43 = vpack.c.bf16 %v34, %v33
  %v44 = vpack.c.bf16 %v36, %v35
  %v45 = vld [vmem:[%s1] sm:$0xf]
  %v46 = vld [vmem:[%s1 + $0x4] sm:$0xf]
  %v47 = vld [vmem:[%s1 + $0x8] sm:$0xf]
  %v48 = vld [vmem:[%s1 + $0xc] sm:$0xf]
  %v49 = vld [vmem:[%s1 + $0x10] sm:$0xf]
  %v50 = vld [vmem:[%s1 + $0x14] sm:$0xf]
  %v51 = vld [vmem:[%s1 + $0x18] sm:$0xf]
  %v52 = vld [vmem:[%s1 + $0x1c] sm:$0xf]
  %v53 = vld [vmem:[%s2] sm:$0x1]
  %v55 = vperm.slane %v53, 0
  %v65 = vunpack.c.l.b16 %v45
  %v66 = vunpack.c.l.b16 %v46
  %v67 = vunpack.c.l.b16 %v47
  %v68 = vunpack.c.l.b16 %v48
  %v69 = vunpack.c.l.b16 %v49
  %v70 = vunpack.c.l.b16 %v50
  %v71 = vunpack.c.l.b16 %v51
  %v72 = vunpack.c.l.b16 %v52
  %v73 = vpack.c.b16 %v66, %v65
  %v74 = vpack.c.b16 %v68, %v67
  %v75 = vpack.c.b16 %v70, %v69
  %v76 = vpack.c.b16 %v72, %v71
  %vm81 = vcmask 523264
  %v83 = vsel %vm81, %v37, 0
  %v86 = vsel %vm81, %v38, 0
  %v89 = vsel %vm81, %v39, 0
  %v92 = vsel %vm81, %v40, 0
  %v95 = vsel %vm81, %v41, 0
  %v98 = vsel %vm81, %v42, 0
  %v101 = vsel %vm81, %v43, 0
  %v104 = vsel %vm81, %v44, 0
  %106 = vmatpush.bf16.msra.mxu0 0
  %107 = vmatpush.bf16.msra.mxu0 0
  %108 = vmatpush.bf16.msra.mxu0 0
  %109 = vmatpush.bf16.msra.mxu0 0
  %110 = vmatpush.bf16.msra.mxu0 %v76
  %111 = vmatpush.bf16.msra.mxu0 %v75
  %112 = vmatpush.bf16.msra.mxu0 %v74
  %113 = vmatpush.bf16.msra.mxu0 %v73
  %114 = vmatmul.bf16.gmra.mxu0 %v83
  %v115 = vpop.f32.mrf.mxu0
  %v116 = vadd.f32 %v55, %v115
  %v117 = vpop.f32.mrf.mxu0
  %v118 = vadd.f32 %v55, %v117
  %119 = vmatmul.bf16.gmra.mxu0 %v86
  %v120 = vpop.f32.mrf.mxu0
  %v121 = vadd.f32 %v55, %v120
  %v122 = vpop.f32.mrf.mxu0
  %v123 = vadd.f32 %v55, %v122
  %124 = vmatmul.bf16.gmra.mxu0 %v89
  %v125 = vpop.f32.mrf.mxu0
  %v126 = vadd.f32 %v55, %v125
  %v127 = vpop.f32.mrf.mxu0
  %v128 = vadd.f32 %v55, %v127
  %129 = vmatmul.bf16.gmra.mxu0 %v92
  %v130 = vpop.f32.mrf.mxu0
  %v131 = vadd.f32 %v55, %v130
  %v132 = vpop.f32.mrf.mxu0
  %v133 = vadd.f32 %v55, %v132
  %134 = vmatmul.bf16.gmra.mxu0 %v95
  %v135 = vpop.f32.mrf.mxu0
  %v136 = vadd.f32 %v55, %v135
  %v137 = vpop.f32.mrf.mxu0
  %v138 = vadd.f32 %v55, %v137
  %139 = vmatmul.bf16.gmra.mxu0 %v98
  %v140 = vpop.f32.mrf.mxu0
  %v141 = vadd.f32 %v55, %v140
  %v142 = vpop.f32.mrf.mxu0
  %v143 = vadd.f32 %v55, %v142
  %144 = vmatmul.bf16.gmra.mxu0 %v101
  %v145 = vpop.f32.mrf.mxu0
  %v146 = vadd.f32 %v55, %v145
  %v147 = vpop.f32.mrf.mxu0
  %v148 = vadd.f32 %v55, %v147
  %149 = vmatmul.bf16.gmra.mxu0 %v104
  %v150 = vpop.f32.mrf.mxu0
  %v151 = vadd.f32 %v55, %v150
  %v152 = vpop.f32.mrf.mxu0
  %v153 = vadd.f32 %v55, %v152
  %154 = vdwg.mxu0
  %v155 = vld [vmem:[%s3] sm:$0xff]
  %v156 = vld [vmem:[%s3 + $0x8] sm:$0xff]
  %v157 = vld [vmem:[%s3 + $0x10] sm:$0xff]
  %v158 = vld [vmem:[%s3 + $0x18] sm:$0xff]
  %v159 = vld [vmem:[%s3 + $0x20] sm:$0xff]
  %v160 = vld [vmem:[%s3 + $0x28] sm:$0xff]
  %v161 = vld [vmem:[%s3 + $0x30] sm:$0xff]
  %v162 = vld [vmem:[%s3 + $0x38] sm:$0xff]
  %v163 = vld [vmem:[%s3 + $0x40] sm:$0xff]
  %v164 = vld [vmem:[%s3 + $0x48] sm:$0xff]
  %v165 = vld [vmem:[%s3 + $0x50] sm:$0xff]
  %v166 = vld [vmem:[%s3 + $0x58] sm:$0xff]
  %v167 = vld [vmem:[%s3 + $0x60] sm:$0xff]
  %v168 = vld [vmem:[%s3 + $0x68] sm:$0xff]
  %v169 = vld [vmem:[%s3 + $0x70] sm:$0xff]
  %v170 = vld [vmem:[%s3 + $0x78] sm:$0xff]
  %v171 = vadd.f32 %v116, %v155
  %v172 = vadd.f32 %v118, %v156
  %v173 = vadd.f32 %v121, %v157
  %v174 = vadd.f32 %v123, %v158
  %v175 = vadd.f32 %v126, %v159
  %v176 = vadd.f32 %v128, %v160
  %v177 = vadd.f32 %v131, %v161
  %v178 = vadd.f32 %v133, %v162
  %v179 = vadd.f32 %v136, %v163
  %v180 = vadd.f32 %v138, %v164
  %v181 = vadd.f32 %v141, %v165
  %v182 = vadd.f32 %v143, %v166
  %v183 = vadd.f32 %v146, %v167
  %v184 = vadd.f32 %v148, %v168
  %v185 = vadd.f32 %v151, %v169
  %v186 = vadd.f32 %v153, %v170
  %v187 = vld [vmem:[%s4] sm:$0xff]
  %v188 = vld [vmem:[%s4 + $0x8] sm:$0xff]
  %v189 = vld [vmem:[%s4 + $0x10] sm:$0xff]
  %v190 = vld [vmem:[%s4 + $0x18] sm:$0xff]
  %v191 = vld [vmem:[%s4 + $0x20] sm:$0xff]
  %v192 = vld [vmem:[%s4 + $0x28] sm:$0xff]
  %v193 = vld [vmem:[%s4 + $0x30] sm:$0xff]
  %v194 = vld [vmem:[%s4 + $0x38] sm:$0xff]
  %v195 = vld [vmem:[%s4 + $0x40] sm:$0xff]
  %v196 = vld [vmem:[%s4 + $0x48] sm:$0xff]
  %v197 = vld [vmem:[%s4 + $0x50] sm:$0xff]
  %v198 = vld [vmem:[%s4 + $0x58] sm:$0xff]
  %v199 = vld [vmem:[%s4 + $0x60] sm:$0xff]
  %v200 = vld [vmem:[%s4 + $0x68] sm:$0xff]
  %v201 = vld [vmem:[%s4 + $0x70] sm:$0xff]
  %v202 = vld [vmem:[%s4 + $0x78] sm:$0xff]
  %v203 = vadd.f32 %v171, %v187
  %v204 = vadd.f32 %v172, %v188
  %v205 = vadd.f32 %v173, %v189
  %v206 = vadd.f32 %v174, %v190
  %v207 = vadd.f32 %v175, %v191
  %v208 = vadd.f32 %v176, %v192
  %v209 = vadd.f32 %v177, %v193
  %v210 = vadd.f32 %v178, %v194
  %v211 = vadd.f32 %v179, %v195
  %v212 = vadd.f32 %v180, %v196
  %v213 = vadd.f32 %v181, %v197
  %v214 = vadd.f32 %v182, %v198
  %v215 = vadd.f32 %v183, %v199
  %v216 = vadd.f32 %v184, %v200
  %v217 = vadd.f32 %v185, %v201
  %v218 = vadd.f32 %v186, %v202
  %v219 = vmax.f32 %v203, 0.0
  %v220 = vmax.f32 %v204, 0.0
  %v221 = vmax.f32 %v205, 0.0
  %v222 = vmax.f32 %v206, 0.0
  %v223 = vmax.f32 %v207, 0.0
  %v224 = vmax.f32 %v208, 0.0
  %v225 = vmax.f32 %v209, 0.0
  %v226 = vmax.f32 %v210, 0.0
  %v227 = vmax.f32 %v211, 0.0
  %v228 = vmax.f32 %v212, 0.0
  %v229 = vmax.f32 %v213, 0.0
  %v230 = vmax.f32 %v214, 0.0
  %v231 = vmax.f32 %v215, 0.0
  %v232 = vmax.f32 %v216, 0.0
  %v233 = vmax.f32 %v217, 0.0
  %v234 = vmax.f32 %v218, 0.0
  %vm235 = vcmask 261120
  %236 = vst.msk [vmem:[%s5] sm:$0xff] %vm235, %v219
  %237 = vst.msk [vmem:[%s5 + $0x8] sm:$0xff] %vm235, %v220
  %238 = vst.msk [vmem:[%s5 + $0x10] sm:$0xff] %vm235, %v221
  %239 = vst.msk [vmem:[%s5 + $0x18] sm:$0xff] %vm235, %v222
  %240 = vst.msk [vmem:[%s5 + $0x20] sm:$0xff] %vm235, %v223
  %241 = vst.msk [vmem:[%s5 + $0x28] sm:$0xff] %vm235, %v224
  %242 = vst.msk [vmem:[%s5 + $0x30] sm:$0xff] %vm235, %v225
  %243 = vst.msk [vmem:[%s5 + $0x38] sm:$0xff] %vm235, %v226
  %244 = vst.msk [vmem:[%s5 + $0x40] sm:$0xff] %vm235, %v227
  %245 = vst.msk [vmem:[%s5 + $0x48] sm:$0xff] %vm235, %v228
  %246 = vst.msk [vmem:[%s5 + $0x50] sm:$0xff] %vm235, %v229
  %247 = vst.msk [vmem:[%s5 + $0x58] sm:$0xff] %vm235, %v230
  %248 = vst.msk [vmem:[%s5 + $0x60] sm:$0xff] %vm235, %v231
  %249 = vst.msk [vmem:[%s5 + $0x68] sm:$0xff] %vm235, %v232
  %250 = vst.msk [vmem:[%s5 + $0x70] sm:$0xff] %vm235, %v233
  %251 = vst.msk [vmem:[%s5 + $0x78] sm:$0xff] %vm235, %v234
  // Predicated region
  $region22: #{hourglass2d_forward.35} parent=0 // pred_check
    _
  $region23: #{hourglass2d_forward.35} parent=0 // pred_check_branch
    %253 = sbr.rel (0) target = $region25
  $region24: #{hourglass2d_forward.35} parent=0 // pred_region
    _
  $region25: #{hourglass2d_forward.35} parent=0 // pred_fallthru
    _
  // Predicated region
  $region26: #{hourglass2d_forward.35} parent=0 // pred_check
    _
  $region27: #{hourglass2d_forward.35} parent=0 // pred_check_branch
    %255 = sbr.rel (0) target = $region29
  $region28: #{hourglass2d_forward.35} parent=0 // pred_region
    _
  $region29: #{hourglass2d_forward.35} parent=0 // pred_fallthru
    _

// kernel: hourglass2d_forward.36
$region0: #{hourglass2d_forward.36}
  #allocation0 [shape = 'u32[]', space=smem, size = 0x4, offset = 0x4, fixed_abs, tag = 'smem constant byte address 0x4 - core index']
  #allocation1 [shape = 'u32[72,128]{1,0:T(1,128)}', space=vmem, size = 0x9000, scoped, tag = 'internal scratch']
  %s0 = inlined_call_operand.vmem [shape: f32[128,128], index: 0, kind: input, shape index: {}]
  %s1 = inlined_call_operand.vmem [shape: bf16[128,64], index: 1, kind: input, shape index: {}]
  %s2 = inlined_call_operand.vmem [shape: f32[1,64], index: 2, kind: input, shape index: {}]
  %s3 = inlined_call_operand.vmem [shape: f32[128,64], index: 3, kind: output, shape index: {}]
  %s4 = sld [smem:[#allocation0]]
  $region22: #{hourglass2d_forward.36} parent=0
    _
  %s6 = ssub.s32 1, %s4
  %s7 = scalar_select 0, %s6, %s4
  // Predicated region
  $region2: #{hourglass2d_forward.36} parent=0 // pred_check
    _
  $region3: #{hourglass2d_forward.36} parent=0 // pred_check_branch
    %9 = sbr.rel (0) target = $region5
  $region4: #{hourglass2d_forward.36} parent=0 // pred_region
    _
  $region5: #{hourglass2d_forward.36} parent=0 // pred_fallthru
    _
  // Predicated region
  $region6: #{hourglass2d_forward.36} parent=0 // pred_check
    _
  $region7: #{hourglass2d_forward.36} parent=0 // pred_check_branch
    %11 = sbr.rel (0) target = $region9
  $region8: #{hourglass2d_forward.36} parent=0 // pred_region
    _
  $region9: #{hourglass2d_forward.36} parent=0 // pred_fallthru
    _
  // Predicated region
  $region10: #{hourglass2d_forward.36} parent=0 // pred_check
    _
  $region11: #{hourglass2d_forward.36} parent=0 // pred_check_branch
    %13 = sbr.rel (0) target = $region13
  $region12: #{hourglass2d_forward.36} parent=0 // pred_region
    _
  $region13: #{hourglass2d_forward.36} parent=0 // pred_fallthru
    _
  %v14 = vld [vmem:[%s0] sm:$0xff]
  %v15 = vld [vmem:[%s0 + $0x8] sm:$0xff]
  %v16 = vld [vmem:[%s0 + $0x10] sm:$0xff]
  %v17 = vld [vmem:[%s0 + $0x18] sm:$0xff]
  %v18 = vld [vmem:[%s0 + $0x20] sm:$0xff]
  %v19 = vld [vmem:[%s0 + $0x28] sm:$0xff]
  %v20 = vld [vmem:[%s0 + $0x30] sm:$0xff]
  %v21 = vld [vmem:[%s0 + $0x38] sm:$0xff]
  %v22 = vld [vmem:[%s0 + $0x40] sm:$0xff]
  %v23 = vld [vmem:[%s0 + $0x48] sm:$0xff]
  %v24 = vld [vmem:[%s0 + $0x50] sm:$0xff]
  %v25 = vld [vmem:[%s0 + $0x58] sm:$0xff]
  %v26 = vld [vmem:[%s0 + $0x60] sm:$0xff]
  %v27 = vld [vmem:[%s0 + $0x68] sm:$0xff]
  %v28 = vld [vmem:[%s0 + $0x70] sm:$0xff]
  %v29 = vld [vmem:[%s0 + $0x78] sm:$0xff]
  %v30 = vpack.c.bf16 %v15, %v14
  %v31 = vpack.c.bf16 %v17, %v16
  %v32 = vpack.c.bf16 %v19, %v18
  %v33 = vpack.c.bf16 %v21, %v20
  %v34 = vpack.c.bf16 %v23, %v22
  %v35 = vpack.c.bf16 %v25, %v24
  %v36 = vpack.c.bf16 %v27, %v26
  %v37 = vpack.c.bf16 %v29, %v28
  %v38 = vld [vmem:[%s1] sm:$0xf]
  %v39 = vld [vmem:[%s1 + $0x4] sm:$0xf]
  %v40 = vld [vmem:[%s1 + $0x8] sm:$0xf]
  %v41 = vld [vmem:[%s1 + $0xc] sm:$0xf]
  %v42 = vld [vmem:[%s1 + $0x10] sm:$0xf]
  %v43 = vld [vmem:[%s1 + $0x14] sm:$0xf]
  %v44 = vld [vmem:[%s1 + $0x18] sm:$0xf]
  %v45 = vld [vmem:[%s1 + $0x1c] sm:$0xf]
  %v46 = vld [vmem:[%s1 + $0x20] sm:$0xf]
  %v47 = vld [vmem:[%s1 + $0x24] sm:$0xf]
  %v48 = vld [vmem:[%s1 + $0x28] sm:$0xf]
  %v49 = vld [vmem:[%s1 + $0x2c] sm:$0xf]
  %v50 = vld [vmem:[%s1 + $0x30] sm:$0xf]
  %v51 = vld [vmem:[%s1 + $0x34] sm:$0xf]
  %v52 = vld [vmem:[%s1 + $0x38] sm:$0xf]
  %v53 = vld [vmem:[%s1 + $0x3c] sm:$0xf]
  %v54 = vld [vmem:[%s2] sm:$0x1]
  %v56 = vperm.slane %v54, 0
  %v74 = vunpack.c.l.b16 %v38
  %v75 = vunpack.c.l.b16 %v39
  %v76 = vunpack.c.l.b16 %v40
  %v77 = vunpack.c.l.b16 %v41
  %v78 = vunpack.c.l.b16 %v42
  %v79 = vunpack.c.l.b16 %v43
  %v80 = vunpack.c.l.b16 %v44
  %v81 = vunpack.c.l.b16 %v45
  %v82 = vunpack.c.l.b16 %v46
  %v83 = vunpack.c.l.b16 %v47
  %v84 = vunpack.c.l.b16 %v48
  %v85 = vunpack.c.l.b16 %v49
  %v86 = vunpack.c.l.b16 %v50
  %v87 = vunpack.c.l.b16 %v51
  %v88 = vunpack.c.l.b16 %v52
  %v89 = vunpack.c.l.b16 %v53
  %v90 = vpack.c.b16 %v75, %v74
  %v91 = vpack.c.b16 %v77, %v76
  %v92 = vpack.c.b16 %v79, %v78
  %v93 = vpack.c.b16 %v81, %v80
  %v94 = vpack.c.b16 %v83, %v82
  %v95 = vpack.c.b16 %v85, %v84
  %v96 = vpack.c.b16 %v87, %v86
  %v97 = vpack.c.b16 %v89, %v88
  %106 = vmatpush.bf16.msra.mxu0 %v97
  %107 = vmatpush.bf16.msra.mxu0 %v96
  %108 = vmatpush.bf16.msra.mxu0 %v95
  %109 = vmatpush.bf16.msra.mxu0 %v94
  %110 = vmatpush.bf16.msra.mxu0 %v93
  %111 = vmatpush.bf16.msra.mxu0 %v92
  %112 = vmatpush.bf16.msra.mxu0 %v91
  %113 = vmatpush.bf16.msra.mxu0 %v90
  %114 = vmatmul.bf16.gmra.mxu0 %v30
  %v115 = vpop.f32.mrf.mxu0
  %v116 = vadd.f32 %v56, %v115
  %v117 = vpop.f32.mrf.mxu0
  %v118 = vadd.f32 %v56, %v117
  %119 = vmatmul.bf16.gmra.mxu0 %v31
  %v120 = vpop.f32.mrf.mxu0
  %v121 = vadd.f32 %v56, %v120
  %v122 = vpop.f32.mrf.mxu0
  %v123 = vadd.f32 %v56, %v122
  %124 = vmatmul.bf16.gmra.mxu0 %v32
  %v125 = vpop.f32.mrf.mxu0
  %v126 = vadd.f32 %v56, %v125
  %v127 = vpop.f32.mrf.mxu0
  %v128 = vadd.f32 %v56, %v127
  %129 = vmatmul.bf16.gmra.mxu0 %v33
  %v130 = vpop.f32.mrf.mxu0
  %v131 = vadd.f32 %v56, %v130
  %v132 = vpop.f32.mrf.mxu0
  %v133 = vadd.f32 %v56, %v132
  %134 = vmatmul.bf16.gmra.mxu0 %v34
  %v135 = vpop.f32.mrf.mxu0
  %v136 = vadd.f32 %v56, %v135
  %v137 = vpop.f32.mrf.mxu0
  %v138 = vadd.f32 %v56, %v137
  %139 = vmatmul.bf16.gmra.mxu0 %v35
  %v140 = vpop.f32.mrf.mxu0
  %v141 = vadd.f32 %v56, %v140
  %v142 = vpop.f32.mrf.mxu0
  %v143 = vadd.f32 %v56, %v142
  %144 = vmatmul.bf16.gmra.mxu0 %v36
  %v145 = vpop.f32.mrf.mxu0
  %v146 = vadd.f32 %v56, %v145
  %v147 = vpop.f32.mrf.mxu0
  %v148 = vadd.f32 %v56, %v147
  %149 = vmatmul.bf16.gmra.mxu0 %v37
  %v150 = vpop.f32.mrf.mxu0
  %v151 = vadd.f32 %v56, %v150
  %v152 = vpop.f32.mrf.mxu0
  %v153 = vadd.f32 %v56, %v152
  %154 = vdwg.mxu0
  %vm155 = vcmask 523264
  %156 = vst.msk [vmem:[%s3] sm:$0xff] %vm155, %v116
  %157 = vst.msk [vmem:[%s3 + $0x8] sm:$0xff] %vm155, %v118
  %158 = vst.msk [vmem:[%s3 + $0x10] sm:$0xff] %vm155, %v121
  %159 = vst.msk [vmem:[%s3 + $0x18] sm:$0xff] %vm155, %v123
  %160 = vst.msk [vmem:[%s3 + $0x20] sm:$0xff] %vm155, %v126
  %161 = vst.msk [vmem:[%s3 + $0x28] sm:$0xff] %vm155, %v128
  %162 = vst.msk [vmem:[%s3 + $0x30] sm:$0xff] %vm155, %v131
  %163 = vst.msk [vmem:[%s3 + $0x38] sm:$0xff] %vm155, %v133
  %164 = vst.msk [vmem:[%s3 + $0x40] sm:$0xff] %vm155, %v136
  %165 = vst.msk [vmem:[%s3 + $0x48] sm:$0xff] %vm155, %v138
  %166 = vst.msk [vmem:[%s3 + $0x50] sm:$0xff] %vm155, %v141
  %167 = vst.msk [vmem:[%s3 + $0x58] sm:$0xff] %vm155, %v143
  %168 = vst.msk [vmem:[%s3 + $0x60] sm:$0xff] %vm155, %v146
  %169 = vst.msk [vmem:[%s3 + $0x68] sm:$0xff] %vm155, %v148
  %170 = vst.msk [vmem:[%s3 + $0x70] sm:$0xff] %vm155, %v151
  %171 = vst.msk [vmem:[%s3 + $0x78] sm:$0xff] %vm155, %v153
  // Predicated region
  $region14: #{hourglass2d_forward.36} parent=0 // pred_check
    _
  $region15: #{hourglass2d_forward.36} parent=0 // pred_check_branch
    %173 = sbr.rel (0) target = $region17
  $region16: #{hourglass2d_forward.36} parent=0 // pred_region
    _
  $region17: #{hourglass2d_forward.36} parent=0 // pred_fallthru
    _
  // Predicated region
  $region18: #{hourglass2d_forward.36} parent=0 // pred_check
    _
  $region19: #{hourglass2d_forward.36} parent=0 // pred_check_branch
    %175 = sbr.rel (0) target = $region21
  $region20: #{hourglass2d_forward.36} parent=0 // pred_region
    _
  $region21: #{hourglass2d_forward.36} parent=0 // pred_fallthru
    _

// kernel: hourglass2d_forward.39
$region0: #{hourglass2d_forward.39}
  #allocation0 [shape = 'u32[]', space=smem, size = 0x4, offset = 0x4, fixed_abs, tag = 'smem constant byte address 0x4 - core index']
  #allocation1 [shape = 'u32[72,128]{1,0:T(1,128)}', space=vmem, size = 0x9000, scoped, tag = 'internal scratch']
  %s0 = inlined_call_operand.vmem [shape: f32[512,32], index: 0, kind: input, shape index: {}]
  %s1 = inlined_call_operand.vmem [shape: bf16[32,16], index: 1, kind: input, shape index: {}]
  %s2 = inlined_call_operand.vmem [shape: f32[1,16], index: 2, kind: input, shape index: {}]
  %s3 = inlined_call_operand.vmem [shape: f32[512,16], index: 3, kind: input, shape index: {}]
  %s4 = inlined_call_operand.vmem [shape: f32[512,16], index: 4, kind: input, shape index: {}]
  %s5 = inlined_call_operand.vmem [shape: f32[512,16], index: 5, kind: output, shape index: {}]
  %s6 = sld [smem:[#allocation0]]
  $region30: #{hourglass2d_forward.39} parent=0
    _
  %s8 = ssub.s32 1, %s6
  %s9 = scalar_select 0, %s8, %s6
  // Predicated region
  $region2: #{hourglass2d_forward.39} parent=0 // pred_check
    _
  $region3: #{hourglass2d_forward.39} parent=0 // pred_check_branch
    %11 = sbr.rel (0) target = $region5
  $region4: #{hourglass2d_forward.39} parent=0 // pred_region
    _
  $region5: #{hourglass2d_forward.39} parent=0 // pred_fallthru
    _
  // Predicated region
  $region6: #{hourglass2d_forward.39} parent=0 // pred_check
    _
  $region7: #{hourglass2d_forward.39} parent=0 // pred_check_branch
    %13 = sbr.rel (0) target = $region9
  $region8: #{hourglass2d_forward.39} parent=0 // pred_region
    _
  $region9: #{hourglass2d_forward.39} parent=0 // pred_fallthru
    _
  // Predicated region
  $region10: #{hourglass2d_forward.39} parent=0 // pred_check
    _
  $region11: #{hourglass2d_forward.39} parent=0 // pred_check_branch
    %15 = sbr.rel (0) target = $region13
  $region12: #{hourglass2d_forward.39} parent=0 // pred_region
    _
  $region13: #{hourglass2d_forward.39} parent=0 // pred_fallthru
    _
  // Predicated region
  $region14: #{hourglass2d_forward.39} parent=0 // pred_check
    _
  $region15: #{hourglass2d_forward.39} parent=0 // pred_check_branch
    %17 = sbr.rel (0) target = $region17
  $region16: #{hourglass2d_forward.39} parent=0 // pred_region
    _
  $region17: #{hourglass2d_forward.39} parent=0 // pred_fallthru
    _
  // Predicated region
  $region18: #{hourglass2d_forward.39} parent=0 // pred_check
    _
  $region19: #{hourglass2d_forward.39} parent=0 // pred_check_branch
    %19 = sbr.rel (0) target = $region21
  $region20: #{hourglass2d_forward.39} parent=0 // pred_region
    _
  $region21: #{hourglass2d_forward.39} parent=0 // pred_fallthru
    _
  %v21 = vld [vmem:[%s0] sm:$0xff]
  %v22 = vld [vmem:[%s0 + $0x8] sm:$0xff]
  %v23 = vld [vmem:[%s0 + $0x10] sm:$0xff]
  %v24 = vld [vmem:[%s0 + $0x18] sm:$0xff]
  %v25 = vld [vmem:[%s0 + $0x20] sm:$0xff]
  %v26 = vld [vmem:[%s0 + $0x28] sm:$0xff]
  %v27 = vld [vmem:[%s0 + $0x30] sm:$0xff]
  %v28 = vld [vmem:[%s0 + $0x38] sm:$0xff]
  %v29 = vld [vmem:[%s0 + $0x40] sm:$0xff]
  %v30 = vld [vmem:[%s0 + $0x48] sm:$0xff]
  %v31 = vld [vmem:[%s0 + $0x50] sm:$0xff]
  %v32 = vld [vmem:[%s0 + $0x58] sm:$0xff]
  %v33 = vld [vmem:[%s0 + $0x60] sm:$0xff]
  %v34 = vld [vmem:[%s0 + $0x68] sm:$0xff]
  %v35 = vld [vmem:[%s0 + $0x70] sm:$0xff]
  %v36 = vld [vmem:[%s0 + $0x78] sm:$0xff]
  %v37 = vld [vmem:[%s0 + $0x80] sm:$0xff]
  %v38 = vld [vmem:[%s0 + $0x88] sm:$0xff]
  %v39 = vld [vmem:[%s0 + $0x90] sm:$0xff]
  %v40 = vld [vmem:[%s0 + $0x98] sm:$0xff]
  %v41 = vld [vmem:[%s0 + $0xa0] sm:$0xff]
  %v42 = vld [vmem:[%s0 + $0xa8] sm:$0xff]
  %v43 = vld [vmem:[%s0 + $0xb0] sm:$0xff]
  %v44 = vld [vmem:[%s0 + $0xb8] sm:$0xff]
  %v45 = vld [vmem:[%s0 + $0xc0] sm:$0xff]
  %v46 = vld [vmem:[%s0 + $0xc8] sm:$0xff]
  %v47 = vld [vmem:[%s0 + $0xd0] sm:$0xff]
  %v48 = vld [vmem:[%s0 + $0xd8] sm:$0xff]
  %v49 = vld [vmem:[%s0 + $0xe0] sm:$0xff]
  %v50 = vld [vmem:[%s0 + $0xe8] sm:$0xff]
  %v51 = vld [vmem:[%s0 + $0xf0] sm:$0xff]
  %v52 = vld [vmem:[%s0 + $0xf8] sm:$0xff]
  %v53 = vld [vmem:[%s0 + $0x100] sm:$0xff]
  %v54 = vld [vmem:[%s0 + $0x108] sm:$0xff]
  %v55 = vld [vmem:[%s0 + $0x110] sm:$0xff]
  %v56 = vld [vmem:[%s0 + $0x118] sm:$0xff]
  %v57 = vld [vmem:[%s0 + $0x120] sm:$0xff]
  %v58 = vld [vmem:[%s0 + $0x128] sm:$0xff]
  %v59 = vld [vmem:[%s0 + $0x130] sm:$0xff]
  %v60 = vld [vmem:[%s0 + $0x138] sm:$0xff]
  %v61 = vld [vmem:[%s0 + $0x140] sm:$0xff]
  %v62 = vld [vmem:[%s0 + $0x148] sm:$0xff]
  %v63 = vld [vmem:[%s0 + $0x150] sm:$0xff]
  %v64 = vld [vmem:[%s0 + $0x158] sm:$0xff]
  %v65 = vld [vmem:[%s0 + $0x160] sm:$0xff]
  %v66 = vld [vmem:[%s0 + $0x168] sm:$0xff]
  %v67 = vld [vmem:[%s0 + $0x170] sm:$0xff]
  %v68 = vld [vmem:[%s0 + $0x178] sm:$0xff]
  %v69 = vld [vmem:[%s0 + $0x180] sm:$0xff]
  %v70 = vld [vmem:[%s0 + $0x188] sm:$0xff]
  %v71 = vld [vmem:[%s0 + $0x190] sm:$0xff]
  %v72 = vld [vmem:[%s0 + $0x198] sm:$0xff]
  %v73 = vld [vmem:[%s0 + $0x1a0] sm:$0xff]
  %v74 = vld [vmem:[%s0 + $0x1a8] sm:$0xff]
  %v75 = vld [vmem:[%s0 + $0x1b0] sm:$0xff]
  %v76 = vld [vmem:[%s0 + $0x1b8] sm:$0xff]
  %v77 = vld [vmem:[%s0 + $0x1c0] sm:$0xff]
  %v78 = vld [vmem:[%s0 + $0x1c8] sm:$0xff]
  %v79 = vld [vmem:[%s0 + $0x1d0] sm:$0xff]
  %v80 = vld [vmem:[%s0 + $0x1d8] sm:$0xff]
  %v81 = vld [vmem:[%s0 + $0x1e0] sm:$0xff]
  %v82 = vld [vmem:[%s0 + $0x1e8] sm:$0xff]
  %v83 = vld [vmem:[%s0 + $0x1f0] sm:$0xff]
  %v84 = vld [vmem:[%s0 + $0x1f8] sm:$0xff]
  %v85 = vpack.c.bf16 %v22, %v21
  %v86 = vpack.c.bf16 %v24, %v23
  %v87 = vpack.c.bf16 %v26, %v25
  %v88 = vpack.c.bf16 %v28, %v27
  %v89 = vpack.c.bf16 %v30, %v29
  %v90 = vpack.c.bf16 %v32, %v31
  %v91 = vpack.c.bf16 %v34, %v33
  %v92 = vpack.c.bf16 %v36, %v35
  %v93 = vpack.c.bf16 %v38, %v37
  %v94 = vpack.c.bf16 %v40, %v39
  %v95 = vpack.c.bf16 %v42, %v41
  %v96 = vpack.c.bf16 %v44, %v43
  %v97 = vpack.c.bf16 %v46, %v45
  %v98 = vpack.c.bf16 %v48, %v47
  %v99 = vpack.c.bf16 %v50, %v49
  %v100 = vpack.c.bf16 %v52, %v51
  %v101 = vpack.c.bf16 %v54, %v53
  %v102 = vpack.c.bf16 %v56, %v55
  %v103 = vpack.c.bf16 %v58, %v57
  %v104 = vpack.c.bf16 %v60, %v59
  %v105 = vpack.c.bf16 %v62, %v61
  %v106 = vpack.c.bf16 %v64, %v63
  %v107 = vpack.c.bf16 %v66, %v65
  %v108 = vpack.c.bf16 %v68, %v67
  %v109 = vpack.c.bf16 %v70, %v69
  %v110 = vpack.c.bf16 %v72, %v71
  %v111 = vpack.c.bf16 %v74, %v73
  %v112 = vpack.c.bf16 %v76, %v75
  %v113 = vpack.c.bf16 %v78, %v77
  %v114 = vpack.c.bf16 %v80, %v79
  %v115 = vpack.c.bf16 %v82, %v81
  %v116 = vpack.c.bf16 %v84, %v83
  %v117 = vld [vmem:[%s1] sm:$0xf]
  %v118 = vld [vmem:[%s1 + $0x4] sm:$0xf]
  %v119 = vld [vmem:[%s1 + $0x8] sm:$0xf]
  %v120 = vld [vmem:[%s1 + $0xc] sm:$0xf]
  %v121 = vld [vmem:[%s2] sm:$0x1]
  %v123 = vperm.slane %v121, 0
  %v129 = vunpack.c.l.b16 %v117
  %v130 = vunpack.c.l.b16 %v118
  %v131 = vunpack.c.l.b16 %v119
  %v132 = vunpack.c.l.b16 %v120
  %v133 = vpack.c.b16 %v130, %v129
  %v134 = vpack.c.b16 %v132, %v131
  %vm137 = vcmask 261120
  %v139 = vsel %vm137, %v85, 0
  %v142 = vsel %vm137, %v86, 0
  %v145 = vsel %vm137, %v87, 0
  %v148 = vsel %vm137, %v88, 0
  %v151 = vsel %vm137, %v89, 0
  %v154 = vsel %vm137, %v90, 0
  %v157 = vsel %vm137, %v91, 0
  %v160 = vsel %vm137, %v92, 0
  %v163 = vsel %vm137, %v93, 0
  %v166 = vsel %vm137, %v94, 0
  %v169 = vsel %vm137, %v95, 0
  %v172 = vsel %vm137, %v96, 0
  %v175 = vsel %vm137, %v97, 0
  %v178 = vsel %vm137, %v98, 0
  %v181 = vsel %vm137, %v99, 0
  %v184 = vsel %vm137, %v100, 0
  %v187 = vsel %vm137, %v101, 0
  %v190 = vsel %vm137, %v102, 0
  %v193 = vsel %vm137, %v103, 0
  %v196 = vsel %vm137, %v104, 0
  %v199 = vsel %vm137, %v105, 0
  %v202 = vsel %vm137, %v106, 0
  %v205 = vsel %vm137, %v107, 0
  %v208 = vsel %vm137, %v108, 0
  %v211 = vsel %vm137, %v109, 0
  %v214 = vsel %vm137, %v110, 0
  %v217 = vsel %vm137, %v111, 0
  %v220 = vsel %vm137, %v112, 0
  %v223 = vsel %vm137, %v113, 0
  %v226 = vsel %vm137, %v114, 0
  %v229 = vsel %vm137, %v115, 0
  %v232 = vsel %vm137, %v116, 0
  %234 = vmatpush.bf16.msra.mxu0 0
  %235 = vmatpush.bf16.msra.mxu0 0
  %236 = vmatpush.bf16.msra.mxu0 0
  %237 = vmatpush.bf16.msra.mxu0 0
  %238 = vmatpush.bf16.msra.mxu0 0
  %239 = vmatpush.bf16.msra.mxu0 0
  %240 = vmatpush.bf16.msra.mxu0 %v134
  %241 = vmatpush.bf16.msra.mxu0 %v133
  %242 = vmatmul.bf16.gmra.mxu0 %v139
  %v243 = vpop.f32.mrf.mxu0
  %v244 = vadd.f32 %v123, %v243
  %v245 = vpop.f32.mrf.mxu0
  %v246 = vadd.f32 %v123, %v245
  %247 = vmatmul.bf16.gmra.mxu0 %v142
  %v248 = vpop.f32.mrf.mxu0
  %v249 = vadd.f32 %v123, %v248
  %v250 = vpop.f32.mrf.mxu0
  %v251 = vadd.f32 %v123, %v250
  %252 = vmatmul.bf16.gmra.mxu0 %v145
  %v253 = vpop.f32.mrf.mxu0
  %v254 = vadd.f32 %v123, %v253
  %v255 = vpop.f32.mrf.mxu0
  %v256 = vadd.f32 %v123, %v255
  %257 = vmatmul.bf16.gmra.mxu0 %v148
  %v258 = vpop.f32.mrf.mxu0
  %v259 = vadd.f32 %v123, %v258
  %v260 = vpop.f32.mrf.mxu0
  %v261 = vadd.f32 %v123, %v260
  %262 = vmatmul.bf16.gmra.mxu0 %v151
  %v263 = vpop.f32.mrf.mxu0
  %v264 = vadd.f32 %v123, %v263
  %v265 = vpop.f32.mrf.mxu0
  %v266 = vadd.f32 %v123, %v265
  %267 = vmatmul.bf16.gmra.mxu0 %v154
  %v268 = vpop.f32.mrf.mxu0
  %v269 = vadd.f32 %v123, %v268
  %v270 = vpop.f32.mrf.mxu0
  %v271 = vadd.f32 %v123, %v270
  %272 = vmatmul.bf16.gmra.mxu0 %v157
  %v273 = vpop.f32.mrf.mxu0
  %v274 = vadd.f32 %v123, %v273
  %v275 = vpop.f32.mrf.mxu0
  %v276 = vadd.f32 %v123, %v275
  %277 = vmatmul.bf16.gmra.mxu0 %v160
  %v278 = vpop.f32.mrf.mxu0
  %v279 = vadd.f32 %v123, %v278
  %v280 = vpop.f32.mrf.mxu0
  %v281 = vadd.f32 %v123, %v280
  %282 = vmatmul.bf16.gmra.mxu0 %v163
  %v283 = vpop.f32.mrf.mxu0
  %v284 = vadd.f32 %v123, %v283
  %v285 = vpop.f32.mrf.mxu0
  %v286 = vadd.f32 %v123, %v285
  %287 = vmatmul.bf16.gmra.mxu0 %v166
  %v288 = vpop.f32.mrf.mxu0
  %v289 = vadd.f32 %v123, %v288
  %v290 = vpop.f32.mrf.mxu0
  %v291 = vadd.f32 %v123, %v290
  %292 = vmatmul.bf16.gmra.mxu0 %v169
  %v293 = vpop.f32.mrf.mxu0
  %v294 = vadd.f32 %v123, %v293
  %v295 = vpop.f32.mrf.mxu0
  %v296 = vadd.f32 %v123, %v295
  %297 = vmatmul.bf16.gmra.mxu0 %v172
  %v298 = vpop.f32.mrf.mxu0
  %v299 = vadd.f32 %v123, %v298
  %v300 = vpop.f32.mrf.mxu0
  %v301 = vadd.f32 %v123, %v300
  %302 = vmatmul.bf16.gmra.mxu0 %v175
  %v303 = vpop.f32.mrf.mxu0
  %v304 = vadd.f32 %v123, %v303
  %v305 = vpop.f32.mrf.mxu0
  %v306 = vadd.f32 %v123, %v305
  %307 = vmatmul.bf16.gmra.mxu0 %v178
  %v308 = vpop.f32.mrf.mxu0
  %v309 = vadd.f32 %v123, %v308
  %v310 = vpop.f32.mrf.mxu0
  %v311 = vadd.f32 %v123, %v310
  %312 = vmatmul.bf16.gmra.mxu0 %v181
  %v313 = vpop.f32.mrf.mxu0
  %v314 = vadd.f32 %v123, %v313
  %v315 = vpop.f32.mrf.mxu0
  %v316 = vadd.f32 %v123, %v315
  %317 = vmatmul.bf16.gmra.mxu0 %v184
  %v318 = vpop.f32.mrf.mxu0
  %v319 = vadd.f32 %v123, %v318
  %v320 = vpop.f32.mrf.mxu0
  %v321 = vadd.f32 %v123, %v320
  %322 = vmatmul.bf16.gmra.mxu0 %v187
  %v323 = vpop.f32.mrf.mxu0
  %v324 = vadd.f32 %v123, %v323
  %v325 = vpop.f32.mrf.mxu0
  %v326 = vadd.f32 %v123, %v325
  %327 = vmatmul.bf16.gmra.mxu0 %v190
  %v328 = vpop.f32.mrf.mxu0
  %v329 = vadd.f32 %v123, %v328
  %v330 = vpop.f32.mrf.mxu0
  %v331 = vadd.f32 %v123, %v330
  %332 = vmatmul.bf16.gmra.mxu0 %v193
  %v333 = vpop.f32.mrf.mxu0
  %v334 = vadd.f32 %v123, %v333
  %v335 = vpop.f32.mrf.mxu0
  %v336 = vadd.f32 %v123, %v335
  %337 = vmatmul.bf16.gmra.mxu0 %v196
  %v338 = vpop.f32.mrf.mxu0
  %v339 = vadd.f32 %v123, %v338
  %v340 = vpop.f32.mrf.mxu0
  %v341 = vadd.f32 %v123, %v340
  %342 = vmatmul.bf16.gmra.mxu0 %v199
  %v343 = vpop.f32.mrf.mxu0
  %v344 = vadd.f32 %v123, %v343
  %v345 = vpop.f32.mrf.mxu0
  %v346 = vadd.f32 %v123, %v345
  %347 = vmatmul.bf16.gmra.mxu0 %v202
  %v348 = vpop.f32.mrf.mxu0
  %v349 = vadd.f32 %v123, %v348
  %v350 = vpop.f32.mrf.mxu0
  %v351 = vadd.f32 %v123, %v350
  %352 = vmatmul.bf16.gmra.mxu0 %v205
  %v353 = vpop.f32.mrf.mxu0
  %v354 = vadd.f32 %v123, %v353
  %v355 = vpop.f32.mrf.mxu0
  %v356 = vadd.f32 %v123, %v355
  %357 = vmatmul.bf16.gmra.mxu0 %v208
  %v358 = vpop.f32.mrf.mxu0
  %v359 = vadd.f32 %v123, %v358
  %v360 = vpop.f32.mrf.mxu0
  %v361 = vadd.f32 %v123, %v360
  %362 = vmatmul.bf16.gmra.mxu0 %v211
  %v363 = vpop.f32.mrf.mxu0
  %v364 = vadd.f32 %v123, %v363
  %v365 = vpop.f32.mrf.mxu0
  %v366 = vadd.f32 %v123, %v365
  %367 = vmatmul.bf16.gmra.mxu0 %v214
  %v368 = vpop.f32.mrf.mxu0
  %v369 = vadd.f32 %v123, %v368
  %v370 = vpop.f32.mrf.mxu0
  %v371 = vadd.f32 %v123, %v370
  %372 = vmatmul.bf16.gmra.mxu0 %v217
  %v373 = vpop.f32.mrf.mxu0
  %v374 = vadd.f32 %v123, %v373
  %v375 = vpop.f32.mrf.mxu0
  %v376 = vadd.f32 %v123, %v375
  %377 = vmatmul.bf16.gmra.mxu0 %v220
  %v378 = vpop.f32.mrf.mxu0
  %v379 = vadd.f32 %v123, %v378
  %v380 = vpop.f32.mrf.mxu0
  %v381 = vadd.f32 %v123, %v380
  %382 = vmatmul.bf16.gmra.mxu0 %v223
  %v383 = vpop.f32.mrf.mxu0
  %v384 = vadd.f32 %v123, %v383
  %v385 = vpop.f32.mrf.mxu0
  %v386 = vadd.f32 %v123, %v385
  %387 = vmatmul.bf16.gmra.mxu0 %v226
  %v388 = vpop.f32.mrf.mxu0
  %v389 = vadd.f32 %v123, %v388
  %v390 = vpop.f32.mrf.mxu0
  %v391 = vadd.f32 %v123, %v390
  %392 = vmatmul.bf16.gmra.mxu0 %v229
  %v393 = vpop.f32.mrf.mxu0
  %v394 = vadd.f32 %v123, %v393
  %v395 = vpop.f32.mrf.mxu0
  %v396 = vadd.f32 %v123, %v395
  %397 = vmatmul.bf16.gmra.mxu0 %v232
  %v398 = vpop.f32.mrf.mxu0
  %v399 = vadd.f32 %v123, %v398
  %v400 = vpop.f32.mrf.mxu0
  %v401 = vadd.f32 %v123, %v400
  %402 = vdwg.mxu0
  %v403 = vld [vmem:[%s3] sm:$0xff]
  %v404 = vld [vmem:[%s3 + $0x8] sm:$0xff]
  %v405 = vld [vmem:[%s3 + $0x10] sm:$0xff]
  %v406 = vld [vmem:[%s3 + $0x18] sm:$0xff]
  %v407 = vld [vmem:[%s3 + $0x20] sm:$0xff]
  %v408 = vld [vmem:[%s3 + $0x28] sm:$0xff]
  %v409 = vld [vmem:[%s3 + $0x30] sm:$0xff]
  %v410 = vld [vmem:[%s3 + $0x38] sm:$0xff]
  %v411 = vld [vmem:[%s3 + $0x40] sm:$0xff]
  %v412 = vld [vmem:[%s3 + $0x48] sm:$0xff]
  %v413 = vld [vmem:[%s3 + $0x50] sm:$0xff]
  %v414 = vld [vmem:[%s3 + $0x58] sm:$0xff]
  %v415 = vld [vmem:[%s3 + $0x60] sm:$0xff]
  %v416 = vld [vmem:[%s3 + $0x68] sm:$0xff]
  %v417 = vld [vmem:[%s3 + $0x70] sm:$0xff]
  %v418 = vld [vmem:[%s3 + $0x78] sm:$0xff]
  %v419 = vld [vmem:[%s3 + $0x80] sm:$0xff]
  %v420 = vld [vmem:[%s3 + $0x88] sm:$0xff]
  %v421 = vld [vmem:[%s3 + $0x90] sm:$0xff]
  %v422 = vld [vmem:[%s3 + $0x98] sm:$0xff]
  %v423 = vld [vmem:[%s3 + $0xa0] sm:$0xff]
  %v424 = vld [vmem:[%s3 + $0xa8] sm:$0xff]
  %v425 = vld [vmem:[%s3 + $0xb0] sm:$0xff]
  %v426 = vld [vmem:[%s3 + $0xb8] sm:$0xff]
  %v427 = vld [vmem:[%s3 + $0xc0] sm:$0xff]
  %v428 = vld [vmem:[%s3 + $0xc8] sm:$0xff]
  %v429 = vld [vmem:[%s3 + $0xd0] sm:$0xff]
  %v430 = vld [vmem:[%s3 + $0xd8] sm:$0xff]
  %v431 = vld [vmem:[%s3 + $0xe0] sm:$0xff]
  %v432 = vld [vmem:[%s3 + $0xe8] sm:$0xff]
  %v433 = vld [vmem:[%s3 + $0xf0] sm:$0xff]
  %v434 = vld [vmem:[%s3 + $0xf8] sm:$0xff]
  %v435 = vld [vmem:[%s3 + $0x100] sm:$0xff]
  %v436 = vld [vmem:[%s3 + $0x108] sm:$0xff]
  %v437 = vld [vmem:[%s3 + $0x110] sm:$0xff]
  %v438 = vld [vmem:[%s3 + $0x118] sm:$0xff]
  %v439 = vld [vmem:[%s3 + $0x120] sm:$0xff]
  %v440 = vld [vmem:[%s3 + $0x128] sm:$0xff]
  %v441 = vld [vmem:[%s3 + $0x130] sm:$0xff]
  %v442 = vld [vmem:[%s3 + $0x138] sm:$0xff]
  %v443 = vld [vmem:[%s3 + $0x140] sm:$0xff]
  %v444 = vld [vmem:[%s3 + $0x148] sm:$0xff]
  %v445 = vld [vmem:[%s3 + $0x150] sm:$0xff]
  %v446 = vld [vmem:[%s3 + $0x158] sm:$0xff]
  %v447 = vld [vmem:[%s3 + $0x160] sm:$0xff]
  %v448 = vld [vmem:[%s3 + $0x168] sm:$0xff]
  %v449 = vld [vmem:[%s3 + $0x170] sm:$0xff]
  %v450 = vld [vmem:[%s3 + $0x178] sm:$0xff]
  %v451 = vld [vmem:[%s3 + $0x180] sm:$0xff]
  %v452 = vld [vmem:[%s3 + $0x188] sm:$0xff]
  %v453 = vld [vmem:[%s3 + $0x190] sm:$0xff]
  %v454 = vld [vmem:[%s3 + $0x198] sm:$0xff]
  %v455 = vld [vmem:[%s3 + $0x1a0] sm:$0xff]
  %v456 = vld [vmem:[%s3 + $0x1a8] sm:$0xff]
  %v457 = vld [vmem:[%s3 + $0x1b0] sm:$0xff]
  %v458 = vld [vmem:[%s3 + $0x1b8] sm:$0xff]
  %v459 = vld [vmem:[%s3 + $0x1c0] sm:$0xff]
  %v460 = vld [vmem:[%s3 + $0x1c8] sm:$0xff]
  %v461 = vld [vmem:[%s3 + $0x1d0] sm:$0xff]
  %v462 = vld [vmem:[%s3 + $0x1d8] sm:$0xff]
  %v463 = vld [vmem:[%s3 + $0x1e0] sm:$0xff]
  %v464 = vld [vmem:[%s3 + $0x1e8] sm:$0xff]
  %v465 = vld [vmem:[%s3 + $0x1f0] sm:$0xff]
  %v466 = vld [vmem:[%s3 + $0x1f8] sm:$0xff]
  %v467 = vadd.f32 %v244, %v403
  %v468 = vadd.f32 %v246, %v404
  %v469 = vadd.f32 %v249, %v405
  %v470 = vadd.f32 %v251, %v406
  %v471 = vadd.f32 %v254, %v407
  %v472 = vadd.f32 %v256, %v408
  %v473 = vadd.f32 %v259, %v409
  %v474 = vadd.f32 %v261, %v410
  %v475 = vadd.f32 %v264, %v411
  %v476 = vadd.f32 %v266, %v412
  %v477 = vadd.f32 %v269, %v413
  %v478 = vadd.f32 %v271, %v414
  %v479 = vadd.f32 %v274, %v415
  %v480 = vadd.f32 %v276, %v416
  %v481 = vadd.f32 %v279, %v417
  %v482 = vadd.f32 %v281, %v418
  %v483 = vadd.f32 %v284, %v419
  %v484 = vadd.f32 %v286, %v420
  %v485 = vadd.f32 %v289, %v421
  %v486 = vadd.f32 %v291, %v422
  %v487 = vadd.f32 %v294, %v423
  %v488 = vadd.f32 %v296, %v424
  %v489 = vadd.f32 %v299, %v425
  %v490 = vadd.f32 %v301, %v426
  %v491 = vadd.f32 %v304, %v427
  %v492 = vadd.f32 %v306, %v428
  %v493 = vadd.f32 %v309, %v429
  %v494 = vadd.f32 %v311, %v430
  %v495 = vadd.f32 %v314, %v431
  %v496 = vadd.f32 %v316, %v432
  %v497 = vadd.f32 %v319, %v433
  %v498 = vadd.f32 %v321, %v434
  %v499 = vadd.f32 %v324, %v435
  %v500 = vadd.f32 %v326, %v436
  %v501 = vadd.f32 %v329, %v437
  %v502 = vadd.f32 %v331, %v438
  %v503 = vadd.f32 %v334, %v439
  %v504 = vadd.f32 %v336, %v440
  %v505 = vadd.f32 %v339, %v441
  %v506 = vadd.f32 %v341, %v442
  %v507 = vadd.f32 %v344, %v443
  %v508 = vadd.f32 %v346, %v444
  %v509 = vadd.f32 %v349, %v445
  %v510 = vadd.f32 %v351, %v446
  %v511 = vadd.f32 %v354, %v447
  %v512 = vadd.f32 %v356, %v448
  %v513 = vadd.f32 %v359, %v449
  %v514 = vadd.f32 %v361, %v450
  %v515 = vadd.f32 %v364, %v451
  %v516 = vadd.f32 %v366, %v452
  %v517 = vadd.f32 %v369, %v453
  %v518 = vadd.f32 %v371, %v454
  %v519 = vadd.f32 %v374, %v455
  %v520 = vadd.f32 %v376, %v456
  %v521 = vadd.f32 %v379, %v457
  %v522 = vadd.f32 %v381, %v458
  %v523 = vadd.f32 %v384, %v459
  %v524 = vadd.f32 %v386, %v460
  %v525 = vadd.f32 %v389, %v461
  %v526 = vadd.f32 %v391, %v462
  %v527 = vadd.f32 %v394, %v463
  %v528 = vadd.f32 %v396, %v464
  %v529 = vadd.f32 %v399, %v465
  %v530 = vadd.f32 %v401, %v466
  %v531 = vld [vmem:[%s4] sm:$0xff]
  %v532 = vld [vmem:[%s4 + $0x8] sm:$0xff]
  %v533 = vld [vmem:[%s4 + $0x10] sm:$0xff]
  %v534 = vld [vmem:[%s4 + $0x18] sm:$0xff]
  %v535 = vld [vmem:[%s4 + $0x20] sm:$0xff]
  %v536 = vld [vmem:[%s4 + $0x28] sm:$0xff]
  %v537 = vld [vmem:[%s4 + $0x30] sm:$0xff]
  %v538 = vld [vmem:[%s4 + $0x38] sm:$0xff]
  %v539 = vld [vmem:[%s4 + $0x40] sm:$0xff]
  %v540 = vld [vmem:[%s4 + $0x48] sm:$0xff]
  %v541 = vld [vmem:[%s4 + $0x50] sm:$0xff]
  %v542 = vld [vmem:[%s4 + $0x58] sm:$0xff]
  %v543 = vld [vmem:[%s4 + $0x60] sm:$0xff]
  %v544 = vld [vmem:[%s4 + $0x68] sm:$0xff]
  %v545 = vld [vmem:[%s4 + $0x70] sm:$0xff]
  %v546 = vld [vmem:[%s4 + $0x78] sm:$0xff]
  %v547 = vld [vmem:[%s4 + $0x80] sm:$0xff]
  %v548 = vld [vmem:[%s4 + $0x88] sm:$0xff]
  %v549 = vld [vmem:[%s4 + $0x90] sm:$0xff]
  %v550 = vld [vmem:[%s4 + $0x98] sm:$0xff]
  %v551 = vld [vmem:[%s4 + $0xa0] sm:$0xff]
  %v552 = vld [vmem:[%s4 + $0xa8] sm:$0xff]
  %v553 = vld [vmem:[%s4 + $0xb0] sm:$0xff]
  %v554 = vld [vmem:[%s4 + $0xb8] sm:$0xff]
  %v555 = vld [vmem:[%s4 + $0xc0] sm:$0xff]
  %v556 = vld [vmem:[%s4 + $0xc8] sm:$0xff]
  %v557 = vld [vmem:[%s4 + $0xd0] sm:$0xff]
  %v558 = vld [vmem:[%s4 + $0xd8] sm:$0xff]
  %v559 = vld [vmem:[%s4 + $0xe0] sm:$0xff]
  %v560 = vld [vmem:[%s4 + $0xe8] sm:$0xff]
  %v561 = vld [vmem:[%s4 + $0xf0] sm:$0xff]
  %v562 = vld [vmem:[%s4 + $0xf8] sm:$0xff]
  %v563 = vld [vmem:[%s4 + $0x100] sm:$0xff]
  %v564 = vld [vmem:[%s4 + $0x108] sm:$0xff]
  %v565 = vld [vmem:[%s4 + $0x110] sm:$0xff]
  %v566 = vld [vmem:[%s4 + $0x118] sm:$0xff]
  %v567 = vld [vmem:[%s4 + $0x120] sm:$0xff]
  %v568 = vld [vmem:[%s4 + $0x128] sm:$0xff]
  %v569 = vld [vmem:[%s4 + $0x130] sm:$0xff]
  %v570 = vld [vmem:[%s4 + $0x138] sm:$0xff]
  %v571 = vld [vmem:[%s4 + $0x140] sm:$0xff]
  %v572 = vld [vmem:[%s4 + $0x148] sm:$0xff]
  %v573 = vld [vmem:[%s4 + $0x150] sm:$0xff]
  %v574 = vld [vmem:[%s4 + $0x158] sm:$0xff]
  %v575 = vld [vmem:[%s4 + $0x160] sm:$0xff]
  %v576 = vld [vmem:[%s4 + $0x168] sm:$0xff]
  %v577 = vld [vmem:[%s4 + $0x170] sm:$0xff]
  %v578 = vld [vmem:[%s4 + $0x178] sm:$0xff]
  %v579 = vld [vmem:[%s4 + $0x180] sm:$0xff]
  %v580 = vld [vmem:[%s4 + $0x188] sm:$0xff]
  %v581 = vld [vmem:[%s4 + $0x190] sm:$0xff]
  %v582 = vld [vmem:[%s4 + $0x198] sm:$0xff]
  %v583 = vld [vmem:[%s4 + $0x1a0] sm:$0xff]
  %v584 = vld [vmem:[%s4 + $0x1a8] sm:$0xff]
  %v585 = vld [vmem:[%s4 + $0x1b0] sm:$0xff]
  %v586 = vld [vmem:[%s4 + $0x1b8] sm:$0xff]
  %v587 = vld [vmem:[%s4 + $0x1c0] sm:$0xff]
  %v588 = vld [vmem:[%s4 + $0x1c8] sm:$0xff]
  %v589 = vld [vmem:[%s4 + $0x1d0] sm:$0xff]
  %v590 = vld [vmem:[%s4 + $0x1d8] sm:$0xff]
  %v591 = vld [vmem:[%s4 + $0x1e0] sm:$0xff]
  %v592 = vld [vmem:[%s4 + $0x1e8] sm:$0xff]
  %v593 = vld [vmem:[%s4 + $0x1f0] sm:$0xff]
  %v594 = vld [vmem:[%s4 + $0x1f8] sm:$0xff]
  %v595 = vadd.f32 %v467, %v531
  %v596 = vadd.f32 %v468, %v532
  %v597 = vadd.f32 %v469, %v533
  %v598 = vadd.f32 %v470, %v534
  %v599 = vadd.f32 %v471, %v535
  %v600 = vadd.f32 %v472, %v536
  %v601 = vadd.f32 %v473, %v537
  %v602 = vadd.f32 %v474, %v538
  %v603 = vadd.f32 %v475, %v539
  %v604 = vadd.f32 %v476, %v540
  %v605 = vadd.f32 %v477, %v541
  %v606 = vadd.f32 %v478, %v542
  %v607 = vadd.f32 %v479, %v543
  %v608 = vadd.f32 %v480, %v544
  %v609 = vadd.f32 %v481, %v545
  %v610 = vadd.f32 %v482, %v546
  %v611 = vadd.f32 %v483, %v547
  %v612 = vadd.f32 %v484, %v548
  %v613 = vadd.f32 %v485, %v549
  %v614 = vadd.f32 %v486, %v550
  %v615 = vadd.f32 %v487, %v551
  %v616 = vadd.f32 %v488, %v552
  %v617 = vadd.f32 %v489, %v553
  %v618 = vadd.f32 %v490, %v554
  %v619 = vadd.f32 %v491, %v555
  %v620 = vadd.f32 %v492, %v556
  %v621 = vadd.f32 %v493, %v557
  %v622 = vadd.f32 %v494, %v558
  %v623 = vadd.f32 %v495, %v559
  %v624 = vadd.f32 %v496, %v560
  %v625 = vadd.f32 %v497, %v561
  %v626 = vadd.f32 %v498, %v562
  %v627 = vadd.f32 %v499, %v563
  %v628 = vadd.f32 %v500, %v564
  %v629 = vadd.f32 %v501, %v565
  %v630 = vadd.f32 %v502, %v566
  %v631 = vadd.f32 %v503, %v567
  %v632 = vadd.f32 %v504, %v568
  %v633 = vadd.f32 %v505, %v569
  %v634 = vadd.f32 %v506, %v570
  %v635 = vadd.f32 %v507, %v571
  %v636 = vadd.f32 %v508, %v572
  %v637 = vadd.f32 %v509, %v573
  %v638 = vadd.f32 %v510, %v574
  %v639 = vadd.f32 %v511, %v575
  %v640 = vadd.f32 %v512, %v576
  %v641 = vadd.f32 %v513, %v577
  %v642 = vadd.f32 %v514, %v578
  %v643 = vadd.f32 %v515, %v579
  %v644 = vadd.f32 %v516, %v580
  %v645 = vadd.f32 %v517, %v581
  %v646 = vadd.f32 %v518, %v582
  %v647 = vadd.f32 %v519, %v583
  %v648 = vadd.f32 %v520, %v584
  %v649 = vadd.f32 %v521, %v585
  %v650 = vadd.f32 %v522, %v586
  %v651 = vadd.f32 %v523, %v587
  %v652 = vadd.f32 %v524, %v588
  %v653 = vadd.f32 %v525, %v589
  %v654 = vadd.f32 %v526, %v590
  %v655 = vadd.f32 %v527, %v591
  %v656 = vadd.f32 %v528, %v592
  %v657 = vadd.f32 %v529, %v593
  %v658 = vadd.f32 %v530, %v594
  %v659 = vmax.f32 %v595, 0.0
  %v660 = vmax.f32 %v596, 0.0
  %v661 = vmax.f32 %v597, 0.0
  %v662 = vmax.f32 %v598, 0.0
  %v663 = vmax.f32 %v599, 0.0
  %v664 = vmax.f32 %v600, 0.0
  %v665 = vmax.f32 %v601, 0.0
  %v666 = vmax.f32 %v602, 0.0
  %v667 = vmax.f32 %v603, 0.0
  %v668 = vmax.f32 %v604, 0.0
  %v669 = vmax.f32 %v605, 0.0
  %v670 = vmax.f32 %v606, 0.0
  %v671 = vmax.f32 %v607, 0.0
  %v672 = vmax.f32 %v608, 0.0
  %v673 = vmax.f32 %v609, 0.0
  %v674 = vmax.f32 %v610, 0.0
  %v675 = vmax.f32 %v611, 0.0
  %v676 = vmax.f32 %v612, 0.0
  %v677 = vmax.f32 %v613, 0.0
  %v678 = vmax.f32 %v614, 0.0
  %v679 = vmax.f32 %v615, 0.0
  %v680 = vmax.f32 %v616, 0.0
  %v681 = vmax.f32 %v617, 0.0
  %v682 = vmax.f32 %v618, 0.0
  %v683 = vmax.f32 %v619, 0.0
  %v684 = vmax.f32 %v620, 0.0
  %v685 = vmax.f32 %v621, 0.0
  %v686 = vmax.f32 %v622, 0.0
  %v687 = vmax.f32 %v623, 0.0
  %v688 = vmax.f32 %v624, 0.0
  %v689 = vmax.f32 %v625, 0.0
  %v690 = vmax.f32 %v626, 0.0
  %v691 = vmax.f32 %v627, 0.0
  %v692 = vmax.f32 %v628, 0.0
  %v693 = vmax.f32 %v629, 0.0
  %v694 = vmax.f32 %v630, 0.0
  %v695 = vmax.f32 %v631, 0.0
  %v696 = vmax.f32 %v632, 0.0
  %v697 = vmax.f32 %v633, 0.0
  %v698 = vmax.f32 %v634, 0.0
  %v699 = vmax.f32 %v635, 0.0
  %v700 = vmax.f32 %v636, 0.0
  %v701 = vmax.f32 %v637, 0.0
  %v702 = vmax.f32 %v638, 0.0
  %v703 = vmax.f32 %v639, 0.0
  %v704 = vmax.f32 %v640, 0.0
  %v705 = vmax.f32 %v641, 0.0
  %v706 = vmax.f32 %v642, 0.0
  %v707 = vmax.f32 %v643, 0.0
  %v708 = vmax.f32 %v644, 0.0
  %v709 = vmax.f32 %v645, 0.0
  %v710 = vmax.f32 %v646, 0.0
  %v711 = vmax.f32 %v647, 0.0
  %v712 = vmax.f32 %v648, 0.0
  %v713 = vmax.f32 %v649, 0.0
  %v714 = vmax.f32 %v650, 0.0
  %v715 = vmax.f32 %v651, 0.0
  %v716 = vmax.f32 %v652, 0.0
  %v717 = vmax.f32 %v653, 0.0
  %v718 = vmax.f32 %v654, 0.0
  %v719 = vmax.f32 %v655, 0.0
  %v720 = vmax.f32 %v656, 0.0
  %v721 = vmax.f32 %v657, 0.0
  %v722 = vmax.f32 %v658, 0.0
  %vm723 = vcmask 130048
  %724 = vst.msk [vmem:[%s5] sm:$0xff] %vm723, %v659
  %725 = vst.msk [vmem:[%s5 + $0x8] sm:$0xff] %vm723, %v660
  %726 = vst.msk [vmem:[%s5 + $0x10] sm:$0xff] %vm723, %v661
  %727 = vst.msk [vmem:[%s5 + $0x18] sm:$0xff] %vm723, %v662
  %728 = vst.msk [vmem:[%s5 + $0x20] sm:$0xff] %vm723, %v663
  %729 = vst.msk [vmem:[%s5 + $0x28] sm:$0xff] %vm723, %v664
  %730 = vst.msk [vmem:[%s5 + $0x30] sm:$0xff] %vm723, %v665
  %731 = vst.msk [vmem:[%s5 + $0x38] sm:$0xff] %vm723, %v666
  %732 = vst.msk [vmem:[%s5 + $0x40] sm:$0xff] %vm723, %v667
  %733 = vst.msk [vmem:[%s5 + $0x48] sm:$0xff] %vm723, %v668
  %734 = vst.msk [vmem:[%s5 + $0x50] sm:$0xff] %vm723, %v669
  %735 = vst.msk [vmem:[%s5 + $0x58] sm:$0xff] %vm723, %v670
  %736 = vst.msk [vmem:[%s5 + $0x60] sm:$0xff] %vm723, %v671
  %737 = vst.msk [vmem:[%s5 + $0x68] sm:$0xff] %vm723, %v672
  %738 = vst.msk [vmem:[%s5 + $0x70] sm:$0xff] %vm723, %v673
  %739 = vst.msk [vmem:[%s5 + $0x78] sm:$0xff] %vm723, %v674
  %740 = vst.msk [vmem:[%s5 + $0x80] sm:$0xff] %vm723, %v675
  %741 = vst.msk [vmem:[%s5 + $0x88] sm:$0xff] %vm723, %v676
  %742 = vst.msk [vmem:[%s5 + $0x90] sm:$0xff] %vm723, %v677
  %743 = vst.msk [vmem:[%s5 + $0x98] sm:$0xff] %vm723, %v678
  %744 = vst.msk [vmem:[%s5 + $0xa0] sm:$0xff] %vm723, %v679
  %745 = vst.msk [vmem:[%s5 + $0xa8] sm:$0xff] %vm723, %v680
  %746 = vst.msk [vmem:[%s5 + $0xb0] sm:$0xff] %vm723, %v681
  %747 = vst.msk [vmem:[%s5 + $0xb8] sm:$0xff] %vm723, %v682
  %748 = vst.msk [vmem:[%s5 + $0xc0] sm:$0xff] %vm723, %v683
  %749 = vst.msk [vmem:[%s5 + $0xc8] sm:$0xff] %vm723, %v684
  %750 = vst.msk [vmem:[%s5 + $0xd0] sm:$0xff] %vm723, %v685
  %751 = vst.msk [vmem:[%s5 + $0xd8] sm:$0xff] %vm723, %v686
  %752 = vst.msk [vmem:[%s5 + $0xe0] sm:$0xff] %vm723, %v687
  %753 = vst.msk [vmem:[%s5 + $0xe8] sm:$0xff] %vm723, %v688
  %754 = vst.msk [vmem:[%s5 + $0xf0] sm:$0xff] %vm723, %v689
  %755 = vst.msk [vmem:[%s5 + $0xf8] sm:$0xff] %vm723, %v690
  %756 = vst.msk [vmem:[%s5 + $0x100] sm:$0xff] %vm723, %v691
  %757 = vst.msk [vmem:[%s5 + $0x108] sm:$0xff] %vm723, %v692
  %758 = vst.msk [vmem:[%s5 + $0x110] sm:$0xff] %vm723, %v693
  %759 = vst.msk [vmem:[%s5 + $0x118] sm:$0xff] %vm723, %v694
  %760 = vst.msk [vmem:[%s5 + $0x120] sm:$0xff] %vm723, %v695
  %761 = vst.msk [vmem:[%s5 + $0x128] sm:$0xff] %vm723, %v696
  %762 = vst.msk [vmem:[%s5 + $0x130] sm:$0xff] %vm723, %v697
  %763 = vst.msk [vmem:[%s5 + $0x138] sm:$0xff] %vm723, %v698
  %764 = vst.msk [vmem:[%s5 + $0x140] sm:$0xff] %vm723, %v699
  %765 = vst.msk [vmem:[%s5 + $0x148] sm:$0xff] %vm723, %v700
  %766 = vst.msk [vmem:[%s5 + $0x150] sm:$0xff] %vm723, %v701
  %767 = vst.msk [vmem:[%s5 + $0x158] sm:$0xff] %vm723, %v702
  %768 = vst.msk [vmem:[%s5 + $0x160] sm:$0xff] %vm723, %v703
  %769 = vst.msk [vmem:[%s5 + $0x168] sm:$0xff] %vm723, %v704
  %770 = vst.msk [vmem:[%s5 + $0x170] sm:$0xff] %vm723, %v705
  %771 = vst.msk [vmem:[%s5 + $0x178] sm:$0xff] %vm723, %v706
  %772 = vst.msk [vmem:[%s5 + $0x180] sm:$0xff] %vm723, %v707
  %773 = vst.msk [vmem:[%s5 + $0x188] sm:$0xff] %vm723, %v708
  %774 = vst.msk [vmem:[%s5 + $0x190] sm:$0xff] %vm723, %v709
  %775 = vst.msk [vmem:[%s5 + $0x198] sm:$0xff] %vm723, %v710
  %776 = vst.msk [vmem:[%s5 + $0x1a0] sm:$0xff] %vm723, %v711
  %777 = vst.msk [vmem:[%s5 + $0x1a8] sm:$0xff] %vm723, %v712
  %778 = vst.msk [vmem:[%s5 + $0x1b0] sm:$0xff] %vm723, %v713
  %779 = vst.msk [vmem:[%s5 + $0x1b8] sm:$0xff] %vm723, %v714
  %780 = vst.msk [vmem:[%s5 + $0x1c0] sm:$0xff] %vm723, %v715
  %781 = vst.msk [vmem:[%s5 + $0x1c8] sm:$0xff] %vm723, %v716
  %782 = vst.msk [vmem:[%s5 + $0x1d0] sm:$0xff] %vm723, %v717
  %783 = vst.msk [vmem:[%s5 + $0x1d8] sm:$0xff] %vm723, %v718
  %784 = vst.msk [vmem:[%s5 + $0x1e0] sm:$0xff] %vm723, %v719
  %785 = vst.msk [vmem:[%s5 + $0x1e8] sm:$0xff] %vm723, %v720
  %786 = vst.msk [vmem:[%s5 + $0x1f0] sm:$0xff] %vm723, %v721
  %787 = vst.msk [vmem:[%s5 + $0x1f8] sm:$0xff] %vm723, %v722
  // Predicated region
  $region22: #{hourglass2d_forward.39} parent=0 // pred_check
    _
  $region23: #{hourglass2d_forward.39} parent=0 // pred_check_branch
    %789 = sbr.rel (0) target = $region25
  $region24: #{hourglass2d_forward.39} parent=0 // pred_region
    _
  $region25: #{hourglass2d_forward.39} parent=0 // pred_fallthru
    _
  // Predicated region
  $region26: #{hourglass2d_forward.39} parent=0 // pred_check
    _
  $region27: #{hourglass2d_forward.39} parent=0 // pred_check_branch
    %791 = sbr.rel (0) target = $region29
  $region28: #{hourglass2d_forward.39} parent=0 // pred_region
    _
  $region29: #{hourglass2d_forward.39} parent=0 // pred_fallthru
    _

// kernel: hourglass2d_forward.38
$region0: #{hourglass2d_forward.38}
  #allocation0 [shape = 'u32[]', space=smem, size = 0x4, offset = 0x4, fixed_abs, tag = 'smem constant byte address 0x4 - core index']
  #allocation1 [shape = 'u32[72,128]{1,0:T(1,128)}', space=vmem, size = 0x9000, scoped, tag = 'internal scratch']
  %s0 = inlined_call_operand.vmem [shape: f32[2,18,18,32], index: 0, kind: input, shape index: {}]
  %s1 = inlined_call_operand.vmem [shape: f32[9,32], index: 1, kind: input, shape index: {}]
  %s2 = inlined_call_operand.vmem [shape: f32[1,32], index: 2, kind: input, shape index: {}]
  %s3 = inlined_call_operand.vmem [shape: f32[2,16,16,32], index: 3, kind: output, shape index: {}]
  %s4 = sld [smem:[#allocation0]]
  $region45: #{hourglass2d_forward.38} parent=0
    _
  %s6 = ssub.s32 1, %s4
  %s7 = scalar_select 0, %s6, %s4
  loop: start=0, step=1, limit=4
  $region2: #{hourglass2d_forward.38} parent=0 // loop_pre_header
    _
  $region3: #{hourglass2d_forward.38} parent=0 // loop_header
    %s9 = sphi 0, %s13
    %p10 = scmp.ge.s32.totalorder %s9, 4
    %s16 = sphi 0, %s28
    %s17 = sphi 0, %s24
    %s18 = sphi 0, %s16
    %s19 = sphi 0, %s17
    %s20 = sphi 0, %s18
    %s21 = sphi 0, %s19
    %s33 = sphi 0, %s35
    %s36 = sphi 0, %s33
    %s37 = sphi 0, %s36
    %s53 = sphi 0, %s37
    %s59 = sphi 0, %s61
    %s62 = sphi 0, %s59
    %s63 = sphi 0, %s62
    %s79 = sphi 0, %s63
    %s85 = sphi 0, %s87
    %s88 = sphi 0, %s85
    %s89 = sphi 0, %s88
    %s105 = sphi 0, %s89
    %s113 = sphi 0, %s115
    %s116 = sphi 0, %s113
    %s117 = sphi 0, %s116
    %s133 = sphi 0, %s117
  $region4: #{hourglass2d_forward.38} parent=0 // loop_header_branch
    %12 = sbr.rel (%p10) target = $region8
  $region5: #{hourglass2d_forward.38} parent=0 // loop_body
    %s14 = ssub.s32 %s9, 1
    %s15 = ssub.s32 %s9, 2
    %s22 = sadd.s32 1, %s17
    %p23 = scmp.ge.s32.totalorder %s22, 1
    %s24 = scalar_select %p23, 0, %s22
    %s25 = sadd.s32 1, %s16
    %s26 = scalar_select %p23, %s25, %s16
    %p27 = scmp.ge.s32.totalorder %s26, 2
    %s28 = scalar_select %p27, 0, %s26
    %s29 = ssub.s32 %s16, %s28
    %s30 = ssub.s32 %s17, %s24
    %s31 = sor.u32 %s29, %s30
    %p32 = scmp.eq.s32.totalorder %s31, 0
    %s34 = sadd.s32 %s33, 1
    %s35 = scalar_select %p32, %s33, %s34
    %p38 = pneg %p32
    %p39 = scmp.eq.s32.totalorder %s9, 1
    %p40 = por %p38, %p39
    %p41 = scmp.ne.s32.totalorder %s33, %s36
    %p42 = scmp.eq.s32.totalorder %s9, 0
    %p43 = por %p41, %p42
    %p44 = scmp.ne.s32.totalorder %s33, %s36
    %p45 = scmp.eq.s32.totalorder %s14, 1
    %p46 = por %p44, %p45
    %p47 = scmp.ne.s32.totalorder %s36, %s37
    %p48 = scmp.eq.s32.totalorder %s14, 0
    %p49 = por %p47, %p48
    %p50 = scmp.ne.s32.totalorder %s36, %s37
    %p51 = scmp.eq.s32.totalorder %s15, 1
    %p52 = por %p50, %p51
    %p54 = scmp.ne.s32.totalorder %s37, %s53
    %p55 = scmp.eq.s32.totalorder %s15, 0
    %p56 = por %p54, %p55
    %s57 = ssub.s32 %s17, %s24
    %p58 = scmp.eq.s32.totalorder %s57, 0
    %s60 = sadd.s32 %s59, 1
    %s61 = scalar_select %p58, %s59, %s60
    %p64 = pneg %p58
    %p65 = scmp.eq.s32.totalorder %s9, 1
    %p66 = por %p64, %p65
    %p67 = scmp.ne.s32.totalorder %s59, %s62
    %p68 = scmp.eq.s32.totalorder %s9, 0
    %p69 = por %p67, %p68
    %p70 = scmp.ne.s32.totalorder %s59, %s62
    %p71 = scmp.eq.s32.totalorder %s14, 1
    %p72 = por %p70, %p71
    %p73 = scmp.ne.s32.totalorder %s62, %s63
    %p74 = scmp.eq.s32.totalorder %s14, 0
    %p75 = por %p73, %p74
    %p76 = scmp.ne.s32.totalorder %s62, %s63
    %p77 = scmp.eq.s32.totalorder %s15, 1
    %p78 = por %p76, %p77
    %p80 = scmp.ne.s32.totalorder %s63, %s79
    %p81 = scmp.eq.s32.totalorder %s15, 0
    %p82 = por %p80, %p81
    %s83 = ssub.s32 %s17, %s24
    %p84 = scmp.eq.s32.totalorder %s83, 0
    %s86 = sadd.s32 %s85, 1
    %s87 = scalar_select %p84, %s85, %s86
    %p90 = pneg %p84
    %p91 = scmp.eq.s32.totalorder %s9, 1
    %p92 = por %p90, %p91
    %p93 = scmp.ne.s32.totalorder %s85, %s88
    %p94 = scmp.eq.s32.totalorder %s9, 0
    %p95 = por %p93, %p94
    %p96 = scmp.ne.s32.totalorder %s85, %s88
    %p97 = scmp.eq.s32.totalorder %s14, 1
    %p98 = por %p96, %p97
    %p99 = scmp.ne.s32.totalorder %s88, %s89
    %p100 = scmp.eq.s32.totalorder %s14, 0
    %p101 = por %p99, %p100
    %p102 = scmp.ne.s32.totalorder %s88, %s89
    %p103 = scmp.eq.s32.totalorder %s15, 1
    %p104 = por %p102, %p103
    %p106 = scmp.ne.s32.totalorder %s89, %s105
    %p107 = scmp.eq.s32.totalorder %s15, 0
    %p108 = por %p106, %p107
    %s109 = ssub.s32 %s16, %s28
    %s110 = ssub.s32 %s17, %s24
    %s111 = sor.u32 %s109, %s110
    %p112 = scmp.eq.s32.totalorder %s111, 0
    %s114 = sadd.s32 %s113, 1
    %s115 = scalar_select %p112, %s113, %s114
    %p118 = pneg %p112
    %p119 = scmp.eq.s32.totalorder %s9, 1
    %p120 = por %p118, %p119
    %p121 = scmp.ne.s32.totalorder %s113, %s116
    %p122 = scmp.eq.s32.totalorder %s9, 0
    %p123 = por %p121, %p122
    %p124 = scmp.ne.s32.totalorder %s113, %s116
    %p125 = scmp.eq.s32.totalorder %s14, 1
    %p126 = por %p124, %p125
    %p127 = scmp.ne.s32.totalorder %s116, %s117
    %p128 = scmp.eq.s32.totalorder %s14, 0
    %p129 = por %p127, %p128
    %p130 = scmp.ne.s32.totalorder %s116, %s117
    %p131 = scmp.eq.s32.totalorder %s15, 1
    %p132 = por %p130, %p131
    %p134 = scmp.ne.s32.totalorder %s117, %s133
    %p135 = scmp.eq.s32.totalorder %s15, 0
    %p136 = por %p134, %p135
    %p137 = scmp.le.s32.totalorder 1, %s9
    %p138 = scmp.lt.s32.totalorder %s9, 3
    %p139 = pnand %p137, %p138
    %p140 = pneg %p139
    // Predicated region
    $region9: #{hourglass2d_forward.38} parent=5 // pred_check
      _
    $region10: #{hourglass2d_forward.38} parent=5 // pred_check_branch
      %142 = sbr.rel (%p139) target = $region12
    $region11: #{hourglass2d_forward.38} parent=5 // pred_region
      %s143 = ssub.s32 %s9, 1
      // Predicated region
      $region13: #{hourglass2d_forward.38} parent=11 // pred_check
        %p144 = pneg %p75
      $region14: #{hourglass2d_forward.38} parent=11 // pred_check_branch
        %146 = sbr.rel (%p144) target = $region16
      $region15: #{hourglass2d_forward.38} parent=11 // pred_region
        %p147 = scmp.lt.s32.totalorder %s19, 0
        %s148 = scalar_select %p147, %s19, 0
        %s149 = smul.addr %s148, 8
        %s150 = scalar_lea.vmem %s1, %s149
      $region16: #{hourglass2d_forward.38} parent=11 // pred_fallthru
        _
      // Predicated region
      $region17: #{hourglass2d_forward.38} parent=11 // pred_check
        %p151 = pneg %p101
      $region18: #{hourglass2d_forward.38} parent=11 // pred_check_branch
        %153 = sbr.rel (%p151) target = $region20
      $region19: #{hourglass2d_forward.38} parent=11 // pred_region
        %p154 = scmp.lt.s32.totalorder %s19, 0
        %s155 = scalar_select %p154, %s19, 0
        %s156 = scalar_lea.vmem %s2, %s155
      $region20: #{hourglass2d_forward.38} parent=11 // pred_fallthru
        _
    $region12: #{hourglass2d_forward.38} parent=5 // pred_fallthru
      _
    %p157 = scmp.lt.s32.totalorder %s9, 2
    // Predicated region
    $region21: #{hourglass2d_forward.38} parent=5 // pred_check
      %p158 = pneg %p157
    $region22: #{hourglass2d_forward.38} parent=5 // pred_check_branch
      %160 = sbr.rel (%p158) target = $region24
    $region23: #{hourglass2d_forward.38} parent=5 // pred_region
      // Predicated region
      $region25: #{hourglass2d_forward.38} parent=23 // pred_check
        %p161 = pneg %p43
      $region26: #{hourglass2d_forward.38} parent=23 // pred_check_branch
        %163 = sbr.rel (%p161) target = $region28
      $region27: #{hourglass2d_forward.38} parent=23 // pred_region
        %p164 = scmp.lt.s32.totalorder %s16, 1
        %s165 = scalar_select %p164, %s16, 1
        %p166 = scmp.lt.s32.totalorder %s17, 0
        %s167 = scalar_select %p166, %s17, 0
        %s168 = smul.addr %s165, 54
        %s169 = sadd.s32 %s167, %s168
        %s170 = smul.addr %s169, 8
        %s171 = scalar_lea.vmem %s0, %s170
      $region28: #{hourglass2d_forward.38} parent=23 // pred_fallthru
        _
    $region24: #{hourglass2d_forward.38} parent=5 // pred_fallthru
      _
    %p172 = scmp.le.s32.totalorder 1, %s9
    %p173 = scmp.lt.s32.totalorder %s9, 3
    %p174 = pnand %p172, %p173
    %p175 = pneg %p174
    // Predicated region
    $region29: #{hourglass2d_forward.38} parent=5 // pred_check
      _
    $region30: #{hourglass2d_forward.38} parent=5 // pred_check_branch
      %177 = sbr.rel (%p174) target = $region32
    $region31: #{hourglass2d_forward.38} parent=5 // pred_region
      %s178 = ssub.s32 %s9, 1
      %p179 = scmp.lt.s32.totalorder %s18, 1
      %s180 = scalar_select %p179, %s18, 1
      %p181 = scmp.lt.s32.totalorder %s19, 0
      %s182 = scalar_select %p181, %s19, 0
      %s183 = smul.addr %s180, 54
      %s184 = sadd.s32 %s182, %s183
      %s185 = smul.addr %s184, 8
      %s186 = scalar_lea.vmem %s0, %s185
      %p187 = pneg %p49
      %p188 = pneg %p46
      %p189 = scmp.lt.s32.totalorder %s19, 0
      %s190 = scalar_select %p189, %s19, 0
      %s191 = smul.addr %s190, 8
      %s192 = scalar_lea.vmem %s1, %s191
      %p193 = pneg %p75
      %p194 = pneg %p72
      %p195 = scmp.lt.s32.totalorder %s19, 0
      %s196 = scalar_select %p195, %s19, 0
      %s197 = scalar_lea.vmem %s2, %s196
      %p198 = pneg %p101
      %p199 = pneg %p98
      %p200 = pneg %p129
      %p201 = pneg %p126
      %p202 = scmp.lt.s32.totalorder %s18, 1
      %s203 = scalar_select %p202, %s18, 1
      %p204 = scmp.lt.s32.totalorder %s19, 0
      %s205 = scalar_select %p204, %s19, 0
      %s206 = smul.addr %s203, 32
      %s207 = sadd.s32 %s205, %s206
      %s208 = smul.addr %s207, 8
      %s209 = scalar_lea.vmem %s3, %s208
      %p210 = scmp.lt.s32.totalorder %s18, 1
      %s211 = scalar_select %p210, %s18, 1
      %p212 = scmp.lt.s32.totalorder %s19, 0
      %s213 = scalar_select %p212, %s19, 0
      %s214 = smul.addr %s211, 54
      %s215 = sadd.s32 %s213, %s214
      %s216 = smul.addr %s215, 8
      %s217 = scalar_lea.vmem %s0, %s216
      %p218 = scmp.lt.s32.totalorder %s19, 0
      %s219 = scalar_select %p218, %s19, 0
      %s220 = smul.addr %s219, 8
      %s221 = scalar_lea.vmem %s1, %s220
      %p222 = scmp.lt.s32.totalorder %s19, 0
      %s223 = scalar_select %p222, %s19, 0
      %s224 = scalar_lea.vmem %s2, %s223
      %p225 = scmp.lt.s32.totalorder %s18, 1
      %s226 = scalar_select %p225, %s18, 1
      %p227 = scmp.lt.s32.totalorder %s19, 0
      %s228 = scalar_select %p227, %s19, 0
      %s229 = smul.addr %s226, 32
      %s230 = sadd.s32 %s228, %s229
      %s231 = smul.addr %s230, 8
      %s232 = scalar_lea.vmem %s3, %s231
      %v233 = vld [vmem:[%s217] sm:$0xff]
      %v234 = vld [vmem:[%s217 + $0x8] sm:$0xff]
      %v235 = vld [vmem:[%s217 + $0x18] sm:$0xff]
      %v236 = vld [vmem:[%s217 + $0x20] sm:$0xff]
      %v237 = vld [vmem:[%s217 + $0x30] sm:$0xff]
      %v238 = vld [vmem:[%s217 + $0x38] sm:$0xff]
      %v239 = vld [vmem:[%s217 + $0x48] sm:$0xff]
      %v240 = vld [vmem:[%s217 + $0x50] sm:$0xff]
      %v241 = vld [vmem:[%s217 + $0x60] sm:$0xff]
      %v242 = vld [vmem:[%s217 + $0x68] sm:$0xff]
      %v243 = vld [vmem:[%s217 + $0x78] sm:$0xff]
      %v244 = vld [vmem:[%s217 + $0x80] sm:$0xff]
      %v245 = vld [vmem:[%s217 + $0x90] sm:$0xff]
      %v246 = vld [vmem:[%s217 + $0x98] sm:$0xff]
      %v247 = vld [vmem:[%s217 + $0xa8] sm:$0xff]
      %v248 = vld [vmem:[%s217 + $0xb0] sm:$0xff]
      %v249 = vld [vmem:[%s217 + $0xc0] sm:$0xff]
      %v250 = vld [vmem:[%s217 + $0xc8] sm:$0xff]
      %v251 = vld [vmem:[%s217 + $0xd8] sm:$0xff]
      %v252 = vld [vmem:[%s217 + $0xe0] sm:$0xff]
      %v253 = vld [vmem:[%s217 + $0xf0] sm:$0xff]
      %v254 = vld [vmem:[%s217 + $0xf8] sm:$0xff]
      %v255 = vld [vmem:[%s217 + $0x108] sm:$0xff]
      %v256 = vld [vmem:[%s217 + $0x110] sm:$0xff]
      %v257 = vld [vmem:[%s217 + $0x120] sm:$0xff]
      %v258 = vld [vmem:[%s217 + $0x128] sm:$0xff]
      %v259 = vld [vmem:[%s217 + $0x138] sm:$0xff]
      %v260 = vld [vmem:[%s217 + $0x140] sm:$0xff]
      %v261 = vld [vmem:[%s217 + $0x150] sm:$0xff]
      %v262 = vld [vmem:[%s217 + $0x158] sm:$0xff]
      %v263 = vld [vmem:[%s217 + $0x168] sm:$0xff]
      %v264 = vld [vmem:[%s217 + $0x170] sm:$0xff]
      %v265 = vld [vmem:[%s221] sm:$0x1]
      %v266 = vperm.slane %v265, 0
      %v267 = vmul.f32 %v233, %v266
      %v268 = vmul.f32 %v234, %v266
      %v269 = vmul.f32 %v235, %v266
      %v270 = vmul.f32 %v236, %v266
      %v271 = vmul.f32 %v237, %v266
      %v272 = vmul.f32 %v238, %v266
      %v273 = vmul.f32 %v239, %v266
      %v274 = vmul.f32 %v240, %v266
      %v275 = vmul.f32 %v241, %v266
      %v276 = vmul.f32 %v242, %v266
      %v277 = vmul.f32 %v243, %v266
      %v278 = vmul.f32 %v244, %v266
      %v279 = vmul.f32 %v245, %v266
      %v280 = vmul.f32 %v246, %v266
      %v281 = vmul.f32 %v247, %v266
      %v282 = vmul.f32 %v248, %v266
      %v283 = vmul.f32 %v249, %v266
      %v284 = vmul.f32 %v250, %v266
      %v285 = vmul.f32 %v251, %v266
      %v286 = vmul.f32 %v252, %v266
      %v287 = vmul.f32 %v253, %v266
      %v288 = vmul.f32 %v254, %v266
      %v289 = vmul.f32 %v255, %v266
      %v290 = vmul.f32 %v256, %v266
      %v291 = vmul.f32 %v257, %v266
      %v292 = vmul.f32 %v258, %v266
      %v293 = vmul.f32 %v259, %v266
      %v294 = vmul.f32 %v260, %v266
      %v295 = vmul.f32 %v261, %v266
      %v296 = vmul.f32 %v262, %v266
      %v297 = vmul.f32 %v263, %v266
      %v298 = vmul.f32 %v264, %v266
      %v299 = vld [vmem:[%s217 + $0x1] sm:$0xff]
      %v300 = vld [vmem:[%s217 + $0x9] sm:$0xff]
      %v301 = vld [vmem:[%s217 + $0x19] sm:$0xff]
      %v302 = vld [vmem:[%s217 + $0x21] sm:$0xff]
      %v303 = vld [vmem:[%s217 + $0x31] sm:$0xff]
      %v304 = vld [vmem:[%s217 + $0x39] sm:$0xff]
      %v305 = vld [vmem:[%s217 + $0x49] sm:$0xff]
      %v306 = vld [vmem:[%s217 + $0x51] sm:$0xff]
      %v307 = vld [vmem:[%s217 + $0x61] sm:$0xff]
      %v308 = vld [vmem:[%s217 + $0x69] sm:$0xff]
      %v309 = vld [vmem:[%s217 + $0x79] sm:$0xff]
      %v310 = vld [vmem:[%s217 + $0x81] sm:$0xff]
      %v311 = vld [vmem:[%s217 + $0x91] sm:$0xff]
      %v312 = vld [vmem:[%s217 + $0x99] sm:$0xff]
      %v313 = vld [vmem:[%s217 + $0xa9] sm:$0xff]
      %v314 = vld [vmem:[%s217 + $0xb1] sm:$0xff]
      %v315 = vld [vmem:[%s217 + $0xc1] sm:$0xff]
      %v316 = vld [vmem:[%s217 + $0xc9] sm:$0xff]
      %v317 = vld [vmem:[%s217 + $0xd9] sm:$0xff]
      %v318 = vld [vmem:[%s217 + $0xe1] sm:$0xff]
      %v319 = vld [vmem:[%s217 + $0xf1] sm:$0xff]
      %v320 = vld [vmem:[%s217 + $0xf9] sm:$0xff]
      %v321 = vld [vmem:[%s217 + $0x109] sm:$0xff]
      %v322 = vld [vmem:[%s217 + $0x111] sm:$0xff]
      %v323 = vld [vmem:[%s217 + $0x121] sm:$0xff]
      %v324 = vld [vmem:[%s217 + $0x129] sm:$0xff]
      %v325 = vld [vmem:[%s217 + $0x139] sm:$0xff]
      %v326 = vld [vmem:[%s217 + $0x141] sm:$0xff]
      %v327 = vld [vmem:[%s217 + $0x151] sm:$0xff]
      %v328 = vld [vmem:[%s217 + $0x159] sm:$0xff]
      %v329 = vld [vmem:[%s217 + $0x169] sm:$0xff]
      %v330 = vld [vmem:[%s217 + $0x171] sm:$0xff]
      %v331 = vld [vmem:[%s221 + $0x1] sm:$0x1]
      %v332 = vperm.slane %v331, 0
      %v333 = vmul.f32 %v299, %v332
      %v334 = vmul.f32 %v300, %v332
      %v335 = vmul.f32 %v301, %v332
      %v336 = vmul.f32 %v302, %v332
      %v337 = vmul.f32 %v303, %v332
      %v338 = vmul.f32 %v304, %v332
      %v339 = vmul.f32 %v305, %v332
      %v340 = vmul.f32 %v306, %v332
      %v341 = vmul.f32 %v307, %v332
      %v342 = vmul.f32 %v308, %v332
      %v343 = vmul.f32 %v309, %v332
      %v344 = vmul.f32 %v310, %v332
      %v345 = vmul.f32 %v311, %v332
      %v346 = vmul.f32 %v312, %v332
      %v347 = vmul.f32 %v313, %v332
      %v348 = vmul.f32 %v314, %v332
      %v349 = vmul.f32 %v315, %v332
      %v350 = vmul.f32 %v316, %v332
      %v351 = vmul.f32 %v317, %v332
      %v352 = vmul.f32 %v318, %v332
      %v353 = vmul.f32 %v319, %v332
      %v354 = vmul.f32 %v320, %v332
      %v355 = vmul.f32 %v321, %v332
      %v356 = vmul.f32 %v322, %v332
      %v357 = vmul.f32 %v323, %v332
      %v358 = vmul.f32 %v324, %v332
      %v359 = vmul.f32 %v325, %v332
      %v360 = vmul.f32 %v326, %v332
      %v361 = vmul.f32 %v327, %v332
      %v362 = vmul.f32 %v328, %v332
      %v363 = vmul.f32 %v329, %v332
      %v364 = vmul.f32 %v330, %v332
      %v365 = vadd.f32 %v267, %v333
      %v366 = vadd.f32 %v268, %v334
      %v367 = vadd.f32 %v269, %v335
      %v368 = vadd.f32 %v270, %v336
      %v369 = vadd.f32 %v271, %v337
      %v370 = vadd.f32 %v272, %v338
      %v371 = vadd.f32 %v273, %v339
      %v372 = vadd.f32 %v274, %v340
      %v373 = vadd.f32 %v275, %v341
      %v374 = vadd.f32 %v276, %v342
      %v375 = vadd.f32 %v277, %v343
      %v376 = vadd.f32 %v278, %v344
      %v377 = vadd.f32 %v279, %v345
      %v378 = vadd.f32 %v280, %v346
      %v379 = vadd.f32 %v281, %v347
      %v380 = vadd.f32 %v282, %v348
      %v381 = vadd.f32 %v283, %v349
      %v382 = vadd.f32 %v284, %v350
      %v383 = vadd.f32 %v285, %v351
      %v384 = vadd.f32 %v286, %v352
      %v385 = vadd.f32 %v287, %v353
      %v386 = vadd.f32 %v288, %v354
      %v387 = vadd.f32 %v289, %v355
      %v388 = vadd.f32 %v290, %v356
      %v389 = vadd.f32 %v291, %v357
      %v390 = vadd.f32 %v292, %v358
      %v391 = vadd.f32 %v293, %v359
      %v392 = vadd.f32 %v294, %v360
      %v393 = vadd.f32 %v295, %v361
      %v394 = vadd.f32 %v296, %v362
      %v395 = vadd.f32 %v297, %v363
      %v396 = vadd.f32 %v298, %v364
      %v397 = vld [vmem:[%s217 + $0x2] sm:$0xff]
      %v398 = vld [vmem:[%s217 + $0xa] sm:$0xff]
      %v399 = vld [vmem:[%s217 + $0x1a] sm:$0xff]
      %v400 = vld [vmem:[%s217 + $0x22] sm:$0xff]
      %v401 = vld [vmem:[%s217 + $0x32] sm:$0xff]
      %v402 = vld [vmem:[%s217 + $0x3a] sm:$0xff]
      %v403 = vld [vmem:[%s217 + $0x4a] sm:$0xff]
      %v404 = vld [vmem:[%s217 + $0x52] sm:$0xff]
      %v405 = vld [vmem:[%s217 + $0x62] sm:$0xff]
      %v406 = vld [vmem:[%s217 + $0x6a] sm:$0xff]
      %v407 = vld [vmem:[%s217 + $0x7a] sm:$0xff]
      %v408 = vld [vmem:[%s217 + $0x82] sm:$0xff]
      %v409 = vld [vmem:[%s217 + $0x92] sm:$0xff]
      %v410 = vld [vmem:[%s217 + $0x9a] sm:$0xff]
      %v411 = vld [vmem:[%s217 + $0xaa] sm:$0xff]
      %v412 = vld [vmem:[%s217 + $0xb2] sm:$0xff]
      %v413 = vld [vmem:[%s217 + $0xc2] sm:$0xff]
      %v414 = vld [vmem:[%s217 + $0xca] sm:$0xff]
      %v415 = vld [vmem:[%s217 + $0xda] sm:$0xff]
      %v416 = vld [vmem:[%s217 + $0xe2] sm:$0xff]
      %v417 = vld [vmem:[%s217 + $0xf2] sm:$0xff]
      %v418 = vld [vmem:[%s217 + $0xfa] sm:$0xff]
      %v419 = vld [vmem:[%s217 + $0x10a] sm:$0xff]
      %v420 = vld [vmem:[%s217 + $0x112] sm:$0xff]
      %v421 = vld [vmem:[%s217 + $0x122] sm:$0xff]
      %v422 = vld [vmem:[%s217 + $0x12a] sm:$0xff]
      %v423 = vld [vmem:[%s217 + $0x13a] sm:$0xff]
      %v424 = vld [vmem:[%s217 + $0x142] sm:$0xff]
      %v425 = vld [vmem:[%s217 + $0x152] sm:$0xff]
      %v426 = vld [vmem:[%s217 + $0x15a] sm:$0xff]
      %v427 = vld [vmem:[%s217 + $0x16a] sm:$0xff]
      %v428 = vld [vmem:[%s217 + $0x172] sm:$0xff]
      %v429 = vld [vmem:[%s221 + $0x2] sm:$0x1]
      %v430 = vperm.slane %v429, 0
      %v431 = vmul.f32 %v397, %v430
      %v432 = vmul.f32 %v398, %v430
      %v433 = vmul.f32 %v399, %v430
      %v434 = vmul.f32 %v400, %v430
      %v435 = vmul.f32 %v401, %v430
      %v436 = vmul.f32 %v402, %v430
      %v437 = vmul.f32 %v403, %v430
      %v438 = vmul.f32 %v404, %v430
      %v439 = vmul.f32 %v405, %v430
      %v440 = vmul.f32 %v406, %v430
      %v441 = vmul.f32 %v407, %v430
      %v442 = vmul.f32 %v408, %v430
      %v443 = vmul.f32 %v409, %v430
      %v444 = vmul.f32 %v410, %v430
      %v445 = vmul.f32 %v411, %v430
      %v446 = vmul.f32 %v412, %v430
      %v447 = vmul.f32 %v413, %v430
      %v448 = vmul.f32 %v414, %v430
      %v449 = vmul.f32 %v415, %v430
      %v450 = vmul.f32 %v416, %v430
      %v451 = vmul.f32 %v417, %v430
      %v452 = vmul.f32 %v418, %v430
      %v453 = vmul.f32 %v419, %v430
      %v454 = vmul.f32 %v420, %v430
      %v455 = vmul.f32 %v421, %v430
      %v456 = vmul.f32 %v422, %v430
      %v457 = vmul.f32 %v423, %v430
      %v458 = vmul.f32 %v424, %v430
      %v459 = vmul.f32 %v425, %v430
      %v460 = vmul.f32 %v426, %v430
      %v461 = vmul.f32 %v427, %v430
      %v462 = vmul.f32 %v428, %v430
      %v463 = vadd.f32 %v365, %v431
      %v464 = vadd.f32 %v366, %v432
      %v465 = vadd.f32 %v367, %v433
      %v466 = vadd.f32 %v368, %v434
      %v467 = vadd.f32 %v369, %v435
      %v468 = vadd.f32 %v370, %v436
      %v469 = vadd.f32 %v371, %v437
      %v470 = vadd.f32 %v372, %v438
      %v471 = vadd.f32 %v373, %v439
      %v472 = vadd.f32 %v374, %v440
      %v473 = vadd.f32 %v375, %v441
      %v474 = vadd.f32 %v376, %v442
      %v475 = vadd.f32 %v377, %v443
      %v476 = vadd.f32 %v378, %v444
      %v477 = vadd.f32 %v379, %v445
      %v478 = vadd.f32 %v380, %v446
      %v479 = vadd.f32 %v381, %v447
      %v480 = vadd.f32 %v382, %v448
      %v481 = vadd.f32 %v383, %v449
      %v482 = vadd.f32 %v384, %v450
      %v483 = vadd.f32 %v385, %v451
      %v484 = vadd.f32 %v386, %v452
      %v485 = vadd.f32 %v387, %v453
      %v486 = vadd.f32 %v388, %v454
      %v487 = vadd.f32 %v389, %v455
      %v488 = vadd.f32 %v390, %v456
      %v489 = vadd.f32 %v391, %v457
      %v490 = vadd.f32 %v392, %v458
      %v491 = vadd.f32 %v393, %v459
      %v492 = vadd.f32 %v394, %v460
      %v493 = vadd.f32 %v395, %v461
      %v494 = vadd.f32 %v396, %v462
      %s495 = scalar_lea.vmem %s217, 24
      %v496 = vld [vmem:[%s495] sm:$0xff]
      %v497 = vld [vmem:[%s495 + $0x8] sm:$0xff]
      %v498 = vld [vmem:[%s495 + $0x18] sm:$0xff]
      %v499 = vld [vmem:[%s495 + $0x20] sm:$0xff]
      %v500 = vld [vmem:[%s495 + $0x30] sm:$0xff]
      %v501 = vld [vmem:[%s495 + $0x38] sm:$0xff]
      %v502 = vld [vmem:[%s495 + $0x48] sm:$0xff]
      %v503 = vld [vmem:[%s495 + $0x50] sm:$0xff]
      %v504 = vld [vmem:[%s495 + $0x60] sm:$0xff]
      %v505 = vld [vmem:[%s495 + $0x68] sm:$0xff]
      %v506 = vld [vmem:[%s495 + $0x78] sm:$0xff]
      %v507 = vld [vmem:[%s495 + $0x80] sm:$0xff]
      %v508 = vld [vmem:[%s495 + $0x90] sm:$0xff]
      %v509 = vld [vmem:[%s495 + $0x98] sm:$0xff]
      %v510 = vld [vmem:[%s495 + $0xa8] sm:$0xff]
      %v511 = vld [vmem:[%s495 + $0xb0] sm:$0xff]
      %v512 = vld [vmem:[%s495 + $0xc0] sm:$0xff]
      %v513 = vld [vmem:[%s495 + $0xc8] sm:$0xff]
      %v514 = vld [vmem:[%s495 + $0xd8] sm:$0xff]
      %v515 = vld [vmem:[%s495 + $0xe0] sm:$0xff]
      %v516 = vld [vmem:[%s495 + $0xf0] sm:$0xff]
      %v517 = vld [vmem:[%s495 + $0xf8] sm:$0xff]
      %v518 = vld [vmem:[%s495 + $0x108] sm:$0xff]
      %v519 = vld [vmem:[%s495 + $0x110] sm:$0xff]
      %v520 = vld [vmem:[%s495 + $0x120] sm:$0xff]
      %v521 = vld [vmem:[%s495 + $0x128] sm:$0xff]
      %v522 = vld [vmem:[%s495 + $0x138] sm:$0xff]
      %v523 = vld [vmem:[%s495 + $0x140] sm:$0xff]
      %v524 = vld [vmem:[%s495 + $0x150] sm:$0xff]
      %v525 = vld [vmem:[%s495 + $0x158] sm:$0xff]
      %v526 = vld [vmem:[%s495 + $0x168] sm:$0xff]
      %v527 = vld [vmem:[%s495 + $0x170] sm:$0xff]
      %v528 = vld [vmem:[%s221 + $0x3] sm:$0x1]
      %v529 = vperm.slane %v528, 0
      %v530 = vmul.f32 %v496, %v529
      %v531 = vmul.f32 %v497, %v529
      %v532 = vmul.f32 %v498, %v529
      %v533 = vmul.f32 %v499, %v529
      %v534 = vmul.f32 %v500, %v529
      %v535 = vmul.f32 %v501, %v529
      %v536 = vmul.f32 %v502, %v529
      %v537 = vmul.f32 %v503, %v529
      %v538 = vmul.f32 %v504, %v529
      %v539 = vmul.f32 %v505, %v529
      %v540 = vmul.f32 %v506, %v529
      %v541 = vmul.f32 %v507, %v529
      %v542 = vmul.f32 %v508, %v529
      %v543 = vmul.f32 %v509, %v529
      %v544 = vmul.f32 %v510, %v529
      %v545 = vmul.f32 %v511, %v529
      %v546 = vmul.f32 %v512, %v529
      %v547 = vmul.f32 %v513, %v529
      %v548 = vmul.f32 %v514, %v529
      %v549 = vmul.f32 %v515, %v529
      %v550 = vmul.f32 %v516, %v529
      %v551 = vmul.f32 %v517, %v529
      %v552 = vmul.f32 %v518, %v529
      %v553 = vmul.f32 %v519, %v529
      %v554 = vmul.f32 %v520, %v529
      %v555 = vmul.f32 %v521, %v529
      %v556 = vmul.f32 %v522, %v529
      %v557 = vmul.f32 %v523, %v529
      %v558 = vmul.f32 %v524, %v529
      %v559 = vmul.f32 %v525, %v529
      %v560 = vmul.f32 %v526, %v529
      %v561 = vmul.f32 %v527, %v529
      %v562 = vadd.f32 %v463, %v530
      %v563 = vadd.f32 %v464, %v531
      %v564 = vadd.f32 %v465, %v532
      %v565 = vadd.f32 %v466, %v533
      %v566 = vadd.f32 %v467, %v534
      %v567 = vadd.f32 %v468, %v535
      %v568 = vadd.f32 %v469, %v536
      %v569 = vadd.f32 %v470, %v537
      %v570 = vadd.f32 %v471, %v538
      %v571 = vadd.f32 %v472, %v539
      %v572 = vadd.f32 %v473, %v540
      %v573 = vadd.f32 %v474, %v541
      %v574 = vadd.f32 %v475, %v542
      %v575 = vadd.f32 %v476, %v543
      %v576 = vadd.f32 %v477, %v544
      %v577 = vadd.f32 %v478, %v545
      %v578 = vadd.f32 %v479, %v546
      %v579 = vadd.f32 %v480, %v547
      %v580 = vadd.f32 %v481, %v548
      %v581 = vadd.f32 %v482, %v549
      %v582 = vadd.f32 %v483, %v550
      %v583 = vadd.f32 %v484, %v551
      %v584 = vadd.f32 %v485, %v552
      %v585 = vadd.f32 %v486, %v553
      %v586 = vadd.f32 %v487, %v554
      %v587 = vadd.f32 %v488, %v555
      %v588 = vadd.f32 %v489, %v556
      %v589 = vadd.f32 %v490, %v557
      %v590 = vadd.f32 %v491, %v558
      %v591 = vadd.f32 %v492, %v559
      %v592 = vadd.f32 %v493, %v560
      %v593 = vadd.f32 %v494, %v561
      %v594 = vld [vmem:[%s495 + $0x1] sm:$0xff]
      %v595 = vld [vmem:[%s495 + $0x9] sm:$0xff]
      %v596 = vld [vmem:[%s495 + $0x19] sm:$0xff]
      %v597 = vld [vmem:[%s495 + $0x21] sm:$0xff]
      %v598 = vld [vmem:[%s495 + $0x31] sm:$0xff]
      %v599 = vld [vmem:[%s495 + $0x39] sm:$0xff]
      %v600 = vld [vmem:[%s495 + $0x49] sm:$0xff]
      %v601 = vld [vmem:[%s495 + $0x51] sm:$0xff]
      %v602 = vld [vmem:[%s495 + $0x61] sm:$0xff]
      %v603 = vld [vmem:[%s495 + $0x69] sm:$0xff]
      %v604 = vld [vmem:[%s495 + $0x79] sm:$0xff]
      %v605 = vld [vmem:[%s495 + $0x81] sm:$0xff]
      %v606 = vld [vmem:[%s495 + $0x91] sm:$0xff]
      %v607 = vld [vmem:[%s495 + $0x99] sm:$0xff]
      %v608 = vld [vmem:[%s495 + $0xa9] sm:$0xff]
      %v609 = vld [vmem:[%s495 + $0xb1] sm:$0xff]
      %v610 = vld [vmem:[%s495 + $0xc1] sm:$0xff]
      %v611 = vld [vmem:[%s495 + $0xc9] sm:$0xff]
      %v612 = vld [vmem:[%s495 + $0xd9] sm:$0xff]
      %v613 = vld [vmem:[%s495 + $0xe1] sm:$0xff]
      %v614 = vld [vmem:[%s495 + $0xf1] sm:$0xff]
      %v615 = vld [vmem:[%s495 + $0xf9] sm:$0xff]
      %v616 = vld [vmem:[%s495 + $0x109] sm:$0xff]
      %v617 = vld [vmem:[%s495 + $0x111] sm:$0xff]
      %v618 = vld [vmem:[%s495 + $0x121] sm:$0xff]
      %v619 = vld [vmem:[%s495 + $0x129] sm:$0xff]
      %v620 = vld [vmem:[%s495 + $0x139] sm:$0xff]
      %v621 = vld [vmem:[%s495 + $0x141] sm:$0xff]
      %v622 = vld [vmem:[%s495 + $0x151] sm:$0xff]
      %v623 = vld [vmem:[%s495 + $0x159] sm:$0xff]
      %v624 = vld [vmem:[%s495 + $0x169] sm:$0xff]
      %v625 = vld [vmem:[%s495 + $0x171] sm:$0xff]
      %v626 = vld [vmem:[%s221 + $0x4] sm:$0x1]
      %v627 = vperm.slane %v626, 0
      %v628 = vmul.f32 %v594, %v627
      %v629 = vmul.f32 %v595, %v627
      %v630 = vmul.f32 %v596, %v627
      %v631 = vmul.f32 %v597, %v627
      %v632 = vmul.f32 %v598, %v627
      %v633 = vmul.f32 %v599, %v627
      %v634 = vmul.f32 %v600, %v627
      %v635 = vmul.f32 %v601, %v627
      %v636 = vmul.f32 %v602, %v627
      %v637 = vmul.f32 %v603, %v627
      %v638 = vmul.f32 %v604, %v627
      %v639 = vmul.f32 %v605, %v627
      %v640 = vmul.f32 %v606, %v627
      %v641 = vmul.f32 %v607, %v627
      %v642 = vmul.f32 %v608, %v627
      %v643 = vmul.f32 %v609, %v627
      %v644 = vmul.f32 %v610, %v627
      %v645 = vmul.f32 %v611, %v627
      %v646 = vmul.f32 %v612, %v627
      %v647 = vmul.f32 %v613, %v627
      %v648 = vmul.f32 %v614, %v627
      %v649 = vmul.f32 %v615, %v627
      %v650 = vmul.f32 %v616, %v627
      %v651 = vmul.f32 %v617, %v627
      %v652 = vmul.f32 %v618, %v627
      %v653 = vmul.f32 %v619, %v627
      %v654 = vmul.f32 %v620, %v627
      %v655 = vmul.f32 %v621, %v627
      %v656 = vmul.f32 %v622, %v627
      %v657 = vmul.f32 %v623, %v627
      %v658 = vmul.f32 %v624, %v627
      %v659 = vmul.f32 %v625, %v627
      %v660 = vadd.f32 %v562, %v628
      %v661 = vadd.f32 %v563, %v629
      %v662 = vadd.f32 %v564, %v630
      %v663 = vadd.f32 %v565, %v631
      %v664 = vadd.f32 %v566, %v632
      %v665 = vadd.f32 %v567, %v633
      %v666 = vadd.f32 %v568, %v634
      %v667 = vadd.f32 %v569, %v635
      %v668 = vadd.f32 %v570, %v636
      %v669 = vadd.f32 %v571, %v637
      %v670 = vadd.f32 %v572, %v638
      %v671 = vadd.f32 %v573, %v639
      %v672 = vadd.f32 %v574, %v640
      %v673 = vadd.f32 %v575, %v641
      %v674 = vadd.f32 %v576, %v642
      %v675 = vadd.f32 %v577, %v643
      %v676 = vadd.f32 %v578, %v644
      %v677 = vadd.f32 %v579, %v645
      %v678 = vadd.f32 %v580, %v646
      %v679 = vadd.f32 %v581, %v647
      %v680 = vadd.f32 %v582, %v648
      %v681 = vadd.f32 %v583, %v649
      %v682 = vadd.f32 %v584, %v650
      %v683 = vadd.f32 %v585, %v651
      %v684 = vadd.f32 %v586, %v652
      %v685 = vadd.f32 %v587, %v653
      %v686 = vadd.f32 %v588, %v654
      %v687 = vadd.f32 %v589, %v655
      %v688 = vadd.f32 %v590, %v656
      %v689 = vadd.f32 %v591, %v657
      %v690 = vadd.f32 %v592, %v658
      %v691 = vadd.f32 %v593, %v659
      %v692 = vld [vmem:[%s495 + $0x2] sm:$0xff]
      %v693 = vld [vmem:[%s495 + $0xa] sm:$0xff]
      %v694 = vld [vmem:[%s495 + $0x1a] sm:$0xff]
      %v695 = vld [vmem:[%s495 + $0x22] sm:$0xff]
      %v696 = vld [vmem:[%s495 + $0x32] sm:$0xff]
      %v697 = vld [vmem:[%s495 + $0x3a] sm:$0xff]
      %v698 = vld [vmem:[%s495 + $0x4a] sm:$0xff]
      %v699 = vld [vmem:[%s495 + $0x52] sm:$0xff]
      %v700 = vld [vmem:[%s495 + $0x62] sm:$0xff]
      %v701 = vld [vmem:[%s495 + $0x6a] sm:$0xff]
      %v702 = vld [vmem:[%s495 + $0x7a] sm:$0xff]
      %v703 = vld [vmem:[%s495 + $0x82] sm:$0xff]
      %v704 = vld [vmem:[%s495 + $0x92] sm:$0xff]
      %v705 = vld [vmem:[%s495 + $0x9a] sm:$0xff]
      %v706 = vld [vmem:[%s495 + $0xaa] sm:$0xff]
      %v707 = vld [vmem:[%s495 + $0xb2] sm:$0xff]
      %v708 = vld [vmem:[%s495 + $0xc2] sm:$0xff]
      %v709 = vld [vmem:[%s495 + $0xca] sm:$0xff]
      %v710 = vld [vmem:[%s495 + $0xda] sm:$0xff]
      %v711 = vld [vmem:[%s495 + $0xe2] sm:$0xff]
      %v712 = vld [vmem:[%s495 + $0xf2] sm:$0xff]
      %v713 = vld [vmem:[%s495 + $0xfa] sm:$0xff]
      %v714 = vld [vmem:[%s495 + $0x10a] sm:$0xff]
      %v715 = vld [vmem:[%s495 + $0x112] sm:$0xff]
      %v716 = vld [vmem:[%s495 + $0x122] sm:$0xff]
      %v717 = vld [vmem:[%s495 + $0x12a] sm:$0xff]
      %v718 = vld [vmem:[%s495 + $0x13a] sm:$0xff]
      %v719 = vld [vmem:[%s495 + $0x142] sm:$0xff]
      %v720 = vld [vmem:[%s495 + $0x152] sm:$0xff]
      %v721 = vld [vmem:[%s495 + $0x15a] sm:$0xff]
      %v722 = vld [vmem:[%s495 + $0x16a] sm:$0xff]
      %v723 = vld [vmem:[%s495 + $0x172] sm:$0xff]
      %v724 = vld [vmem:[%s221 + $0x5] sm:$0x1]
      %v725 = vperm.slane %v724, 0
      %v726 = vmul.f32 %v692, %v725
      %v727 = vmul.f32 %v693, %v725
      %v728 = vmul.f32 %v694, %v725
      %v729 = vmul.f32 %v695, %v725
      %v730 = vmul.f32 %v696, %v725
      %v731 = vmul.f32 %v697, %v725
      %v732 = vmul.f32 %v698, %v725
      %v733 = vmul.f32 %v699, %v725
      %v734 = vmul.f32 %v700, %v725
      %v735 = vmul.f32 %v701, %v725
      %v736 = vmul.f32 %v702, %v725
      %v737 = vmul.f32 %v703, %v725
      %v738 = vmul.f32 %v704, %v725
      %v739 = vmul.f32 %v705, %v725
      %v740 = vmul.f32 %v706, %v725
      %v741 = vmul.f32 %v707, %v725
      %v742 = vmul.f32 %v708, %v725
      %v743 = vmul.f32 %v709, %v725
      %v744 = vmul.f32 %v710, %v725
      %v745 = vmul.f32 %v711, %v725
      %v746 = vmul.f32 %v712, %v725
      %v747 = vmul.f32 %v713, %v725
      %v748 = vmul.f32 %v714, %v725
      %v749 = vmul.f32 %v715, %v725
      %v750 = vmul.f32 %v716, %v725
      %v751 = vmul.f32 %v717, %v725
      %v752 = vmul.f32 %v718, %v725
      %v753 = vmul.f32 %v719, %v725
      %v754 = vmul.f32 %v720, %v725
      %v755 = vmul.f32 %v721, %v725
      %v756 = vmul.f32 %v722, %v725
      %v757 = vmul.f32 %v723, %v725
      %v758 = vadd.f32 %v660, %v726
      %v759 = vadd.f32 %v661, %v727
      %v760 = vadd.f32 %v662, %v728
      %v761 = vadd.f32 %v663, %v729
      %v762 = vadd.f32 %v664, %v730
      %v763 = vadd.f32 %v665, %v731
      %v764 = vadd.f32 %v666, %v732
      %v765 = vadd.f32 %v667, %v733
      %v766 = vadd.f32 %v668, %v734
      %v767 = vadd.f32 %v669, %v735
      %v768 = vadd.f32 %v670, %v736
      %v769 = vadd.f32 %v671, %v737
      %v770 = vadd.f32 %v672, %v738
      %v771 = vadd.f32 %v673, %v739
      %v772 = vadd.f32 %v674, %v740
      %v773 = vadd.f32 %v675, %v741
      %v774 = vadd.f32 %v676, %v742
      %v775 = vadd.f32 %v677, %v743
      %v776 = vadd.f32 %v678, %v744
      %v777 = vadd.f32 %v679, %v745
      %v778 = vadd.f32 %v680, %v746
      %v779 = vadd.f32 %v681, %v747
      %v780 = vadd.f32 %v682, %v748
      %v781 = vadd.f32 %v683, %v749
      %v782 = vadd.f32 %v684, %v750
      %v783 = vadd.f32 %v685, %v751
      %v784 = vadd.f32 %v686, %v752
      %v785 = vadd.f32 %v687, %v753
      %v786 = vadd.f32 %v688, %v754
      %v787 = vadd.f32 %v689, %v755
      %v788 = vadd.f32 %v690, %v756
      %v789 = vadd.f32 %v691, %v757
      %s790 = scalar_lea.vmem %s217, 48
      %v791 = vld [vmem:[%s790] sm:$0xff]
      %v792 = vld [vmem:[%s790 + $0x8] sm:$0xff]
      %v793 = vld [vmem:[%s790 + $0x18] sm:$0xff]
      %v794 = vld [vmem:[%s790 + $0x20] sm:$0xff]
      %v795 = vld [vmem:[%s790 + $0x30] sm:$0xff]
      %v796 = vld [vmem:[%s790 + $0x38] sm:$0xff]
      %v797 = vld [vmem:[%s790 + $0x48] sm:$0xff]
      %v798 = vld [vmem:[%s790 + $0x50] sm:$0xff]
      %v799 = vld [vmem:[%s790 + $0x60] sm:$0xff]
      %v800 = vld [vmem:[%s790 + $0x68] sm:$0xff]
      %v801 = vld [vmem:[%s790 + $0x78] sm:$0xff]
      %v802 = vld [vmem:[%s790 + $0x80] sm:$0xff]
      %v803 = vld [vmem:[%s790 + $0x90] sm:$0xff]
      %v804 = vld [vmem:[%s790 + $0x98] sm:$0xff]
      %v805 = vld [vmem:[%s790 + $0xa8] sm:$0xff]
      %v806 = vld [vmem:[%s790 + $0xb0] sm:$0xff]
      %v807 = vld [vmem:[%s790 + $0xc0] sm:$0xff]
      %v808 = vld [vmem:[%s790 + $0xc8] sm:$0xff]
      %v809 = vld [vmem:[%s790 + $0xd8] sm:$0xff]
      %v810 = vld [vmem:[%s790 + $0xe0] sm:$0xff]
      %v811 = vld [vmem:[%s790 + $0xf0] sm:$0xff]
      %v812 = vld [vmem:[%s790 + $0xf8] sm:$0xff]
      %v813 = vld [vmem:[%s790 + $0x108] sm:$0xff]
      %v814 = vld [vmem:[%s790 + $0x110] sm:$0xff]
      %v815 = vld [vmem:[%s790 + $0x120] sm:$0xff]
      %v816 = vld [vmem:[%s790 + $0x128] sm:$0xff]
      %v817 = vld [vmem:[%s790 + $0x138] sm:$0xff]
      %v818 = vld [vmem:[%s790 + $0x140] sm:$0xff]
      %v819 = vld [vmem:[%s790 + $0x150] sm:$0xff]
      %v820 = vld [vmem:[%s790 + $0x158] sm:$0xff]
      %v821 = vld [vmem:[%s790 + $0x168] sm:$0xff]
      %v822 = vld [vmem:[%s790 + $0x170] sm:$0xff]
      %v823 = vld [vmem:[%s221 + $0x6] sm:$0x1]
      %v824 = vperm.slane %v823, 0
      %v825 = vmul.f32 %v791, %v824
      %v826 = vmul.f32 %v792, %v824
      %v827 = vmul.f32 %v793, %v824
      %v828 = vmul.f32 %v794, %v824
      %v829 = vmul.f32 %v795, %v824
      %v830 = vmul.f32 %v796, %v824
      %v831 = vmul.f32 %v797, %v824
      %v832 = vmul.f32 %v798, %v824
      %v833 = vmul.f32 %v799, %v824
      %v834 = vmul.f32 %v800, %v824
      %v835 = vmul.f32 %v801, %v824
      %v836 = vmul.f32 %v802, %v824
      %v837 = vmul.f32 %v803, %v824
      %v838 = vmul.f32 %v804, %v824
      %v839 = vmul.f32 %v805, %v824
      %v840 = vmul.f32 %v806, %v824
      %v841 = vmul.f32 %v807, %v824
      %v842 = vmul.f32 %v808, %v824
      %v843 = vmul.f32 %v809, %v824
      %v844 = vmul.f32 %v810, %v824
      %v845 = vmul.f32 %v811, %v824
      %v846 = vmul.f32 %v812, %v824
      %v847 = vmul.f32 %v813, %v824
      %v848 = vmul.f32 %v814, %v824
      %v849 = vmul.f32 %v815, %v824
      %v850 = vmul.f32 %v816, %v824
      %v851 = vmul.f32 %v817, %v824
      %v852 = vmul.f32 %v818, %v824
      %v853 = vmul.f32 %v819, %v824
      %v854 = vmul.f32 %v820, %v824
      %v855 = vmul.f32 %v821, %v824
      %v856 = vmul.f32 %v822, %v824
      %v857 = vadd.f32 %v758, %v825
      %v858 = vadd.f32 %v759, %v826
      %v859 = vadd.f32 %v760, %v827
      %v860 = vadd.f32 %v761, %v828
      %v861 = vadd.f32 %v762, %v829
      %v862 = vadd.f32 %v763, %v830
      %v863 = vadd.f32 %v764, %v831
      %v864 = vadd.f32 %v765, %v832
      %v865 = vadd.f32 %v766, %v833
      %v866 = vadd.f32 %v767, %v834
      %v867 = vadd.f32 %v768, %v835
      %v868 = vadd.f32 %v769, %v836
      %v869 = vadd.f32 %v770, %v837
      %v870 = vadd.f32 %v771, %v838
      %v871 = vadd.f32 %v772, %v839
      %v872 = vadd.f32 %v773, %v840
      %v873 = vadd.f32 %v774, %v841
      %v874 = vadd.f32 %v775, %v842
      %v875 = vadd.f32 %v776, %v843
      %v876 = vadd.f32 %v777, %v844
      %v877 = vadd.f32 %v778, %v845
      %v878 = vadd.f32 %v779, %v846
      %v879 = vadd.f32 %v780, %v847
      %v880 = vadd.f32 %v781, %v848
      %v881 = vadd.f32 %v782, %v849
      %v882 = vadd.f32 %v783, %v850
      %v883 = vadd.f32 %v784, %v851
      %v884 = vadd.f32 %v785, %v852
      %v885 = vadd.f32 %v786, %v853
      %v886 = vadd.f32 %v787, %v854
      %v887 = vadd.f32 %v788, %v855
      %v888 = vadd.f32 %v789, %v856
      %v889 = vld [vmem:[%s790 + $0x1] sm:$0xff]
      %v890 = vld [vmem:[%s790 + $0x9] sm:$0xff]
      %v891 = vld [vmem:[%s790 + $0x19] sm:$0xff]
      %v892 = vld [vmem:[%s790 + $0x21] sm:$0xff]
      %v893 = vld [vmem:[%s790 + $0x31] sm:$0xff]
      %v894 = vld [vmem:[%s790 + $0x39] sm:$0xff]
      %v895 = vld [vmem:[%s790 + $0x49] sm:$0xff]
      %v896 = vld [vmem:[%s790 + $0x51] sm:$0xff]
      %v897 = vld [vmem:[%s790 + $0x61] sm:$0xff]
      %v898 = vld [vmem:[%s790 + $0x69] sm:$0xff]
      %v899 = vld [vmem:[%s790 + $0x79] sm:$0xff]
      %v900 = vld [vmem:[%s790 + $0x81] sm:$0xff]
      %v901 = vld [vmem:[%s790 + $0x91] sm:$0xff]
      %v902 = vld [vmem:[%s790 + $0x99] sm:$0xff]
      %v903 = vld [vmem:[%s790 + $0xa9] sm:$0xff]
      %v904 = vld [vmem:[%s790 + $0xb1] sm:$0xff]
      %v905 = vld [vmem:[%s790 + $0xc1] sm:$0xff]
      %v906 = vld [vmem:[%s790 + $0xc9] sm:$0xff]
      %v907 = vld [vmem:[%s790 + $0xd9] sm:$0xff]
      %v908 = vld [vmem:[%s790 + $0xe1] sm:$0xff]
      %v909 = vld [vmem:[%s790 + $0xf1] sm:$0xff]
      %v910 = vld [vmem:[%s790 + $0xf9] sm:$0xff]
      %v911 = vld [vmem:[%s790 + $0x109] sm:$0xff]
      %v912 = vld [vmem:[%s790 + $0x111] sm:$0xff]
      %v913 = vld [vmem:[%s790 + $0x121] sm:$0xff]
      %v914 = vld [vmem:[%s790 + $0x129] sm:$0xff]
      %v915 = vld [vmem:[%s790 + $0x139] sm:$0xff]
      %v916 = vld [vmem:[%s790 + $0x141] sm:$0xff]
      %v917 = vld [vmem:[%s790 + $0x151] sm:$0xff]
      %v918 = vld [vmem:[%s790 + $0x159] sm:$0xff]
      %v919 = vld [vmem:[%s790 + $0x169] sm:$0xff]
      %v920 = vld [vmem:[%s790 + $0x171] sm:$0xff]
      %v921 = vld [vmem:[%s221 + $0x7] sm:$0x1]
      %v922 = vperm.slane %v921, 0
      %v923 = vmul.f32 %v889, %v922
      %v924 = vmul.f32 %v890, %v922
      %v925 = vmul.f32 %v891, %v922
      %v926 = vmul.f32 %v892, %v922
      %v927 = vmul.f32 %v893, %v922
      %v928 = vmul.f32 %v894, %v922
      %v929 = vmul.f32 %v895, %v922
      %v930 = vmul.f32 %v896, %v922
      %v931 = vmul.f32 %v897, %v922
      %v932 = vmul.f32 %v898, %v922
      %v933 = vmul.f32 %v899, %v922
      %v934 = vmul.f32 %v900, %v922
      %v935 = vmul.f32 %v901, %v922
      %v936 = vmul.f32 %v902, %v922
      %v937 = vmul.f32 %v903, %v922
      %v938 = vmul.f32 %v904, %v922
      %v939 = vmul.f32 %v905, %v922
      %v940 = vmul.f32 %v906, %v922
      %v941 = vmul.f32 %v907, %v922
      %v942 = vmul.f32 %v908, %v922
      %v943 = vmul.f32 %v909, %v922
      %v944 = vmul.f32 %v910, %v922
      %v945 = vmul.f32 %v911, %v922
      %v946 = vmul.f32 %v912, %v922
      %v947 = vmul.f32 %v913, %v922
      %v948 = vmul.f32 %v914, %v922
      %v949 = vmul.f32 %v915, %v922
      %v950 = vmul.f32 %v916, %v922
      %v951 = vmul.f32 %v917, %v922
      %v952 = vmul.f32 %v918, %v922
      %v953 = vmul.f32 %v919, %v922
      %v954 = vmul.f32 %v920, %v922
      %v955 = vadd.f32 %v857, %v923
      %v956 = vadd.f32 %v858, %v924
      %v957 = vadd.f32 %v859, %v925
      %v958 = vadd.f32 %v860, %v926
      %v959 = vadd.f32 %v861, %v927
      %v960 = vadd.f32 %v862, %v928
      %v961 = vadd.f32 %v863, %v929
      %v962 = vadd.f32 %v864, %v930
      %v963 = vadd.f32 %v865, %v931
      %v964 = vadd.f32 %v866, %v932
      %v965 = vadd.f32 %v867, %v933
      %v966 = vadd.f32 %v868, %v934
      %v967 = vadd.f32 %v869, %v935
      %v968 = vadd.f32 %v870, %v936
      %v969 = vadd.f32 %v871, %v937
      %v970 = vadd.f32 %v872, %v938
      %v971 = vadd.f32 %v873, %v939
      %v972 = vadd.f32 %v874, %v940
      %v973 = vadd.f32 %v875, %v941
      %v974 = vadd.f32 %v876, %v942
      %v975 = vadd.f32 %v877, %v943
      %v976 = vadd.f32 %v878, %v944
      %v977 = vadd.f32 %v879, %v945
      %v978 = vadd.f32 %v880, %v946
      %v979 = vadd.f32 %v881, %v947
      %v980 = vadd.f32 %v882, %v948
      %v981 = vadd.f32 %v883, %v949
      %v982 = vadd.f32 %v884, %v950
      %v983 = vadd.f32 %v885, %v951
      %v984 = vadd.f32 %v886, %v952
      %v985 = vadd.f32 %v887, %v953
      %v986 = vadd.f32 %v888, %v954
      %v987 = vld [vmem:[%s790 + $0x2] sm:$0xff]
      %v988 = vld [vmem:[%s790 + $0xa] sm:$0xff]
      %v989 = vld [vmem:[%s790 + $0x1a] sm:$0xff]
      %v990 = vld [vmem:[%s790 + $0x22] sm:$0xff]
      %v991 = vld [vmem:[%s790 + $0x32] sm:$0xff]
      %v992 = vld [vmem:[%s790 + $0x3a] sm:$0xff]
      %v993 = vld [vmem:[%s790 + $0x4a] sm:$0xff]
      %v994 = vld [vmem:[%s790 + $0x52] sm:$0xff]
      %v995 = vld [vmem:[%s790 + $0x62] sm:$0xff]
      %v996 = vld [vmem:[%s790 + $0x6a] sm:$0xff]
      %v997 = vld [vmem:[%s790 + $0x7a] sm:$0xff]
      %v998 = vld [vmem:[%s790 + $0x82] sm:$0xff]
      %v999 = vld [vmem:[%s790 + $0x92] sm:$0xff]
      %v1000 = vld [vmem:[%s790 + $0x9a] sm:$0xff]
      %v1001 = vld [vmem:[%s790 + $0xaa] sm:$0xff]
      %v1002 = vld [vmem:[%s790 + $0xb2] sm:$0xff]
      %v1003 = vld [vmem:[%s790 + $0xc2] sm:$0xff]
      %v1004 = vld [vmem:[%s790 + $0xca] sm:$0xff]
      %v1005 = vld [vmem:[%s790 + $0xda] sm:$0xff]
      %v1006 = vld [vmem:[%s790 + $0xe2] sm:$0xff]
      %v1007 = vld [vmem:[%s790 + $0xf2] sm:$0xff]
      %v1008 = vld [vmem:[%s790 + $0xfa] sm:$0xff]
      %v1009 = vld [vmem:[%s790 + $0x10a] sm:$0xff]
      %v1010 = vld [vmem:[%s790 + $0x112] sm:$0xff]
      %v1011 = vld [vmem:[%s790 + $0x122] sm:$0xff]
      %v1012 = vld [vmem:[%s790 + $0x12a] sm:$0xff]
      %v1013 = vld [vmem:[%s790 + $0x13a] sm:$0xff]
      %v1014 = vld [vmem:[%s790 + $0x142] sm:$0xff]
      %v1015 = vld [vmem:[%s790 + $0x152] sm:$0xff]
      %v1016 = vld [vmem:[%s790 + $0x15a] sm:$0xff]
      %v1017 = vld [vmem:[%s790 + $0x16a] sm:$0xff]
      %v1018 = vld [vmem:[%s790 + $0x172] sm:$0xff]
      %v1019 = vld [vmem:[%s221 + $0x8] sm:$0x1]
      %v1020 = vperm.slane %v1019, 0
      %v1021 = vmul.f32 %v987, %v1020
      %v1022 = vmul.f32 %v988, %v1020
      %v1023 = vmul.f32 %v989, %v1020
      %v1024 = vmul.f32 %v990, %v1020
      %v1025 = vmul.f32 %v991, %v1020
      %v1026 = vmul.f32 %v992, %v1020
      %v1027 = vmul.f32 %v993, %v1020
      %v1028 = vmul.f32 %v994, %v1020
      %v1029 = vmul.f32 %v995, %v1020
      %v1030 = vmul.f32 %v996, %v1020
      %v1031 = vmul.f32 %v997, %v1020
      %v1032 = vmul.f32 %v998, %v1020
      %v1033 = vmul.f32 %v999, %v1020
      %v1034 = vmul.f32 %v1000, %v1020
      %v1035 = vmul.f32 %v1001, %v1020
      %v1036 = vmul.f32 %v1002, %v1020
      %v1037 = vmul.f32 %v1003, %v1020
      %v1038 = vmul.f32 %v1004, %v1020
      %v1039 = vmul.f32 %v1005, %v1020
      %v1040 = vmul.f32 %v1006, %v1020
      %v1041 = vmul.f32 %v1007, %v1020
      %v1042 = vmul.f32 %v1008, %v1020
      %v1043 = vmul.f32 %v1009, %v1020
      %v1044 = vmul.f32 %v1010, %v1020
      %v1045 = vmul.f32 %v1011, %v1020
      %v1046 = vmul.f32 %v1012, %v1020
      %v1047 = vmul.f32 %v1013, %v1020
      %v1048 = vmul.f32 %v1014, %v1020
      %v1049 = vmul.f32 %v1015, %v1020
      %v1050 = vmul.f32 %v1016, %v1020
      %v1051 = vmul.f32 %v1017, %v1020
      %v1052 = vmul.f32 %v1018, %v1020
      %v1053 = vadd.f32 %v955, %v1021
      %v1054 = vadd.f32 %v956, %v1022
      %v1055 = vadd.f32 %v957, %v1023
      %v1056 = vadd.f32 %v958, %v1024
      %v1057 = vadd.f32 %v959, %v1025
      %v1058 = vadd.f32 %v960, %v1026
      %v1059 = vadd.f32 %v961, %v1027
      %v1060 = vadd.f32 %v962, %v1028
      %v1061 = vadd.f32 %v963, %v1029
      %v1062 = vadd.f32 %v964, %v1030
      %v1063 = vadd.f32 %v965, %v1031
      %v1064 = vadd.f32 %v966, %v1032
      %v1065 = vadd.f32 %v967, %v1033
      %v1066 = vadd.f32 %v968, %v1034
      %v1067 = vadd.f32 %v969, %v1035
      %v1068 = vadd.f32 %v970, %v1036
      %v1069 = vadd.f32 %v971, %v1037
      %v1070 = vadd.f32 %v972, %v1038
      %v1071 = vadd.f32 %v973, %v1039
      %v1072 = vadd.f32 %v974, %v1040
      %v1073 = vadd.f32 %v975, %v1041
      %v1074 = vadd.f32 %v976, %v1042
      %v1075 = vadd.f32 %v977, %v1043
      %v1076 = vadd.f32 %v978, %v1044
      %v1077 = vadd.f32 %v979, %v1045
      %v1078 = vadd.f32 %v980, %v1046
      %v1079 = vadd.f32 %v981, %v1047
      %v1080 = vadd.f32 %v982, %v1048
      %v1081 = vadd.f32 %v983, %v1049
      %v1082 = vadd.f32 %v984, %v1050
      %v1083 = vadd.f32 %v985, %v1051
      %v1084 = vadd.f32 %v986, %v1052
      %v1085 = vld [vmem:[%s224] sm:$0x1]
      %v1087 = vperm.slane %v1085, 0
      %v1089 = vadd.f32 %v1053, %v1087
      %v1090 = vadd.f32 %v1054, %v1087
      %v1091 = vadd.f32 %v1055, %v1087
      %v1092 = vadd.f32 %v1056, %v1087
      %v1093 = vadd.f32 %v1057, %v1087
      %v1094 = vadd.f32 %v1058, %v1087
      %v1095 = vadd.f32 %v1059, %v1087
      %v1096 = vadd.f32 %v1060, %v1087
      %v1097 = vadd.f32 %v1061, %v1087
      %v1098 = vadd.f32 %v1062, %v1087
      %v1099 = vadd.f32 %v1063, %v1087
      %v1100 = vadd.f32 %v1064, %v1087
      %v1101 = vadd.f32 %v1065, %v1087
      %v1102 = vadd.f32 %v1066, %v1087
      %v1103 = vadd.f32 %v1067, %v1087
      %v1104 = vadd.f32 %v1068, %v1087
      %v1105 = vadd.f32 %v1069, %v1087
      %v1106 = vadd.f32 %v1070, %v1087
      %v1107 = vadd.f32 %v1071, %v1087
      %v1108 = vadd.f32 %v1072, %v1087
      %v1109 = vadd.f32 %v1073, %v1087
      %v1110 = vadd.f32 %v1074, %v1087
      %v1111 = vadd.f32 %v1075, %v1087
      %v1112 = vadd.f32 %v1076, %v1087
      %v1113 = vadd.f32 %v1077, %v1087
      %v1114 = vadd.f32 %v1078, %v1087
      %v1115 = vadd.f32 %v1079, %v1087
      %v1116 = vadd.f32 %v1080, %v1087
      %v1117 = vadd.f32 %v1081, %v1087
      %v1118 = vadd.f32 %v1082, %v1087
      %v1119 = vadd.f32 %v1083, %v1087
      %v1120 = vadd.f32 %v1084, %v1087
      %v1121 = vmax.f32 %v1089, 0.0
      %v1122 = vmax.f32 %v1090, 0.0
      %v1123 = vmax.f32 %v1091, 0.0
      %v1124 = vmax.f32 %v1092, 0.0
      %v1125 = vmax.f32 %v1093, 0.0
      %v1126 = vmax.f32 %v1094, 0.0
      %v1127 = vmax.f32 %v1095, 0.0
      %v1128 = vmax.f32 %v1096, 0.0
      %v1129 = vmax.f32 %v1097, 0.0
      %v1130 = vmax.f32 %v1098, 0.0
      %v1131 = vmax.f32 %v1099, 0.0
      %v1132 = vmax.f32 %v1100, 0.0
      %v1133 = vmax.f32 %v1101, 0.0
      %v1134 = vmax.f32 %v1102, 0.0
      %v1135 = vmax.f32 %v1103, 0.0
      %v1136 = vmax.f32 %v1104, 0.0
      %v1137 = vmax.f32 %v1105, 0.0
      %v1138 = vmax.f32 %v1106, 0.0
      %v1139 = vmax.f32 %v1107, 0.0
      %v1140 = vmax.f32 %v1108, 0.0
      %v1141 = vmax.f32 %v1109, 0.0
      %v1142 = vmax.f32 %v1110, 0.0
      %v1143 = vmax.f32 %v1111, 0.0
      %v1144 = vmax.f32 %v1112, 0.0
      %v1145 = vmax.f32 %v1113, 0.0
      %v1146 = vmax.f32 %v1114, 0.0
      %v1147 = vmax.f32 %v1115, 0.0
      %v1148 = vmax.f32 %v1116, 0.0
      %v1149 = vmax.f32 %v1117, 0.0
      %v1150 = vmax.f32 %v1118, 0.0
      %v1151 = vmax.f32 %v1119, 0.0
      %v1152 = vmax.f32 %v1120, 0.0
      %v1153 = vmin.f32 %v1121, 6.0
      %v1154 = vmin.f32 %v1122, 6.0
      %v1155 = vmin.f32 %v1123, 6.0
      %v1156 = vmin.f32 %v1124, 6.0
      %v1157 = vmin.f32 %v1125, 6.0
      %v1158 = vmin.f32 %v1126, 6.0
      %v1159 = vmin.f32 %v1127, 6.0
      %v1160 = vmin.f32 %v1128, 6.0
      %v1161 = vmin.f32 %v1129, 6.0
      %v1162 = vmin.f32 %v1130, 6.0
      %v1163 = vmin.f32 %v1131, 6.0
      %v1164 = vmin.f32 %v1132, 6.0
      %v1165 = vmin.f32 %v1133, 6.0
      %v1166 = vmin.f32 %v1134, 6.0
      %v1167 = vmin.f32 %v1135, 6.0
      %v1168 = vmin.f32 %v1136, 6.0
      %v1169 = vmin.f32 %v1137, 6.0
      %v1170 = vmin.f32 %v1138, 6.0
      %v1171 = vmin.f32 %v1139, 6.0
      %v1172 = vmin.f32 %v1140, 6.0
      %v1173 = vmin.f32 %v1141, 6.0
      %v1174 = vmin.f32 %v1142, 6.0
      %v1175 = vmin.f32 %v1143, 6.0
      %v1176 = vmin.f32 %v1144, 6.0
      %v1177 = vmin.f32 %v1145, 6.0
      %v1178 = vmin.f32 %v1146, 6.0
      %v1179 = vmin.f32 %v1147, 6.0
      %v1180 = vmin.f32 %v1148, 6.0
      %v1181 = vmin.f32 %v1149, 6.0
      %v1182 = vmin.f32 %v1150, 6.0
      %v1183 = vmin.f32 %v1151, 6.0
      %v1184 = vmin.f32 %v1152, 6.0
      %vm1185 = vcmask 261120
      %1186 = vst.msk [vmem:[%s232] sm:$0xff] %vm1185, %v1153
      %1187 = vst.msk [vmem:[%s232 + $0x8] sm:$0xff] %vm1185, %v1154
      %1188 = vst.msk [vmem:[%s232 + $0x10] sm:$0xff] %vm1185, %v1155
      %1189 = vst.msk [vmem:[%s232 + $0x18] sm:$0xff] %vm1185, %v1156
      %1190 = vst.msk [vmem:[%s232 + $0x20] sm:$0xff] %vm1185, %v1157
      %1191 = vst.msk [vmem:[%s232 + $0x28] sm:$0xff] %vm1185, %v1158
      %1192 = vst.msk [vmem:[%s232 + $0x30] sm:$0xff] %vm1185, %v1159
      %1193 = vst.msk [vmem:[%s232 + $0x38] sm:$0xff] %vm1185, %v1160
      %1194 = vst.msk [vmem:[%s232 + $0x40] sm:$0xff] %vm1185, %v1161
      %1195 = vst.msk [vmem:[%s232 + $0x48] sm:$0xff] %vm1185, %v1162
      %1196 = vst.msk [vmem:[%s232 + $0x50] sm:$0xff] %vm1185, %v1163
      %1197 = vst.msk [vmem:[%s232 + $0x58] sm:$0xff] %vm1185, %v1164
      %1198 = vst.msk [vmem:[%s232 + $0x60] sm:$0xff] %vm1185, %v1165
      %1199 = vst.msk [vmem:[%s232 + $0x68] sm:$0xff] %vm1185, %v1166
      %1200 = vst.msk [vmem:[%s232 + $0x70] sm:$0xff] %vm1185, %v1167
      %1201 = vst.msk [vmem:[%s232 + $0x78] sm:$0xff] %vm1185, %v1168
      %1202 = vst.msk [vmem:[%s232 + $0x80] sm:$0xff] %vm1185, %v1169
      %1203 = vst.msk [vmem:[%s232 + $0x88] sm:$0xff] %vm1185, %v1170
      %1204 = vst.msk [vmem:[%s232 + $0x90] sm:$0xff] %vm1185, %v1171
      %1205 = vst.msk [vmem:[%s232 + $0x98] sm:$0xff] %vm1185, %v1172
      %1206 = vst.msk [vmem:[%s232 + $0xa0] sm:$0xff] %vm1185, %v1173
      %1207 = vst.msk [vmem:[%s232 + $0xa8] sm:$0xff] %vm1185, %v1174
      %1208 = vst.msk [vmem:[%s232 + $0xb0] sm:$0xff] %vm1185, %v1175
      %1209 = vst.msk [vmem:[%s232 + $0xb8] sm:$0xff] %vm1185, %v1176
      %1210 = vst.msk [vmem:[%s232 + $0xc0] sm:$0xff] %vm1185, %v1177
      %1211 = vst.msk [vmem:[%s232 + $0xc8] sm:$0xff] %vm1185, %v1178
      %1212 = vst.msk [vmem:[%s232 + $0xd0] sm:$0xff] %vm1185, %v1179
      %1213 = vst.msk [vmem:[%s232 + $0xd8] sm:$0xff] %vm1185, %v1180
      %1214 = vst.msk [vmem:[%s232 + $0xe0] sm:$0xff] %vm1185, %v1181
      %1215 = vst.msk [vmem:[%s232 + $0xe8] sm:$0xff] %vm1185, %v1182
      %1216 = vst.msk [vmem:[%s232 + $0xf0] sm:$0xff] %vm1185, %v1183
      %1217 = vst.msk [vmem:[%s232 + $0xf8] sm:$0xff] %vm1185, %v1184
      %p1218 = scmp.lt.s32.totalorder %s18, 1
      %s1219 = scalar_select %p1218, %s18, 1
      %p1220 = scmp.lt.s32.totalorder %s19, 0
      %s1221 = scalar_select %p1220, %s19, 0
      %s1222 = smul.addr %s1219, 32
      %s1223 = sadd.s32 %s1221, %s1222
      %s1224 = smul.addr %s1223, 8
      %s1225 = scalar_lea.vmem %s3, %s1224
      // Predicated region
      $region33: #{hourglass2d_forward.38} parent=31 // pred_check
        %p1226 = pneg %p126
      $region34: #{hourglass2d_forward.38} parent=31 // pred_check_branch
        %1228 = sbr.rel (%p1226) target = $region36
      $region35: #{hourglass2d_forward.38} parent=31 // pred_region
        _
      $region36: #{hourglass2d_forward.38} parent=31 // pred_fallthru
        _
    $region32: #{hourglass2d_forward.38} parent=5 // pred_fallthru
      _
    %p1229 = scmp.le.s32.totalorder 2, %s9
    // Predicated region
    $region37: #{hourglass2d_forward.38} parent=5 // pred_check
      %p1230 = pneg %p1229
    $region38: #{hourglass2d_forward.38} parent=5 // pred_check_branch
      %1232 = sbr.rel (%p1230) target = $region40
    $region39: #{hourglass2d_forward.38} parent=5 // pred_region
      %s1233 = ssub.s32 %s9, 2
      // Predicated region
      $region41: #{hourglass2d_forward.38} parent=39 // pred_check
        %p1234 = pneg %p132
      $region42: #{hourglass2d_forward.38} parent=39 // pred_check_branch
        %1236 = sbr.rel (%p1234) target = $region44
      $region43: #{hourglass2d_forward.38} parent=39 // pred_region
        %p1237 = scmp.lt.s32.totalorder %s20, 1
        %s1238 = scalar_select %p1237, %s20, 1
        %p1239 = scmp.lt.s32.totalorder %s21, 0
        %s1240 = scalar_select %p1239, %s21, 0
        %s1241 = smul.addr %s1238, 32
        %s1242 = sadd.s32 %s1240, %s1241
        %s1243 = smul.addr %s1242, 8
        %s1244 = scalar_lea.vmem %s3, %s1243
      $region44: #{hourglass2d_forward.38} parent=39 // pred_fallthru
        _
    $region40: #{hourglass2d_forward.38} parent=5 // pred_fallthru
      _
  $region6: #{hourglass2d_forward.38} parent=0 // loop_footer
    %s13 = sadd.s32 1, %s9
  $region7: #{hourglass2d_forward.38} parent=0 // loop_footer_branch
    %8 = sbr.rel target = $region3
  $region8: #{hourglass2d_forward.38} parent=0 // loop_exit
    _

</llo_original>
